<compile_context>
chip_gen: v6e
topology: v6e:2x2x1
jax: 0.10.0
libtpu: 0.0.40
codegen_flags: <defaults>
</compile_context>

<pallas_src>
import math
import functools

import jax
import jax.numpy as jnp
from jax.experimental import pallas as pl
from jax.experimental.pallas import tpu as pltpu


# ----------------------------- in-kernel helpers -----------------------------

def _layer_norm(x, g, b, eps=1e-6):
    # x: (S, H), g/b: (1, H)
    mu = jnp.mean(x, axis=-1, keepdims=True)
    xc = x - mu
    var = jnp.mean(xc * xc, axis=-1, keepdims=True)
    return xc * jax.lax.rsqrt(var + eps) * g + b


def _gelu(x):
    # TODO(synk): reference `gelu` is exact erf GELU; tanh approximation used here
    #             (erf has no guaranteed Mosaic lowering; EUP-friendly tanh instead).
    return 0.5 * x * (1.0 + jnp.tanh(0.7978845608028654 * (x + 0.044715 * x * x * x)))


def _softmax(x):
    m = jnp.max(x, axis=-1, keepdims=True)
    e = jnp.exp(x - m)
    return e * pl.reciprocal(jnp.sum(e, axis=-1, keepdims=True), approx=True)


# ----------------------------- fused Pallas kernel ----------------------------

def fused_encoder_kernel(x_ref, keybias_ref, maskrow_ref,
                         attn_ln_g_ref, attn_ln_b_ref,
                         wqh_ref, bqh_ref, wkh_ref, bkh_ref, wvh_ref, bvh_ref,
                         woh_ref, bo_ref,
                         ffn_ln_g_ref, ffn_ln_b_ref,
                         w1_ref, b1_ref, w2_ref, b2_ref,
                         fin_ln_g_ref, fin_ln_b_ref, sw_ref, sb_ref,
                         o_ref, *, num_layers, num_heads):
    x = x_ref[0].astype(jnp.float32)                       # (S, H), resident in VMEM
    S, H = x.shape
    hd = H // num_heads
    scale = 1.0 / math.sqrt(hd)
    key_bias = keybias_ref[0]                               # (1, S) additive key mask

    for l in range(num_layers):                             # unrolled: static weight indices
        # ---------------- multi-head self-attention + residual ----------------
        if l == 0:
            xn = x                                          # layer 0: no input LN
        else:
            xn = _layer_norm(x, attn_ln_g_ref[l], attn_ln_b_ref[l])

        attn = jnp.zeros((S, H), jnp.float32)
        for h in range(num_heads):                          # per-head weights pre-split on host
            q = jnp.dot(xn, wqh_ref[l, h], preferred_element_type=jnp.float32) + bqh_ref[l, h]
            k = jnp.dot(xn, wkh_ref[l, h], preferred_element_type=jnp.float32) + bkh_ref[l, h]
            v = jnp.dot(xn, wvh_ref[l, h], preferred_element_type=jnp.float32) + bvh_ref[l, h]
            s = jnp.dot(q, k.T, preferred_element_type=jnp.float32) * scale + key_bias  # (S, S)
            p = _softmax(s)
            ctx = jnp.dot(p, v, preferred_element_type=jnp.float32)                     # (S, hd)
            # fold the output projection per head -> no concat needed
            attn = attn + jnp.dot(ctx, woh_ref[l, h], preferred_element_type=jnp.float32)
        x = attn + bo_ref[l] + x                            # residual with raw input

        # ---------------- position-wise feed-forward + residual ---------------
        xn = _layer_norm(x, ffn_ln_g_ref[l], ffn_ln_b_ref[l])
        inter = _gelu(jnp.dot(xn, w1_ref[l], preferred_element_type=jnp.float32) + b1_ref[l])
        out = jnp.dot(inter, w2_ref[l], preferred_element_type=jnp.float32) + b2_ref[l]
        x = out + x

    # ------------- final LN -> linear(H->1) -> sigmoid -> * mask ---------------
    xn = _layer_norm(x, fin_ln_g_ref[...], fin_ln_b_ref[...])
    # score weight passed as a (1, H) row: produce lane-oriented (1, S) logits directly
    logits = jnp.dot(sw_ref[...], xn.T, preferred_element_type=jnp.float32) + sb_ref[...]
    o_ref[0] = (jax.nn.sigmoid(logits) * maskrow_ref[0]).astype(o_ref.dtype)


# --------------------------------- wrapper ------------------------------------

def _rep_spec(shape):
    """Full-array block, same block for every grid step (weights)."""
    zeros = (0,) * len(shape)
    return pl.BlockSpec(shape, lambda b: zeros)


def long_ext_transformer_encoder(params, top_vecs, sections, mask, extended_mask,
                                 *, num_heads):
    """Full forward pass.  Glue (embedding gather, PE add) is plain JAX; the
    entire transformer stack + scoring runs in one fused pallas_call."""
    B, S, H = top_vecs.shape
    L = params["wqh"].shape[0]
    maskf = mask.astype(jnp.float32)

    # ---- pre-encoder glue (one small fused XLA op + gather) ----
    x = top_vecs * maskf[:, :, None]
    x = x * math.sqrt(H) + params["pe"][:, :S, :]            # PositionalEncoding
    x = x + params["section_embedding"][sections]            # section embedding

    # additive key bias precomputed once (masked key => -1e9)
    key_bias = jnp.where(extended_mask < 0.0, -1e9, 0.0).astype(jnp.float32).reshape(B, 1, S)
    mask_row = maskf.reshape(B, 1, S)

    kernel = functools.partial(fused_encoder_kernel, num_layers=L, num_heads=num_heads)

    in_arrays = [
        x, key_bias, mask_row,
        params["attn_ln_g"], params["attn_ln_b"],
        params["wqh"], params["bqh"], params["wkh"], params["bkh"],
        params["wvh"], params["bvh"], params["woh"], params["bo"],
        params["ffn_ln_g"], params["ffn_ln_b"],
        params["w1"], params["b1"], params["w2"], params["b2"],
        params["final_ln_g"], params["final_ln_b"],
        params["score_w_row"], params["score_b"],
    ]
    in_specs = [
        pl.BlockSpec((1, S, H), lambda b: (b, 0, 0)),        # x
        pl.BlockSpec((1, 1, S), lambda b: (b, 0, 0)),        # key bias
        pl.BlockSpec((1, 1, S), lambda b: (b, 0, 0)),        # mask row
    ] + [_rep_spec(a.shape) for a in in_arrays[3:]]

    scores = pl.pallas_call(
        kernel,
        out_shape=jax.ShapeDtypeStruct((B, 1, S), top_vecs.dtype),
        grid=(B,),
        in_specs=in_specs,
        out_specs=pl.BlockSpec((1, 1, S), lambda b: (b, 0, 0)),
        compiler_params=pltpu.CompilerParams(dimension_semantics=("parallel",)),
    )(*in_arrays)

    return scores[:, 0, :]                                   # (B, S)


# ----------------------------- param construction ----------------------------

def make_params(key, *, hidden, ff, num_layers, num_heads, max_pos, section_size):
    hd = hidden // num_heads

    # sinusoidal positional encoding (same construction as the PyTorch module)
    position = jnp.arange(max_pos, dtype=jnp.float32)[:, None]
    div_term = jnp.exp(jnp.arange(0, hidden, 2, dtype=jnp.float32)
                       * -(math.log(10000.0) / hidden))
    pe = jnp.zeros((max_pos, hidden), jnp.float32)
    pe = pe.at[:, 0::2].set(jnp.sin(position * div_term))
    pe = pe.at[:, 1::2].set(jnp.cos(position * div_term))

    key, k_sec = jax.random.split(key)
    params = {
        "pe": pe[None],
        "section_embedding": jax.random.normal(
            k_sec, (section_size, hidden), jnp.float32) * 0.02,
    }

    def dense(k, fan_in, fan_out, scale=0.02):
        k1, k2 = jax.random.split(k)
        return (jax.random.normal(k1, (fan_in, fan_out), jnp.float32) * scale,
                jax.random.normal(k2, (1, fan_out), jnp.float32) * scale)

    acc = {name: [] for name in
           ("wqh", "bqh", "wkh", "bkh", "wvh", "bvh", "woh", "bo",
            "w1", "b1", "w2", "b2")}
    for _ in range(num_layers):
        key, kq, kk, kv, ko, k1, k2 = jax.random.split(key, 7)
        wq, bq = dense(kq, hidden, hidden)
        wk, bk = dense(kk, hidden, hidden)
        wv, bv = dense(kv, hidden, hidden)
        wo, bo = dense(ko, hidden, hidden)
        w1, b1 = dense(k1, hidden, ff)
        w2, b2 = dense(k2, ff, hidden)
        # Host-side per-head split of the projections: kernel never lane-slices
        # activations or concatenates heads.
        acc["wqh"].append(wq.reshape(hidden, num_heads, hd).transpose(1, 0, 2))
        acc["bqh"].append(bq.reshape(1, num_heads, hd).transpose(1, 0, 2))
        acc["wkh"].append(wk.reshape(hidden, num_heads, hd).transpose(1, 0, 2))
        acc["bkh"].append(bk.reshape(1, num_heads, hd).transpose(1, 0, 2))
        acc["wvh"].append(wv.reshape(hidden, num_heads, hd).transpose(1, 0, 2))
        acc["bvh"].append(bv.reshape(1, num_heads, hd).transpose(1, 0, 2))
        acc["woh"].append(wo.reshape(num_heads, hd, hidden))
        acc["bo"].append(bo)
        acc["w1"].append(w1); acc["b1"].append(b1)
        acc["w2"].append(w2); acc["b2"].append(b2)
    for name, arrs in acc.items():
        params[name] = jnp.stack(arrs, axis=0)               # leading L dim

    params["attn_ln_g"] = jnp.ones((num_layers, 1, hidden), jnp.float32)
    params["attn_ln_b"] = jnp.zeros((num_layers, 1, hidden), jnp.float32)
    params["ffn_ln_g"] = jnp.ones((num_layers, 1, hidden), jnp.float32)
    params["ffn_ln_b"] = jnp.zeros((num_layers, 1, hidden), jnp.float32)
    params["final_ln_g"] = jnp.ones((1, hidden), jnp.float32)
    params["final_ln_b"] = jnp.zeros((1, hidden), jnp.float32)

    key, ks = jax.random.split(key)
    sw, sb = dense(ks, hidden, 1)
    params["score_w_row"] = sw.T                              # (1, H) row form
    params["score_b"] = sb                                    # (1, 1)
    return params


# ------------------------------------ main ------------------------------------

if __name__ == "__main__":
    B, S, H, FF = 2, 8, 32, 64
    NUM_HEADS, NUM_LAYERS = 4, 2
    MAX_POS, SECTION_SIZE = 64, 4

    key = jax.random.PRNGKey(0)
    key, kp, kx = jax.random.split(key, 3)

    params = make_params(kp, hidden=H, ff=FF, num_layers=NUM_LAYERS,
                         num_heads=NUM_HEADS, max_pos=MAX_POS,
                         section_size=SECTION_SIZE)

    top_vecs = jax.random.normal(kx, (B, S, H), jnp.float32)
    sections = (jnp.arange(B * S, dtype=jnp.int32) % SECTION_SIZE).reshape(B, S)

    # mask: 1 = real token, 0 = padding (pad last two tokens of batch element 1)
    mask = jnp.ones((B, S), jnp.float32).at[1, 6:].set(0.0)
    # extended_mask: -10000 for padding, 0 local attention, +10000 global (token 0)
    extended_mask = (1.0 - mask) * -10000.0
    extended_mask = extended_mask.at[:, 0].set(10000.0)

    fwd = jax.jit(functools.partial(long_ext_transformer_encoder,
                                    num_heads=NUM_HEADS))
    sent_scores = fwd(params, top_vecs, sections, mask, extended_mask)
    jax.block_until_ready(sent_scores)

    assert sent_scores.shape == (B, S)
    assert bool(jnp.all(jnp.isfinite(sent_scores)))
    print("KERNEL_OK")
</pallas_src>

<mosaic_0001>
module attributes {stable_mosaic.version = 11 : i64} {
  func.func @fused_encoder_kernel(%arg0: i32, %arg1: memref<1x8x32xf32, #tpu.memory_space<vmem>>, %arg2: memref<1x1x8xf32, #tpu.memory_space<vmem>>, %arg3: memref<1x1x8xf32, #tpu.memory_space<vmem>>, %arg4: memref<2x1x32xf32, #tpu.memory_space<vmem>>, %arg5: memref<2x1x32xf32, #tpu.memory_space<vmem>>, %arg6: memref<2x4x32x8xf32, #tpu.memory_space<vmem>>, %arg7: memref<2x4x1x8xf32, #tpu.memory_space<vmem>>, %arg8: memref<2x4x32x8xf32, #tpu.memory_space<vmem>>, %arg9: memref<2x4x1x8xf32, #tpu.memory_space<vmem>>, %arg10: memref<2x4x32x8xf32, #tpu.memory_space<vmem>>, %arg11: memref<2x4x1x8xf32, #tpu.memory_space<vmem>>, %arg12: memref<2x4x8x32xf32, #tpu.memory_space<vmem>>, %arg13: memref<2x1x32xf32, #tpu.memory_space<vmem>>, %arg14: memref<2x1x32xf32, #tpu.memory_space<vmem>>, %arg15: memref<2x1x32xf32, #tpu.memory_space<vmem>>, %arg16: memref<2x32x64xf32, #tpu.memory_space<vmem>>, %arg17: memref<2x1x64xf32, #tpu.memory_space<vmem>>, %arg18: memref<2x64x32xf32, #tpu.memory_space<vmem>>, %arg19: memref<2x1x32xf32, #tpu.memory_space<vmem>>, %arg20: memref<1x32xf32, #tpu.memory_space<vmem>>, %arg21: memref<1x32xf32, #tpu.memory_space<vmem>>, %arg22: memref<1x32xf32, #tpu.memory_space<vmem>>, %arg23: memref<1x1xf32, #tpu.memory_space<vmem>>, %arg24: memref<1x1x8xf32, #tpu.memory_space<vmem>>) attributes {dimension_semantics = [#tpu.dimension_semantics<parallel>], iteration_bounds = array<i64: 2>, scalar_prefetch = 0 : i64, scratch_operands = 0 : i64, tpu.core_type = #tpu.core_type<tc>, window_params = [{transform_indices = @transform_0, window_bounds = array<i64: 1, 8, 32>}, {transform_indices = @transform_1, window_bounds = array<i64: 1, 1, 8>}, {transform_indices = @transform_2, window_bounds = array<i64: 1, 1, 8>}, {pipeline_mode = #tpu.pipeline_mode<synchronous>, transform_indices = @transform_3, window_bounds = array<i64: 2, 1, 32>}, {pipeline_mode = #tpu.pipeline_mode<synchronous>, transform_indices = @transform_4, window_bounds = array<i64: 2, 1, 32>}, {pipeline_mode = #tpu.pipeline_mode<synchronous>, transform_indices = @transform_5, window_bounds = array<i64: 2, 4, 32, 8>}, {pipeline_mode = #tpu.pipeline_mode<synchronous>, transform_indices = @transform_6, window_bounds = array<i64: 2, 4, 1, 8>}, {pipeline_mode = #tpu.pipeline_mode<synchronous>, transform_indices = @transform_7, window_bounds = array<i64: 2, 4, 32, 8>}, {pipeline_mode = #tpu.pipeline_mode<synchronous>, transform_indices = @transform_8, window_bounds = array<i64: 2, 4, 1, 8>}, {pipeline_mode = #tpu.pipeline_mode<synchronous>, transform_indices = @transform_9, window_bounds = array<i64: 2, 4, 32, 8>}, {pipeline_mode = #tpu.pipeline_mode<synchronous>, transform_indices = @transform_10, window_bounds = array<i64: 2, 4, 1, 8>}, {pipeline_mode = #tpu.pipeline_mode<synchronous>, transform_indices = @transform_11, window_bounds = array<i64: 2, 4, 8, 32>}, {pipeline_mode = #tpu.pipeline_mode<synchronous>, transform_indices = @transform_12, window_bounds = array<i64: 2, 1, 32>}, {pipeline_mode = #tpu.pipeline_mode<synchronous>, transform_indices = @transform_13, window_bounds = array<i64: 2, 1, 32>}, {pipeline_mode = #tpu.pipeline_mode<synchronous>, transform_indices = @transform_14, window_bounds = array<i64: 2, 1, 32>}, {pipeline_mode = #tpu.pipeline_mode<synchronous>, transform_indices = @transform_15, window_bounds = array<i64: 2, 32, 64>}, {pipeline_mode = #tpu.pipeline_mode<synchronous>, transform_indices = @transform_16, window_bounds = array<i64: 2, 1, 64>}, {pipeline_mode = #tpu.pipeline_mode<synchronous>, transform_indices = @transform_17, window_bounds = array<i64: 2, 64, 32>}, {pipeline_mode = #tpu.pipeline_mode<synchronous>, transform_indices = @transform_18, window_bounds = array<i64: 2, 1, 32>}, {pipeline_mode = #tpu.pipeline_mode<synchronous>, transform_indices = @transform_19, window_bounds = array<i64: 1, 32>}, {pipeline_mode = #tpu.pipeline_mode<synchronous>, transform_indices = @transform_20, window_bounds = array<i64: 1, 32>}, {pipeline_mode = #tpu.pipeline_mode<synchronous>, transform_indices = @transform_21, window_bounds = array<i64: 1, 32>}, {pipeline_mode = #tpu.pipeline_mode<synchronous>, transform_indices = @transform_22, window_bounds = array<i64: 1, 1>}, {transform_indices = @transform_23, window_bounds = array<i64: 1, 1, 8>}]} {
    %c0 = arith.constant 0 : index
    %c0_0 = arith.constant 0 : index
    %c0_1 = arith.constant 0 : index
    %0 = vector.load %arg1[%c0, %c0_0, %c0_1] : memref<1x8x32xf32, #tpu.memory_space<vmem>>, vector<1x8x32xf32>
    %1 = vector.shape_cast %0 : vector<1x8x32xf32> to vector<8x32xf32>
    %c0_2 = arith.constant 0 : index
    %c0_3 = arith.constant 0 : index
    %c0_4 = arith.constant 0 : index
    %2 = vector.load %arg2[%c0_2, %c0_3, %c0_4] : memref<1x1x8xf32, #tpu.memory_space<vmem>>, vector<1x1x8xf32>
    %3 = vector.shape_cast %2 : vector<1x1x8xf32> to vector<1x8xf32>
    %cst = arith.constant 0.000000e+00 : f32
    %4 = vector.broadcast %cst : f32 to vector<8x32xf32>
    %c0_5 = arith.constant 0 : index
    %c0_6 = arith.constant 0 : index
    %c0_7 = arith.constant 0 : index
    %c0_8 = arith.constant 0 : index
    %5 = vector.load %arg6[%c0_5, %c0_6, %c0_7, %c0_8] : memref<2x4x32x8xf32, #tpu.memory_space<vmem>>, vector<1x1x32x8xf32>
    %6 = vector.shape_cast %5 : vector<1x1x32x8xf32> to vector<32x8xf32>
    %cst_9 = arith.constant dense<0.000000e+00> : vector<8x8xf32>
    %7 = tpu.matmul %1, %6, %cst_9 {dimension_numbers = #tpu.dot_dimension_numbers<[1], [0], [0], [1], [0, 0, 1, 1], [], []>} : vector<8x32xf32>, vector<32x8xf32>, vector<8x8xf32> -> vector<8x8xf32>
    %c0_10 = arith.constant 0 : index
    %c0_11 = arith.constant 0 : index
    %c0_12 = arith.constant 0 : index
    %c0_13 = arith.constant 0 : index
    %8 = vector.load %arg7[%c0_10, %c0_11, %c0_12, %c0_13] : memref<2x4x1x8xf32, #tpu.memory_space<vmem>>, vector<1x1x1x8xf32>
    %9 = vector.shape_cast %8 : vector<1x1x1x8xf32> to vector<1x8xf32>
    %10 = vector.broadcast %9 : vector<1x8xf32> to vector<8x8xf32>
    %11 = arith.addf %7, %10 : vector<8x8xf32>
    %c0_14 = arith.constant 0 : index
    %c0_15 = arith.constant 0 : index
    %c0_16 = arith.constant 0 : index
    %c0_17 = arith.constant 0 : index
    %12 = vector.load %arg8[%c0_14, %c0_15, %c0_16, %c0_17] : memref<2x4x32x8xf32, #tpu.memory_space<vmem>>, vector<1x1x32x8xf32>
    %13 = vector.shape_cast %12 : vector<1x1x32x8xf32> to vector<32x8xf32>
    %cst_18 = arith.constant dense<0.000000e+00> : vector<8x8xf32>
    %14 = tpu.matmul %1, %13, %cst_18 {dimension_numbers = #tpu.dot_dimension_numbers<[1], [0], [0], [1], [0, 0, 1, 1], [], []>} : vector<8x32xf32>, vector<32x8xf32>, vector<8x8xf32> -> vector<8x8xf32>
    %c0_19 = arith.constant 0 : index
    %c0_20 = arith.constant 0 : index
    %c0_21 = arith.constant 0 : index
    %c0_22 = arith.constant 0 : index
    %15 = vector.load %arg9[%c0_19, %c0_20, %c0_21, %c0_22] : memref<2x4x1x8xf32, #tpu.memory_space<vmem>>, vector<1x1x1x8xf32>
    %16 = vector.shape_cast %15 : vector<1x1x1x8xf32> to vector<1x8xf32>
    %17 = vector.broadcast %16 : vector<1x8xf32> to vector<8x8xf32>
    %18 = arith.addf %14, %17 : vector<8x8xf32>
    %c0_23 = arith.constant 0 : index
    %c0_24 = arith.constant 0 : index
    %c0_25 = arith.constant 0 : index
    %c0_26 = arith.constant 0 : index
    %19 = vector.load %arg10[%c0_23, %c0_24, %c0_25, %c0_26] : memref<2x4x32x8xf32, #tpu.memory_space<vmem>>, vector<1x1x32x8xf32>
    %20 = vector.shape_cast %19 : vector<1x1x32x8xf32> to vector<32x8xf32>
    %cst_27 = arith.constant dense<0.000000e+00> : vector<8x8xf32>
    %21 = tpu.matmul %1, %20, %cst_27 {dimension_numbers = #tpu.dot_dimension_numbers<[1], [0], [0], [1], [0, 0, 1, 1], [], []>} : vector<8x32xf32>, vector<32x8xf32>, vector<8x8xf32> -> vector<8x8xf32>
    %c0_28 = arith.constant 0 : index
    %c0_29 = arith.constant 0 : index
    %c0_30 = arith.constant 0 : index
    %c0_31 = arith.constant 0 : index
    %22 = vector.load %arg11[%c0_28, %c0_29, %c0_30, %c0_31] : memref<2x4x1x8xf32, #tpu.memory_space<vmem>>, vector<1x1x1x8xf32>
    %23 = vector.shape_cast %22 : vector<1x1x1x8xf32> to vector<1x8xf32>
    %24 = vector.broadcast %23 : vector<1x8xf32> to vector<8x8xf32>
    %25 = arith.addf %21, %24 : vector<8x8xf32>
    %26 = tpu.transpose %18, [1, 0] : vector<8x8xf32> -> vector<8x8xf32>
    %cst_32 = arith.constant dense<0.000000e+00> : vector<8x8xf32>
    %27 = tpu.matmul %11, %26, %cst_32 {dimension_numbers = #tpu.dot_dimension_numbers<[1], [0], [0], [1], [0, 0, 1, 1], [], []>} : vector<8x8xf32>, vector<8x8xf32>, vector<8x8xf32> -> vector<8x8xf32>
    %cst_33 = arith.constant 0.353553385 : f32
    %28 = vector.broadcast %cst_33 : f32 to vector<8x8xf32>
    %29 = arith.mulf %27, %28 : vector<8x8xf32>
    %30 = vector.broadcast %3 : vector<1x8xf32> to vector<8x8xf32>
    %31 = arith.addf %29, %30 : vector<8x8xf32>
    %cst_34 = arith.constant dense<0xFF800000> : vector<8xf32>
    %32 = vector.multi_reduction <maximumf>, %31, %cst_34 [1] : vector<8x8xf32> to vector<8xf32>
    %33 = vector.shape_cast %32 : vector<8xf32> to vector<8x1xf32>
    %34 = vector.broadcast %33 : vector<8x1xf32> to vector<8x8xf32>
    %35 = arith.subf %31, %34 : vector<8x8xf32>
    %36 = math.exp %35 : vector<8x8xf32>
    %cst_35 = arith.constant dense<0.000000e+00> : vector<8xf32>
    %37 = vector.multi_reduction <add>, %36, %cst_35 [1] : vector<8x8xf32> to vector<8xf32>
    %38 = vector.shape_cast %37 : vector<8xf32> to vector<8x1xf32>
    %39 = tpu.reciprocal %38 {approx = true} : vector<8x1xf32> -> vector<8x1xf32>
    %40 = vector.broadcast %39 : vector<8x1xf32> to vector<8x8xf32>
    %41 = arith.mulf %36, %40 : vector<8x8xf32>
    %cst_36 = arith.constant dense<0.000000e+00> : vector<8x8xf32>
    %42 = tpu.matmul %41, %25, %cst_36 {dimension_numbers = #tpu.dot_dimension_numbers<[1], [0], [0], [1], [0, 0, 1, 1], [], []>} : vector<8x8xf32>, vector<8x8xf32>, vector<8x8xf32> -> vector<8x8xf32>
    %c0_37 = arith.constant 0 : index
    %c0_38 = arith.constant 0 : index
    %c0_39 = arith.constant 0 : index
    %c0_40 = arith.constant 0 : index
    %43 = vector.load %arg12[%c0_37, %c0_38, %c0_39, %c0_40] : memref<2x4x8x32xf32, #tpu.memory_space<vmem>>, vector<1x1x8x32xf32>
    %44 = vector.shape_cast %43 : vector<1x1x8x32xf32> to vector<8x32xf32>
    %cst_41 = arith.constant dense<0.000000e+00> : vector<8x32xf32>
    %45 = tpu.matmul %42, %44, %cst_41 {dimension_numbers = #tpu.dot_dimension_numbers<[1], [0], [0], [1], [0, 0, 1, 1], [], []>} : vector<8x8xf32>, vector<8x32xf32>, vector<8x32xf32> -> vector<8x32xf32>
    %46 = arith.addf %4, %45 : vector<8x32xf32>
    %c0_42 = arith.constant 0 : index
    %c1 = arith.constant 1 : index
    %c0_43 = arith.constant 0 : index
    %c0_44 = arith.constant 0 : index
    %47 = vector.load %arg6[%c0_42, %c1, %c0_43, %c0_44] : memref<2x4x32x8xf32, #tpu.memory_space<vmem>>, vector<1x1x32x8xf32>
    %48 = vector.shape_cast %47 : vector<1x1x32x8xf32> to vector<32x8xf32>
    %cst_45 = arith.constant dense<0.000000e+00> : vector<8x8xf32>
    %49 = tpu.matmul %1, %48, %cst_45 {dimension_numbers = #tpu.dot_dimension_numbers<[1], [0], [0], [1], [0, 0, 1, 1], [], []>} : vector<8x32xf32>, vector<32x8xf32>, vector<8x8xf32> -> vector<8x8xf32>
    %c0_46 = arith.constant 0 : index
    %c1_47 = arith.constant 1 : index
    %c0_48 = arith.constant 0 : index
    %c0_49 = arith.constant 0 : index
    %50 = vector.load %arg7[%c0_46, %c1_47, %c0_48, %c0_49] : memref<2x4x1x8xf32, #tpu.memory_space<vmem>>, vector<1x1x1x8xf32>
    %51 = vector.shape_cast %50 : vector<1x1x1x8xf32> to vector<1x8xf32>
    %52 = vector.broadcast %51 : vector<1x8xf32> to vector<8x8xf32>
    %53 = arith.addf %49, %52 : vector<8x8xf32>
    %c0_50 = arith.constant 0 : index
    %c1_51 = arith.constant 1 : index
    %c0_52 = arith.constant 0 : index
    %c0_53 = arith.constant 0 : index
    %54 = vector.load %arg8[%c0_50, %c1_51, %c0_52, %c0_53] : memref<2x4x32x8xf32, #tpu.memory_space<vmem>>, vector<1x1x32x8xf32>
    %55 = vector.shape_cast %54 : vector<1x1x32x8xf32> to vector<32x8xf32>
    %cst_54 = arith.constant dense<0.000000e+00> : vector<8x8xf32>
    %56 = tpu.matmul %1, %55, %cst_54 {dimension_numbers = #tpu.dot_dimension_numbers<[1], [0], [0], [1], [0, 0, 1, 1], [], []>} : vector<8x32xf32>, vector<32x8xf32>, vector<8x8xf32> -> vector<8x8xf32>
    %c0_55 = arith.constant 0 : index
    %c1_56 = arith.constant 1 : index
    %c0_57 = arith.constant 0 : index
    %c0_58 = arith.constant 0 : index
    %57 = vector.load %arg9[%c0_55, %c1_56, %c0_57, %c0_58] : memref<2x4x1x8xf32, #tpu.memory_space<vmem>>, vector<1x1x1x8xf32>
    %58 = vector.shape_cast %57 : vector<1x1x1x8xf32> to vector<1x8xf32>
    %59 = vector.broadcast %58 : vector<1x8xf32> to vector<8x8xf32>
    %60 = arith.addf %56, %59 : vector<8x8xf32>
    %c0_59 = arith.constant 0 : index
    %c1_60 = arith.constant 1 : index
    %c0_61 = arith.constant 0 : index
    %c0_62 = arith.constant 0 : index
    %61 = vector.load %arg10[%c0_59, %c1_60, %c0_61, %c0_62] : memref<2x4x32x8xf32, #tpu.memory_space<vmem>>, vector<1x1x32x8xf32>
    %62 = vector.shape_cast %61 : vector<1x1x32x8xf32> to vector<32x8xf32>
    %cst_63 = arith.constant dense<0.000000e+00> : vector<8x8xf32>
    %63 = tpu.matmul %1, %62, %cst_63 {dimension_numbers = #tpu.dot_dimension_numbers<[1], [0], [0], [1], [0, 0, 1, 1], [], []>} : vector<8x32xf32>, vector<32x8xf32>, vector<8x8xf32> -> vector<8x8xf32>
    %c0_64 = arith.constant 0 : index
    %c1_65 = arith.constant 1 : index
    %c0_66 = arith.constant 0 : index
    %c0_67 = arith.constant 0 : index
    %64 = vector.load %arg11[%c0_64, %c1_65, %c0_66, %c0_67] : memref<2x4x1x8xf32, #tpu.memory_space<vmem>>, vector<1x1x1x8xf32>
    %65 = vector.shape_cast %64 : vector<1x1x1x8xf32> to vector<1x8xf32>
    %66 = vector.broadcast %65 : vector<1x8xf32> to vector<8x8xf32>
    %67 = arith.addf %63, %66 : vector<8x8xf32>
    %68 = tpu.transpose %60, [1, 0] : vector<8x8xf32> -> vector<8x8xf32>
    %cst_68 = arith.constant dense<0.000000e+00> : vector<8x8xf32>
    %69 = tpu.matmul %53, %68, %cst_68 {dimension_numbers = #tpu.dot_dimension_numbers<[1], [0], [0], [1], [0, 0, 1, 1], [], []>} : vector<8x8xf32>, vector<8x8xf32>, vector<8x8xf32> -> vector<8x8xf32>
    %cst_69 = arith.constant 0.353553385 : f32
    %70 = vector.broadcast %cst_69 : f32 to vector<8x8xf32>
    %71 = arith.mulf %69, %70 : vector<8x8xf32>
    %72 = vector.broadcast %3 : vector<1x8xf32> to vector<8x8xf32>
    %73 = arith.addf %71, %72 : vector<8x8xf32>
    %cst_70 = arith.constant dense<0xFF800000> : vector<8xf32>
    %74 = vector.multi_reduction <maximumf>, %73, %cst_70 [1] : vector<8x8xf32> to vector<8xf32>
    %75 = vector.shape_cast %74 : vector<8xf32> to vector<8x1xf32>
    %76 = vector.broadcast %75 : vector<8x1xf32> to vector<8x8xf32>
    %77 = arith.subf %73, %76 : vector<8x8xf32>
    %78 = math.exp %77 : vector<8x8xf32>
    %cst_71 = arith.constant dense<0.000000e+00> : vector<8xf32>
    %79 = vector.multi_reduction <add>, %78, %cst_71 [1] : vector<8x8xf32> to vector<8xf32>
    %80 = vector.shape_cast %79 : vector<8xf32> to vector<8x1xf32>
    %81 = tpu.reciprocal %80 {approx = true} : vector<8x1xf32> -> vector<8x1xf32>
    %82 = vector.broadcast %81 : vector<8x1xf32> to vector<8x8xf32>
    %83 = arith.mulf %78, %82 : vector<8x8xf32>
    %cst_72 = arith.constant dense<0.000000e+00> : vector<8x8xf32>
    %84 = tpu.matmul %83, %67, %cst_72 {dimension_numbers = #tpu.dot_dimension_numbers<[1], [0], [0], [1], [0, 0, 1, 1], [], []>} : vector<8x8xf32>, vector<8x8xf32>, vector<8x8xf32> -> vector<8x8xf32>
    %c0_73 = arith.constant 0 : index
    %c1_74 = arith.constant 1 : index
    %c0_75 = arith.constant 0 : index
    %c0_76 = arith.constant 0 : index
    %85 = vector.load %arg12[%c0_73, %c1_74, %c0_75, %c0_76] : memref<2x4x8x32xf32, #tpu.memory_space<vmem>>, vector<1x1x8x32xf32>
    %86 = vector.shape_cast %85 : vector<1x1x8x32xf32> to vector<8x32xf32>
    %cst_77 = arith.constant dense<0.000000e+00> : vector<8x32xf32>
    %87 = tpu.matmul %84, %86, %cst_77 {dimension_numbers = #tpu.dot_dimension_numbers<[1], [0], [0], [1], [0, 0, 1, 1], [], []>} : vector<8x8xf32>, vector<8x32xf32>, vector<8x32xf32> -> vector<8x32xf32>
    %88 = arith.addf %46, %87 : vector<8x32xf32>
    %c0_78 = arith.constant 0 : index
    %c2 = arith.constant 2 : index
    %c0_79 = arith.constant 0 : index
    %c0_80 = arith.constant 0 : index
    %89 = vector.load %arg6[%c0_78, %c2, %c0_79, %c0_80] : memref<2x4x32x8xf32, #tpu.memory_space<vmem>>, vector<1x1x32x8xf32>
    %90 = vector.shape_cast %89 : vector<1x1x32x8xf32> to vector<32x8xf32>
    %cst_81 = arith.constant dense<0.000000e+00> : vector<8x8xf32>
    %91 = tpu.matmul %1, %90, %cst_81 {dimension_numbers = #tpu.dot_dimension_numbers<[1], [0], [0], [1], [0, 0, 1, 1], [], []>} : vector<8x32xf32>, vector<32x8xf32>, vector<8x8xf32> -> vector<8x8xf32>
    %c0_82 = arith.constant 0 : index
    %c2_83 = arith.constant 2 : index
    %c0_84 = arith.constant 0 : index
    %c0_85 = arith.constant 0 : index
    %92 = vector.load %arg7[%c0_82, %c2_83, %c0_84, %c0_85] : memref<2x4x1x8xf32, #tpu.memory_space<vmem>>, vector<1x1x1x8xf32>
    %93 = vector.shape_cast %92 : vector<1x1x1x8xf32> to vector<1x8xf32>
    %94 = vector.broadcast %93 : vector<1x8xf32> to vector<8x8xf32>
    %95 = arith.addf %91, %94 : vector<8x8xf32>
    %c0_86 = arith.constant 0 : index
    %c2_87 = arith.constant 2 : index
    %c0_88 = arith.constant 0 : index
    %c0_89 = arith.constant 0 : index
    %96 = vector.load %arg8[%c0_86, %c2_87, %c0_88, %c0_89] : memref<2x4x32x8xf32, #tpu.memory_space<vmem>>, vector<1x1x32x8xf32>
    %97 = vector.shape_cast %96 : vector<1x1x32x8xf32> to vector<32x8xf32>
    %cst_90 = arith.constant dense<0.000000e+00> : vector<8x8xf32>
    %98 = tpu.matmul %1, %97, %cst_90 {dimension_numbers = #tpu.dot_dimension_numbers<[1], [0], [0], [1], [0, 0, 1, 1], [], []>} : vector<8x32xf32>, vector<32x8xf32>, vector<8x8xf32> -> vector<8x8xf32>
    %c0_91 = arith.constant 0 : index
    %c2_92 = arith.constant 2 : index
    %c0_93 = arith.constant 0 : index
    %c0_94 = arith.constant 0 : index
    %99 = vector.load %arg9[%c0_91, %c2_92, %c0_93, %c0_94] : memref<2x4x1x8xf32, #tpu.memory_space<vmem>>, vector<1x1x1x8xf32>
    %100 = vector.shape_cast %99 : vector<1x1x1x8xf32> to vector<1x8xf32>
    %101 = vector.broadcast %100 : vector<1x8xf32> to vector<8x8xf32>
    %102 = arith.addf %98, %101 : vector<8x8xf32>
    %c0_95 = arith.constant 0 : index
    %c2_96 = arith.constant 2 : index
    %c0_97 = arith.constant 0 : index
    %c0_98 = arith.constant 0 : index
    %103 = vector.load %arg10[%c0_95, %c2_96, %c0_97, %c0_98] : memref<2x4x32x8xf32, #tpu.memory_space<vmem>>, vector<1x1x32x8xf32>
    %104 = vector.shape_cast %103 : vector<1x1x32x8xf32> to vector<32x8xf32>
    %cst_99 = arith.constant dense<0.000000e+00> : vector<8x8xf32>
    %105 = tpu.matmul %1, %104, %cst_99 {dimension_numbers = #tpu.dot_dimension_numbers<[1], [0], [0], [1], [0, 0, 1, 1], [], []>} : vector<8x32xf32>, vector<32x8xf32>, vector<8x8xf32> -> vector<8x8xf32>
    %c0_100 = arith.constant 0 : index
    %c2_101 = arith.constant 2 : index
    %c0_102 = arith.constant 0 : index
    %c0_103 = arith.constant 0 : index
    %106 = vector.load %arg11[%c0_100, %c2_101, %c0_102, %c0_103] : memref<2x4x1x8xf32, #tpu.memory_space<vmem>>, vector<1x1x1x8xf32>
    %107 = vector.shape_cast %106 : vector<1x1x1x8xf32> to vector<1x8xf32>
    %108 = vector.broadcast %107 : vector<1x8xf32> to vector<8x8xf32>
    %109 = arith.addf %105, %108 : vector<8x8xf32>
    %110 = tpu.transpose %102, [1, 0] : vector<8x8xf32> -> vector<8x8xf32>
    %cst_104 = arith.constant dense<0.000000e+00> : vector<8x8xf32>
    %111 = tpu.matmul %95, %110, %cst_104 {dimension_numbers = #tpu.dot_dimension_numbers<[1], [0], [0], [1], [0, 0, 1, 1], [], []>} : vector<8x8xf32>, vector<8x8xf32>, vector<8x8xf32> -> vector<8x8xf32>
    %cst_105 = arith.constant 0.353553385 : f32
    %112 = vector.broadcast %cst_105 : f32 to vector<8x8xf32>
    %113 = arith.mulf %111, %112 : vector<8x8xf32>
    %114 = vector.broadcast %3 : vector<1x8xf32> to vector<8x8xf32>
    %115 = arith.addf %113, %114 : vector<8x8xf32>
    %cst_106 = arith.constant dense<0xFF800000> : vector<8xf32>
    %116 = vector.multi_reduction <maximumf>, %115, %cst_106 [1] : vector<8x8xf32> to vector<8xf32>
    %117 = vector.shape_cast %116 : vector<8xf32> to vector<8x1xf32>
    %118 = vector.broadcast %117 : vector<8x1xf32> to vector<8x8xf32>
    %119 = arith.subf %115, %118 : vector<8x8xf32>
    %120 = math.exp %119 : vector<8x8xf32>
    %cst_107 = arith.constant dense<0.000000e+00> : vector<8xf32>
    %121 = vector.multi_reduction <add>, %120, %cst_107 [1] : vector<8x8xf32> to vector<8xf32>
    %122 = vector.shape_cast %121 : vector<8xf32> to vector<8x1xf32>
    %123 = tpu.reciprocal %122 {approx = true} : vector<8x1xf32> -> vector<8x1xf32>
    %124 = vector.broadcast %123 : vector<8x1xf32> to vector<8x8xf32>
    %125 = arith.mulf %120, %124 : vector<8x8xf32>
    %cst_108 = arith.constant dense<0.000000e+00> : vector<8x8xf32>
    %126 = tpu.matmul %125, %109, %cst_108 {dimension_numbers = #tpu.dot_dimension_numbers<[1], [0], [0], [1], [0, 0, 1, 1], [], []>} : vector<8x8xf32>, vector<8x8xf32>, vector<8x8xf32> -> vector<8x8xf32>
    %c0_109 = arith.constant 0 : index
    %c2_110 = arith.constant 2 : index
    %c0_111 = arith.constant 0 : index
    %c0_112 = arith.constant 0 : index
    %127 = vector.load %arg12[%c0_109, %c2_110, %c0_111, %c0_112] : memref<2x4x8x32xf32, #tpu.memory_space<vmem>>, vector<1x1x8x32xf32>
    %128 = vector.shape_cast %127 : vector<1x1x8x32xf32> to vector<8x32xf32>
    %cst_113 = arith.constant dense<0.000000e+00> : vector<8x32xf32>
    %129 = tpu.matmul %126, %128, %cst_113 {dimension_numbers = #tpu.dot_dimension_numbers<[1], [0], [0], [1], [0, 0, 1, 1], [], []>} : vector<8x8xf32>, vector<8x32xf32>, vector<8x32xf32> -> vector<8x32xf32>
    %130 = arith.addf %88, %129 : vector<8x32xf32>
    %c0_114 = arith.constant 0 : index
    %c3 = arith.constant 3 : index
    %c0_115 = arith.constant 0 : index
    %c0_116 = arith.constant 0 : index
    %131 = vector.load %arg6[%c0_114, %c3, %c0_115, %c0_116] : memref<2x4x32x8xf32, #tpu.memory_space<vmem>>, vector<1x1x32x8xf32>
    %132 = vector.shape_cast %131 : vector<1x1x32x8xf32> to vector<32x8xf32>
    %cst_117 = arith.constant dense<0.000000e+00> : vector<8x8xf32>
    %133 = tpu.matmul %1, %132, %cst_117 {dimension_numbers = #tpu.dot_dimension_numbers<[1], [0], [0], [1], [0, 0, 1, 1], [], []>} : vector<8x32xf32>, vector<32x8xf32>, vector<8x8xf32> -> vector<8x8xf32>
    %c0_118 = arith.constant 0 : index
    %c3_119 = arith.constant 3 : index
    %c0_120 = arith.constant 0 : index
    %c0_121 = arith.constant 0 : index
    %134 = vector.load %arg7[%c0_118, %c3_119, %c0_120, %c0_121] : memref<2x4x1x8xf32, #tpu.memory_space<vmem>>, vector<1x1x1x8xf32>
    %135 = vector.shape_cast %134 : vector<1x1x1x8xf32> to vector<1x8xf32>
    %136 = vector.broadcast %135 : vector<1x8xf32> to vector<8x8xf32>
    %137 = arith.addf %133, %136 : vector<8x8xf32>
    %c0_122 = arith.constant 0 : index
    %c3_123 = arith.constant 3 : index
    %c0_124 = arith.constant 0 : index
    %c0_125 = arith.constant 0 : index
    %138 = vector.load %arg8[%c0_122, %c3_123, %c0_124, %c0_125] : memref<2x4x32x8xf32, #tpu.memory_space<vmem>>, vector<1x1x32x8xf32>
    %139 = vector.shape_cast %138 : vector<1x1x32x8xf32> to vector<32x8xf32>
    %cst_126 = arith.constant dense<0.000000e+00> : vector<8x8xf32>
    %140 = tpu.matmul %1, %139, %cst_126 {dimension_numbers = #tpu.dot_dimension_numbers<[1], [0], [0], [1], [0, 0, 1, 1], [], []>} : vector<8x32xf32>, vector<32x8xf32>, vector<8x8xf32> -> vector<8x8xf32>
    %c0_127 = arith.constant 0 : index
    %c3_128 = arith.constant 3 : index
    %c0_129 = arith.constant 0 : index
    %c0_130 = arith.constant 0 : index
    %141 = vector.load %arg9[%c0_127, %c3_128, %c0_129, %c0_130] : memref<2x4x1x8xf32, #tpu.memory_space<vmem>>, vector<1x1x1x8xf32>
    %142 = vector.shape_cast %141 : vector<1x1x1x8xf32> to vector<1x8xf32>
    %143 = vector.broadcast %142 : vector<1x8xf32> to vector<8x8xf32>
    %144 = arith.addf %140, %143 : vector<8x8xf32>
    %c0_131 = arith.constant 0 : index
    %c3_132 = arith.constant 3 : index
    %c0_133 = arith.constant 0 : index
    %c0_134 = arith.constant 0 : index
    %145 = vector.load %arg10[%c0_131, %c3_132, %c0_133, %c0_134] : memref<2x4x32x8xf32, #tpu.memory_space<vmem>>, vector<1x1x32x8xf32>
    %146 = vector.shape_cast %145 : vector<1x1x32x8xf32> to vector<32x8xf32>
    %cst_135 = arith.constant dense<0.000000e+00> : vector<8x8xf32>
    %147 = tpu.matmul %1, %146, %cst_135 {dimension_numbers = #tpu.dot_dimension_numbers<[1], [0], [0], [1], [0, 0, 1, 1], [], []>} : vector<8x32xf32>, vector<32x8xf32>, vector<8x8xf32> -> vector<8x8xf32>
    %c0_136 = arith.constant 0 : index
    %c3_137 = arith.constant 3 : index
    %c0_138 = arith.constant 0 : index
    %c0_139 = arith.constant 0 : index
    %148 = vector.load %arg11[%c0_136, %c3_137, %c0_138, %c0_139] : memref<2x4x1x8xf32, #tpu.memory_space<vmem>>, vector<1x1x1x8xf32>
    %149 = vector.shape_cast %148 : vector<1x1x1x8xf32> to vector<1x8xf32>
    %150 = vector.broadcast %149 : vector<1x8xf32> to vector<8x8xf32>
    %151 = arith.addf %147, %150 : vector<8x8xf32>
    %152 = tpu.transpose %144, [1, 0] : vector<8x8xf32> -> vector<8x8xf32>
    %cst_140 = arith.constant dense<0.000000e+00> : vector<8x8xf32>
    %153 = tpu.matmul %137, %152, %cst_140 {dimension_numbers = #tpu.dot_dimension_numbers<[1], [0], [0], [1], [0, 0, 1, 1], [], []>} : vector<8x8xf32>, vector<8x8xf32>, vector<8x8xf32> -> vector<8x8xf32>
    %cst_141 = arith.constant 0.353553385 : f32
    %154 = vector.broadcast %cst_141 : f32 to vector<8x8xf32>
    %155 = arith.mulf %153, %154 : vector<8x8xf32>
    %156 = vector.broadcast %3 : vector<1x8xf32> to vector<8x8xf32>
    %157 = arith.addf %155, %156 : vector<8x8xf32>
    %cst_142 = arith.constant dense<0xFF800000> : vector<8xf32>
    %158 = vector.multi_reduction <maximumf>, %157, %cst_142 [1] : vector<8x8xf32> to vector<8xf32>
    %159 = vector.shape_cast %158 : vector<8xf32> to vector<8x1xf32>
    %160 = vector.broadcast %159 : vector<8x1xf32> to vector<8x8xf32>
    %161 = arith.subf %157, %160 : vector<8x8xf32>
    %162 = math.exp %161 : vector<8x8xf32>
    %cst_143 = arith.constant dense<0.000000e+00> : vector<8xf32>
    %163 = vector.multi_reduction <add>, %162, %cst_143 [1] : vector<8x8xf32> to vector<8xf32>
    %164 = vector.shape_cast %163 : vector<8xf32> to vector<8x1xf32>
    %165 = tpu.reciprocal %164 {approx = true} : vector<8x1xf32> -> vector<8x1xf32>
    %166 = vector.broadcast %165 : vector<8x1xf32> to vector<8x8xf32>
    %167 = arith.mulf %162, %166 : vector<8x8xf32>
    %cst_144 = arith.constant dense<0.000000e+00> : vector<8x8xf32>
    %168 = tpu.matmul %167, %151, %cst_144 {dimension_numbers = #tpu.dot_dimension_numbers<[1], [0], [0], [1], [0, 0, 1, 1], [], []>} : vector<8x8xf32>, vector<8x8xf32>, vector<8x8xf32> -> vector<8x8xf32>
    %c0_145 = arith.constant 0 : index
    %c3_146 = arith.constant 3 : index
    %c0_147 = arith.constant 0 : index
    %c0_148 = arith.constant 0 : index
    %169 = vector.load %arg12[%c0_145, %c3_146, %c0_147, %c0_148] : memref<2x4x8x32xf32, #tpu.memory_space<vmem>>, vector<1x1x8x32xf32>
    %170 = vector.shape_cast %169 : vector<1x1x8x32xf32> to vector<8x32xf32>
    %cst_149 = arith.constant dense<0.000000e+00> : vector<8x32xf32>
    %171 = tpu.matmul %168, %170, %cst_149 {dimension_numbers = #tpu.dot_dimension_numbers<[1], [0], [0], [1], [0, 0, 1, 1], [], []>} : vector<8x8xf32>, vector<8x32xf32>, vector<8x32xf32> -> vector<8x32xf32>
    %172 = arith.addf %130, %171 : vector<8x32xf32>
    %c0_150 = arith.constant 0 : index
    %c0_151 = arith.constant 0 : index
    %c0_152 = arith.constant 0 : index
    %173 = vector.load %arg13[%c0_150, %c0_151, %c0_152] : memref<2x1x32xf32, #tpu.memory_space<vmem>>, vector<1x1x32xf32>
    %174 = vector.shape_cast %173 : vector<1x1x32xf32> to vector<1x32xf32>
    %175 = vector.broadcast %174 : vector<1x32xf32> to vector<8x32xf32>
    %176 = arith.addf %172, %175 : vector<8x32xf32>
    %177 = arith.addf %176, %1 : vector<8x32xf32>
    %c0_153 = arith.constant 0 : index
    %c0_154 = arith.constant 0 : index
    %c0_155 = arith.constant 0 : index
    %178 = vector.load %arg14[%c0_153, %c0_154, %c0_155] : memref<2x1x32xf32, #tpu.memory_space<vmem>>, vector<1x1x32xf32>
    %179 = vector.shape_cast %178 : vector<1x1x32xf32> to vector<1x32xf32>
    %c0_156 = arith.constant 0 : index
    %c0_157 = arith.constant 0 : index
    %c0_158 = arith.constant 0 : index
    %180 = vector.load %arg15[%c0_156, %c0_157, %c0_158] : memref<2x1x32xf32, #tpu.memory_space<vmem>>, vector<1x1x32xf32>
    %181 = vector.shape_cast %180 : vector<1x1x32xf32> to vector<1x32xf32>
    %cst_159 = arith.constant dense<0.000000e+00> : vector<8xf32>
    %182 = vector.multi_reduction <add>, %177, %cst_159 [1] : vector<8x32xf32> to vector<8xf32>
    %183 = vector.shape_cast %182 : vector<8xf32> to vector<8x1xf32>
    %cst_160 = arith.constant 3.200000e+01 : f32
    %184 = vector.broadcast %cst_160 : f32 to vector<8x1xf32>
    %185 = arith.divf %183, %184 : vector<8x1xf32>
    %186 = vector.broadcast %185 : vector<8x1xf32> to vector<8x32xf32>
    %187 = arith.subf %177, %186 : vector<8x32xf32>
    %188 = arith.mulf %187, %187 : vector<8x32xf32>
    %cst_161 = arith.constant dense<0.000000e+00> : vector<8xf32>
    %189 = vector.multi_reduction <add>, %188, %cst_161 [1] : vector<8x32xf32> to vector<8xf32>
    %190 = vector.shape_cast %189 : vector<8xf32> to vector<8x1xf32>
    %cst_162 = arith.constant 3.200000e+01 : f32
    %191 = vector.broadcast %cst_162 : f32 to vector<8x1xf32>
    %192 = arith.divf %190, %191 : vector<8x1xf32>
    %cst_163 = arith.constant 9.99999997E-7 : f32
    %193 = vector.broadcast %cst_163 : f32 to vector<8x1xf32>
    %194 = arith.addf %192, %193 : vector<8x1xf32>
    %195 = math.rsqrt %194 : vector<8x1xf32>
    %196 = vector.broadcast %195 : vector<8x1xf32> to vector<8x32xf32>
    %197 = arith.mulf %187, %196 : vector<8x32xf32>
    %198 = vector.broadcast %179 : vector<1x32xf32> to vector<8x32xf32>
    %199 = arith.mulf %197, %198 : vector<8x32xf32>
    %200 = vector.broadcast %181 : vector<1x32xf32> to vector<8x32xf32>
    %201 = arith.addf %199, %200 : vector<8x32xf32>
    %c0_164 = arith.constant 0 : index
    %c0_165 = arith.constant 0 : index
    %c0_166 = arith.constant 0 : index
    %202 = vector.load %arg16[%c0_164, %c0_165, %c0_166] : memref<2x32x64xf32, #tpu.memory_space<vmem>>, vector<1x32x64xf32>
    %203 = vector.shape_cast %202 : vector<1x32x64xf32> to vector<32x64xf32>
    %cst_167 = arith.constant dense<0.000000e+00> : vector<8x64xf32>
    %204 = tpu.matmul %201, %203, %cst_167 {dimension_numbers = #tpu.dot_dimension_numbers<[1], [0], [0], [1], [0, 0, 1, 1], [], []>} : vector<8x32xf32>, vector<32x64xf32>, vector<8x64xf32> -> vector<8x64xf32>
    %c0_168 = arith.constant 0 : index
    %c0_169 = arith.constant 0 : index
    %c0_170 = arith.constant 0 : index
    %205 = vector.load %arg17[%c0_168, %c0_169, %c0_170] : memref<2x1x64xf32, #tpu.memory_space<vmem>>, vector<1x1x64xf32>
    %206 = vector.shape_cast %205 : vector<1x1x64xf32> to vector<1x64xf32>
    %207 = vector.broadcast %206 : vector<1x64xf32> to vector<8x64xf32>
    %208 = arith.addf %204, %207 : vector<8x64xf32>
    %cst_171 = arith.constant 5.000000e-01 : f32
    %209 = vector.broadcast %cst_171 : f32 to vector<8x64xf32>
    %210 = arith.mulf %209, %208 : vector<8x64xf32>
    %cst_172 = arith.constant 4.471500e-02 : f32
    %211 = vector.broadcast %cst_172 : f32 to vector<8x64xf32>
    %212 = arith.mulf %211, %208 : vector<8x64xf32>
    %213 = arith.mulf %212, %208 : vector<8x64xf32>
    %214 = arith.mulf %213, %208 : vector<8x64xf32>
    %215 = arith.addf %208, %214 : vector<8x64xf32>
    %cst_173 = arith.constant 0.797884583 : f32
    %216 = vector.broadcast %cst_173 : f32 to vector<8x64xf32>
    %217 = arith.mulf %216, %215 : vector<8x64xf32>
    %218 = math.tanh %217 : vector<8x64xf32>
    %cst_174 = arith.constant 1.000000e+00 : f32
    %219 = vector.broadcast %cst_174 : f32 to vector<8x64xf32>
    %220 = arith.addf %219, %218 : vector<8x64xf32>
    %221 = arith.mulf %210, %220 : vector<8x64xf32>
    %c0_175 = arith.constant 0 : index
    %c0_176 = arith.constant 0 : index
    %c0_177 = arith.constant 0 : index
    %222 = vector.load %arg18[%c0_175, %c0_176, %c0_177] : memref<2x64x32xf32, #tpu.memory_space<vmem>>, vector<1x64x32xf32>
    %223 = vector.shape_cast %222 : vector<1x64x32xf32> to vector<64x32xf32>
    %cst_178 = arith.constant dense<0.000000e+00> : vector<8x32xf32>
    %224 = tpu.matmul %221, %223, %cst_178 {dimension_numbers = #tpu.dot_dimension_numbers<[1], [0], [0], [1], [0, 0, 1, 1], [], []>} : vector<8x64xf32>, vector<64x32xf32>, vector<8x32xf32> -> vector<8x32xf32>
    %c0_179 = arith.constant 0 : index
    %c0_180 = arith.constant 0 : index
    %c0_181 = arith.constant 0 : index
    %225 = vector.load %arg19[%c0_179, %c0_180, %c0_181] : memref<2x1x32xf32, #tpu.memory_space<vmem>>, vector<1x1x32xf32>
    %226 = vector.shape_cast %225 : vector<1x1x32xf32> to vector<1x32xf32>
    %227 = vector.broadcast %226 : vector<1x32xf32> to vector<8x32xf32>
    %228 = arith.addf %224, %227 : vector<8x32xf32>
    %229 = arith.addf %228, %177 : vector<8x32xf32>
    %c1_182 = arith.constant 1 : index
    %c0_183 = arith.constant 0 : index
    %c0_184 = arith.constant 0 : index
    %230 = vector.load %arg4[%c1_182, %c0_183, %c0_184] : memref<2x1x32xf32, #tpu.memory_space<vmem>>, vector<1x1x32xf32>
    %231 = vector.shape_cast %230 : vector<1x1x32xf32> to vector<1x32xf32>
    %c1_185 = arith.constant 1 : index
    %c0_186 = arith.constant 0 : index
    %c0_187 = arith.constant 0 : index
    %232 = vector.load %arg5[%c1_185, %c0_186, %c0_187] : memref<2x1x32xf32, #tpu.memory_space<vmem>>, vector<1x1x32xf32>
    %233 = vector.shape_cast %232 : vector<1x1x32xf32> to vector<1x32xf32>
    %cst_188 = arith.constant dense<0.000000e+00> : vector<8xf32>
    %234 = vector.multi_reduction <add>, %229, %cst_188 [1] : vector<8x32xf32> to vector<8xf32>
    %235 = vector.shape_cast %234 : vector<8xf32> to vector<8x1xf32>
    %cst_189 = arith.constant 3.200000e+01 : f32
    %236 = vector.broadcast %cst_189 : f32 to vector<8x1xf32>
    %237 = arith.divf %235, %236 : vector<8x1xf32>
    %238 = vector.broadcast %237 : vector<8x1xf32> to vector<8x32xf32>
    %239 = arith.subf %229, %238 : vector<8x32xf32>
    %240 = arith.mulf %239, %239 : vector<8x32xf32>
    %cst_190 = arith.constant dense<0.000000e+00> : vector<8xf32>
    %241 = vector.multi_reduction <add>, %240, %cst_190 [1] : vector<8x32xf32> to vector<8xf32>
    %242 = vector.shape_cast %241 : vector<8xf32> to vector<8x1xf32>
    %cst_191 = arith.constant 3.200000e+01 : f32
    %243 = vector.broadcast %cst_191 : f32 to vector<8x1xf32>
    %244 = arith.divf %242, %243 : vector<8x1xf32>
    %cst_192 = arith.constant 9.99999997E-7 : f32
    %245 = vector.broadcast %cst_192 : f32 to vector<8x1xf32>
    %246 = arith.addf %244, %245 : vector<8x1xf32>
    %247 = math.rsqrt %246 : vector<8x1xf32>
    %248 = vector.broadcast %247 : vector<8x1xf32> to vector<8x32xf32>
    %249 = arith.mulf %239, %248 : vector<8x32xf32>
    %250 = vector.broadcast %231 : vector<1x32xf32> to vector<8x32xf32>
    %251 = arith.mulf %249, %250 : vector<8x32xf32>
    %252 = vector.broadcast %233 : vector<1x32xf32> to vector<8x32xf32>
    %253 = arith.addf %251, %252 : vector<8x32xf32>
    %cst_193 = arith.constant 0.000000e+00 : f32
    %254 = vector.broadcast %cst_193 : f32 to vector<8x32xf32>
    %c1_194 = arith.constant 1 : index
    %c0_195 = arith.constant 0 : index
    %c0_196 = arith.constant 0 : index
    %c0_197 = arith.constant 0 : index
    %255 = vector.load %arg6[%c1_194, %c0_195, %c0_196, %c0_197] : memref<2x4x32x8xf32, #tpu.memory_space<vmem>>, vector<1x1x32x8xf32>
    %256 = vector.shape_cast %255 : vector<1x1x32x8xf32> to vector<32x8xf32>
    %cst_198 = arith.constant dense<0.000000e+00> : vector<8x8xf32>
    %257 = tpu.matmul %253, %256, %cst_198 {dimension_numbers = #tpu.dot_dimension_numbers<[1], [0], [0], [1], [0, 0, 1, 1], [], []>} : vector<8x32xf32>, vector<32x8xf32>, vector<8x8xf32> -> vector<8x8xf32>
    %c1_199 = arith.constant 1 : index
    %c0_200 = arith.constant 0 : index
    %c0_201 = arith.constant 0 : index
    %c0_202 = arith.constant 0 : index
    %258 = vector.load %arg7[%c1_199, %c0_200, %c0_201, %c0_202] : memref<2x4x1x8xf32, #tpu.memory_space<vmem>>, vector<1x1x1x8xf32>
    %259 = vector.shape_cast %258 : vector<1x1x1x8xf32> to vector<1x8xf32>
    %260 = vector.broadcast %259 : vector<1x8xf32> to vector<8x8xf32>
    %261 = arith.addf %257, %260 : vector<8x8xf32>
    %c1_203 = arith.constant 1 : index
    %c0_204 = arith.constant 0 : index
    %c0_205 = arith.constant 0 : index
    %c0_206 = arith.constant 0 : index
    %262 = vector.load %arg8[%c1_203, %c0_204, %c0_205, %c0_206] : memref<2x4x32x8xf32, #tpu.memory_space<vmem>>, vector<1x1x32x8xf32>
    %263 = vector.shape_cast %262 : vector<1x1x32x8xf32> to vector<32x8xf32>
    %cst_207 = arith.constant dense<0.000000e+00> : vector<8x8xf32>
    %264 = tpu.matmul %253, %263, %cst_207 {dimension_numbers = #tpu.dot_dimension_numbers<[1], [0], [0], [1], [0, 0, 1, 1], [], []>} : vector<8x32xf32>, vector<32x8xf32>, vector<8x8xf32> -> vector<8x8xf32>
    %c1_208 = arith.constant 1 : index
    %c0_209 = arith.constant 0 : index
    %c0_210 = arith.constant 0 : index
    %c0_211 = arith.constant 0 : index
    %265 = vector.load %arg9[%c1_208, %c0_209, %c0_210, %c0_211] : memref<2x4x1x8xf32, #tpu.memory_space<vmem>>, vector<1x1x1x8xf32>
    %266 = vector.shape_cast %265 : vector<1x1x1x8xf32> to vector<1x8xf32>
    %267 = vector.broadcast %266 : vector<1x8xf32> to vector<8x8xf32>
    %268 = arith.addf %264, %267 : vector<8x8xf32>
    %c1_212 = arith.constant 1 : index
    %c0_213 = arith.constant 0 : index
    %c0_214 = arith.constant 0 : index
    %c0_215 = arith.constant 0 : index
    %269 = vector.load %arg10[%c1_212, %c0_213, %c0_214, %c0_215] : memref<2x4x32x8xf32, #tpu.memory_space<vmem>>, vector<1x1x32x8xf32>
    %270 = vector.shape_cast %269 : vector<1x1x32x8xf32> to vector<32x8xf32>
    %cst_216 = arith.constant dense<0.000000e+00> : vector<8x8xf32>
    %271 = tpu.matmul %253, %270, %cst_216 {dimension_numbers = #tpu.dot_dimension_numbers<[1], [0], [0], [1], [0, 0, 1, 1], [], []>} : vector<8x32xf32>, vector<32x8xf32>, vector<8x8xf32> -> vector<8x8xf32>
    %c1_217 = arith.constant 1 : index
    %c0_218 = arith.constant 0 : index
    %c0_219 = arith.constant 0 : index
    %c0_220 = arith.constant 0 : index
    %272 = vector.load %arg11[%c1_217, %c0_218, %c0_219, %c0_220] : memref<2x4x1x8xf32, #tpu.memory_space<vmem>>, vector<1x1x1x8xf32>
    %273 = vector.shape_cast %272 : vector<1x1x1x8xf32> to vector<1x8xf32>
    %274 = vector.broadcast %273 : vector<1x8xf32> to vector<8x8xf32>
    %275 = arith.addf %271, %274 : vector<8x8xf32>
    %276 = tpu.transpose %268, [1, 0] : vector<8x8xf32> -> vector<8x8xf32>
    %cst_221 = arith.constant dense<0.000000e+00> : vector<8x8xf32>
    %277 = tpu.matmul %261, %276, %cst_221 {dimension_numbers = #tpu.dot_dimension_numbers<[1], [0], [0], [1], [0, 0, 1, 1], [], []>} : vector<8x8xf32>, vector<8x8xf32>, vector<8x8xf32> -> vector<8x8xf32>
    %cst_222 = arith.constant 0.353553385 : f32
    %278 = vector.broadcast %cst_222 : f32 to vector<8x8xf32>
    %279 = arith.mulf %277, %278 : vector<8x8xf32>
    %280 = vector.broadcast %3 : vector<1x8xf32> to vector<8x8xf32>
    %281 = arith.addf %279, %280 : vector<8x8xf32>
    %cst_223 = arith.constant dense<0xFF800000> : vector<8xf32>
    %282 = vector.multi_reduction <maximumf>, %281, %cst_223 [1] : vector<8x8xf32> to vector<8xf32>
    %283 = vector.shape_cast %282 : vector<8xf32> to vector<8x1xf32>
    %284 = vector.broadcast %283 : vector<8x1xf32> to vector<8x8xf32>
    %285 = arith.subf %281, %284 : vector<8x8xf32>
    %286 = math.exp %285 : vector<8x8xf32>
    %cst_224 = arith.constant dense<0.000000e+00> : vector<8xf32>
    %287 = vector.multi_reduction <add>, %286, %cst_224 [1] : vector<8x8xf32> to vector<8xf32>
    %288 = vector.shape_cast %287 : vector<8xf32> to vector<8x1xf32>
    %289 = tpu.reciprocal %288 {approx = true} : vector<8x1xf32> -> vector<8x1xf32>
    %290 = vector.broadcast %289 : vector<8x1xf32> to vector<8x8xf32>
    %291 = arith.mulf %286, %290 : vector<8x8xf32>
    %cst_225 = arith.constant dense<0.000000e+00> : vector<8x8xf32>
    %292 = tpu.matmul %291, %275, %cst_225 {dimension_numbers = #tpu.dot_dimension_numbers<[1], [0], [0], [1], [0, 0, 1, 1], [], []>} : vector<8x8xf32>, vector<8x8xf32>, vector<8x8xf32> -> vector<8x8xf32>
    %c1_226 = arith.constant 1 : index
    %c0_227 = arith.constant 0 : index
    %c0_228 = arith.constant 0 : index
    %c0_229 = arith.constant 0 : index
    %293 = vector.load %arg12[%c1_226, %c0_227, %c0_228, %c0_229] : memref<2x4x8x32xf32, #tpu.memory_space<vmem>>, vector<1x1x8x32xf32>
    %294 = vector.shape_cast %293 : vector<1x1x8x32xf32> to vector<8x32xf32>
    %cst_230 = arith.constant dense<0.000000e+00> : vector<8x32xf32>
    %295 = tpu.matmul %292, %294, %cst_230 {dimension_numbers = #tpu.dot_dimension_numbers<[1], [0], [0], [1], [0, 0, 1, 1], [], []>} : vector<8x8xf32>, vector<8x32xf32>, vector<8x32xf32> -> vector<8x32xf32>
    %296 = arith.addf %254, %295 : vector<8x32xf32>
    %c1_231 = arith.constant 1 : index
    %c1_232 = arith.constant 1 : index
    %c0_233 = arith.constant 0 : index
    %c0_234 = arith.constant 0 : index
    %297 = vector.load %arg6[%c1_231, %c1_232, %c0_233, %c0_234] : memref<2x4x32x8xf32, #tpu.memory_space<vmem>>, vector<1x1x32x8xf32>
    %298 = vector.shape_cast %297 : vector<1x1x32x8xf32> to vector<32x8xf32>
    %cst_235 = arith.constant dense<0.000000e+00> : vector<8x8xf32>
    %299 = tpu.matmul %253, %298, %cst_235 {dimension_numbers = #tpu.dot_dimension_numbers<[1], [0], [0], [1], [0, 0, 1, 1], [], []>} : vector<8x32xf32>, vector<32x8xf32>, vector<8x8xf32> -> vector<8x8xf32>
    %c1_236 = arith.constant 1 : index
    %c1_237 = arith.constant 1 : index
    %c0_238 = arith.constant 0 : index
    %c0_239 = arith.constant 0 : index
    %300 = vector.load %arg7[%c1_236, %c1_237, %c0_238, %c0_239] : memref<2x4x1x8xf32, #tpu.memory_space<vmem>>, vector<1x1x1x8xf32>
    %301 = vector.shape_cast %300 : vector<1x1x1x8xf32> to vector<1x8xf32>
    %302 = vector.broadcast %301 : vector<1x8xf32> to vector<8x8xf32>
    %303 = arith.addf %299, %302 : vector<8x8xf32>
    %c1_240 = arith.constant 1 : index
    %c1_241 = arith.constant 1 : index
    %c0_242 = arith.constant 0 : index
    %c0_243 = arith.constant 0 : index
    %304 = vector.load %arg8[%c1_240, %c1_241, %c0_242, %c0_243] : memref<2x4x32x8xf32, #tpu.memory_space<vmem>>, vector<1x1x32x8xf32>
    %305 = vector.shape_cast %304 : vector<1x1x32x8xf32> to vector<32x8xf32>
    %cst_244 = arith.constant dense<0.000000e+00> : vector<8x8xf32>
    %306 = tpu.matmul %253, %305, %cst_244 {dimension_numbers = #tpu.dot_dimension_numbers<[1], [0], [0], [1], [0, 0, 1, 1], [], []>} : vector<8x32xf32>, vector<32x8xf32>, vector<8x8xf32> -> vector<8x8xf32>
    %c1_245 = arith.constant 1 : index
    %c1_246 = arith.constant 1 : index
    %c0_247 = arith.constant 0 : index
    %c0_248 = arith.constant 0 : index
    %307 = vector.load %arg9[%c1_245, %c1_246, %c0_247, %c0_248] : memref<2x4x1x8xf32, #tpu.memory_space<vmem>>, vector<1x1x1x8xf32>
    %308 = vector.shape_cast %307 : vector<1x1x1x8xf32> to vector<1x8xf32>
    %309 = vector.broadcast %308 : vector<1x8xf32> to vector<8x8xf32>
    %310 = arith.addf %306, %309 : vector<8x8xf32>
    %c1_249 = arith.constant 1 : index
    %c1_250 = arith.constant 1 : index
    %c0_251 = arith.constant 0 : index
    %c0_252 = arith.constant 0 : index
    %311 = vector.load %arg10[%c1_249, %c1_250, %c0_251, %c0_252] : memref<2x4x32x8xf32, #tpu.memory_space<vmem>>, vector<1x1x32x8xf32>
    %312 = vector.shape_cast %311 : vector<1x1x32x8xf32> to vector<32x8xf32>
    %cst_253 = arith.constant dense<0.000000e+00> : vector<8x8xf32>
    %313 = tpu.matmul %253, %312, %cst_253 {dimension_numbers = #tpu.dot_dimension_numbers<[1], [0], [0], [1], [0, 0, 1, 1], [], []>} : vector<8x32xf32>, vector<32x8xf32>, vector<8x8xf32> -> vector<8x8xf32>
    %c1_254 = arith.constant 1 : index
    %c1_255 = arith.constant 1 : index
    %c0_256 = arith.constant 0 : index
    %c0_257 = arith.constant 0 : index
    %314 = vector.load %arg11[%c1_254, %c1_255, %c0_256, %c0_257] : memref<2x4x1x8xf32, #tpu.memory_space<vmem>>, vector<1x1x1x8xf32>
    %315 = vector.shape_cast %314 : vector<1x1x1x8xf32> to vector<1x8xf32>
    %316 = vector.broadcast %315 : vector<1x8xf32> to vector<8x8xf32>
    %317 = arith.addf %313, %316 : vector<8x8xf32>
    %318 = tpu.transpose %310, [1, 0] : vector<8x8xf32> -> vector<8x8xf32>
    %cst_258 = arith.constant dense<0.000000e+00> : vector<8x8xf32>
    %319 = tpu.matmul %303, %318, %cst_258 {dimension_numbers = #tpu.dot_dimension_numbers<[1], [0], [0], [1], [0, 0, 1, 1], [], []>} : vector<8x8xf32>, vector<8x8xf32>, vector<8x8xf32> -> vector<8x8xf32>
    %cst_259 = arith.constant 0.353553385 : f32
    %320 = vector.broadcast %cst_259 : f32 to vector<8x8xf32>
    %321 = arith.mulf %319, %320 : vector<8x8xf32>
    %322 = vector.broadcast %3 : vector<1x8xf32> to vector<8x8xf32>
    %323 = arith.addf %321, %322 : vector<8x8xf32>
    %cst_260 = arith.constant dense<0xFF800000> : vector<8xf32>
    %324 = vector.multi_reduction <maximumf>, %323, %cst_260 [1] : vector<8x8xf32> to vector<8xf32>
    %325 = vector.shape_cast %324 : vector<8xf32> to vector<8x1xf32>
    %326 = vector.broadcast %325 : vector<8x1xf32> to vector<8x8xf32>
    %327 = arith.subf %323, %326 : vector<8x8xf32>
    %328 = math.exp %327 : vector<8x8xf32>
    %cst_261 = arith.constant dense<0.000000e+00> : vector<8xf32>
    %329 = vector.multi_reduction <add>, %328, %cst_261 [1] : vector<8x8xf32> to vector<8xf32>
    %330 = vector.shape_cast %329 : vector<8xf32> to vector<8x1xf32>
    %331 = tpu.reciprocal %330 {approx = true} : vector<8x1xf32> -> vector<8x1xf32>
    %332 = vector.broadcast %331 : vector<8x1xf32> to vector<8x8xf32>
    %333 = arith.mulf %328, %332 : vector<8x8xf32>
    %cst_262 = arith.constant dense<0.000000e+00> : vector<8x8xf32>
    %334 = tpu.matmul %333, %317, %cst_262 {dimension_numbers = #tpu.dot_dimension_numbers<[1], [0], [0], [1], [0, 0, 1, 1], [], []>} : vector<8x8xf32>, vector<8x8xf32>, vector<8x8xf32> -> vector<8x8xf32>
    %c1_263 = arith.constant 1 : index
    %c1_264 = arith.constant 1 : index
    %c0_265 = arith.constant 0 : index
    %c0_266 = arith.constant 0 : index
    %335 = vector.load %arg12[%c1_263, %c1_264, %c0_265, %c0_266] : memref<2x4x8x32xf32, #tpu.memory_space<vmem>>, vector<1x1x8x32xf32>
    %336 = vector.shape_cast %335 : vector<1x1x8x32xf32> to vector<8x32xf32>
    %cst_267 = arith.constant dense<0.000000e+00> : vector<8x32xf32>
    %337 = tpu.matmul %334, %336, %cst_267 {dimension_numbers = #tpu.dot_dimension_numbers<[1], [0], [0], [1], [0, 0, 1, 1], [], []>} : vector<8x8xf32>, vector<8x32xf32>, vector<8x32xf32> -> vector<8x32xf32>
    %338 = arith.addf %296, %337 : vector<8x32xf32>
    %c1_268 = arith.constant 1 : index
    %c2_269 = arith.constant 2 : index
    %c0_270 = arith.constant 0 : index
    %c0_271 = arith.constant 0 : index
    %339 = vector.load %arg6[%c1_268, %c2_269, %c0_270, %c0_271] : memref<2x4x32x8xf32, #tpu.memory_space<vmem>>, vector<1x1x32x8xf32>
    %340 = vector.shape_cast %339 : vector<1x1x32x8xf32> to vector<32x8xf32>
    %cst_272 = arith.constant dense<0.000000e+00> : vector<8x8xf32>
    %341 = tpu.matmul %253, %340, %cst_272 {dimension_numbers = #tpu.dot_dimension_numbers<[1], [0], [0], [1], [0, 0, 1, 1], [], []>} : vector<8x32xf32>, vector<32x8xf32>, vector<8x8xf32> -> vector<8x8xf32>
    %c1_273 = arith.constant 1 : index
    %c2_274 = arith.constant 2 : index
    %c0_275 = arith.constant 0 : index
    %c0_276 = arith.constant 0 : index
    %342 = vector.load %arg7[%c1_273, %c2_274, %c0_275, %c0_276] : memref<2x4x1x8xf32, #tpu.memory_space<vmem>>, vector<1x1x1x8xf32>
    %343 = vector.shape_cast %342 : vector<1x1x1x8xf32> to vector<1x8xf32>
    %344 = vector.broadcast %343 : vector<1x8xf32> to vector<8x8xf32>
    %345 = arith.addf %341, %344 : vector<8x8xf32>
    %c1_277 = arith.constant 1 : index
    %c2_278 = arith.constant 2 : index
    %c0_279 = arith.constant 0 : index
    %c0_280 = arith.constant 0 : index
    %346 = vector.load %arg8[%c1_277, %c2_278, %c0_279, %c0_280] : memref<2x4x32x8xf32, #tpu.memory_space<vmem>>, vector<1x1x32x8xf32>
    %347 = vector.shape_cast %346 : vector<1x1x32x8xf32> to vector<32x8xf32>
    %cst_281 = arith.constant dense<0.000000e+00> : vector<8x8xf32>
    %348 = tpu.matmul %253, %347, %cst_281 {dimension_numbers = #tpu.dot_dimension_numbers<[1], [0], [0], [1], [0, 0, 1, 1], [], []>} : vector<8x32xf32>, vector<32x8xf32>, vector<8x8xf32> -> vector<8x8xf32>
    %c1_282 = arith.constant 1 : index
    %c2_283 = arith.constant 2 : index
    %c0_284 = arith.constant 0 : index
    %c0_285 = arith.constant 0 : index
    %349 = vector.load %arg9[%c1_282, %c2_283, %c0_284, %c0_285] : memref<2x4x1x8xf32, #tpu.memory_space<vmem>>, vector<1x1x1x8xf32>
    %350 = vector.shape_cast %349 : vector<1x1x1x8xf32> to vector<1x8xf32>
    %351 = vector.broadcast %350 : vector<1x8xf32> to vector<8x8xf32>
    %352 = arith.addf %348, %351 : vector<8x8xf32>
    %c1_286 = arith.constant 1 : index
    %c2_287 = arith.constant 2 : index
    %c0_288 = arith.constant 0 : index
    %c0_289 = arith.constant 0 : index
    %353 = vector.load %arg10[%c1_286, %c2_287, %c0_288, %c0_289] : memref<2x4x32x8xf32, #tpu.memory_space<vmem>>, vector<1x1x32x8xf32>
    %354 = vector.shape_cast %353 : vector<1x1x32x8xf32> to vector<32x8xf32>
    %cst_290 = arith.constant dense<0.000000e+00> : vector<8x8xf32>
    %355 = tpu.matmul %253, %354, %cst_290 {dimension_numbers = #tpu.dot_dimension_numbers<[1], [0], [0], [1], [0, 0, 1, 1], [], []>} : vector<8x32xf32>, vector<32x8xf32>, vector<8x8xf32> -> vector<8x8xf32>
    %c1_291 = arith.constant 1 : index
    %c2_292 = arith.constant 2 : index
    %c0_293 = arith.constant 0 : index
    %c0_294 = arith.constant 0 : index
    %356 = vector.load %arg11[%c1_291, %c2_292, %c0_293, %c0_294] : memref<2x4x1x8xf32, #tpu.memory_space<vmem>>, vector<1x1x1x8xf32>
    %357 = vector.shape_cast %356 : vector<1x1x1x8xf32> to vector<1x8xf32>
    %358 = vector.broadcast %357 : vector<1x8xf32> to vector<8x8xf32>
    %359 = arith.addf %355, %358 : vector<8x8xf32>
    %360 = tpu.transpose %352, [1, 0] : vector<8x8xf32> -> vector<8x8xf32>
    %cst_295 = arith.constant dense<0.000000e+00> : vector<8x8xf32>
    %361 = tpu.matmul %345, %360, %cst_295 {dimension_numbers = #tpu.dot_dimension_numbers<[1], [0], [0], [1], [0, 0, 1, 1], [], []>} : vector<8x8xf32>, vector<8x8xf32>, vector<8x8xf32> -> vector<8x8xf32>
    %cst_296 = arith.constant 0.353553385 : f32
    %362 = vector.broadcast %cst_296 : f32 to vector<8x8xf32>
    %363 = arith.mulf %361, %362 : vector<8x8xf32>
    %364 = vector.broadcast %3 : vector<1x8xf32> to vector<8x8xf32>
    %365 = arith.addf %363, %364 : vector<8x8xf32>
    %cst_297 = arith.constant dense<0xFF800000> : vector<8xf32>
    %366 = vector.multi_reduction <maximumf>, %365, %cst_297 [1] : vector<8x8xf32> to vector<8xf32>
    %367 = vector.shape_cast %366 : vector<8xf32> to vector<8x1xf32>
    %368 = vector.broadcast %367 : vector<8x1xf32> to vector<8x8xf32>
    %369 = arith.subf %365, %368 : vector<8x8xf32>
    %370 = math.exp %369 : vector<8x8xf32>
    %cst_298 = arith.constant dense<0.000000e+00> : vector<8xf32>
    %371 = vector.multi_reduction <add>, %370, %cst_298 [1] : vector<8x8xf32> to vector<8xf32>
    %372 = vector.shape_cast %371 : vector<8xf32> to vector<8x1xf32>
    %373 = tpu.reciprocal %372 {approx = true} : vector<8x1xf32> -> vector<8x1xf32>
    %374 = vector.broadcast %373 : vector<8x1xf32> to vector<8x8xf32>
    %375 = arith.mulf %370, %374 : vector<8x8xf32>
    %cst_299 = arith.constant dense<0.000000e+00> : vector<8x8xf32>
    %376 = tpu.matmul %375, %359, %cst_299 {dimension_numbers = #tpu.dot_dimension_numbers<[1], [0], [0], [1], [0, 0, 1, 1], [], []>} : vector<8x8xf32>, vector<8x8xf32>, vector<8x8xf32> -> vector<8x8xf32>
    %c1_300 = arith.constant 1 : index
    %c2_301 = arith.constant 2 : index
    %c0_302 = arith.constant 0 : index
    %c0_303 = arith.constant 0 : index
    %377 = vector.load %arg12[%c1_300, %c2_301, %c0_302, %c0_303] : memref<2x4x8x32xf32, #tpu.memory_space<vmem>>, vector<1x1x8x32xf32>
    %378 = vector.shape_cast %377 : vector<1x1x8x32xf32> to vector<8x32xf32>
    %cst_304 = arith.constant dense<0.000000e+00> : vector<8x32xf32>
    %379 = tpu.matmul %376, %378, %cst_304 {dimension_numbers = #tpu.dot_dimension_numbers<[1], [0], [0], [1], [0, 0, 1, 1], [], []>} : vector<8x8xf32>, vector<8x32xf32>, vector<8x32xf32> -> vector<8x32xf32>
    %380 = arith.addf %338, %379 : vector<8x32xf32>
    %c1_305 = arith.constant 1 : index
    %c3_306 = arith.constant 3 : index
    %c0_307 = arith.constant 0 : index
    %c0_308 = arith.constant 0 : index
    %381 = vector.load %arg6[%c1_305, %c3_306, %c0_307, %c0_308] : memref<2x4x32x8xf32, #tpu.memory_space<vmem>>, vector<1x1x32x8xf32>
    %382 = vector.shape_cast %381 : vector<1x1x32x8xf32> to vector<32x8xf32>
    %cst_309 = arith.constant dense<0.000000e+00> : vector<8x8xf32>
    %383 = tpu.matmul %253, %382, %cst_309 {dimension_numbers = #tpu.dot_dimension_numbers<[1], [0], [0], [1], [0, 0, 1, 1], [], []>} : vector<8x32xf32>, vector<32x8xf32>, vector<8x8xf32> -> vector<8x8xf32>
    %c1_310 = arith.constant 1 : index
    %c3_311 = arith.constant 3 : index
    %c0_312 = arith.constant 0 : index
    %c0_313 = arith.constant 0 : index
    %384 = vector.load %arg7[%c1_310, %c3_311, %c0_312, %c0_313] : memref<2x4x1x8xf32, #tpu.memory_space<vmem>>, vector<1x1x1x8xf32>
    %385 = vector.shape_cast %384 : vector<1x1x1x8xf32> to vector<1x8xf32>
    %386 = vector.broadcast %385 : vector<1x8xf32> to vector<8x8xf32>
    %387 = arith.addf %383, %386 : vector<8x8xf32>
    %c1_314 = arith.constant 1 : index
    %c3_315 = arith.constant 3 : index
    %c0_316 = arith.constant 0 : index
    %c0_317 = arith.constant 0 : index
    %388 = vector.load %arg8[%c1_314, %c3_315, %c0_316, %c0_317] : memref<2x4x32x8xf32, #tpu.memory_space<vmem>>, vector<1x1x32x8xf32>
    %389 = vector.shape_cast %388 : vector<1x1x32x8xf32> to vector<32x8xf32>
    %cst_318 = arith.constant dense<0.000000e+00> : vector<8x8xf32>
    %390 = tpu.matmul %253, %389, %cst_318 {dimension_numbers = #tpu.dot_dimension_numbers<[1], [0], [0], [1], [0, 0, 1, 1], [], []>} : vector<8x32xf32>, vector<32x8xf32>, vector<8x8xf32> -> vector<8x8xf32>
    %c1_319 = arith.constant 1 : index
    %c3_320 = arith.constant 3 : index
    %c0_321 = arith.constant 0 : index
    %c0_322 = arith.constant 0 : index
    %391 = vector.load %arg9[%c1_319, %c3_320, %c0_321, %c0_322] : memref<2x4x1x8xf32, #tpu.memory_space<vmem>>, vector<1x1x1x8xf32>
    %392 = vector.shape_cast %391 : vector<1x1x1x8xf32> to vector<1x8xf32>
    %393 = vector.broadcast %392 : vector<1x8xf32> to vector<8x8xf32>
    %394 = arith.addf %390, %393 : vector<8x8xf32>
    %c1_323 = arith.constant 1 : index
    %c3_324 = arith.constant 3 : index
    %c0_325 = arith.constant 0 : index
    %c0_326 = arith.constant 0 : index
    %395 = vector.load %arg10[%c1_323, %c3_324, %c0_325, %c0_326] : memref<2x4x32x8xf32, #tpu.memory_space<vmem>>, vector<1x1x32x8xf32>
    %396 = vector.shape_cast %395 : vector<1x1x32x8xf32> to vector<32x8xf32>
    %cst_327 = arith.constant dense<0.000000e+00> : vector<8x8xf32>
    %397 = tpu.matmul %253, %396, %cst_327 {dimension_numbers = #tpu.dot_dimension_numbers<[1], [0], [0], [1], [0, 0, 1, 1], [], []>} : vector<8x32xf32>, vector<32x8xf32>, vector<8x8xf32> -> vector<8x8xf32>
    %c1_328 = arith.constant 1 : index
    %c3_329 = arith.constant 3 : index
    %c0_330 = arith.constant 0 : index
    %c0_331 = arith.constant 0 : index
    %398 = vector.load %arg11[%c1_328, %c3_329, %c0_330, %c0_331] : memref<2x4x1x8xf32, #tpu.memory_space<vmem>>, vector<1x1x1x8xf32>
    %399 = vector.shape_cast %398 : vector<1x1x1x8xf32> to vector<1x8xf32>
    %400 = vector.broadcast %399 : vector<1x8xf32> to vector<8x8xf32>
    %401 = arith.addf %397, %400 : vector<8x8xf32>
    %402 = tpu.transpose %394, [1, 0] : vector<8x8xf32> -> vector<8x8xf32>
    %cst_332 = arith.constant dense<0.000000e+00> : vector<8x8xf32>
    %403 = tpu.matmul %387, %402, %cst_332 {dimension_numbers = #tpu.dot_dimension_numbers<[1], [0], [0], [1], [0, 0, 1, 1], [], []>} : vector<8x8xf32>, vector<8x8xf32>, vector<8x8xf32> -> vector<8x8xf32>
    %cst_333 = arith.constant 0.353553385 : f32
    %404 = vector.broadcast %cst_333 : f32 to vector<8x8xf32>
    %405 = arith.mulf %403, %404 : vector<8x8xf32>
    %406 = vector.broadcast %3 : vector<1x8xf32> to vector<8x8xf32>
    %407 = arith.addf %405, %406 : vector<8x8xf32>
    %cst_334 = arith.constant dense<0xFF800000> : vector<8xf32>
    %408 = vector.multi_reduction <maximumf>, %407, %cst_334 [1] : vector<8x8xf32> to vector<8xf32>
    %409 = vector.shape_cast %408 : vector<8xf32> to vector<8x1xf32>
    %410 = vector.broadcast %409 : vector<8x1xf32> to vector<8x8xf32>
    %411 = arith.subf %407, %410 : vector<8x8xf32>
    %412 = math.exp %411 : vector<8x8xf32>
    %cst_335 = arith.constant dense<0.000000e+00> : vector<8xf32>
    %413 = vector.multi_reduction <add>, %412, %cst_335 [1] : vector<8x8xf32> to vector<8xf32>
    %414 = vector.shape_cast %413 : vector<8xf32> to vector<8x1xf32>
    %415 = tpu.reciprocal %414 {approx = true} : vector<8x1xf32> -> vector<8x1xf32>
    %416 = vector.broadcast %415 : vector<8x1xf32> to vector<8x8xf32>
    %417 = arith.mulf %412, %416 : vector<8x8xf32>
    %cst_336 = arith.constant dense<0.000000e+00> : vector<8x8xf32>
    %418 = tpu.matmul %417, %401, %cst_336 {dimension_numbers = #tpu.dot_dimension_numbers<[1], [0], [0], [1], [0, 0, 1, 1], [], []>} : vector<8x8xf32>, vector<8x8xf32>, vector<8x8xf32> -> vector<8x8xf32>
    %c1_337 = arith.constant 1 : index
    %c3_338 = arith.constant 3 : index
    %c0_339 = arith.constant 0 : index
    %c0_340 = arith.constant 0 : index
    %419 = vector.load %arg12[%c1_337, %c3_338, %c0_339, %c0_340] : memref<2x4x8x32xf32, #tpu.memory_space<vmem>>, vector<1x1x8x32xf32>
    %420 = vector.shape_cast %419 : vector<1x1x8x32xf32> to vector<8x32xf32>
    %cst_341 = arith.constant dense<0.000000e+00> : vector<8x32xf32>
    %421 = tpu.matmul %418, %420, %cst_341 {dimension_numbers = #tpu.dot_dimension_numbers<[1], [0], [0], [1], [0, 0, 1, 1], [], []>} : vector<8x8xf32>, vector<8x32xf32>, vector<8x32xf32> -> vector<8x32xf32>
    %422 = arith.addf %380, %421 : vector<8x32xf32>
    %c1_342 = arith.constant 1 : index
    %c0_343 = arith.constant 0 : index
    %c0_344 = arith.constant 0 : index
    %423 = vector.load %arg13[%c1_342, %c0_343, %c0_344] : memref<2x1x32xf32, #tpu.memory_space<vmem>>, vector<1x1x32xf32>
    %424 = vector.shape_cast %423 : vector<1x1x32xf32> to vector<1x32xf32>
    %425 = vector.broadcast %424 : vector<1x32xf32> to vector<8x32xf32>
    %426 = arith.addf %422, %425 : vector<8x32xf32>
    %427 = arith.addf %426, %229 : vector<8x32xf32>
    %c1_345 = arith.constant 1 : index
    %c0_346 = arith.constant 0 : index
    %c0_347 = arith.constant 0 : index
    %428 = vector.load %arg14[%c1_345, %c0_346, %c0_347] : memref<2x1x32xf32, #tpu.memory_space<vmem>>, vector<1x1x32xf32>
    %429 = vector.shape_cast %428 : vector<1x1x32xf32> to vector<1x32xf32>
    %c1_348 = arith.constant 1 : index
    %c0_349 = arith.constant 0 : index
    %c0_350 = arith.constant 0 : index
    %430 = vector.load %arg15[%c1_348, %c0_349, %c0_350] : memref<2x1x32xf32, #tpu.memory_space<vmem>>, vector<1x1x32xf32>
    %431 = vector.shape_cast %430 : vector<1x1x32xf32> to vector<1x32xf32>
    %cst_351 = arith.constant dense<0.000000e+00> : vector<8xf32>
    %432 = vector.multi_reduction <add>, %427, %cst_351 [1] : vector<8x32xf32> to vector<8xf32>
    %433 = vector.shape_cast %432 : vector<8xf32> to vector<8x1xf32>
    %cst_352 = arith.constant 3.200000e+01 : f32
    %434 = vector.broadcast %cst_352 : f32 to vector<8x1xf32>
    %435 = arith.divf %433, %434 : vector<8x1xf32>
    %436 = vector.broadcast %435 : vector<8x1xf32> to vector<8x32xf32>
    %437 = arith.subf %427, %436 : vector<8x32xf32>
    %438 = arith.mulf %437, %437 : vector<8x32xf32>
    %cst_353 = arith.constant dense<0.000000e+00> : vector<8xf32>
    %439 = vector.multi_reduction <add>, %438, %cst_353 [1] : vector<8x32xf32> to vector<8xf32>
    %440 = vector.shape_cast %439 : vector<8xf32> to vector<8x1xf32>
    %cst_354 = arith.constant 3.200000e+01 : f32
    %441 = vector.broadcast %cst_354 : f32 to vector<8x1xf32>
    %442 = arith.divf %440, %441 : vector<8x1xf32>
    %cst_355 = arith.constant 9.99999997E-7 : f32
    %443 = vector.broadcast %cst_355 : f32 to vector<8x1xf32>
    %444 = arith.addf %442, %443 : vector<8x1xf32>
    %445 = math.rsqrt %444 : vector<8x1xf32>
    %446 = vector.broadcast %445 : vector<8x1xf32> to vector<8x32xf32>
    %447 = arith.mulf %437, %446 : vector<8x32xf32>
    %448 = vector.broadcast %429 : vector<1x32xf32> to vector<8x32xf32>
    %449 = arith.mulf %447, %448 : vector<8x32xf32>
    %450 = vector.broadcast %431 : vector<1x32xf32> to vector<8x32xf32>
    %451 = arith.addf %449, %450 : vector<8x32xf32>
    %c1_356 = arith.constant 1 : index
    %c0_357 = arith.constant 0 : index
    %c0_358 = arith.constant 0 : index
    %452 = vector.load %arg16[%c1_356, %c0_357, %c0_358] : memref<2x32x64xf32, #tpu.memory_space<vmem>>, vector<1x32x64xf32>
    %453 = vector.shape_cast %452 : vector<1x32x64xf32> to vector<32x64xf32>
    %cst_359 = arith.constant dense<0.000000e+00> : vector<8x64xf32>
    %454 = tpu.matmul %451, %453, %cst_359 {dimension_numbers = #tpu.dot_dimension_numbers<[1], [0], [0], [1], [0, 0, 1, 1], [], []>} : vector<8x32xf32>, vector<32x64xf32>, vector<8x64xf32> -> vector<8x64xf32>
    %c1_360 = arith.constant 1 : index
    %c0_361 = arith.constant 0 : index
    %c0_362 = arith.constant 0 : index
    %455 = vector.load %arg17[%c1_360, %c0_361, %c0_362] : memref<2x1x64xf32, #tpu.memory_space<vmem>>, vector<1x1x64xf32>
    %456 = vector.shape_cast %455 : vector<1x1x64xf32> to vector<1x64xf32>
    %457 = vector.broadcast %456 : vector<1x64xf32> to vector<8x64xf32>
    %458 = arith.addf %454, %457 : vector<8x64xf32>
    %cst_363 = arith.constant 5.000000e-01 : f32
    %459 = vector.broadcast %cst_363 : f32 to vector<8x64xf32>
    %460 = arith.mulf %459, %458 : vector<8x64xf32>
    %cst_364 = arith.constant 4.471500e-02 : f32
    %461 = vector.broadcast %cst_364 : f32 to vector<8x64xf32>
    %462 = arith.mulf %461, %458 : vector<8x64xf32>
    %463 = arith.mulf %462, %458 : vector<8x64xf32>
    %464 = arith.mulf %463, %458 : vector<8x64xf32>
    %465 = arith.addf %458, %464 : vector<8x64xf32>
    %cst_365 = arith.constant 0.797884583 : f32
    %466 = vector.broadcast %cst_365 : f32 to vector<8x64xf32>
    %467 = arith.mulf %466, %465 : vector<8x64xf32>
    %468 = math.tanh %467 : vector<8x64xf32>
    %cst_366 = arith.constant 1.000000e+00 : f32
    %469 = vector.broadcast %cst_366 : f32 to vector<8x64xf32>
    %470 = arith.addf %469, %468 : vector<8x64xf32>
    %471 = arith.mulf %460, %470 : vector<8x64xf32>
    %c1_367 = arith.constant 1 : index
    %c0_368 = arith.constant 0 : index
    %c0_369 = arith.constant 0 : index
    %472 = vector.load %arg18[%c1_367, %c0_368, %c0_369] : memref<2x64x32xf32, #tpu.memory_space<vmem>>, vector<1x64x32xf32>
    %473 = vector.shape_cast %472 : vector<1x64x32xf32> to vector<64x32xf32>
    %cst_370 = arith.constant dense<0.000000e+00> : vector<8x32xf32>
    %474 = tpu.matmul %471, %473, %cst_370 {dimension_numbers = #tpu.dot_dimension_numbers<[1], [0], [0], [1], [0, 0, 1, 1], [], []>} : vector<8x64xf32>, vector<64x32xf32>, vector<8x32xf32> -> vector<8x32xf32>
    %c1_371 = arith.constant 1 : index
    %c0_372 = arith.constant 0 : index
    %c0_373 = arith.constant 0 : index
    %475 = vector.load %arg19[%c1_371, %c0_372, %c0_373] : memref<2x1x32xf32, #tpu.memory_space<vmem>>, vector<1x1x32xf32>
    %476 = vector.shape_cast %475 : vector<1x1x32xf32> to vector<1x32xf32>
    %477 = vector.broadcast %476 : vector<1x32xf32> to vector<8x32xf32>
    %478 = arith.addf %474, %477 : vector<8x32xf32>
    %479 = arith.addf %478, %427 : vector<8x32xf32>
    %c0_374 = arith.constant 0 : index
    %c0_375 = arith.constant 0 : index
    %480 = vector.load %arg20[%c0_374, %c0_375] : memref<1x32xf32, #tpu.memory_space<vmem>>, vector<1x32xf32>
    %c0_376 = arith.constant 0 : index
    %c0_377 = arith.constant 0 : index
    %481 = vector.load %arg21[%c0_376, %c0_377] : memref<1x32xf32, #tpu.memory_space<vmem>>, vector<1x32xf32>
    %cst_378 = arith.constant dense<0.000000e+00> : vector<8xf32>
    %482 = vector.multi_reduction <add>, %479, %cst_378 [1] : vector<8x32xf32> to vector<8xf32>
    %483 = vector.shape_cast %482 : vector<8xf32> to vector<8x1xf32>
    %cst_379 = arith.constant 3.200000e+01 : f32
    %484 = vector.broadcast %cst_379 : f32 to vector<8x1xf32>
    %485 = arith.divf %483, %484 : vector<8x1xf32>
    %486 = vector.broadcast %485 : vector<8x1xf32> to vector<8x32xf32>
    %487 = arith.subf %479, %486 : vector<8x32xf32>
    %488 = arith.mulf %487, %487 : vector<8x32xf32>
    %cst_380 = arith.constant dense<0.000000e+00> : vector<8xf32>
    %489 = vector.multi_reduction <add>, %488, %cst_380 [1] : vector<8x32xf32> to vector<8xf32>
    %490 = vector.shape_cast %489 : vector<8xf32> to vector<8x1xf32>
    %cst_381 = arith.constant 3.200000e+01 : f32
    %491 = vector.broadcast %cst_381 : f32 to vector<8x1xf32>
    %492 = arith.divf %490, %491 : vector<8x1xf32>
    %cst_382 = arith.constant 9.99999997E-7 : f32
    %493 = vector.broadcast %cst_382 : f32 to vector<8x1xf32>
    %494 = arith.addf %492, %493 : vector<8x1xf32>
    %495 = math.rsqrt %494 : vector<8x1xf32>
    %496 = vector.broadcast %495 : vector<8x1xf32> to vector<8x32xf32>
    %497 = arith.mulf %487, %496 : vector<8x32xf32>
    %498 = vector.broadcast %480 : vector<1x32xf32> to vector<8x32xf32>
    %499 = arith.mulf %497, %498 : vector<8x32xf32>
    %500 = vector.broadcast %481 : vector<1x32xf32> to vector<8x32xf32>
    %501 = arith.addf %499, %500 : vector<8x32xf32>
    %c0_383 = arith.constant 0 : index
    %c0_384 = arith.constant 0 : index
    %502 = vector.load %arg22[%c0_383, %c0_384] : memref<1x32xf32, #tpu.memory_space<vmem>>, vector<1x32xf32>
    %503 = tpu.transpose %501, [1, 0] : vector<8x32xf32> -> vector<32x8xf32>
    %cst_385 = arith.constant dense<0.000000e+00> : vector<1x8xf32>
    %504 = tpu.matmul %502, %503, %cst_385 {dimension_numbers = #tpu.dot_dimension_numbers<[1], [0], [0], [1], [0, 0, 1, 1], [], []>} : vector<1x32xf32>, vector<32x8xf32>, vector<1x8xf32> -> vector<1x8xf32>
    %c0_386 = arith.constant 0 : index
    %c0_387 = arith.constant 0 : index
    %505 = vector.load %arg23[%c0_386, %c0_387] : memref<1x1xf32, #tpu.memory_space<vmem>>, vector<1x1xf32>
    %506 = vector.broadcast %505 : vector<1x1xf32> to vector<1x8xf32>
    %507 = arith.addf %504, %506 : vector<1x8xf32>
    %508 = arith.negf %507 : vector<1x8xf32>
    %509 = math.exp %508 : vector<1x8xf32>
    %cst_388 = arith.constant 1.000000e+00 : f32
    %510 = vector.broadcast %cst_388 : f32 to vector<1x8xf32>
    %511 = arith.addf %510, %509 : vector<1x8xf32>
    %512 = arith.divf %510, %511 : vector<1x8xf32>
    %c0_389 = arith.constant 0 : index
    %c0_390 = arith.constant 0 : index
    %c0_391 = arith.constant 0 : index
    %513 = vector.load %arg3[%c0_389, %c0_390, %c0_391] : memref<1x1x8xf32, #tpu.memory_space<vmem>>, vector<1x1x8xf32>
    %514 = vector.shape_cast %513 : vector<1x1x8xf32> to vector<1x8xf32>
    %515 = arith.mulf %512, %514 : vector<1x8xf32>
    %c0_392 = arith.constant 0 : index
    %c0_393 = arith.constant 0 : index
    %c0_394 = arith.constant 0 : index
    %516 = vector.load %arg24[%c0_392, %c0_393, %c0_394] : memref<1x1x8xf32, #tpu.memory_space<vmem>>, vector<1x1x8xf32>
    %517 = vector.shape_cast %516 : vector<1x1x8xf32> to vector<1x8xf32>
    %518 = vector.shape_cast %515 : vector<1x8xf32> to vector<1x1x8xf32>
    tpu.vector_store %arg24[%c0_392, %c0_393, %c0_394], %518 {strides = array<i32>} : memref<1x1x8xf32, #tpu.memory_space<vmem>>, vector<1x1x8xf32>,
    return
  }
  func.func @transform_0(%arg0: i32) -> (i32, i32, i32) {
    %c0_i32 = arith.constant 0 : i32
    %c0_i32_0 = arith.constant 0 : i32
    %c0_i32_1 = arith.constant 0 : i32
    return %arg0, %c0_i32, %c0_i32_0 : i32, i32, i32
  }
  func.func @transform_1(%arg0: i32) -> (i32, i32, i32) {
    %c0_i32 = arith.constant 0 : i32
    %c0_i32_0 = arith.constant 0 : i32
    %c0_i32_1 = arith.constant 0 : i32
    return %arg0, %c0_i32, %c0_i32_0 : i32, i32, i32
  }
  func.func @transform_2(%arg0: i32) -> (i32, i32, i32) {
    %c0_i32 = arith.constant 0 : i32
    %c0_i32_0 = arith.constant 0 : i32
    %c0_i32_1 = arith.constant 0 : i32
    return %arg0, %c0_i32, %c0_i32_0 : i32, i32, i32
  }
  func.func @transform_3(%arg0: i32) -> (i32, i32, i32) {
    %c0_i32 = arith.constant 0 : i32
    %c0_i32_0 = arith.constant 0 : i32
    %c0_i32_1 = arith.constant 0 : i32
    %c0_i32_2 = arith.constant 0 : i32
    return %c0_i32, %c0_i32_0, %c0_i32_1 : i32, i32, i32
  }
  func.func @transform_4(%arg0: i32) -> (i32, i32, i32) {
    %c0_i32 = arith.constant 0 : i32
    %c0_i32_0 = arith.constant 0 : i32
    %c0_i32_1 = arith.constant 0 : i32
    %c0_i32_2 = arith.constant 0 : i32
    return %c0_i32, %c0_i32_0, %c0_i32_1 : i32, i32, i32
  }
  func.func @transform_5(%arg0: i32) -> (i32, i32, i32, i32) {
    %c0_i32 = arith.constant 0 : i32
    %c0_i32_0 = arith.constant 0 : i32
    %c0_i32_1 = arith.constant 0 : i32
    %c0_i32_2 = arith.constant 0 : i32
    %c0_i32_3 = arith.constant 0 : i32
    return %c0_i32, %c0_i32_0, %c0_i32_1, %c0_i32_2 : i32, i32, i32, i32
  }
  func.func @transform_6(%arg0: i32) -> (i32, i32, i32, i32) {
    %c0_i32 = arith.constant 0 : i32
    %c0_i32_0 = arith.constant 0 : i32
    %c0_i32_1 = arith.constant 0 : i32
    %c0_i32_2 = arith.constant 0 : i32
    %c0_i32_3 = arith.constant 0 : i32
    return %c0_i32, %c0_i32_0, %c0_i32_1, %c0_i32_2 : i32, i32, i32, i32
  }
  func.func @transform_7(%arg0: i32) -> (i32, i32, i32, i32) {
    %c0_i32 = arith.constant 0 : i32
    %c0_i32_0 = arith.constant 0 : i32
    %c0_i32_1 = arith.constant 0 : i32
    %c0_i32_2 = arith.constant 0 : i32
    %c0_i32_3 = arith.constant 0 : i32
    return %c0_i32, %c0_i32_0, %c0_i32_1, %c0_i32_2 : i32, i32, i32, i32
  }
  func.func @transform_8(%arg0: i32) -> (i32, i32, i32, i32) {
    %c0_i32 = arith.constant 0 : i32
    %c0_i32_0 = arith.constant 0 : i32
    %c0_i32_1 = arith.constant 0 : i32
    %c0_i32_2 = arith.constant 0 : i32
    %c0_i32_3 = arith.constant 0 : i32
    return %c0_i32, %c0_i32_0, %c0_i32_1, %c0_i32_2 : i32, i32, i32, i32
  }
  func.func @transform_9(%arg0: i32) -> (i32, i32, i32, i32) {
    %c0_i32 = arith.constant 0 : i32
    %c0_i32_0 = arith.constant 0 : i32
    %c0_i32_1 = arith.constant 0 : i32
    %c0_i32_2 = arith.constant 0 : i32
    %c0_i32_3 = arith.constant 0 : i32
    return %c0_i32, %c0_i32_0, %c0_i32_1, %c0_i32_2 : i32, i32, i32, i32
  }
  func.func @transform_10(%arg0: i32) -> (i32, i32, i32, i32) {
    %c0_i32 = arith.constant 0 : i32
    %c0_i32_0 = arith.constant 0 : i32
    %c0_i32_1 = arith.constant 0 : i32
    %c0_i32_2 = arith.constant 0 : i32
    %c0_i32_3 = arith.constant 0 : i32
    return %c0_i32, %c0_i32_0, %c0_i32_1, %c0_i32_2 : i32, i32, i32, i32
  }
  func.func @transform_11(%arg0: i32) -> (i32, i32, i32, i32) {
    %c0_i32 = arith.constant 0 : i32
    %c0_i32_0 = arith.constant 0 : i32
    %c0_i32_1 = arith.constant 0 : i32
    %c0_i32_2 = arith.constant 0 : i32
    %c0_i32_3 = arith.constant 0 : i32
    return %c0_i32, %c0_i32_0, %c0_i32_1, %c0_i32_2 : i32, i32, i32, i32
  }
  func.func @transform_12(%arg0: i32) -> (i32, i32, i32) {
    %c0_i32 = arith.constant 0 : i32
    %c0_i32_0 = arith.constant 0 : i32
    %c0_i32_1 = arith.constant 0 : i32
    %c0_i32_2 = arith.constant 0 : i32
    return %c0_i32, %c0_i32_0, %c0_i32_1 : i32, i32, i32
  }
  func.func @transform_13(%arg0: i32) -> (i32, i32, i32) {
    %c0_i32 = arith.constant 0 : i32
    %c0_i32_0 = arith.constant 0 : i32
    %c0_i32_1 = arith.constant 0 : i32
    %c0_i32_2 = arith.constant 0 : i32
    return %c0_i32, %c0_i32_0, %c0_i32_1 : i32, i32, i32
  }
  func.func @transform_14(%arg0: i32) -> (i32, i32, i32) {
    %c0_i32 = arith.constant 0 : i32
    %c0_i32_0 = arith.constant 0 : i32
    %c0_i32_1 = arith.constant 0 : i32
    %c0_i32_2 = arith.constant 0 : i32
    return %c0_i32, %c0_i32_0, %c0_i32_1 : i32, i32, i32
  }
  func.func @transform_15(%arg0: i32) -> (i32, i32, i32) {
    %c0_i32 = arith.constant 0 : i32
    %c0_i32_0 = arith.constant 0 : i32
    %c0_i32_1 = arith.constant 0 : i32
    %c0_i32_2 = arith.constant 0 : i32
    return %c0_i32, %c0_i32_0, %c0_i32_1 : i32, i32, i32
  }
  func.func @transform_16(%arg0: i32) -> (i32, i32, i32) {
    %c0_i32 = arith.constant 0 : i32
    %c0_i32_0 = arith.constant 0 : i32
    %c0_i32_1 = arith.constant 0 : i32
    %c0_i32_2 = arith.constant 0 : i32
    return %c0_i32, %c0_i32_0, %c0_i32_1 : i32, i32, i32
  }
  func.func @transform_17(%arg0: i32) -> (i32, i32, i32) {
    %c0_i32 = arith.constant 0 : i32
    %c0_i32_0 = arith.constant 0 : i32
    %c0_i32_1 = arith.constant 0 : i32
    %c0_i32_2 = arith.constant 0 : i32
    return %c0_i32, %c0_i32_0, %c0_i32_1 : i32, i32, i32
  }
  func.func @transform_18(%arg0: i32) -> (i32, i32, i32) {
    %c0_i32 = arith.constant 0 : i32
    %c0_i32_0 = arith.constant 0 : i32
    %c0_i32_1 = arith.constant 0 : i32
    %c0_i32_2 = arith.constant 0 : i32
    return %c0_i32, %c0_i32_0, %c0_i32_1 : i32, i32, i32
  }
  func.func @transform_19(%arg0: i32) -> (i32, i32) {
    %c0_i32 = arith.constant 0 : i32
    %c0_i32_0 = arith.constant 0 : i32
    %c0_i32_1 = arith.constant 0 : i32
    return %c0_i32, %c0_i32_0 : i32, i32
  }
  func.func @transform_20(%arg0: i32) -> (i32, i32) {
    %c0_i32 = arith.constant 0 : i32
    %c0_i32_0 = arith.constant 0 : i32
    %c0_i32_1 = arith.constant 0 : i32
    return %c0_i32, %c0_i32_0 : i32, i32
  }
  func.func @transform_21(%arg0: i32) -> (i32, i32) {
    %c0_i32 = arith.constant 0 : i32
    %c0_i32_0 = arith.constant 0 : i32
    %c0_i32_1 = arith.constant 0 : i32
    return %c0_i32, %c0_i32_0 : i32, i32
  }
  func.func @transform_22(%arg0: i32) -> (i32, i32) {
    %c0_i32 = arith.constant 0 : i32
    %c0_i32_0 = arith.constant 0 : i32
    %c0_i32_1 = arith.constant 0 : i32
    return %c0_i32, %c0_i32_0 : i32, i32
  }
  func.func @transform_23(%arg0: i32) -> (i32, i32, i32) {
    %c0_i32 = arith.constant 0 : i32
    %c0_i32_0 = arith.constant 0 : i32
    %c0_i32_1 = arith.constant 0 : i32
    return %arg0, %c0_i32, %c0_i32_0 : i32, i32, i32
  }
}

</mosaic_0001>

<llo_original>
// kernel: long_ext_transformer_encoder.1
$region0: #{long_ext_transformer_encoder.1}
  #allocation0 [shape = 'u32[]', space=smem, size = 0x4, offset = 0x4, fixed_abs, tag = 'smem constant byte address 0x4 - core index']
  #allocation1 [shape = 'u32[144,128]{1,0:T(1,128)}', space=vmem, size = 0x12000, scoped, tag = 'internal scratch']
  #allocation2 [shape = 'f32[1,1]{1,0:T(1,128)S(1)}', space=vmem, size = 0x200, scoped, tag = 'scoped memory for long_ext_transformer_encoder.1']
  %s0 = inlined_call_operand.vmem [shape: f32[2,8,32], index: 0, kind: input, shape index: {}]
  %s1 = inlined_call_operand.vmem [shape: f32[2,1,8], index: 1, kind: input, shape index: {}]
  %s2 = inlined_call_operand.vmem [shape: f32[2,1,8], index: 2, kind: input, shape index: {}]
  %s3 = inlined_call_operand.vmem [shape: f32[2,1,32], index: 3, kind: input, shape index: {}]
  %s4 = inlined_call_operand.vmem [shape: f32[2,1,32], index: 4, kind: input, shape index: {}]
  %s5 = inlined_call_operand.vmem [shape: f32[2,4,32,8], index: 5, kind: input, shape index: {}]
  %s6 = inlined_call_operand.vmem [shape: f32[2,4,1,8], index: 6, kind: input, shape index: {}]
  %s7 = inlined_call_operand.vmem [shape: f32[2,4,32,8], index: 7, kind: input, shape index: {}]
  %s8 = inlined_call_operand.vmem [shape: f32[2,4,1,8], index: 8, kind: input, shape index: {}]
  %s9 = inlined_call_operand.vmem [shape: f32[2,4,32,8], index: 9, kind: input, shape index: {}]
  %s10 = inlined_call_operand.vmem [shape: f32[2,4,1,8], index: 10, kind: input, shape index: {}]
  %s11 = inlined_call_operand.vmem [shape: f32[2,4,8,32], index: 11, kind: input, shape index: {}]
  %s12 = inlined_call_operand.vmem [shape: f32[2,1,32], index: 12, kind: input, shape index: {}]
  %s13 = inlined_call_operand.vmem [shape: f32[2,1,32], index: 13, kind: input, shape index: {}]
  %s14 = inlined_call_operand.vmem [shape: f32[2,1,32], index: 14, kind: input, shape index: {}]
  %s15 = inlined_call_operand.vmem [shape: f32[2,32,64], index: 15, kind: input, shape index: {}]
  %s16 = inlined_call_operand.vmem [shape: f32[2,1,64], index: 16, kind: input, shape index: {}]
  %s17 = inlined_call_operand.vmem [shape: f32[2,64,32], index: 17, kind: input, shape index: {}]
  %s18 = inlined_call_operand.vmem [shape: f32[2,1,32], index: 18, kind: input, shape index: {}]
  %s19 = inlined_call_operand.vmem [shape: f32[1,32], index: 19, kind: input, shape index: {}]
  %s20 = inlined_call_operand.vmem [shape: f32[1,32], index: 20, kind: input, shape index: {}]
  %s21 = inlined_call_operand.vmem [shape: f32[1,32], index: 21, kind: input, shape index: {}]
  %s22 = inlined_call_operand.<no memory space> [shape: f32[1,1], index: 22, kind: input, shape index: {}]
  %s23 = inlined_call_operand.hbm [shape: f32[2,1,8], index: 23, kind: output, shape index: {}]
  %s24 = sld [smem:[#allocation0]]
  $region125: #{long_ext_transformer_encoder.1} parent=0
    _
  %s26 = ssub.s32 1, %s24
  %s27 = scalar_select 0, %s26, %s24
  %v28 = vstv %s22
  %29 = vst [vmem:[#allocation2] sm:$0x1] %v28
  $region1: #{long_ext_transformer_encoder.1} parent=0
    #allocation3 [shape = 'u8[1024]{0}', space=vmem, size = 0x400, scoped, tag = 'output window, operand 0']
    #allocation4 [shape = 's32[2]{0}', space=sflag, size = 0x8, scoped, tag = 'scoped memory for long_ext_transformer_encoder.1']
    %30 = vsyncpa [#allocation4], 0
    %s31 = scalar_lea.sflag [#allocation4], 1
    %32 = vsyncpa %s31, 0
    loop: start=0, step=1, limit=4
    $region2: #{long_ext_transformer_encoder.1} parent=1 // loop_pre_header
      _
    $region3: #{long_ext_transformer_encoder.1} parent=1 // loop_header
      %s34 = sphi 0, %s38
      %p35 = scmp.ge.s32.totalorder %s34, 4
      %s44 = sphi 0, %s46
      %s47 = sphi 0, %s44
      %s48 = sphi 0, %s47
      %s64 = sphi 0, %s48
      %s70 = sphi 0, %s72
      %s73 = sphi 0, %s70
      %s74 = sphi 0, %s73
      %s90 = sphi 0, %s74
      %s96 = sphi 0, %s98
      %s99 = sphi 0, %s96
      %s100 = sphi 0, %s99
      %s116 = sphi 0, %s100
      %s120 = sphi 0, %s120
      %s122 = sphi 0, %s120
      %s123 = sphi 0, %s122
      %s137 = sphi 0, %s123
      %s141 = sphi 0, %s141
      %s143 = sphi 0, %s141
      %s144 = sphi 0, %s143
      %s158 = sphi 0, %s144
      %s162 = sphi 0, %s162
      %s164 = sphi 0, %s162
      %s165 = sphi 0, %s164
      %s179 = sphi 0, %s165
      %s183 = sphi 0, %s183
      %s185 = sphi 0, %s183
      %s186 = sphi 0, %s185
      %s200 = sphi 0, %s186
      %s204 = sphi 0, %s204
      %s206 = sphi 0, %s204
      %s207 = sphi 0, %s206
      %s221 = sphi 0, %s207
      %s225 = sphi 0, %s225
      %s227 = sphi 0, %s225
      %s228 = sphi 0, %s227
      %s242 = sphi 0, %s228
      %s246 = sphi 0, %s246
      %s248 = sphi 0, %s246
      %s249 = sphi 0, %s248
      %s263 = sphi 0, %s249
      %s267 = sphi 0, %s267
      %s269 = sphi 0, %s267
      %s270 = sphi 0, %s269
      %s284 = sphi 0, %s270
      %s288 = sphi 0, %s288
      %s290 = sphi 0, %s288
      %s291 = sphi 0, %s290
      %s305 = sphi 0, %s291
      %s309 = sphi 0, %s309
      %s311 = sphi 0, %s309
      %s312 = sphi 0, %s311
      %s326 = sphi 0, %s312
      %s330 = sphi 0, %s330
      %s332 = sphi 0, %s330
      %s333 = sphi 0, %s332
      %s347 = sphi 0, %s333
      %s351 = sphi 0, %s351
      %s353 = sphi 0, %s351
      %s354 = sphi 0, %s353
      %s368 = sphi 0, %s354
      %s372 = sphi 0, %s372
      %s374 = sphi 0, %s372
      %s375 = sphi 0, %s374
      %s389 = sphi 0, %s375
      %s393 = sphi 0, %s393
      %s395 = sphi 0, %s393
      %s396 = sphi 0, %s395
      %s410 = sphi 0, %s396
      %s414 = sphi 0, %s414
      %s416 = sphi 0, %s414
      %s417 = sphi 0, %s416
      %s431 = sphi 0, %s417
      %s435 = sphi 0, %s435
      %s437 = sphi 0, %s435
      %s438 = sphi 0, %s437
      %s452 = sphi 0, %s438
      %s456 = sphi 0, %s456
      %s458 = sphi 0, %s456
      %s459 = sphi 0, %s458
      %s473 = sphi 0, %s459
      %s477 = sphi 0, %s477
      %s479 = sphi 0, %s477
      %s480 = sphi 0, %s479
      %s494 = sphi 0, %s480
      %s498 = sphi 0, %s498
      %s500 = sphi 0, %s498
      %s501 = sphi 0, %s500
      %s515 = sphi 0, %s501
      %s519 = sphi 0, %s519
      %s521 = sphi 0, %s519
      %s522 = sphi 0, %s521
      %s536 = sphi 0, %s522
      %s542 = sphi 0, %s544
      %s545 = sphi 0, %s542
      %s546 = sphi 0, %s545
      %s562 = sphi 0, %s546
    $region4: #{long_ext_transformer_encoder.1} parent=1 // loop_header_branch
      %37 = sbr.rel (%p35) target = $region8
    $region5: #{long_ext_transformer_encoder.1} parent=1 // loop_body
      %s39 = ssub.s32 %s34, 1
      %s40 = ssub.s32 %s34, 2
      %s41 = sadd.s32 %s34, 1
      %s42 = ssub.s32 %s34, %s41
      %p43 = scmp.eq.s32.totalorder %s42, 0
      %s45 = sadd.s32 %s44, 1
      %s46 = scalar_select %p43, %s44, %s45
      %p49 = pneg %p43
      %p50 = scmp.eq.s32.totalorder %s34, 1
      %p51 = por %p49, %p50
      %p52 = scmp.ne.s32.totalorder %s44, %s47
      %p53 = scmp.eq.s32.totalorder %s34, 0
      %p54 = por %p52, %p53
      %p55 = scmp.ne.s32.totalorder %s44, %s47
      %p56 = scmp.eq.s32.totalorder %s39, 1
      %p57 = por %p55, %p56
      %p58 = scmp.ne.s32.totalorder %s47, %s48
      %p59 = scmp.eq.s32.totalorder %s39, 0
      %p60 = por %p58, %p59
      %p61 = scmp.ne.s32.totalorder %s47, %s48
      %p62 = scmp.eq.s32.totalorder %s40, 1
      %p63 = por %p61, %p62
      %p65 = scmp.ne.s32.totalorder %s48, %s64
      %p66 = scmp.eq.s32.totalorder %s40, 0
      %p67 = por %p65, %p66
      %s68 = ssub.s32 %s34, %s41
      %p69 = scmp.eq.s32.totalorder %s68, 0
      %s71 = sadd.s32 %s70, 1
      %s72 = scalar_select %p69, %s70, %s71
      %p75 = pneg %p69
      %p76 = scmp.eq.s32.totalorder %s34, 1
      %p77 = por %p75, %p76
      %p78 = scmp.ne.s32.totalorder %s70, %s73
      %p79 = scmp.eq.s32.totalorder %s34, 0
      %p80 = por %p78, %p79
      %p81 = scmp.ne.s32.totalorder %s70, %s73
      %p82 = scmp.eq.s32.totalorder %s39, 1
      %p83 = por %p81, %p82
      %p84 = scmp.ne.s32.totalorder %s73, %s74
      %p85 = scmp.eq.s32.totalorder %s39, 0
      %p86 = por %p84, %p85
      %p87 = scmp.ne.s32.totalorder %s73, %s74
      %p88 = scmp.eq.s32.totalorder %s40, 1
      %p89 = por %p87, %p88
      %p91 = scmp.ne.s32.totalorder %s74, %s90
      %p92 = scmp.eq.s32.totalorder %s40, 0
      %p93 = por %p91, %p92
      %s94 = ssub.s32 %s34, %s41
      %p95 = scmp.eq.s32.totalorder %s94, 0
      %s97 = sadd.s32 %s96, 1
      %s98 = scalar_select %p95, %s96, %s97
      %p101 = pneg %p95
      %p102 = scmp.eq.s32.totalorder %s34, 1
      %p103 = por %p101, %p102
      %p104 = scmp.ne.s32.totalorder %s96, %s99
      %p105 = scmp.eq.s32.totalorder %s34, 0
      %p106 = por %p104, %p105
      %p107 = scmp.ne.s32.totalorder %s96, %s99
      %p108 = scmp.eq.s32.totalorder %s39, 1
      %p109 = por %p107, %p108
      %p110 = scmp.ne.s32.totalorder %s99, %s100
      %p111 = scmp.eq.s32.totalorder %s39, 0
      %p112 = por %p110, %p111
      %p113 = scmp.ne.s32.totalorder %s99, %s100
      %p114 = scmp.eq.s32.totalorder %s40, 1
      %p115 = por %p113, %p114
      %p117 = scmp.ne.s32.totalorder %s100, %s116
      %p118 = scmp.eq.s32.totalorder %s40, 0
      %p119 = por %p117, %p118
      %s121 = sadd.s32 %s120, 1
      %p124 = scmp.eq.s32.totalorder %s34, 1
      %p125 = scmp.ne.s32.totalorder %s120, %s122
      %p126 = scmp.eq.s32.totalorder %s34, 0
      %p127 = por %p125, %p126
      %p128 = scmp.ne.s32.totalorder %s120, %s122
      %p129 = scmp.eq.s32.totalorder %s39, 1
      %p130 = por %p128, %p129
      %p131 = scmp.ne.s32.totalorder %s122, %s123
      %p132 = scmp.eq.s32.totalorder %s39, 0
      %p133 = por %p131, %p132
      %p134 = scmp.ne.s32.totalorder %s122, %s123
      %p135 = scmp.eq.s32.totalorder %s40, 1
      %p136 = por %p134, %p135
      %p138 = scmp.ne.s32.totalorder %s123, %s137
      %p139 = scmp.eq.s32.totalorder %s40, 0
      %p140 = por %p138, %p139
      %s142 = sadd.s32 %s141, 1
      %p145 = scmp.eq.s32.totalorder %s34, 1
      %p146 = scmp.ne.s32.totalorder %s141, %s143
      %p147 = scmp.eq.s32.totalorder %s34, 0
      %p148 = por %p146, %p147
      %p149 = scmp.ne.s32.totalorder %s141, %s143
      %p150 = scmp.eq.s32.totalorder %s39, 1
      %p151 = por %p149, %p150
      %p152 = scmp.ne.s32.totalorder %s143, %s144
      %p153 = scmp.eq.s32.totalorder %s39, 0
      %p154 = por %p152, %p153
      %p155 = scmp.ne.s32.totalorder %s143, %s144
      %p156 = scmp.eq.s32.totalorder %s40, 1
      %p157 = por %p155, %p156
      %p159 = scmp.ne.s32.totalorder %s144, %s158
      %p160 = scmp.eq.s32.totalorder %s40, 0
      %p161 = por %p159, %p160
      %s163 = sadd.s32 %s162, 1
      %p166 = scmp.eq.s32.totalorder %s34, 1
      %p167 = scmp.ne.s32.totalorder %s162, %s164
      %p168 = scmp.eq.s32.totalorder %s34, 0
      %p169 = por %p167, %p168
      %p170 = scmp.ne.s32.totalorder %s162, %s164
      %p171 = scmp.eq.s32.totalorder %s39, 1
      %p172 = por %p170, %p171
      %p173 = scmp.ne.s32.totalorder %s164, %s165
      %p174 = scmp.eq.s32.totalorder %s39, 0
      %p175 = por %p173, %p174
      %p176 = scmp.ne.s32.totalorder %s164, %s165
      %p177 = scmp.eq.s32.totalorder %s40, 1
      %p178 = por %p176, %p177
      %p180 = scmp.ne.s32.totalorder %s165, %s179
      %p181 = scmp.eq.s32.totalorder %s40, 0
      %p182 = por %p180, %p181
      %s184 = sadd.s32 %s183, 1
      %p187 = scmp.eq.s32.totalorder %s34, 1
      %p188 = scmp.ne.s32.totalorder %s183, %s185
      %p189 = scmp.eq.s32.totalorder %s34, 0
      %p190 = por %p188, %p189
      %p191 = scmp.ne.s32.totalorder %s183, %s185
      %p192 = scmp.eq.s32.totalorder %s39, 1
      %p193 = por %p191, %p192
      %p194 = scmp.ne.s32.totalorder %s185, %s186
      %p195 = scmp.eq.s32.totalorder %s39, 0
      %p196 = por %p194, %p195
      %p197 = scmp.ne.s32.totalorder %s185, %s186
      %p198 = scmp.eq.s32.totalorder %s40, 1
      %p199 = por %p197, %p198
      %p201 = scmp.ne.s32.totalorder %s186, %s200
      %p202 = scmp.eq.s32.totalorder %s40, 0
      %p203 = por %p201, %p202
      %s205 = sadd.s32 %s204, 1
      %p208 = scmp.eq.s32.totalorder %s34, 1
      %p209 = scmp.ne.s32.totalorder %s204, %s206
      %p210 = scmp.eq.s32.totalorder %s34, 0
      %p211 = por %p209, %p210
      %p212 = scmp.ne.s32.totalorder %s204, %s206
      %p213 = scmp.eq.s32.totalorder %s39, 1
      %p214 = por %p212, %p213
      %p215 = scmp.ne.s32.totalorder %s206, %s207
      %p216 = scmp.eq.s32.totalorder %s39, 0
      %p217 = por %p215, %p216
      %p218 = scmp.ne.s32.totalorder %s206, %s207
      %p219 = scmp.eq.s32.totalorder %s40, 1
      %p220 = por %p218, %p219
      %p222 = scmp.ne.s32.totalorder %s207, %s221
      %p223 = scmp.eq.s32.totalorder %s40, 0
      %p224 = por %p222, %p223
      %s226 = sadd.s32 %s225, 1
      %p229 = scmp.eq.s32.totalorder %s34, 1
      %p230 = scmp.ne.s32.totalorder %s225, %s227
      %p231 = scmp.eq.s32.totalorder %s34, 0
      %p232 = por %p230, %p231
      %p233 = scmp.ne.s32.totalorder %s225, %s227
      %p234 = scmp.eq.s32.totalorder %s39, 1
      %p235 = por %p233, %p234
      %p236 = scmp.ne.s32.totalorder %s227, %s228
      %p237 = scmp.eq.s32.totalorder %s39, 0
      %p238 = por %p236, %p237
      %p239 = scmp.ne.s32.totalorder %s227, %s228
      %p240 = scmp.eq.s32.totalorder %s40, 1
      %p241 = por %p239, %p240
      %p243 = scmp.ne.s32.totalorder %s228, %s242
      %p244 = scmp.eq.s32.totalorder %s40, 0
      %p245 = por %p243, %p244
      %s247 = sadd.s32 %s246, 1
      %p250 = scmp.eq.s32.totalorder %s34, 1
      %p251 = scmp.ne.s32.totalorder %s246, %s248
      %p252 = scmp.eq.s32.totalorder %s34, 0
      %p253 = por %p251, %p252
      %p254 = scmp.ne.s32.totalorder %s246, %s248
      %p255 = scmp.eq.s32.totalorder %s39, 1
      %p256 = por %p254, %p255
      %p257 = scmp.ne.s32.totalorder %s248, %s249
      %p258 = scmp.eq.s32.totalorder %s39, 0
      %p259 = por %p257, %p258
      %p260 = scmp.ne.s32.totalorder %s248, %s249
      %p261 = scmp.eq.s32.totalorder %s40, 1
      %p262 = por %p260, %p261
      %p264 = scmp.ne.s32.totalorder %s249, %s263
      %p265 = scmp.eq.s32.totalorder %s40, 0
      %p266 = por %p264, %p265
      %s268 = sadd.s32 %s267, 1
      %p271 = scmp.eq.s32.totalorder %s34, 1
      %p272 = scmp.ne.s32.totalorder %s267, %s269
      %p273 = scmp.eq.s32.totalorder %s34, 0
      %p274 = por %p272, %p273
      %p275 = scmp.ne.s32.totalorder %s267, %s269
      %p276 = scmp.eq.s32.totalorder %s39, 1
      %p277 = por %p275, %p276
      %p278 = scmp.ne.s32.totalorder %s269, %s270
      %p279 = scmp.eq.s32.totalorder %s39, 0
      %p280 = por %p278, %p279
      %p281 = scmp.ne.s32.totalorder %s269, %s270
      %p282 = scmp.eq.s32.totalorder %s40, 1
      %p283 = por %p281, %p282
      %p285 = scmp.ne.s32.totalorder %s270, %s284
      %p286 = scmp.eq.s32.totalorder %s40, 0
      %p287 = por %p285, %p286
      %s289 = sadd.s32 %s288, 1
      %p292 = scmp.eq.s32.totalorder %s34, 1
      %p293 = scmp.ne.s32.totalorder %s288, %s290
      %p294 = scmp.eq.s32.totalorder %s34, 0
      %p295 = por %p293, %p294
      %p296 = scmp.ne.s32.totalorder %s288, %s290
      %p297 = scmp.eq.s32.totalorder %s39, 1
      %p298 = por %p296, %p297
      %p299 = scmp.ne.s32.totalorder %s290, %s291
      %p300 = scmp.eq.s32.totalorder %s39, 0
      %p301 = por %p299, %p300
      %p302 = scmp.ne.s32.totalorder %s290, %s291
      %p303 = scmp.eq.s32.totalorder %s40, 1
      %p304 = por %p302, %p303
      %p306 = scmp.ne.s32.totalorder %s291, %s305
      %p307 = scmp.eq.s32.totalorder %s40, 0
      %p308 = por %p306, %p307
      %s310 = sadd.s32 %s309, 1
      %p313 = scmp.eq.s32.totalorder %s34, 1
      %p314 = scmp.ne.s32.totalorder %s309, %s311
      %p315 = scmp.eq.s32.totalorder %s34, 0
      %p316 = por %p314, %p315
      %p317 = scmp.ne.s32.totalorder %s309, %s311
      %p318 = scmp.eq.s32.totalorder %s39, 1
      %p319 = por %p317, %p318
      %p320 = scmp.ne.s32.totalorder %s311, %s312
      %p321 = scmp.eq.s32.totalorder %s39, 0
      %p322 = por %p320, %p321
      %p323 = scmp.ne.s32.totalorder %s311, %s312
      %p324 = scmp.eq.s32.totalorder %s40, 1
      %p325 = por %p323, %p324
      %p327 = scmp.ne.s32.totalorder %s312, %s326
      %p328 = scmp.eq.s32.totalorder %s40, 0
      %p329 = por %p327, %p328
      %s331 = sadd.s32 %s330, 1
      %p334 = scmp.eq.s32.totalorder %s34, 1
      %p335 = scmp.ne.s32.totalorder %s330, %s332
      %p336 = scmp.eq.s32.totalorder %s34, 0
      %p337 = por %p335, %p336
      %p338 = scmp.ne.s32.totalorder %s330, %s332
      %p339 = scmp.eq.s32.totalorder %s39, 1
      %p340 = por %p338, %p339
      %p341 = scmp.ne.s32.totalorder %s332, %s333
      %p342 = scmp.eq.s32.totalorder %s39, 0
      %p343 = por %p341, %p342
      %p344 = scmp.ne.s32.totalorder %s332, %s333
      %p345 = scmp.eq.s32.totalorder %s40, 1
      %p346 = por %p344, %p345
      %p348 = scmp.ne.s32.totalorder %s333, %s347
      %p349 = scmp.eq.s32.totalorder %s40, 0
      %p350 = por %p348, %p349
      %s352 = sadd.s32 %s351, 1
      %p355 = scmp.eq.s32.totalorder %s34, 1
      %p356 = scmp.ne.s32.totalorder %s351, %s353
      %p357 = scmp.eq.s32.totalorder %s34, 0
      %p358 = por %p356, %p357
      %p359 = scmp.ne.s32.totalorder %s351, %s353
      %p360 = scmp.eq.s32.totalorder %s39, 1
      %p361 = por %p359, %p360
      %p362 = scmp.ne.s32.totalorder %s353, %s354
      %p363 = scmp.eq.s32.totalorder %s39, 0
      %p364 = por %p362, %p363
      %p365 = scmp.ne.s32.totalorder %s353, %s354
      %p366 = scmp.eq.s32.totalorder %s40, 1
      %p367 = por %p365, %p366
      %p369 = scmp.ne.s32.totalorder %s354, %s368
      %p370 = scmp.eq.s32.totalorder %s40, 0
      %p371 = por %p369, %p370
      %s373 = sadd.s32 %s372, 1
      %p376 = scmp.eq.s32.totalorder %s34, 1
      %p377 = scmp.ne.s32.totalorder %s372, %s374
      %p378 = scmp.eq.s32.totalorder %s34, 0
      %p379 = por %p377, %p378
      %p380 = scmp.ne.s32.totalorder %s372, %s374
      %p381 = scmp.eq.s32.totalorder %s39, 1
      %p382 = por %p380, %p381
      %p383 = scmp.ne.s32.totalorder %s374, %s375
      %p384 = scmp.eq.s32.totalorder %s39, 0
      %p385 = por %p383, %p384
      %p386 = scmp.ne.s32.totalorder %s374, %s375
      %p387 = scmp.eq.s32.totalorder %s40, 1
      %p388 = por %p386, %p387
      %p390 = scmp.ne.s32.totalorder %s375, %s389
      %p391 = scmp.eq.s32.totalorder %s40, 0
      %p392 = por %p390, %p391
      %s394 = sadd.s32 %s393, 1
      %p397 = scmp.eq.s32.totalorder %s34, 1
      %p398 = scmp.ne.s32.totalorder %s393, %s395
      %p399 = scmp.eq.s32.totalorder %s34, 0
      %p400 = por %p398, %p399
      %p401 = scmp.ne.s32.totalorder %s393, %s395
      %p402 = scmp.eq.s32.totalorder %s39, 1
      %p403 = por %p401, %p402
      %p404 = scmp.ne.s32.totalorder %s395, %s396
      %p405 = scmp.eq.s32.totalorder %s39, 0
      %p406 = por %p404, %p405
      %p407 = scmp.ne.s32.totalorder %s395, %s396
      %p408 = scmp.eq.s32.totalorder %s40, 1
      %p409 = por %p407, %p408
      %p411 = scmp.ne.s32.totalorder %s396, %s410
      %p412 = scmp.eq.s32.totalorder %s40, 0
      %p413 = por %p411, %p412
      %s415 = sadd.s32 %s414, 1
      %p418 = scmp.eq.s32.totalorder %s34, 1
      %p419 = scmp.ne.s32.totalorder %s414, %s416
      %p420 = scmp.eq.s32.totalorder %s34, 0
      %p421 = por %p419, %p420
      %p422 = scmp.ne.s32.totalorder %s414, %s416
      %p423 = scmp.eq.s32.totalorder %s39, 1
      %p424 = por %p422, %p423
      %p425 = scmp.ne.s32.totalorder %s416, %s417
      %p426 = scmp.eq.s32.totalorder %s39, 0
      %p427 = por %p425, %p426
      %p428 = scmp.ne.s32.totalorder %s416, %s417
      %p429 = scmp.eq.s32.totalorder %s40, 1
      %p430 = por %p428, %p429
      %p432 = scmp.ne.s32.totalorder %s417, %s431
      %p433 = scmp.eq.s32.totalorder %s40, 0
      %p434 = por %p432, %p433
      %s436 = sadd.s32 %s435, 1
      %p439 = scmp.eq.s32.totalorder %s34, 1
      %p440 = scmp.ne.s32.totalorder %s435, %s437
      %p441 = scmp.eq.s32.totalorder %s34, 0
      %p442 = por %p440, %p441
      %p443 = scmp.ne.s32.totalorder %s435, %s437
      %p444 = scmp.eq.s32.totalorder %s39, 1
      %p445 = por %p443, %p444
      %p446 = scmp.ne.s32.totalorder %s437, %s438
      %p447 = scmp.eq.s32.totalorder %s39, 0
      %p448 = por %p446, %p447
      %p449 = scmp.ne.s32.totalorder %s437, %s438
      %p450 = scmp.eq.s32.totalorder %s40, 1
      %p451 = por %p449, %p450
      %p453 = scmp.ne.s32.totalorder %s438, %s452
      %p454 = scmp.eq.s32.totalorder %s40, 0
      %p455 = por %p453, %p454
      %s457 = sadd.s32 %s456, 1
      %p460 = scmp.eq.s32.totalorder %s34, 1
      %p461 = scmp.ne.s32.totalorder %s456, %s458
      %p462 = scmp.eq.s32.totalorder %s34, 0
      %p463 = por %p461, %p462
      %p464 = scmp.ne.s32.totalorder %s456, %s458
      %p465 = scmp.eq.s32.totalorder %s39, 1
      %p466 = por %p464, %p465
      %p467 = scmp.ne.s32.totalorder %s458, %s459
      %p468 = scmp.eq.s32.totalorder %s39, 0
      %p469 = por %p467, %p468
      %p470 = scmp.ne.s32.totalorder %s458, %s459
      %p471 = scmp.eq.s32.totalorder %s40, 1
      %p472 = por %p470, %p471
      %p474 = scmp.ne.s32.totalorder %s459, %s473
      %p475 = scmp.eq.s32.totalorder %s40, 0
      %p476 = por %p474, %p475
      %s478 = sadd.s32 %s477, 1
      %p481 = scmp.eq.s32.totalorder %s34, 1
      %p482 = scmp.ne.s32.totalorder %s477, %s479
      %p483 = scmp.eq.s32.totalorder %s34, 0
      %p484 = por %p482, %p483
      %p485 = scmp.ne.s32.totalorder %s477, %s479
      %p486 = scmp.eq.s32.totalorder %s39, 1
      %p487 = por %p485, %p486
      %p488 = scmp.ne.s32.totalorder %s479, %s480
      %p489 = scmp.eq.s32.totalorder %s39, 0
      %p490 = por %p488, %p489
      %p491 = scmp.ne.s32.totalorder %s479, %s480
      %p492 = scmp.eq.s32.totalorder %s40, 1
      %p493 = por %p491, %p492
      %p495 = scmp.ne.s32.totalorder %s480, %s494
      %p496 = scmp.eq.s32.totalorder %s40, 0
      %p497 = por %p495, %p496
      %s499 = sadd.s32 %s498, 1
      %p502 = scmp.eq.s32.totalorder %s34, 1
      %p503 = scmp.ne.s32.totalorder %s498, %s500
      %p504 = scmp.eq.s32.totalorder %s34, 0
      %p505 = por %p503, %p504
      %p506 = scmp.ne.s32.totalorder %s498, %s500
      %p507 = scmp.eq.s32.totalorder %s39, 1
      %p508 = por %p506, %p507
      %p509 = scmp.ne.s32.totalorder %s500, %s501
      %p510 = scmp.eq.s32.totalorder %s39, 0
      %p511 = por %p509, %p510
      %p512 = scmp.ne.s32.totalorder %s500, %s501
      %p513 = scmp.eq.s32.totalorder %s40, 1
      %p514 = por %p512, %p513
      %p516 = scmp.ne.s32.totalorder %s501, %s515
      %p517 = scmp.eq.s32.totalorder %s40, 0
      %p518 = por %p516, %p517
      %s520 = sadd.s32 %s519, 1
      %p523 = scmp.eq.s32.totalorder %s34, 1
      %p524 = scmp.ne.s32.totalorder %s519, %s521
      %p525 = scmp.eq.s32.totalorder %s34, 0
      %p526 = por %p524, %p525
      %p527 = scmp.ne.s32.totalorder %s519, %s521
      %p528 = scmp.eq.s32.totalorder %s39, 1
      %p529 = por %p527, %p528
      %p530 = scmp.ne.s32.totalorder %s521, %s522
      %p531 = scmp.eq.s32.totalorder %s39, 0
      %p532 = por %p530, %p531
      %p533 = scmp.ne.s32.totalorder %s521, %s522
      %p534 = scmp.eq.s32.totalorder %s40, 1
      %p535 = por %p533, %p534
      %p537 = scmp.ne.s32.totalorder %s522, %s536
      %p538 = scmp.eq.s32.totalorder %s40, 0
      %p539 = por %p537, %p538
      %s540 = ssub.s32 %s34, %s41
      %p541 = scmp.eq.s32.totalorder %s540, 0
      %s543 = sadd.s32 %s542, 1
      %s544 = scalar_select %p541, %s542, %s543
      %p547 = pneg %p541
      %p548 = scmp.eq.s32.totalorder %s34, 1
      %p549 = por %p547, %p548
      %p550 = scmp.ne.s32.totalorder %s542, %s545
      %p551 = scmp.eq.s32.totalorder %s34, 0
      %p552 = por %p550, %p551
      %p553 = scmp.ne.s32.totalorder %s542, %s545
      %p554 = scmp.eq.s32.totalorder %s39, 1
      %p555 = por %p553, %p554
      %p556 = scmp.ne.s32.totalorder %s545, %s546
      %p557 = scmp.eq.s32.totalorder %s39, 0
      %p558 = por %p556, %p557
      %p559 = scmp.ne.s32.totalorder %s545, %s546
      %p560 = scmp.eq.s32.totalorder %s40, 1
      %p561 = por %p559, %p560
      %p563 = scmp.ne.s32.totalorder %s546, %s562
      %p564 = scmp.eq.s32.totalorder %s40, 0
      %p565 = por %p563, %p564
      %p566 = scmp.le.s32.totalorder 1, %s34
      %p567 = scmp.lt.s32.totalorder %s34, 3
      %p568 = pnand %p566, %p567
      %p569 = pneg %p568
      // Predicated region
      $region9: #{long_ext_transformer_encoder.1} parent=5 // pred_check
        _
      $region10: #{long_ext_transformer_encoder.1} parent=5 // pred_check_branch
        %571 = sbr.rel (%p568) target = $region12
      $region11: #{long_ext_transformer_encoder.1} parent=5 // pred_region
        %s572 = ssub.s32 %s34, 1
        // Predicated region
        $region13: #{long_ext_transformer_encoder.1} parent=11 // pred_check
          %p573 = pneg %p133
        $region14: #{long_ext_transformer_encoder.1} parent=11 // pred_check_branch
          %575 = sbr.rel (%p573) target = $region16
        $region15: #{long_ext_transformer_encoder.1} parent=11 // pred_region
          _
        $region16: #{long_ext_transformer_encoder.1} parent=11 // pred_fallthru
          _
        // Predicated region
        $region17: #{long_ext_transformer_encoder.1} parent=11 // pred_check
          %p576 = pneg %p154
        $region18: #{long_ext_transformer_encoder.1} parent=11 // pred_check_branch
          %578 = sbr.rel (%p576) target = $region20
        $region19: #{long_ext_transformer_encoder.1} parent=11 // pred_region
          _
        $region20: #{long_ext_transformer_encoder.1} parent=11 // pred_fallthru
          _
        // Predicated region
        $region21: #{long_ext_transformer_encoder.1} parent=11 // pred_check
          %p579 = pneg %p175
        $region22: #{long_ext_transformer_encoder.1} parent=11 // pred_check_branch
          %581 = sbr.rel (%p579) target = $region24
        $region23: #{long_ext_transformer_encoder.1} parent=11 // pred_region
          _
        $region24: #{long_ext_transformer_encoder.1} parent=11 // pred_fallthru
          _
        // Predicated region
        $region25: #{long_ext_transformer_encoder.1} parent=11 // pred_check
          %p582 = pneg %p196
        $region26: #{long_ext_transformer_encoder.1} parent=11 // pred_check_branch
          %584 = sbr.rel (%p582) target = $region28
        $region27: #{long_ext_transformer_encoder.1} parent=11 // pred_region
          _
        $region28: #{long_ext_transformer_encoder.1} parent=11 // pred_fallthru
          _
        // Predicated region
        $region29: #{long_ext_transformer_encoder.1} parent=11 // pred_check
          %p585 = pneg %p217
        $region30: #{long_ext_transformer_encoder.1} parent=11 // pred_check_branch
          %587 = sbr.rel (%p585) target = $region32
        $region31: #{long_ext_transformer_encoder.1} parent=11 // pred_region
          _
        $region32: #{long_ext_transformer_encoder.1} parent=11 // pred_fallthru
          _
        // Predicated region
        $region33: #{long_ext_transformer_encoder.1} parent=11 // pred_check
          %p588 = pneg %p238
        $region34: #{long_ext_transformer_encoder.1} parent=11 // pred_check_branch
          %590 = sbr.rel (%p588) target = $region36
        $region35: #{long_ext_transformer_encoder.1} parent=11 // pred_region
          _
        $region36: #{long_ext_transformer_encoder.1} parent=11 // pred_fallthru
          _
        // Predicated region
        $region37: #{long_ext_transformer_encoder.1} parent=11 // pred_check
          %p591 = pneg %p259
        $region38: #{long_ext_transformer_encoder.1} parent=11 // pred_check_branch
          %593 = sbr.rel (%p591) target = $region40
        $region39: #{long_ext_transformer_encoder.1} parent=11 // pred_region
          _
        $region40: #{long_ext_transformer_encoder.1} parent=11 // pred_fallthru
          _
        // Predicated region
        $region41: #{long_ext_transformer_encoder.1} parent=11 // pred_check
          %p594 = pneg %p280
        $region42: #{long_ext_transformer_encoder.1} parent=11 // pred_check_branch
          %596 = sbr.rel (%p594) target = $region44
        $region43: #{long_ext_transformer_encoder.1} parent=11 // pred_region
          _
        $region44: #{long_ext_transformer_encoder.1} parent=11 // pred_fallthru
          _
        // Predicated region
        $region45: #{long_ext_transformer_encoder.1} parent=11 // pred_check
          %p597 = pneg %p301
        $region46: #{long_ext_transformer_encoder.1} parent=11 // pred_check_branch
          %599 = sbr.rel (%p597) target = $region48
        $region47: #{long_ext_transformer_encoder.1} parent=11 // pred_region
          _
        $region48: #{long_ext_transformer_encoder.1} parent=11 // pred_fallthru
          _
        // Predicated region
        $region49: #{long_ext_transformer_encoder.1} parent=11 // pred_check
          %p600 = pneg %p322
        $region50: #{long_ext_transformer_encoder.1} parent=11 // pred_check_branch
          %602 = sbr.rel (%p600) target = $region52
        $region51: #{long_ext_transformer_encoder.1} parent=11 // pred_region
          _
        $region52: #{long_ext_transformer_encoder.1} parent=11 // pred_fallthru
          _
        // Predicated region
        $region53: #{long_ext_transformer_encoder.1} parent=11 // pred_check
          %p603 = pneg %p343
        $region54: #{long_ext_transformer_encoder.1} parent=11 // pred_check_branch
          %605 = sbr.rel (%p603) target = $region56
        $region55: #{long_ext_transformer_encoder.1} parent=11 // pred_region
          _
        $region56: #{long_ext_transformer_encoder.1} parent=11 // pred_fallthru
          _
        // Predicated region
        $region57: #{long_ext_transformer_encoder.1} parent=11 // pred_check
          %p606 = pneg %p364
        $region58: #{long_ext_transformer_encoder.1} parent=11 // pred_check_branch
          %608 = sbr.rel (%p606) target = $region60
        $region59: #{long_ext_transformer_encoder.1} parent=11 // pred_region
          _
        $region60: #{long_ext_transformer_encoder.1} parent=11 // pred_fallthru
          _
        // Predicated region
        $region61: #{long_ext_transformer_encoder.1} parent=11 // pred_check
          %p609 = pneg %p385
        $region62: #{long_ext_transformer_encoder.1} parent=11 // pred_check_branch
          %611 = sbr.rel (%p609) target = $region64
        $region63: #{long_ext_transformer_encoder.1} parent=11 // pred_region
          _
        $region64: #{long_ext_transformer_encoder.1} parent=11 // pred_fallthru
          _
        // Predicated region
        $region65: #{long_ext_transformer_encoder.1} parent=11 // pred_check
          %p612 = pneg %p406
        $region66: #{long_ext_transformer_encoder.1} parent=11 // pred_check_branch
          %614 = sbr.rel (%p612) target = $region68
        $region67: #{long_ext_transformer_encoder.1} parent=11 // pred_region
          _
        $region68: #{long_ext_transformer_encoder.1} parent=11 // pred_fallthru
          _
        // Predicated region
        $region69: #{long_ext_transformer_encoder.1} parent=11 // pred_check
          %p615 = pneg %p427
        $region70: #{long_ext_transformer_encoder.1} parent=11 // pred_check_branch
          %617 = sbr.rel (%p615) target = $region72
        $region71: #{long_ext_transformer_encoder.1} parent=11 // pred_region
          _
        $region72: #{long_ext_transformer_encoder.1} parent=11 // pred_fallthru
          _
        // Predicated region
        $region73: #{long_ext_transformer_encoder.1} parent=11 // pred_check
          %p618 = pneg %p448
        $region74: #{long_ext_transformer_encoder.1} parent=11 // pred_check_branch
          %620 = sbr.rel (%p618) target = $region76
        $region75: #{long_ext_transformer_encoder.1} parent=11 // pred_region
          _
        $region76: #{long_ext_transformer_encoder.1} parent=11 // pred_fallthru
          _
        // Predicated region
        $region77: #{long_ext_transformer_encoder.1} parent=11 // pred_check
          %p621 = pneg %p469
        $region78: #{long_ext_transformer_encoder.1} parent=11 // pred_check_branch
          %623 = sbr.rel (%p621) target = $region80
        $region79: #{long_ext_transformer_encoder.1} parent=11 // pred_region
          _
        $region80: #{long_ext_transformer_encoder.1} parent=11 // pred_fallthru
          _
        // Predicated region
        $region81: #{long_ext_transformer_encoder.1} parent=11 // pred_check
          %p624 = pneg %p490
        $region82: #{long_ext_transformer_encoder.1} parent=11 // pred_check_branch
          %626 = sbr.rel (%p624) target = $region84
        $region83: #{long_ext_transformer_encoder.1} parent=11 // pred_region
          _
        $region84: #{long_ext_transformer_encoder.1} parent=11 // pred_fallthru
          _
        // Predicated region
        $region85: #{long_ext_transformer_encoder.1} parent=11 // pred_check
          %p627 = pneg %p511
        $region86: #{long_ext_transformer_encoder.1} parent=11 // pred_check_branch
          %629 = sbr.rel (%p627) target = $region88
        $region87: #{long_ext_transformer_encoder.1} parent=11 // pred_region
          _
        $region88: #{long_ext_transformer_encoder.1} parent=11 // pred_fallthru
          _
        // Predicated region
        $region89: #{long_ext_transformer_encoder.1} parent=11 // pred_check
          %p630 = pneg %p532
        $region90: #{long_ext_transformer_encoder.1} parent=11 // pred_check_branch
          %632 = sbr.rel (%p630) target = $region92
        $region91: #{long_ext_transformer_encoder.1} parent=11 // pred_region
          _
        $region92: #{long_ext_transformer_encoder.1} parent=11 // pred_fallthru
          _
      $region12: #{long_ext_transformer_encoder.1} parent=5 // pred_fallthru
        _
      %p633 = scmp.lt.s32.totalorder %s34, 2
      // Predicated region
      $region93: #{long_ext_transformer_encoder.1} parent=5 // pred_check
        %p634 = pneg %p633
      $region94: #{long_ext_transformer_encoder.1} parent=5 // pred_check_branch
        %636 = sbr.rel (%p634) target = $region96
      $region95: #{long_ext_transformer_encoder.1} parent=5 // pred_region
        // Predicated region
        $region97: #{long_ext_transformer_encoder.1} parent=95 // pred_check
          %p637 = pneg %p54
        $region98: #{long_ext_transformer_encoder.1} parent=95 // pred_check_branch
          %639 = sbr.rel (%p637) target = $region100
        $region99: #{long_ext_transformer_encoder.1} parent=95 // pred_region
          %p640 = scmp.lt.s32.totalorder %s34, 1
          %s641 = scalar_select %p640, %s34, 1
          %s642 = smul.addr %s641, 8
          %s643 = scalar_lea.vmem %s0, %s642
        $region100: #{long_ext_transformer_encoder.1} parent=95 // pred_fallthru
          _
        // Predicated region
        $region101: #{long_ext_transformer_encoder.1} parent=95 // pred_check
          %p644 = pneg %p80
        $region102: #{long_ext_transformer_encoder.1} parent=95 // pred_check_branch
          %646 = sbr.rel (%p644) target = $region104
        $region103: #{long_ext_transformer_encoder.1} parent=95 // pred_region
          %p647 = scmp.lt.s32.totalorder %s34, 1
          %s648 = scalar_select %p647, %s34, 1
          %s649 = scalar_lea.vmem %s1, %s648
        $region104: #{long_ext_transformer_encoder.1} parent=95 // pred_fallthru
          _
        // Predicated region
        $region105: #{long_ext_transformer_encoder.1} parent=95 // pred_check
          %p650 = pneg %p106
        $region106: #{long_ext_transformer_encoder.1} parent=95 // pred_check_branch
          %652 = sbr.rel (%p650) target = $region108
        $region107: #{long_ext_transformer_encoder.1} parent=95 // pred_region
          %p653 = scmp.lt.s32.totalorder %s34, 1
          %s654 = scalar_select %p653, %s34, 1
          %s655 = scalar_lea.vmem %s2, %s654
        $region108: #{long_ext_transformer_encoder.1} parent=95 // pred_fallthru
          _
      $region96: #{long_ext_transformer_encoder.1} parent=5 // pred_fallthru
        _
      %p656 = scmp.le.s32.totalorder 1, %s34
      %p657 = scmp.lt.s32.totalorder %s34, 3
      %p658 = pnand %p656, %p657
      %p659 = pneg %p658
      // Predicated region
      $region109: #{long_ext_transformer_encoder.1} parent=5 // pred_check
        _
      $region110: #{long_ext_transformer_encoder.1} parent=5 // pred_check_branch
        %661 = sbr.rel (%p658) target = $region112
      $region111: #{long_ext_transformer_encoder.1} parent=5 // pred_region
        %s662 = ssub.s32 %s34, 1
        %p663 = scmp.lt.s32.totalorder %s39, 1
        %s664 = scalar_select %p663, %s39, 1
        %s665 = smul.addr %s664, 8
        %s666 = scalar_lea.vmem %s0, %s665
        %p667 = pneg %p60
        %p668 = pneg %p57
        %p669 = scmp.lt.s32.totalorder %s39, 1
        %s670 = scalar_select %p669, %s39, 1
        %s671 = scalar_lea.vmem %s1, %s670
        %p672 = pneg %p86
        %p673 = pneg %p83
        %p674 = scmp.lt.s32.totalorder %s39, 1
        %s675 = scalar_select %p674, %s39, 1
        %s676 = scalar_lea.vmem %s2, %s675
        %p677 = pneg %p112
        %p678 = pneg %p109
        %p679 = pneg %p133
        %p680 = pneg %p130
        %p681 = pneg %p154
        %p682 = pneg %p151
        %p683 = pneg %p175
        %p684 = pneg %p172
        %p685 = pneg %p196
        %p686 = pneg %p193
        %p687 = pneg %p217
        %p688 = pneg %p214
        %p689 = pneg %p238
        %p690 = pneg %p235
        %p691 = pneg %p259
        %p692 = pneg %p256
        %p693 = pneg %p280
        %p694 = pneg %p277
        %p695 = pneg %p301
        %p696 = pneg %p298
        %p697 = pneg %p322
        %p698 = pneg %p319
        %p699 = pneg %p343
        %p700 = pneg %p340
        %p701 = pneg %p364
        %p702 = pneg %p361
        %p703 = pneg %p385
        %p704 = pneg %p382
        %p705 = pneg %p406
        %p706 = pneg %p403
        %p707 = pneg %p427
        %p708 = pneg %p424
        %p709 = pneg %p448
        %p710 = pneg %p445
        %p711 = pneg %p469
        %p712 = pneg %p466
        %p713 = pneg %p490
        %p714 = pneg %p487
        %p715 = pneg %p511
        %p716 = pneg %p508
        %p717 = pneg %p532
        %p718 = pneg %p529
        %p719 = pneg %p558
        %p720 = pneg %p555
        %s721 = sand.u32 %s545, 1
        %s722 = scalar_lea.sflag [#allocation4], %s721
        %s723 = sand.u32 %s545, 1
        %s724 = scalar_lea.vmem [#allocation3], %s723
        %p725 = scmp.lt.s32.totalorder %s39, 1
        %s726 = scalar_select %p725, %s39, 1
        %s727 = smul.addr %s726, 8
        %s728 = scalar_lea.vmem %s0, %s727
        %p729 = scmp.lt.s32.totalorder %s39, 1
        %s730 = scalar_select %p729, %s39, 1
        %s731 = scalar_lea.vmem %s1, %s730
        %p732 = scmp.lt.s32.totalorder %s39, 1
        %s733 = scalar_select %p732, %s39, 1
        %s734 = scalar_lea.vmem %s2, %s733
        %v735 = vld [vmem:[%s728] sm:$0xff]
        %v736 = vld [vmem:[%s731] sm:$0x1]
        %v737 = vld [vmem:[%s5] sm:$0xff]
        %v738 = vld [vmem:[%s5 + $0x8] sm:$0xff]
        %v739 = vld [vmem:[%s5 + $0x10] sm:$0xff]
        %v740 = vld [vmem:[%s5 + $0x18] sm:$0xff]
        %v741 = vld [vmem:[%s6] sm:$0x1]
        %v743 = vlaneseq
        %v744 = vshrl.u32 %v743, 7
        %v745 = vsub.s32 0, %v744
        %v746 = vrot.slane %v741, %v745
        %vm748 = vcmask 261120
        %v750 = vsel %vm748, %v735, 0
        %752 = vmatprep.subr.mxu0 0.0
        %753 = vmatpush1.msra.mxu0 0.0
        %754 = vmatprep.subr.mxu0 0.0
        %755 = vmatpush1.msra.mxu0 0.0
        %756 = vmatprep.subr.mxu0 0.0
        %757 = vmatpush1.msra.mxu0 0.0
        %758 = vmatprep.subr.mxu0 0.0
        %759 = vmatpush1.msra.mxu0 0.0
        %760 = vmatprep.subr.mxu0 0.0
        %761 = vmatpush1.msra.mxu0 0.0
        %762 = vmatprep.subr.mxu0 0.0
        %763 = vmatpush1.msra.mxu0 0.0
        %764 = vmatprep.subr.mxu0 0.0
        %765 = vmatpush1.msra.mxu0 0.0
        %766 = vmatprep.subr.mxu0 0.0
        %767 = vmatpush1.msra.mxu0 0.0
        %768 = vmatprep.subr.mxu0 0.0
        %769 = vmatpush1.msra.mxu0 0.0
        %770 = vmatprep.subr.mxu0 0.0
        %771 = vmatpush1.msra.mxu0 0.0
        %772 = vmatprep.subr.mxu0 0.0
        %773 = vmatpush1.msra.mxu0 0.0
        %774 = vmatprep.subr.mxu0 0.0
        %775 = vmatpush1.msra.mxu0 0.0
        %776 = vmatprep.subr.mxu0 0.0
        %777 = vmatpush1.msra.mxu0 %v740
        %778 = vmatprep.subr.mxu0 0.0
        %779 = vmatpush1.msra.mxu0 %v739
        %780 = vmatprep.subr.mxu0 0.0
        %781 = vmatpush1.msra.mxu0 %v738
        %782 = vmatprep.subr.mxu0 0.0
        %783 = vmatpush1.msra.mxu0 %v737
        %784 = vmatprep.subr.mxu0 0.0
        %785 = vmatpush2.msra.mxu0 0.0
        %786 = vmatprep.subr.mxu0 0.0
        %787 = vmatpush2.msra.mxu0 0.0
        %788 = vmatprep.subr.mxu0 0.0
        %789 = vmatpush2.msra.mxu0 0.0
        %790 = vmatprep.subr.mxu0 0.0
        %791 = vmatpush2.msra.mxu0 0.0
        %792 = vmatprep.subr.mxu0 0.0
        %793 = vmatpush2.msra.mxu0 0.0
        %794 = vmatprep.subr.mxu0 0.0
        %795 = vmatpush2.msra.mxu0 0.0
        %796 = vmatprep.subr.mxu0 0.0
        %797 = vmatpush2.msra.mxu0 0.0
        %798 = vmatprep.subr.mxu0 0.0
        %799 = vmatpush2.msra.mxu0 0.0
        %800 = vmatprep.subr.mxu0 0.0
        %801 = vmatpush2.msra.mxu0 0.0
        %802 = vmatprep.subr.mxu0 0.0
        %803 = vmatpush2.msra.mxu0 0.0
        %804 = vmatprep.subr.mxu0 0.0
        %805 = vmatpush2.msra.mxu0 0.0
        %806 = vmatprep.subr.mxu0 0.0
        %807 = vmatpush2.msra.mxu0 0.0
        %808 = vmatprep.subr.mxu0 0.0
        %809 = vmatpush2.msra.mxu0 0.0
        %810 = vmatprep.subr.mxu0 0.0
        %811 = vmatpush2.msra.mxu0 0.0
        %812 = vmatprep.subr.mxu0 0.0
        %813 = vmatpush2.msra.mxu0 0.0
        %814 = vmatprep.subr.mxu0 0.0
        %815 = vmatpush2.msra.mxu0 0.0
        %816 = vmatprep.mubr.f32.mxu0 0.0
        %817 = vmatmul.mubr.f32.gmra.mxu0 %v750
        %v818 = vpop.f32.mrf.mxu0
        %v819 = vadd.f32 %v746, %v818
        %v820 = vpop.f32.mrf.mxu0
        %821 = vdwg.mxu0
        %v822 = vld [vmem:[%s7] sm:$0xff]
        %v823 = vld [vmem:[%s7 + $0x8] sm:$0xff]
        %v824 = vld [vmem:[%s7 + $0x10] sm:$0xff]
        %v825 = vld [vmem:[%s7 + $0x18] sm:$0xff]
        %v826 = vld [vmem:[%s8] sm:$0x1]
        %v828 = vlaneseq
        %v829 = vshrl.u32 %v828, 7
        %v830 = vsub.s32 0, %v829
        %v831 = vrot.slane %v826, %v830
        %833 = vmatprep.subr.mxu0 0.0
        %834 = vmatpush1.msra.mxu0 0.0
        %835 = vmatprep.subr.mxu0 0.0
        %836 = vmatpush1.msra.mxu0 0.0
        %837 = vmatprep.subr.mxu0 0.0
        %838 = vmatpush1.msra.mxu0 0.0
        %839 = vmatprep.subr.mxu0 0.0
        %840 = vmatpush1.msra.mxu0 0.0
        %841 = vmatprep.subr.mxu0 0.0
        %842 = vmatpush1.msra.mxu0 0.0
        %843 = vmatprep.subr.mxu0 0.0
        %844 = vmatpush1.msra.mxu0 0.0
        %845 = vmatprep.subr.mxu0 0.0
        %846 = vmatpush1.msra.mxu0 0.0
        %847 = vmatprep.subr.mxu0 0.0
        %848 = vmatpush1.msra.mxu0 0.0
        %849 = vmatprep.subr.mxu0 0.0
        %850 = vmatpush1.msra.mxu0 0.0
        %851 = vmatprep.subr.mxu0 0.0
        %852 = vmatpush1.msra.mxu0 0.0
        %853 = vmatprep.subr.mxu0 0.0
        %854 = vmatpush1.msra.mxu0 0.0
        %855 = vmatprep.subr.mxu0 0.0
        %856 = vmatpush1.msra.mxu0 0.0
        %857 = vmatprep.subr.mxu0 0.0
        %858 = vmatpush1.msra.mxu0 %v825
        %859 = vmatprep.subr.mxu0 0.0
        %860 = vmatpush1.msra.mxu0 %v824
        %861 = vmatprep.subr.mxu0 0.0
        %862 = vmatpush1.msra.mxu0 %v823
        %863 = vmatprep.subr.mxu0 0.0
        %864 = vmatpush1.msra.mxu0 %v822
        %865 = vmatprep.subr.mxu0 0.0
        %866 = vmatpush2.msra.mxu0 0.0
        %867 = vmatprep.subr.mxu0 0.0
        %868 = vmatpush2.msra.mxu0 0.0
        %869 = vmatprep.subr.mxu0 0.0
        %870 = vmatpush2.msra.mxu0 0.0
        %871 = vmatprep.subr.mxu0 0.0
        %872 = vmatpush2.msra.mxu0 0.0
        %873 = vmatprep.subr.mxu0 0.0
        %874 = vmatpush2.msra.mxu0 0.0
        %875 = vmatprep.subr.mxu0 0.0
        %876 = vmatpush2.msra.mxu0 0.0
        %877 = vmatprep.subr.mxu0 0.0
        %878 = vmatpush2.msra.mxu0 0.0
        %879 = vmatprep.subr.mxu0 0.0
        %880 = vmatpush2.msra.mxu0 0.0
        %881 = vmatprep.subr.mxu0 0.0
        %882 = vmatpush2.msra.mxu0 0.0
        %883 = vmatprep.subr.mxu0 0.0
        %884 = vmatpush2.msra.mxu0 0.0
        %885 = vmatprep.subr.mxu0 0.0
        %886 = vmatpush2.msra.mxu0 0.0
        %887 = vmatprep.subr.mxu0 0.0
        %888 = vmatpush2.msra.mxu0 0.0
        %889 = vmatprep.subr.mxu0 0.0
        %890 = vmatpush2.msra.mxu0 0.0
        %891 = vmatprep.subr.mxu0 0.0
        %892 = vmatpush2.msra.mxu0 0.0
        %893 = vmatprep.subr.mxu0 0.0
        %894 = vmatpush2.msra.mxu0 0.0
        %895 = vmatprep.subr.mxu0 0.0
        %896 = vmatpush2.msra.mxu0 0.0
        %897 = vmatprep.mubr.f32.mxu0 0.0
        %898 = vmatmul.mubr.f32.gmra.mxu0 %v750
        %v899 = vpop.f32.mrf.mxu0
        %v900 = vadd.f32 %v831, %v899
        %v901 = vpop.f32.mrf.mxu0
        %902 = vdwg.mxu0
        %v903 = vld [vmem:[%s9] sm:$0xff]
        %v904 = vld [vmem:[%s9 + $0x8] sm:$0xff]
        %v905 = vld [vmem:[%s9 + $0x10] sm:$0xff]
        %v906 = vld [vmem:[%s9 + $0x18] sm:$0xff]
        %v907 = vld [vmem:[%s10] sm:$0x1]
        %v909 = vlaneseq
        %v910 = vshrl.u32 %v909, 7
        %v911 = vsub.s32 0, %v910
        %v912 = vrot.slane %v907, %v911
        %914 = vmatprep.subr.mxu0 0.0
        %915 = vmatpush1.msra.mxu0 0.0
        %916 = vmatprep.subr.mxu0 0.0
        %917 = vmatpush1.msra.mxu0 0.0
        %918 = vmatprep.subr.mxu0 0.0
        %919 = vmatpush1.msra.mxu0 0.0
        %920 = vmatprep.subr.mxu0 0.0
        %921 = vmatpush1.msra.mxu0 0.0
        %922 = vmatprep.subr.mxu0 0.0
        %923 = vmatpush1.msra.mxu0 0.0
        %924 = vmatprep.subr.mxu0 0.0
        %925 = vmatpush1.msra.mxu0 0.0
        %926 = vmatprep.subr.mxu0 0.0
        %927 = vmatpush1.msra.mxu0 0.0
        %928 = vmatprep.subr.mxu0 0.0
        %929 = vmatpush1.msra.mxu0 0.0
        %930 = vmatprep.subr.mxu0 0.0
        %931 = vmatpush1.msra.mxu0 0.0
        %932 = vmatprep.subr.mxu0 0.0
        %933 = vmatpush1.msra.mxu0 0.0
        %934 = vmatprep.subr.mxu0 0.0
        %935 = vmatpush1.msra.mxu0 0.0
        %936 = vmatprep.subr.mxu0 0.0
        %937 = vmatpush1.msra.mxu0 0.0
        %938 = vmatprep.subr.mxu0 0.0
        %939 = vmatpush1.msra.mxu0 %v906
        %940 = vmatprep.subr.mxu0 0.0
        %941 = vmatpush1.msra.mxu0 %v905
        %942 = vmatprep.subr.mxu0 0.0
        %943 = vmatpush1.msra.mxu0 %v904
        %944 = vmatprep.subr.mxu0 0.0
        %945 = vmatpush1.msra.mxu0 %v903
        %946 = vmatprep.subr.mxu0 0.0
        %947 = vmatpush2.msra.mxu0 0.0
        %948 = vmatprep.subr.mxu0 0.0
        %949 = vmatpush2.msra.mxu0 0.0
        %950 = vmatprep.subr.mxu0 0.0
        %951 = vmatpush2.msra.mxu0 0.0
        %952 = vmatprep.subr.mxu0 0.0
        %953 = vmatpush2.msra.mxu0 0.0
        %954 = vmatprep.subr.mxu0 0.0
        %955 = vmatpush2.msra.mxu0 0.0
        %956 = vmatprep.subr.mxu0 0.0
        %957 = vmatpush2.msra.mxu0 0.0
        %958 = vmatprep.subr.mxu0 0.0
        %959 = vmatpush2.msra.mxu0 0.0
        %960 = vmatprep.subr.mxu0 0.0
        %961 = vmatpush2.msra.mxu0 0.0
        %962 = vmatprep.subr.mxu0 0.0
        %963 = vmatpush2.msra.mxu0 0.0
        %964 = vmatprep.subr.mxu0 0.0
        %965 = vmatpush2.msra.mxu0 0.0
        %966 = vmatprep.subr.mxu0 0.0
        %967 = vmatpush2.msra.mxu0 0.0
        %968 = vmatprep.subr.mxu0 0.0
        %969 = vmatpush2.msra.mxu0 0.0
        %970 = vmatprep.subr.mxu0 0.0
        %971 = vmatpush2.msra.mxu0 0.0
        %972 = vmatprep.subr.mxu0 0.0
        %973 = vmatpush2.msra.mxu0 0.0
        %974 = vmatprep.subr.mxu0 0.0
        %975 = vmatpush2.msra.mxu0 0.0
        %976 = vmatprep.subr.mxu0 0.0
        %977 = vmatpush2.msra.mxu0 0.0
        %978 = vmatprep.mubr.f32.mxu0 0.0
        %979 = vmatmul.mubr.f32.gmra.mxu0 %v750
        %v980 = vpop.f32.mrf.mxu0
        %v981 = vadd.f32 %v912, %v980
        %v982 = vpop.f32.mrf.mxu0
        %983 = vdwg.mxu0
        %vm984 = vcmask 64512
        %v986 = vsel %vm984, %v819, 0
        %v989 = vsel %vm984, %v900, 0
        %991 = vmatprep.subr.mxu0 0.0
        %992 = vmatpush1.xpose.msra.mxu0 0.0
        %993 = vmatprep.subr.mxu0 0.0
        %994 = vmatpush1.xpose.msra.mxu0 0.0
        %995 = vmatprep.subr.mxu0 0.0
        %996 = vmatpush1.xpose.msra.mxu0 0.0
        %997 = vmatprep.subr.mxu0 0.0
        %998 = vmatpush1.xpose.msra.mxu0 0.0
        %999 = vmatprep.subr.mxu0 0.0
        %1000 = vmatpush1.xpose.msra.mxu0 0.0
        %1001 = vmatprep.subr.mxu0 0.0
        %1002 = vmatpush1.xpose.msra.mxu0 0.0
        %1003 = vmatprep.subr.mxu0 0.0
        %1004 = vmatpush1.xpose.msra.mxu0 0.0
        %1005 = vmatprep.subr.mxu0 0.0
        %1006 = vmatpush1.xpose.msra.mxu0 0.0
        %1007 = vmatprep.subr.mxu0 0.0
        %1008 = vmatpush1.xpose.msra.mxu0 0.0
        %1009 = vmatprep.subr.mxu0 0.0
        %1010 = vmatpush1.xpose.msra.mxu0 0.0
        %1011 = vmatprep.subr.mxu0 0.0
        %1012 = vmatpush1.xpose.msra.mxu0 0.0
        %1013 = vmatprep.subr.mxu0 0.0
        %1014 = vmatpush1.xpose.msra.mxu0 0.0
        %1015 = vmatprep.subr.mxu0 0.0
        %1016 = vmatpush1.xpose.msra.mxu0 0.0
        %1017 = vmatprep.subr.mxu0 0.0
        %1018 = vmatpush1.xpose.msra.mxu0 0.0
        %1019 = vmatprep.subr.mxu0 0.0
        %1020 = vmatpush1.xpose.msra.mxu0 0.0
        %1021 = vmatprep.subr.mxu0 0.0
        %1022 = vmatpush1.xpose.msra.mxu0 %v989
        %1023 = vmatprep.subr.mxu0 0.0
        %1024 = vmatpush2.xpose.msra.mxu0 0.0
        %1025 = vmatprep.subr.mxu0 0.0
        %1026 = vmatpush2.xpose.msra.mxu0 0.0
        %1027 = vmatprep.subr.mxu0 0.0
        %1028 = vmatpush2.xpose.msra.mxu0 0.0
        %1029 = vmatprep.subr.mxu0 0.0
        %1030 = vmatpush2.xpose.msra.mxu0 0.0
        %1031 = vmatprep.subr.mxu0 0.0
        %1032 = vmatpush2.xpose.msra.mxu0 0.0
        %1033 = vmatprep.subr.mxu0 0.0
        %1034 = vmatpush2.xpose.msra.mxu0 0.0
        %1035 = vmatprep.subr.mxu0 0.0
        %1036 = vmatpush2.xpose.msra.mxu0 0.0
        %1037 = vmatprep.subr.mxu0 0.0
        %1038 = vmatpush2.xpose.msra.mxu0 0.0
        %1039 = vmatprep.subr.mxu0 0.0
        %1040 = vmatpush2.xpose.msra.mxu0 0.0
        %1041 = vmatprep.subr.mxu0 0.0
        %1042 = vmatpush2.xpose.msra.mxu0 0.0
        %1043 = vmatprep.subr.mxu0 0.0
        %1044 = vmatpush2.xpose.msra.mxu0 0.0
        %1045 = vmatprep.subr.mxu0 0.0
        %1046 = vmatpush2.xpose.msra.mxu0 0.0
        %1047 = vmatprep.subr.mxu0 0.0
        %1048 = vmatpush2.xpose.msra.mxu0 0.0
        %1049 = vmatprep.subr.mxu0 0.0
        %1050 = vmatpush2.xpose.msra.mxu0 0.0
        %1051 = vmatprep.subr.mxu0 0.0
        %1052 = vmatpush2.xpose.msra.mxu0 0.0
        %1053 = vmatprep.subr.mxu0 0.0
        %1054 = vmatpush2.xpose.msra.mxu0 0.0
        %1055 = vmatprep.mubr.f32.mxu0 0.0
        %1056 = vmatmul.mubr.f32.gmra.mxu0 %v986
        %v1057 = vpop.f32.mrf.mxu0
        %v1058 = vadd.f32 0.0, %v1057
        %v1059 = vpop.f32.mrf.mxu0
        %1060 = vdwg.mxu0
        %v1061 = vmul.f32 %v1058, 0.35355338
        %v1063 = vlaneseq
        %v1064 = vshrl.u32 %v1063, 7
        %v1065 = vsub.s32 0, %v1064
        %v1066 = vrot.slane %v736, %v1065
        %v1068 = vadd.f32 %v1061, %v1066
        %v1069 = vsel %vm984, %v1068, -inf
        %1070 = vmax.xlane.f32.xlu0 %v1069
        %v1071 = vpop.xlane.xlu0 %1070
        %v1072 = vsub.f32 %v1068, %v1071
        %v1073 = vmul.f32 %v1072, 1.442695
        %v1074 = vpow.pop %v1073
        %v1075 = vsel %vm984, %v1074, 0.0
        %1076 = vadd.xlane.f32.xlu0 %v1075
        %v1077 = vpop.xlane.xlu0 %1076
        %v1078 = vrcp.pop %v1077
        %v1079 = vmul.f32 %v1074, %v1078
        %v1081 = vsel %vm984, %v1079, 0
        %1083 = vmatprep.subr.mxu0 0.0
        %1084 = vmatpush1.msra.mxu0 0.0
        %1085 = vmatprep.subr.mxu0 0.0
        %1086 = vmatpush1.msra.mxu0 0.0
        %1087 = vmatprep.subr.mxu0 0.0
        %1088 = vmatpush1.msra.mxu0 0.0
        %1089 = vmatprep.subr.mxu0 0.0
        %1090 = vmatpush1.msra.mxu0 0.0
        %1091 = vmatprep.subr.mxu0 0.0
        %1092 = vmatpush1.msra.mxu0 0.0
        %1093 = vmatprep.subr.mxu0 0.0
        %1094 = vmatpush1.msra.mxu0 0.0
        %1095 = vmatprep.subr.mxu0 0.0
        %1096 = vmatpush1.msra.mxu0 0.0
        %1097 = vmatprep.subr.mxu0 0.0
        %1098 = vmatpush1.msra.mxu0 0.0
        %1099 = vmatprep.subr.mxu0 0.0
        %1100 = vmatpush1.msra.mxu0 0.0
        %1101 = vmatprep.subr.mxu0 0.0
        %1102 = vmatpush1.msra.mxu0 0.0
        %1103 = vmatprep.subr.mxu0 0.0
        %1104 = vmatpush1.msra.mxu0 0.0
        %1105 = vmatprep.subr.mxu0 0.0
        %1106 = vmatpush1.msra.mxu0 0.0
        %1107 = vmatprep.subr.mxu0 0.0
        %1108 = vmatpush1.msra.mxu0 0.0
        %1109 = vmatprep.subr.mxu0 0.0
        %1110 = vmatpush1.msra.mxu0 0.0
        %1111 = vmatprep.subr.mxu0 0.0
        %1112 = vmatpush1.msra.mxu0 0.0
        %1113 = vmatprep.subr.mxu0 0.0
        %1114 = vmatpush1.msra.mxu0 %v981
        %1115 = vmatprep.subr.mxu0 0.0
        %1116 = vmatpush2.msra.mxu0 0.0
        %1117 = vmatprep.subr.mxu0 0.0
        %1118 = vmatpush2.msra.mxu0 0.0
        %1119 = vmatprep.subr.mxu0 0.0
        %1120 = vmatpush2.msra.mxu0 0.0
        %1121 = vmatprep.subr.mxu0 0.0
        %1122 = vmatpush2.msra.mxu0 0.0
        %1123 = vmatprep.subr.mxu0 0.0
        %1124 = vmatpush2.msra.mxu0 0.0
        %1125 = vmatprep.subr.mxu0 0.0
        %1126 = vmatpush2.msra.mxu0 0.0
        %1127 = vmatprep.subr.mxu0 0.0
        %1128 = vmatpush2.msra.mxu0 0.0
        %1129 = vmatprep.subr.mxu0 0.0
        %1130 = vmatpush2.msra.mxu0 0.0
        %1131 = vmatprep.subr.mxu0 0.0
        %1132 = vmatpush2.msra.mxu0 0.0
        %1133 = vmatprep.subr.mxu0 0.0
        %1134 = vmatpush2.msra.mxu0 0.0
        %1135 = vmatprep.subr.mxu0 0.0
        %1136 = vmatpush2.msra.mxu0 0.0
        %1137 = vmatprep.subr.mxu0 0.0
        %1138 = vmatpush2.msra.mxu0 0.0
        %1139 = vmatprep.subr.mxu0 0.0
        %1140 = vmatpush2.msra.mxu0 0.0
        %1141 = vmatprep.subr.mxu0 0.0
        %1142 = vmatpush2.msra.mxu0 0.0
        %1143 = vmatprep.subr.mxu0 0.0
        %1144 = vmatpush2.msra.mxu0 0.0
        %1145 = vmatprep.subr.mxu0 0.0
        %1146 = vmatpush2.msra.mxu0 0.0
        %1147 = vmatprep.mubr.f32.mxu0 0.0
        %1148 = vmatmul.mubr.f32.gmra.mxu0 %v1081
        %v1149 = vpop.f32.mrf.mxu0
        %v1150 = vadd.f32 0.0, %v1149
        %v1151 = vpop.f32.mrf.mxu0
        %1152 = vdwg.mxu0
        %v1153 = vld [vmem:[%s11] sm:$0xff]
        %s1154 = scalar_lea.vmem %s5, 32
        %v1155 = vld [vmem:[%s1154] sm:$0xff]
        %v1156 = vld [vmem:[%s1154 + $0x8] sm:$0xff]
        %v1157 = vld [vmem:[%s1154 + $0x10] sm:$0xff]
        %v1158 = vld [vmem:[%s1154 + $0x18] sm:$0xff]
        %s1159 = scalar_lea.vmem %s6, 1
        %v1160 = vld [vmem:[%s1159] sm:$0x1]
        %v1162 = vlaneseq
        %v1163 = vshrl.u32 %v1162, 7
        %v1164 = vsub.s32 0, %v1163
        %v1165 = vrot.slane %v1160, %v1164
        %1167 = vmatprep.subr.mxu0 0.0
        %1168 = vmatpush1.msra.mxu0 0.0
        %1169 = vmatprep.subr.mxu0 0.0
        %1170 = vmatpush1.msra.mxu0 0.0
        %1171 = vmatprep.subr.mxu0 0.0
        %1172 = vmatpush1.msra.mxu0 0.0
        %1173 = vmatprep.subr.mxu0 0.0
        %1174 = vmatpush1.msra.mxu0 0.0
        %1175 = vmatprep.subr.mxu0 0.0
        %1176 = vmatpush1.msra.mxu0 0.0
        %1177 = vmatprep.subr.mxu0 0.0
        %1178 = vmatpush1.msra.mxu0 0.0
        %1179 = vmatprep.subr.mxu0 0.0
        %1180 = vmatpush1.msra.mxu0 0.0
        %1181 = vmatprep.subr.mxu0 0.0
        %1182 = vmatpush1.msra.mxu0 0.0
        %1183 = vmatprep.subr.mxu0 0.0
        %1184 = vmatpush1.msra.mxu0 0.0
        %1185 = vmatprep.subr.mxu0 0.0
        %1186 = vmatpush1.msra.mxu0 0.0
        %1187 = vmatprep.subr.mxu0 0.0
        %1188 = vmatpush1.msra.mxu0 0.0
        %1189 = vmatprep.subr.mxu0 0.0
        %1190 = vmatpush1.msra.mxu0 0.0
        %1191 = vmatprep.subr.mxu0 0.0
        %1192 = vmatpush1.msra.mxu0 %v1158
        %1193 = vmatprep.subr.mxu0 0.0
        %1194 = vmatpush1.msra.mxu0 %v1157
        %1195 = vmatprep.subr.mxu0 0.0
        %1196 = vmatpush1.msra.mxu0 %v1156
        %1197 = vmatprep.subr.mxu0 0.0
        %1198 = vmatpush1.msra.mxu0 %v1155
        %1199 = vmatprep.subr.mxu0 0.0
        %1200 = vmatpush2.msra.mxu0 0.0
        %1201 = vmatprep.subr.mxu0 0.0
        %1202 = vmatpush2.msra.mxu0 0.0
        %1203 = vmatprep.subr.mxu0 0.0
        %1204 = vmatpush2.msra.mxu0 0.0
        %1205 = vmatprep.subr.mxu0 0.0
        %1206 = vmatpush2.msra.mxu0 0.0
        %1207 = vmatprep.subr.mxu0 0.0
        %1208 = vmatpush2.msra.mxu0 0.0
        %1209 = vmatprep.subr.mxu0 0.0
        %1210 = vmatpush2.msra.mxu0 0.0
        %1211 = vmatprep.subr.mxu0 0.0
        %1212 = vmatpush2.msra.mxu0 0.0
        %1213 = vmatprep.subr.mxu0 0.0
        %1214 = vmatpush2.msra.mxu0 0.0
        %1215 = vmatprep.subr.mxu0 0.0
        %1216 = vmatpush2.msra.mxu0 0.0
        %1217 = vmatprep.subr.mxu0 0.0
        %1218 = vmatpush2.msra.mxu0 0.0
        %1219 = vmatprep.subr.mxu0 0.0
        %1220 = vmatpush2.msra.mxu0 0.0
        %1221 = vmatprep.subr.mxu0 0.0
        %1222 = vmatpush2.msra.mxu0 0.0
        %1223 = vmatprep.subr.mxu0 0.0
        %1224 = vmatpush2.msra.mxu0 0.0
        %1225 = vmatprep.subr.mxu0 0.0
        %1226 = vmatpush2.msra.mxu0 0.0
        %1227 = vmatprep.subr.mxu0 0.0
        %1228 = vmatpush2.msra.mxu0 0.0
        %1229 = vmatprep.subr.mxu0 0.0
        %1230 = vmatpush2.msra.mxu0 0.0
        %1231 = vmatprep.mubr.f32.mxu0 0.0
        %1232 = vmatmul.mubr.f32.gmra.mxu0 %v750
        %v1233 = vpop.f32.mrf.mxu0
        %v1234 = vadd.f32 %v1165, %v1233
        %v1235 = vpop.f32.mrf.mxu0
        %1236 = vdwg.mxu0
        %s1237 = scalar_lea.vmem %s7, 32
        %v1238 = vld [vmem:[%s1237] sm:$0xff]
        %v1239 = vld [vmem:[%s1237 + $0x8] sm:$0xff]
        %v1240 = vld [vmem:[%s1237 + $0x10] sm:$0xff]
        %v1241 = vld [vmem:[%s1237 + $0x18] sm:$0xff]
        %s1242 = scalar_lea.vmem %s8, 1
        %v1243 = vld [vmem:[%s1242] sm:$0x1]
        %v1245 = vlaneseq
        %v1246 = vshrl.u32 %v1245, 7
        %v1247 = vsub.s32 0, %v1246
        %v1248 = vrot.slane %v1243, %v1247
        %1250 = vmatprep.subr.mxu0 0.0
        %1251 = vmatpush1.msra.mxu0 0.0
        %1252 = vmatprep.subr.mxu0 0.0
        %1253 = vmatpush1.msra.mxu0 0.0
        %1254 = vmatprep.subr.mxu0 0.0
        %1255 = vmatpush1.msra.mxu0 0.0
        %1256 = vmatprep.subr.mxu0 0.0
        %1257 = vmatpush1.msra.mxu0 0.0
        %1258 = vmatprep.subr.mxu0 0.0
        %1259 = vmatpush1.msra.mxu0 0.0
        %1260 = vmatprep.subr.mxu0 0.0
        %1261 = vmatpush1.msra.mxu0 0.0
        %1262 = vmatprep.subr.mxu0 0.0
        %1263 = vmatpush1.msra.mxu0 0.0
        %1264 = vmatprep.subr.mxu0 0.0
        %1265 = vmatpush1.msra.mxu0 0.0
        %1266 = vmatprep.subr.mxu0 0.0
        %1267 = vmatpush1.msra.mxu0 0.0
        %1268 = vmatprep.subr.mxu0 0.0
        %1269 = vmatpush1.msra.mxu0 0.0
        %1270 = vmatprep.subr.mxu0 0.0
        %1271 = vmatpush1.msra.mxu0 0.0
        %1272 = vmatprep.subr.mxu0 0.0
        %1273 = vmatpush1.msra.mxu0 0.0
        %1274 = vmatprep.subr.mxu0 0.0
        %1275 = vmatpush1.msra.mxu0 %v1241
        %1276 = vmatprep.subr.mxu0 0.0
        %1277 = vmatpush1.msra.mxu0 %v1240
        %1278 = vmatprep.subr.mxu0 0.0
        %1279 = vmatpush1.msra.mxu0 %v1239
        %1280 = vmatprep.subr.mxu0 0.0
        %1281 = vmatpush1.msra.mxu0 %v1238
        %1282 = vmatprep.subr.mxu0 0.0
        %1283 = vmatpush2.msra.mxu0 0.0
        %1284 = vmatprep.subr.mxu0 0.0
        %1285 = vmatpush2.msra.mxu0 0.0
        %1286 = vmatprep.subr.mxu0 0.0
        %1287 = vmatpush2.msra.mxu0 0.0
        %1288 = vmatprep.subr.mxu0 0.0
        %1289 = vmatpush2.msra.mxu0 0.0
        %1290 = vmatprep.subr.mxu0 0.0
        %1291 = vmatpush2.msra.mxu0 0.0
        %1292 = vmatprep.subr.mxu0 0.0
        %1293 = vmatpush2.msra.mxu0 0.0
        %1294 = vmatprep.subr.mxu0 0.0
        %1295 = vmatpush2.msra.mxu0 0.0
        %1296 = vmatprep.subr.mxu0 0.0
        %1297 = vmatpush2.msra.mxu0 0.0
        %1298 = vmatprep.subr.mxu0 0.0
        %1299 = vmatpush2.msra.mxu0 0.0
        %1300 = vmatprep.subr.mxu0 0.0
        %1301 = vmatpush2.msra.mxu0 0.0
        %1302 = vmatprep.subr.mxu0 0.0
        %1303 = vmatpush2.msra.mxu0 0.0
        %1304 = vmatprep.subr.mxu0 0.0
        %1305 = vmatpush2.msra.mxu0 0.0
        %1306 = vmatprep.subr.mxu0 0.0
        %1307 = vmatpush2.msra.mxu0 0.0
        %1308 = vmatprep.subr.mxu0 0.0
        %1309 = vmatpush2.msra.mxu0 0.0
        %1310 = vmatprep.subr.mxu0 0.0
        %1311 = vmatpush2.msra.mxu0 0.0
        %1312 = vmatprep.subr.mxu0 0.0
        %1313 = vmatpush2.msra.mxu0 0.0
        %1314 = vmatprep.mubr.f32.mxu0 0.0
        %1315 = vmatmul.mubr.f32.gmra.mxu0 %v750
        %v1316 = vpop.f32.mrf.mxu0
        %v1317 = vadd.f32 %v1248, %v1316
        %v1318 = vpop.f32.mrf.mxu0
        %1319 = vdwg.mxu0
        %s1320 = scalar_lea.vmem %s9, 32
        %v1321 = vld [vmem:[%s1320] sm:$0xff]
        %v1322 = vld [vmem:[%s1320 + $0x8] sm:$0xff]
        %v1323 = vld [vmem:[%s1320 + $0x10] sm:$0xff]
        %v1324 = vld [vmem:[%s1320 + $0x18] sm:$0xff]
        %s1325 = scalar_lea.vmem %s10, 1
        %v1326 = vld [vmem:[%s1325] sm:$0x1]
        %v1328 = vlaneseq
        %v1329 = vshrl.u32 %v1328, 7
        %v1330 = vsub.s32 0, %v1329
        %v1331 = vrot.slane %v1326, %v1330
        %1333 = vmatprep.subr.mxu0 0.0
        %1334 = vmatpush1.msra.mxu0 0.0
        %1335 = vmatprep.subr.mxu0 0.0
        %1336 = vmatpush1.msra.mxu0 0.0
        %1337 = vmatprep.subr.mxu0 0.0
        %1338 = vmatpush1.msra.mxu0 0.0
        %1339 = vmatprep.subr.mxu0 0.0
        %1340 = vmatpush1.msra.mxu0 0.0
        %1341 = vmatprep.subr.mxu0 0.0
        %1342 = vmatpush1.msra.mxu0 0.0
        %1343 = vmatprep.subr.mxu0 0.0
        %1344 = vmatpush1.msra.mxu0 0.0
        %1345 = vmatprep.subr.mxu0 0.0
        %1346 = vmatpush1.msra.mxu0 0.0
        %1347 = vmatprep.subr.mxu0 0.0
        %1348 = vmatpush1.msra.mxu0 0.0
        %1349 = vmatprep.subr.mxu0 0.0
        %1350 = vmatpush1.msra.mxu0 0.0
        %1351 = vmatprep.subr.mxu0 0.0
        %1352 = vmatpush1.msra.mxu0 0.0
        %1353 = vmatprep.subr.mxu0 0.0
        %1354 = vmatpush1.msra.mxu0 0.0
        %1355 = vmatprep.subr.mxu0 0.0
        %1356 = vmatpush1.msra.mxu0 0.0
        %1357 = vmatprep.subr.mxu0 0.0
        %1358 = vmatpush1.msra.mxu0 %v1324
        %1359 = vmatprep.subr.mxu0 0.0
        %1360 = vmatpush1.msra.mxu0 %v1323
        %1361 = vmatprep.subr.mxu0 0.0
        %1362 = vmatpush1.msra.mxu0 %v1322
        %1363 = vmatprep.subr.mxu0 0.0
        %1364 = vmatpush1.msra.mxu0 %v1321
        %1365 = vmatprep.subr.mxu0 0.0
        %1366 = vmatpush2.msra.mxu0 0.0
        %1367 = vmatprep.subr.mxu0 0.0
        %1368 = vmatpush2.msra.mxu0 0.0
        %1369 = vmatprep.subr.mxu0 0.0
        %1370 = vmatpush2.msra.mxu0 0.0
        %1371 = vmatprep.subr.mxu0 0.0
        %1372 = vmatpush2.msra.mxu0 0.0
        %1373 = vmatprep.subr.mxu0 0.0
        %1374 = vmatpush2.msra.mxu0 0.0
        %1375 = vmatprep.subr.mxu0 0.0
        %1376 = vmatpush2.msra.mxu0 0.0
        %1377 = vmatprep.subr.mxu0 0.0
        %1378 = vmatpush2.msra.mxu0 0.0
        %1379 = vmatprep.subr.mxu0 0.0
        %1380 = vmatpush2.msra.mxu0 0.0
        %1381 = vmatprep.subr.mxu0 0.0
        %1382 = vmatpush2.msra.mxu0 0.0
        %1383 = vmatprep.subr.mxu0 0.0
        %1384 = vmatpush2.msra.mxu0 0.0
        %1385 = vmatprep.subr.mxu0 0.0
        %1386 = vmatpush2.msra.mxu0 0.0
        %1387 = vmatprep.subr.mxu0 0.0
        %1388 = vmatpush2.msra.mxu0 0.0
        %1389 = vmatprep.subr.mxu0 0.0
        %1390 = vmatpush2.msra.mxu0 0.0
        %1391 = vmatprep.subr.mxu0 0.0
        %1392 = vmatpush2.msra.mxu0 0.0
        %1393 = vmatprep.subr.mxu0 0.0
        %1394 = vmatpush2.msra.mxu0 0.0
        %1395 = vmatprep.subr.mxu0 0.0
        %1396 = vmatpush2.msra.mxu0 0.0
        %1397 = vmatprep.mubr.f32.mxu0 0.0
        %1398 = vmatmul.mubr.f32.gmra.mxu0 %v750
        %v1399 = vpop.f32.mrf.mxu0
        %v1400 = vadd.f32 %v1331, %v1399
        %v1401 = vpop.f32.mrf.mxu0
        %1402 = vdwg.mxu0
        %v1404 = vsel %vm984, %v1234, 0
        %v1407 = vsel %vm984, %v1317, 0
        %1409 = vmatprep.subr.mxu0 0.0
        %1410 = vmatpush1.xpose.msra.mxu0 0.0
        %1411 = vmatprep.subr.mxu0 0.0
        %1412 = vmatpush1.xpose.msra.mxu0 0.0
        %1413 = vmatprep.subr.mxu0 0.0
        %1414 = vmatpush1.xpose.msra.mxu0 0.0
        %1415 = vmatprep.subr.mxu0 0.0
        %1416 = vmatpush1.xpose.msra.mxu0 0.0
        %1417 = vmatprep.subr.mxu0 0.0
        %1418 = vmatpush1.xpose.msra.mxu0 0.0
        %1419 = vmatprep.subr.mxu0 0.0
        %1420 = vmatpush1.xpose.msra.mxu0 0.0
        %1421 = vmatprep.subr.mxu0 0.0
        %1422 = vmatpush1.xpose.msra.mxu0 0.0
        %1423 = vmatprep.subr.mxu0 0.0
        %1424 = vmatpush1.xpose.msra.mxu0 0.0
        %1425 = vmatprep.subr.mxu0 0.0
        %1426 = vmatpush1.xpose.msra.mxu0 0.0
        %1427 = vmatprep.subr.mxu0 0.0
        %1428 = vmatpush1.xpose.msra.mxu0 0.0
        %1429 = vmatprep.subr.mxu0 0.0
        %1430 = vmatpush1.xpose.msra.mxu0 0.0
        %1431 = vmatprep.subr.mxu0 0.0
        %1432 = vmatpush1.xpose.msra.mxu0 0.0
        %1433 = vmatprep.subr.mxu0 0.0
        %1434 = vmatpush1.xpose.msra.mxu0 0.0
        %1435 = vmatprep.subr.mxu0 0.0
        %1436 = vmatpush1.xpose.msra.mxu0 0.0
        %1437 = vmatprep.subr.mxu0 0.0
        %1438 = vmatpush1.xpose.msra.mxu0 0.0
        %1439 = vmatprep.subr.mxu0 0.0
        %1440 = vmatpush1.xpose.msra.mxu0 %v1407
        %1441 = vmatprep.subr.mxu0 0.0
        %1442 = vmatpush2.xpose.msra.mxu0 0.0
        %1443 = vmatprep.subr.mxu0 0.0
        %1444 = vmatpush2.xpose.msra.mxu0 0.0
        %1445 = vmatprep.subr.mxu0 0.0
        %1446 = vmatpush2.xpose.msra.mxu0 0.0
        %1447 = vmatprep.subr.mxu0 0.0
        %1448 = vmatpush2.xpose.msra.mxu0 0.0
        %1449 = vmatprep.subr.mxu0 0.0
        %1450 = vmatpush2.xpose.msra.mxu0 0.0
        %1451 = vmatprep.subr.mxu0 0.0
        %1452 = vmatpush2.xpose.msra.mxu0 0.0
        %1453 = vmatprep.subr.mxu0 0.0
        %1454 = vmatpush2.xpose.msra.mxu0 0.0
        %1455 = vmatprep.subr.mxu0 0.0
        %1456 = vmatpush2.xpose.msra.mxu0 0.0
        %1457 = vmatprep.subr.mxu0 0.0
        %1458 = vmatpush2.xpose.msra.mxu0 0.0
        %1459 = vmatprep.subr.mxu0 0.0
        %1460 = vmatpush2.xpose.msra.mxu0 0.0
        %1461 = vmatprep.subr.mxu0 0.0
        %1462 = vmatpush2.xpose.msra.mxu0 0.0
        %1463 = vmatprep.subr.mxu0 0.0
        %1464 = vmatpush2.xpose.msra.mxu0 0.0
        %1465 = vmatprep.subr.mxu0 0.0
        %1466 = vmatpush2.xpose.msra.mxu0 0.0
        %1467 = vmatprep.subr.mxu0 0.0
        %1468 = vmatpush2.xpose.msra.mxu0 0.0
        %1469 = vmatprep.subr.mxu0 0.0
        %1470 = vmatpush2.xpose.msra.mxu0 0.0
        %1471 = vmatprep.subr.mxu0 0.0
        %1472 = vmatpush2.xpose.msra.mxu0 0.0
        %1473 = vmatprep.mubr.f32.mxu0 0.0
        %1474 = vmatmul.mubr.f32.gmra.mxu0 %v1404
        %v1475 = vpop.f32.mrf.mxu0
        %v1476 = vadd.f32 0.0, %v1475
        %v1477 = vpop.f32.mrf.mxu0
        %1478 = vdwg.mxu0
        %v1479 = vmul.f32 %v1476, 0.35355338
        %v1480 = vadd.f32 %v1479, %v1066
        %v1481 = vsel %vm984, %v1480, -inf
        %1482 = vmax.xlane.f32.xlu0 %v1481
        %v1483 = vpop.xlane.xlu0 %1482
        %v1484 = vsub.f32 %v1480, %v1483
        %v1485 = vmul.f32 %v1484, 1.442695
        %v1486 = vpow.pop %v1485
        %v1487 = vsel %vm984, %v1486, 0.0
        %1488 = vadd.xlane.f32.xlu0 %v1487
        %v1489 = vpop.xlane.xlu0 %1488
        %v1490 = vrcp.pop %v1489
        %v1491 = vmul.f32 %v1486, %v1490
        %v1493 = vsel %vm984, %v1491, 0
        %1495 = vmatprep.subr.mxu0 0.0
        %1496 = vmatpush1.msra.mxu0 0.0
        %1497 = vmatprep.subr.mxu0 0.0
        %1498 = vmatpush1.msra.mxu0 0.0
        %1499 = vmatprep.subr.mxu0 0.0
        %1500 = vmatpush1.msra.mxu0 0.0
        %1501 = vmatprep.subr.mxu0 0.0
        %1502 = vmatpush1.msra.mxu0 0.0
        %1503 = vmatprep.subr.mxu0 0.0
        %1504 = vmatpush1.msra.mxu0 0.0
        %1505 = vmatprep.subr.mxu0 0.0
        %1506 = vmatpush1.msra.mxu0 0.0
        %1507 = vmatprep.subr.mxu0 0.0
        %1508 = vmatpush1.msra.mxu0 0.0
        %1509 = vmatprep.subr.mxu0 0.0
        %1510 = vmatpush1.msra.mxu0 0.0
        %1511 = vmatprep.subr.mxu0 0.0
        %1512 = vmatpush1.msra.mxu0 0.0
        %1513 = vmatprep.subr.mxu0 0.0
        %1514 = vmatpush1.msra.mxu0 0.0
        %1515 = vmatprep.subr.mxu0 0.0
        %1516 = vmatpush1.msra.mxu0 0.0
        %1517 = vmatprep.subr.mxu0 0.0
        %1518 = vmatpush1.msra.mxu0 0.0
        %1519 = vmatprep.subr.mxu0 0.0
        %1520 = vmatpush1.msra.mxu0 0.0
        %1521 = vmatprep.subr.mxu0 0.0
        %1522 = vmatpush1.msra.mxu0 0.0
        %1523 = vmatprep.subr.mxu0 0.0
        %1524 = vmatpush1.msra.mxu0 0.0
        %1525 = vmatprep.subr.mxu0 0.0
        %1526 = vmatpush1.msra.mxu0 %v1400
        %1527 = vmatprep.subr.mxu0 0.0
        %1528 = vmatpush2.msra.mxu0 0.0
        %1529 = vmatprep.subr.mxu0 0.0
        %1530 = vmatpush2.msra.mxu0 0.0
        %1531 = vmatprep.subr.mxu0 0.0
        %1532 = vmatpush2.msra.mxu0 0.0
        %1533 = vmatprep.subr.mxu0 0.0
        %1534 = vmatpush2.msra.mxu0 0.0
        %1535 = vmatprep.subr.mxu0 0.0
        %1536 = vmatpush2.msra.mxu0 0.0
        %1537 = vmatprep.subr.mxu0 0.0
        %1538 = vmatpush2.msra.mxu0 0.0
        %1539 = vmatprep.subr.mxu0 0.0
        %1540 = vmatpush2.msra.mxu0 0.0
        %1541 = vmatprep.subr.mxu0 0.0
        %1542 = vmatpush2.msra.mxu0 0.0
        %1543 = vmatprep.subr.mxu0 0.0
        %1544 = vmatpush2.msra.mxu0 0.0
        %1545 = vmatprep.subr.mxu0 0.0
        %1546 = vmatpush2.msra.mxu0 0.0
        %1547 = vmatprep.subr.mxu0 0.0
        %1548 = vmatpush2.msra.mxu0 0.0
        %1549 = vmatprep.subr.mxu0 0.0
        %1550 = vmatpush2.msra.mxu0 0.0
        %1551 = vmatprep.subr.mxu0 0.0
        %1552 = vmatpush2.msra.mxu0 0.0
        %1553 = vmatprep.subr.mxu0 0.0
        %1554 = vmatpush2.msra.mxu0 0.0
        %1555 = vmatprep.subr.mxu0 0.0
        %1556 = vmatpush2.msra.mxu0 0.0
        %1557 = vmatprep.subr.mxu0 0.0
        %1558 = vmatpush2.msra.mxu0 0.0
        %1559 = vmatprep.mubr.f32.mxu0 0.0
        %1560 = vmatmul.mubr.f32.gmra.mxu0 %v1493
        %v1561 = vpop.f32.mrf.mxu0
        %v1562 = vadd.f32 0.0, %v1561
        %v1563 = vpop.f32.mrf.mxu0
        %1564 = vdwg.mxu0
        %s1565 = scalar_lea.vmem %s11, 8
        %v1566 = vld [vmem:[%s1565] sm:$0xff]
        %v1568 = vsel %vm984, %v1562, 0
        %1570 = vmatprep.subr.mxu0 0.0
        %1571 = vmatpush1.msra.mxu0 0.0
        %1572 = vmatprep.subr.mxu0 0.0
        %1573 = vmatpush1.msra.mxu0 0.0
        %1574 = vmatprep.subr.mxu0 0.0
        %1575 = vmatpush1.msra.mxu0 0.0
        %1576 = vmatprep.subr.mxu0 0.0
        %1577 = vmatpush1.msra.mxu0 0.0
        %1578 = vmatprep.subr.mxu0 0.0
        %1579 = vmatpush1.msra.mxu0 0.0
        %1580 = vmatprep.subr.mxu0 0.0
        %1581 = vmatpush1.msra.mxu0 0.0
        %1582 = vmatprep.subr.mxu0 0.0
        %1583 = vmatpush1.msra.mxu0 0.0
        %1584 = vmatprep.subr.mxu0 0.0
        %1585 = vmatpush1.msra.mxu0 0.0
        %1586 = vmatprep.subr.mxu0 0.0
        %1587 = vmatpush1.msra.mxu0 0.0
        %1588 = vmatprep.subr.mxu0 0.0
        %1589 = vmatpush1.msra.mxu0 0.0
        %1590 = vmatprep.subr.mxu0 0.0
        %1591 = vmatpush1.msra.mxu0 0.0
        %1592 = vmatprep.subr.mxu0 0.0
        %1593 = vmatpush1.msra.mxu0 0.0
        %1594 = vmatprep.subr.mxu0 0.0
        %1595 = vmatpush1.msra.mxu0 0.0
        %1596 = vmatprep.subr.mxu0 0.0
        %1597 = vmatpush1.msra.mxu0 0.0
        %1598 = vmatprep.subr.mxu0 0.0
        %1599 = vmatpush1.msra.mxu0 0.0
        %1600 = vmatprep.subr.mxu0 0.0
        %1601 = vmatpush1.msra.mxu0 %v1566
        %1602 = vmatprep.subr.mxu0 0.0
        %1603 = vmatpush2.msra.mxu0 0.0
        %1604 = vmatprep.subr.mxu0 0.0
        %1605 = vmatpush2.msra.mxu0 0.0
        %1606 = vmatprep.subr.mxu0 0.0
        %1607 = vmatpush2.msra.mxu0 0.0
        %1608 = vmatprep.subr.mxu0 0.0
        %1609 = vmatpush2.msra.mxu0 0.0
        %1610 = vmatprep.subr.mxu0 0.0
        %1611 = vmatpush2.msra.mxu0 0.0
        %1612 = vmatprep.subr.mxu0 0.0
        %1613 = vmatpush2.msra.mxu0 0.0
        %1614 = vmatprep.subr.mxu0 0.0
        %1615 = vmatpush2.msra.mxu0 0.0
        %1616 = vmatprep.subr.mxu0 0.0
        %1617 = vmatpush2.msra.mxu0 0.0
        %1618 = vmatprep.subr.mxu0 0.0
        %1619 = vmatpush2.msra.mxu0 0.0
        %1620 = vmatprep.subr.mxu0 0.0
        %1621 = vmatpush2.msra.mxu0 0.0
        %1622 = vmatprep.subr.mxu0 0.0
        %1623 = vmatpush2.msra.mxu0 0.0
        %1624 = vmatprep.subr.mxu0 0.0
        %1625 = vmatpush2.msra.mxu0 0.0
        %1626 = vmatprep.subr.mxu0 0.0
        %1627 = vmatpush2.msra.mxu0 0.0
        %1628 = vmatprep.subr.mxu0 0.0
        %1629 = vmatpush2.msra.mxu0 0.0
        %1630 = vmatprep.subr.mxu0 0.0
        %1631 = vmatpush2.msra.mxu0 0.0
        %1632 = vmatprep.subr.mxu0 0.0
        %1633 = vmatpush2.msra.mxu0 0.0
        %1634 = vmatprep.mubr.f32.mxu0 0.0
        %1635 = vmatmul.mubr.f32.gmra.mxu0 %v1568
        %v1636 = vpop.f32.mrf.mxu0
        %v1637 = vadd.f32 0.0, %v1636
        %v1638 = vpop.f32.mrf.mxu0
        %1639 = vdwg.mxu0
        %v1641 = vsel %vm984, %v1150, 0
        %1643 = vmatprep.subr.mxu0 0.0
        %1644 = vmatpush1.msra.mxu0 0.0
        %1645 = vmatprep.subr.mxu0 0.0
        %1646 = vmatpush1.msra.mxu0 0.0
        %1647 = vmatprep.subr.mxu0 0.0
        %1648 = vmatpush1.msra.mxu0 0.0
        %1649 = vmatprep.subr.mxu0 0.0
        %1650 = vmatpush1.msra.mxu0 0.0
        %1651 = vmatprep.subr.mxu0 0.0
        %1652 = vmatpush1.msra.mxu0 0.0
        %1653 = vmatprep.subr.mxu0 0.0
        %1654 = vmatpush1.msra.mxu0 0.0
        %1655 = vmatprep.subr.mxu0 0.0
        %1656 = vmatpush1.msra.mxu0 0.0
        %1657 = vmatprep.subr.mxu0 0.0
        %1658 = vmatpush1.msra.mxu0 0.0
        %1659 = vmatprep.subr.mxu0 0.0
        %1660 = vmatpush1.msra.mxu0 0.0
        %1661 = vmatprep.subr.mxu0 0.0
        %1662 = vmatpush1.msra.mxu0 0.0
        %1663 = vmatprep.subr.mxu0 0.0
        %1664 = vmatpush1.msra.mxu0 0.0
        %1665 = vmatprep.subr.mxu0 0.0
        %1666 = vmatpush1.msra.mxu0 0.0
        %1667 = vmatprep.subr.mxu0 0.0
        %1668 = vmatpush1.msra.mxu0 0.0
        %1669 = vmatprep.subr.mxu0 0.0
        %1670 = vmatpush1.msra.mxu0 0.0
        %1671 = vmatprep.subr.mxu0 0.0
        %1672 = vmatpush1.msra.mxu0 0.0
        %1673 = vmatprep.subr.mxu0 0.0
        %1674 = vmatpush1.msra.mxu0 %v1153
        %1675 = vmatprep.subr.mxu0 0.0
        %1676 = vmatpush2.msra.mxu0 0.0
        %1677 = vmatprep.subr.mxu0 0.0
        %1678 = vmatpush2.msra.mxu0 0.0
        %1679 = vmatprep.subr.mxu0 0.0
        %1680 = vmatpush2.msra.mxu0 0.0
        %1681 = vmatprep.subr.mxu0 0.0
        %1682 = vmatpush2.msra.mxu0 0.0
        %1683 = vmatprep.subr.mxu0 0.0
        %1684 = vmatpush2.msra.mxu0 0.0
        %1685 = vmatprep.subr.mxu0 0.0
        %1686 = vmatpush2.msra.mxu0 0.0
        %1687 = vmatprep.subr.mxu0 0.0
        %1688 = vmatpush2.msra.mxu0 0.0
        %1689 = vmatprep.subr.mxu0 0.0
        %1690 = vmatpush2.msra.mxu0 0.0
        %1691 = vmatprep.subr.mxu0 0.0
        %1692 = vmatpush2.msra.mxu0 0.0
        %1693 = vmatprep.subr.mxu0 0.0
        %1694 = vmatpush2.msra.mxu0 0.0
        %1695 = vmatprep.subr.mxu0 0.0
        %1696 = vmatpush2.msra.mxu0 0.0
        %1697 = vmatprep.subr.mxu0 0.0
        %1698 = vmatpush2.msra.mxu0 0.0
        %1699 = vmatprep.subr.mxu0 0.0
        %1700 = vmatpush2.msra.mxu0 0.0
        %1701 = vmatprep.subr.mxu0 0.0
        %1702 = vmatpush2.msra.mxu0 0.0
        %1703 = vmatprep.subr.mxu0 0.0
        %1704 = vmatpush2.msra.mxu0 0.0
        %1705 = vmatprep.subr.mxu0 0.0
        %1706 = vmatpush2.msra.mxu0 0.0
        %1707 = vmatprep.mubr.f32.mxu0 0.0
        %1708 = vmatmul.mubr.f32.gmra.mxu0 %v1641
        %v1709 = vpop.f32.mrf.mxu0
        %v1710 = vadd.f32 %v1637, %v1709
        %v1711 = vpop.f32.mrf.mxu0
        %1712 = vdwg.mxu0
        %s1713 = scalar_lea.vmem %s5, 64
        %v1714 = vld [vmem:[%s1713] sm:$0xff]
        %v1715 = vld [vmem:[%s1713 + $0x8] sm:$0xff]
        %v1716 = vld [vmem:[%s1713 + $0x10] sm:$0xff]
        %v1717 = vld [vmem:[%s1713 + $0x18] sm:$0xff]
        %s1718 = scalar_lea.vmem %s6, 2
        %v1719 = vld [vmem:[%s1718] sm:$0x1]
        %v1721 = vlaneseq
        %v1722 = vshrl.u32 %v1721, 7
        %v1723 = vsub.s32 0, %v1722
        %v1724 = vrot.slane %v1719, %v1723
        %1726 = vmatprep.subr.mxu0 0.0
        %1727 = vmatpush1.msra.mxu0 0.0
        %1728 = vmatprep.subr.mxu0 0.0
        %1729 = vmatpush1.msra.mxu0 0.0
        %1730 = vmatprep.subr.mxu0 0.0
        %1731 = vmatpush1.msra.mxu0 0.0
        %1732 = vmatprep.subr.mxu0 0.0
        %1733 = vmatpush1.msra.mxu0 0.0
        %1734 = vmatprep.subr.mxu0 0.0
        %1735 = vmatpush1.msra.mxu0 0.0
        %1736 = vmatprep.subr.mxu0 0.0
        %1737 = vmatpush1.msra.mxu0 0.0
        %1738 = vmatprep.subr.mxu0 0.0
        %1739 = vmatpush1.msra.mxu0 0.0
        %1740 = vmatprep.subr.mxu0 0.0
        %1741 = vmatpush1.msra.mxu0 0.0
        %1742 = vmatprep.subr.mxu0 0.0
        %1743 = vmatpush1.msra.mxu0 0.0
        %1744 = vmatprep.subr.mxu0 0.0
        %1745 = vmatpush1.msra.mxu0 0.0
        %1746 = vmatprep.subr.mxu0 0.0
        %1747 = vmatpush1.msra.mxu0 0.0
        %1748 = vmatprep.subr.mxu0 0.0
        %1749 = vmatpush1.msra.mxu0 0.0
        %1750 = vmatprep.subr.mxu0 0.0
        %1751 = vmatpush1.msra.mxu0 %v1717
        %1752 = vmatprep.subr.mxu0 0.0
        %1753 = vmatpush1.msra.mxu0 %v1716
        %1754 = vmatprep.subr.mxu0 0.0
        %1755 = vmatpush1.msra.mxu0 %v1715
        %1756 = vmatprep.subr.mxu0 0.0
        %1757 = vmatpush1.msra.mxu0 %v1714
        %1758 = vmatprep.subr.mxu0 0.0
        %1759 = vmatpush2.msra.mxu0 0.0
        %1760 = vmatprep.subr.mxu0 0.0
        %1761 = vmatpush2.msra.mxu0 0.0
        %1762 = vmatprep.subr.mxu0 0.0
        %1763 = vmatpush2.msra.mxu0 0.0
        %1764 = vmatprep.subr.mxu0 0.0
        %1765 = vmatpush2.msra.mxu0 0.0
        %1766 = vmatprep.subr.mxu0 0.0
        %1767 = vmatpush2.msra.mxu0 0.0
        %1768 = vmatprep.subr.mxu0 0.0
        %1769 = vmatpush2.msra.mxu0 0.0
        %1770 = vmatprep.subr.mxu0 0.0
        %1771 = vmatpush2.msra.mxu0 0.0
        %1772 = vmatprep.subr.mxu0 0.0
        %1773 = vmatpush2.msra.mxu0 0.0
        %1774 = vmatprep.subr.mxu0 0.0
        %1775 = vmatpush2.msra.mxu0 0.0
        %1776 = vmatprep.subr.mxu0 0.0
        %1777 = vmatpush2.msra.mxu0 0.0
        %1778 = vmatprep.subr.mxu0 0.0
        %1779 = vmatpush2.msra.mxu0 0.0
        %1780 = vmatprep.subr.mxu0 0.0
        %1781 = vmatpush2.msra.mxu0 0.0
        %1782 = vmatprep.subr.mxu0 0.0
        %1783 = vmatpush2.msra.mxu0 0.0
        %1784 = vmatprep.subr.mxu0 0.0
        %1785 = vmatpush2.msra.mxu0 0.0
        %1786 = vmatprep.subr.mxu0 0.0
        %1787 = vmatpush2.msra.mxu0 0.0
        %1788 = vmatprep.subr.mxu0 0.0
        %1789 = vmatpush2.msra.mxu0 0.0
        %1790 = vmatprep.mubr.f32.mxu0 0.0
        %1791 = vmatmul.mubr.f32.gmra.mxu0 %v750
        %v1792 = vpop.f32.mrf.mxu0
        %v1793 = vadd.f32 %v1724, %v1792
        %v1794 = vpop.f32.mrf.mxu0
        %1795 = vdwg.mxu0
        %s1796 = scalar_lea.vmem %s7, 64
        %v1797 = vld [vmem:[%s1796] sm:$0xff]
        %v1798 = vld [vmem:[%s1796 + $0x8] sm:$0xff]
        %v1799 = vld [vmem:[%s1796 + $0x10] sm:$0xff]
        %v1800 = vld [vmem:[%s1796 + $0x18] sm:$0xff]
        %s1801 = scalar_lea.vmem %s8, 2
        %v1802 = vld [vmem:[%s1801] sm:$0x1]
        %v1804 = vlaneseq
        %v1805 = vshrl.u32 %v1804, 7
        %v1806 = vsub.s32 0, %v1805
        %v1807 = vrot.slane %v1802, %v1806
        %1809 = vmatprep.subr.mxu0 0.0
        %1810 = vmatpush1.msra.mxu0 0.0
        %1811 = vmatprep.subr.mxu0 0.0
        %1812 = vmatpush1.msra.mxu0 0.0
        %1813 = vmatprep.subr.mxu0 0.0
        %1814 = vmatpush1.msra.mxu0 0.0
        %1815 = vmatprep.subr.mxu0 0.0
        %1816 = vmatpush1.msra.mxu0 0.0
        %1817 = vmatprep.subr.mxu0 0.0
        %1818 = vmatpush1.msra.mxu0 0.0
        %1819 = vmatprep.subr.mxu0 0.0
        %1820 = vmatpush1.msra.mxu0 0.0
        %1821 = vmatprep.subr.mxu0 0.0
        %1822 = vmatpush1.msra.mxu0 0.0
        %1823 = vmatprep.subr.mxu0 0.0
        %1824 = vmatpush1.msra.mxu0 0.0
        %1825 = vmatprep.subr.mxu0 0.0
        %1826 = vmatpush1.msra.mxu0 0.0
        %1827 = vmatprep.subr.mxu0 0.0
        %1828 = vmatpush1.msra.mxu0 0.0
        %1829 = vmatprep.subr.mxu0 0.0
        %1830 = vmatpush1.msra.mxu0 0.0
        %1831 = vmatprep.subr.mxu0 0.0
        %1832 = vmatpush1.msra.mxu0 0.0
        %1833 = vmatprep.subr.mxu0 0.0
        %1834 = vmatpush1.msra.mxu0 %v1800
        %1835 = vmatprep.subr.mxu0 0.0
        %1836 = vmatpush1.msra.mxu0 %v1799
        %1837 = vmatprep.subr.mxu0 0.0
        %1838 = vmatpush1.msra.mxu0 %v1798
        %1839 = vmatprep.subr.mxu0 0.0
        %1840 = vmatpush1.msra.mxu0 %v1797
        %1841 = vmatprep.subr.mxu0 0.0
        %1842 = vmatpush2.msra.mxu0 0.0
        %1843 = vmatprep.subr.mxu0 0.0
        %1844 = vmatpush2.msra.mxu0 0.0
        %1845 = vmatprep.subr.mxu0 0.0
        %1846 = vmatpush2.msra.mxu0 0.0
        %1847 = vmatprep.subr.mxu0 0.0
        %1848 = vmatpush2.msra.mxu0 0.0
        %1849 = vmatprep.subr.mxu0 0.0
        %1850 = vmatpush2.msra.mxu0 0.0
        %1851 = vmatprep.subr.mxu0 0.0
        %1852 = vmatpush2.msra.mxu0 0.0
        %1853 = vmatprep.subr.mxu0 0.0
        %1854 = vmatpush2.msra.mxu0 0.0
        %1855 = vmatprep.subr.mxu0 0.0
        %1856 = vmatpush2.msra.mxu0 0.0
        %1857 = vmatprep.subr.mxu0 0.0
        %1858 = vmatpush2.msra.mxu0 0.0
        %1859 = vmatprep.subr.mxu0 0.0
        %1860 = vmatpush2.msra.mxu0 0.0
        %1861 = vmatprep.subr.mxu0 0.0
        %1862 = vmatpush2.msra.mxu0 0.0
        %1863 = vmatprep.subr.mxu0 0.0
        %1864 = vmatpush2.msra.mxu0 0.0
        %1865 = vmatprep.subr.mxu0 0.0
        %1866 = vmatpush2.msra.mxu0 0.0
        %1867 = vmatprep.subr.mxu0 0.0
        %1868 = vmatpush2.msra.mxu0 0.0
        %1869 = vmatprep.subr.mxu0 0.0
        %1870 = vmatpush2.msra.mxu0 0.0
        %1871 = vmatprep.subr.mxu0 0.0
        %1872 = vmatpush2.msra.mxu0 0.0
        %1873 = vmatprep.mubr.f32.mxu0 0.0
        %1874 = vmatmul.mubr.f32.gmra.mxu0 %v750
        %v1875 = vpop.f32.mrf.mxu0
        %v1876 = vadd.f32 %v1807, %v1875
        %v1877 = vpop.f32.mrf.mxu0
        %1878 = vdwg.mxu0
        %s1879 = scalar_lea.vmem %s9, 64
        %v1880 = vld [vmem:[%s1879] sm:$0xff]
        %v1881 = vld [vmem:[%s1879 + $0x8] sm:$0xff]
        %v1882 = vld [vmem:[%s1879 + $0x10] sm:$0xff]
        %v1883 = vld [vmem:[%s1879 + $0x18] sm:$0xff]
        %s1884 = scalar_lea.vmem %s10, 2
        %v1885 = vld [vmem:[%s1884] sm:$0x1]
        %v1887 = vlaneseq
        %v1888 = vshrl.u32 %v1887, 7
        %v1889 = vsub.s32 0, %v1888
        %v1890 = vrot.slane %v1885, %v1889
        %1892 = vmatprep.subr.mxu0 0.0
        %1893 = vmatpush1.msra.mxu0 0.0
        %1894 = vmatprep.subr.mxu0 0.0
        %1895 = vmatpush1.msra.mxu0 0.0
        %1896 = vmatprep.subr.mxu0 0.0
        %1897 = vmatpush1.msra.mxu0 0.0
        %1898 = vmatprep.subr.mxu0 0.0
        %1899 = vmatpush1.msra.mxu0 0.0
        %1900 = vmatprep.subr.mxu0 0.0
        %1901 = vmatpush1.msra.mxu0 0.0
        %1902 = vmatprep.subr.mxu0 0.0
        %1903 = vmatpush1.msra.mxu0 0.0
        %1904 = vmatprep.subr.mxu0 0.0
        %1905 = vmatpush1.msra.mxu0 0.0
        %1906 = vmatprep.subr.mxu0 0.0
        %1907 = vmatpush1.msra.mxu0 0.0
        %1908 = vmatprep.subr.mxu0 0.0
        %1909 = vmatpush1.msra.mxu0 0.0
        %1910 = vmatprep.subr.mxu0 0.0
        %1911 = vmatpush1.msra.mxu0 0.0
        %1912 = vmatprep.subr.mxu0 0.0
        %1913 = vmatpush1.msra.mxu0 0.0
        %1914 = vmatprep.subr.mxu0 0.0
        %1915 = vmatpush1.msra.mxu0 0.0
        %1916 = vmatprep.subr.mxu0 0.0
        %1917 = vmatpush1.msra.mxu0 %v1883
        %1918 = vmatprep.subr.mxu0 0.0
        %1919 = vmatpush1.msra.mxu0 %v1882
        %1920 = vmatprep.subr.mxu0 0.0
        %1921 = vmatpush1.msra.mxu0 %v1881
        %1922 = vmatprep.subr.mxu0 0.0
        %1923 = vmatpush1.msra.mxu0 %v1880
        %1924 = vmatprep.subr.mxu0 0.0
        %1925 = vmatpush2.msra.mxu0 0.0
        %1926 = vmatprep.subr.mxu0 0.0
        %1927 = vmatpush2.msra.mxu0 0.0
        %1928 = vmatprep.subr.mxu0 0.0
        %1929 = vmatpush2.msra.mxu0 0.0
        %1930 = vmatprep.subr.mxu0 0.0
        %1931 = vmatpush2.msra.mxu0 0.0
        %1932 = vmatprep.subr.mxu0 0.0
        %1933 = vmatpush2.msra.mxu0 0.0
        %1934 = vmatprep.subr.mxu0 0.0
        %1935 = vmatpush2.msra.mxu0 0.0
        %1936 = vmatprep.subr.mxu0 0.0
        %1937 = vmatpush2.msra.mxu0 0.0
        %1938 = vmatprep.subr.mxu0 0.0
        %1939 = vmatpush2.msra.mxu0 0.0
        %1940 = vmatprep.subr.mxu0 0.0
        %1941 = vmatpush2.msra.mxu0 0.0
        %1942 = vmatprep.subr.mxu0 0.0
        %1943 = vmatpush2.msra.mxu0 0.0
        %1944 = vmatprep.subr.mxu0 0.0
        %1945 = vmatpush2.msra.mxu0 0.0
        %1946 = vmatprep.subr.mxu0 0.0
        %1947 = vmatpush2.msra.mxu0 0.0
        %1948 = vmatprep.subr.mxu0 0.0
        %1949 = vmatpush2.msra.mxu0 0.0
        %1950 = vmatprep.subr.mxu0 0.0
        %1951 = vmatpush2.msra.mxu0 0.0
        %1952 = vmatprep.subr.mxu0 0.0
        %1953 = vmatpush2.msra.mxu0 0.0
        %1954 = vmatprep.subr.mxu0 0.0
        %1955 = vmatpush2.msra.mxu0 0.0
        %1956 = vmatprep.mubr.f32.mxu0 0.0
        %1957 = vmatmul.mubr.f32.gmra.mxu0 %v750
        %v1958 = vpop.f32.mrf.mxu0
        %v1959 = vadd.f32 %v1890, %v1958
        %v1960 = vpop.f32.mrf.mxu0
        %1961 = vdwg.mxu0
        %v1963 = vsel %vm984, %v1793, 0
        %v1966 = vsel %vm984, %v1876, 0
        %1968 = vmatprep.subr.mxu0 0.0
        %1969 = vmatpush1.xpose.msra.mxu0 0.0
        %1970 = vmatprep.subr.mxu0 0.0
        %1971 = vmatpush1.xpose.msra.mxu0 0.0
        %1972 = vmatprep.subr.mxu0 0.0
        %1973 = vmatpush1.xpose.msra.mxu0 0.0
        %1974 = vmatprep.subr.mxu0 0.0
        %1975 = vmatpush1.xpose.msra.mxu0 0.0
        %1976 = vmatprep.subr.mxu0 0.0
        %1977 = vmatpush1.xpose.msra.mxu0 0.0
        %1978 = vmatprep.subr.mxu0 0.0
        %1979 = vmatpush1.xpose.msra.mxu0 0.0
        %1980 = vmatprep.subr.mxu0 0.0
        %1981 = vmatpush1.xpose.msra.mxu0 0.0
        %1982 = vmatprep.subr.mxu0 0.0
        %1983 = vmatpush1.xpose.msra.mxu0 0.0
        %1984 = vmatprep.subr.mxu0 0.0
        %1985 = vmatpush1.xpose.msra.mxu0 0.0
        %1986 = vmatprep.subr.mxu0 0.0
        %1987 = vmatpush1.xpose.msra.mxu0 0.0
        %1988 = vmatprep.subr.mxu0 0.0
        %1989 = vmatpush1.xpose.msra.mxu0 0.0
        %1990 = vmatprep.subr.mxu0 0.0
        %1991 = vmatpush1.xpose.msra.mxu0 0.0
        %1992 = vmatprep.subr.mxu0 0.0
        %1993 = vmatpush1.xpose.msra.mxu0 0.0
        %1994 = vmatprep.subr.mxu0 0.0
        %1995 = vmatpush1.xpose.msra.mxu0 0.0
        %1996 = vmatprep.subr.mxu0 0.0
        %1997 = vmatpush1.xpose.msra.mxu0 0.0
        %1998 = vmatprep.subr.mxu0 0.0
        %1999 = vmatpush1.xpose.msra.mxu0 %v1966
        %2000 = vmatprep.subr.mxu0 0.0
        %2001 = vmatpush2.xpose.msra.mxu0 0.0
        %2002 = vmatprep.subr.mxu0 0.0
        %2003 = vmatpush2.xpose.msra.mxu0 0.0
        %2004 = vmatprep.subr.mxu0 0.0
        %2005 = vmatpush2.xpose.msra.mxu0 0.0
        %2006 = vmatprep.subr.mxu0 0.0
        %2007 = vmatpush2.xpose.msra.mxu0 0.0
        %2008 = vmatprep.subr.mxu0 0.0
        %2009 = vmatpush2.xpose.msra.mxu0 0.0
        %2010 = vmatprep.subr.mxu0 0.0
        %2011 = vmatpush2.xpose.msra.mxu0 0.0
        %2012 = vmatprep.subr.mxu0 0.0
        %2013 = vmatpush2.xpose.msra.mxu0 0.0
        %2014 = vmatprep.subr.mxu0 0.0
        %2015 = vmatpush2.xpose.msra.mxu0 0.0
        %2016 = vmatprep.subr.mxu0 0.0
        %2017 = vmatpush2.xpose.msra.mxu0 0.0
        %2018 = vmatprep.subr.mxu0 0.0
        %2019 = vmatpush2.xpose.msra.mxu0 0.0
        %2020 = vmatprep.subr.mxu0 0.0
        %2021 = vmatpush2.xpose.msra.mxu0 0.0
        %2022 = vmatprep.subr.mxu0 0.0
        %2023 = vmatpush2.xpose.msra.mxu0 0.0
        %2024 = vmatprep.subr.mxu0 0.0
        %2025 = vmatpush2.xpose.msra.mxu0 0.0
        %2026 = vmatprep.subr.mxu0 0.0
        %2027 = vmatpush2.xpose.msra.mxu0 0.0
        %2028 = vmatprep.subr.mxu0 0.0
        %2029 = vmatpush2.xpose.msra.mxu0 0.0
        %2030 = vmatprep.subr.mxu0 0.0
        %2031 = vmatpush2.xpose.msra.mxu0 0.0
        %2032 = vmatprep.mubr.f32.mxu0 0.0
        %2033 = vmatmul.mubr.f32.gmra.mxu0 %v1963
        %v2034 = vpop.f32.mrf.mxu0
        %v2035 = vadd.f32 0.0, %v2034
        %v2036 = vpop.f32.mrf.mxu0
        %2037 = vdwg.mxu0
        %v2038 = vmul.f32 %v2035, 0.35355338
        %v2039 = vadd.f32 %v2038, %v1066
        %v2040 = vsel %vm984, %v2039, -inf
        %2041 = vmax.xlane.f32.xlu0 %v2040
        %v2042 = vpop.xlane.xlu0 %2041
        %v2043 = vsub.f32 %v2039, %v2042
        %v2044 = vmul.f32 %v2043, 1.442695
        %v2045 = vpow.pop %v2044
        %v2046 = vsel %vm984, %v2045, 0.0
        %2047 = vadd.xlane.f32.xlu0 %v2046
        %v2048 = vpop.xlane.xlu0 %2047
        %v2049 = vrcp.pop %v2048
        %v2050 = vmul.f32 %v2045, %v2049
        %v2052 = vsel %vm984, %v2050, 0
        %2054 = vmatprep.subr.mxu0 0.0
        %2055 = vmatpush1.msra.mxu0 0.0
        %2056 = vmatprep.subr.mxu0 0.0
        %2057 = vmatpush1.msra.mxu0 0.0
        %2058 = vmatprep.subr.mxu0 0.0
        %2059 = vmatpush1.msra.mxu0 0.0
        %2060 = vmatprep.subr.mxu0 0.0
        %2061 = vmatpush1.msra.mxu0 0.0
        %2062 = vmatprep.subr.mxu0 0.0
        %2063 = vmatpush1.msra.mxu0 0.0
        %2064 = vmatprep.subr.mxu0 0.0
        %2065 = vmatpush1.msra.mxu0 0.0
        %2066 = vmatprep.subr.mxu0 0.0
        %2067 = vmatpush1.msra.mxu0 0.0
        %2068 = vmatprep.subr.mxu0 0.0
        %2069 = vmatpush1.msra.mxu0 0.0
        %2070 = vmatprep.subr.mxu0 0.0
        %2071 = vmatpush1.msra.mxu0 0.0
        %2072 = vmatprep.subr.mxu0 0.0
        %2073 = vmatpush1.msra.mxu0 0.0
        %2074 = vmatprep.subr.mxu0 0.0
        %2075 = vmatpush1.msra.mxu0 0.0
        %2076 = vmatprep.subr.mxu0 0.0
        %2077 = vmatpush1.msra.mxu0 0.0
        %2078 = vmatprep.subr.mxu0 0.0
        %2079 = vmatpush1.msra.mxu0 0.0
        %2080 = vmatprep.subr.mxu0 0.0
        %2081 = vmatpush1.msra.mxu0 0.0
        %2082 = vmatprep.subr.mxu0 0.0
        %2083 = vmatpush1.msra.mxu0 0.0
        %2084 = vmatprep.subr.mxu0 0.0
        %2085 = vmatpush1.msra.mxu0 %v1959
        %2086 = vmatprep.subr.mxu0 0.0
        %2087 = vmatpush2.msra.mxu0 0.0
        %2088 = vmatprep.subr.mxu0 0.0
        %2089 = vmatpush2.msra.mxu0 0.0
        %2090 = vmatprep.subr.mxu0 0.0
        %2091 = vmatpush2.msra.mxu0 0.0
        %2092 = vmatprep.subr.mxu0 0.0
        %2093 = vmatpush2.msra.mxu0 0.0
        %2094 = vmatprep.subr.mxu0 0.0
        %2095 = vmatpush2.msra.mxu0 0.0
        %2096 = vmatprep.subr.mxu0 0.0
        %2097 = vmatpush2.msra.mxu0 0.0
        %2098 = vmatprep.subr.mxu0 0.0
        %2099 = vmatpush2.msra.mxu0 0.0
        %2100 = vmatprep.subr.mxu0 0.0
        %2101 = vmatpush2.msra.mxu0 0.0
        %2102 = vmatprep.subr.mxu0 0.0
        %2103 = vmatpush2.msra.mxu0 0.0
        %2104 = vmatprep.subr.mxu0 0.0
        %2105 = vmatpush2.msra.mxu0 0.0
        %2106 = vmatprep.subr.mxu0 0.0
        %2107 = vmatpush2.msra.mxu0 0.0
        %2108 = vmatprep.subr.mxu0 0.0
        %2109 = vmatpush2.msra.mxu0 0.0
        %2110 = vmatprep.subr.mxu0 0.0
        %2111 = vmatpush2.msra.mxu0 0.0
        %2112 = vmatprep.subr.mxu0 0.0
        %2113 = vmatpush2.msra.mxu0 0.0
        %2114 = vmatprep.subr.mxu0 0.0
        %2115 = vmatpush2.msra.mxu0 0.0
        %2116 = vmatprep.subr.mxu0 0.0
        %2117 = vmatpush2.msra.mxu0 0.0
        %2118 = vmatprep.mubr.f32.mxu0 0.0
        %2119 = vmatmul.mubr.f32.gmra.mxu0 %v2052
        %v2120 = vpop.f32.mrf.mxu0
        %v2121 = vadd.f32 0.0, %v2120
        %v2122 = vpop.f32.mrf.mxu0
        %2123 = vdwg.mxu0
        %s2124 = scalar_lea.vmem %s11, 16
        %v2125 = vld [vmem:[%s2124] sm:$0xff]
        %v2127 = vsel %vm984, %v2121, 0
        %2129 = vmatprep.subr.mxu0 0.0
        %2130 = vmatpush1.msra.mxu0 0.0
        %2131 = vmatprep.subr.mxu0 0.0
        %2132 = vmatpush1.msra.mxu0 0.0
        %2133 = vmatprep.subr.mxu0 0.0
        %2134 = vmatpush1.msra.mxu0 0.0
        %2135 = vmatprep.subr.mxu0 0.0
        %2136 = vmatpush1.msra.mxu0 0.0
        %2137 = vmatprep.subr.mxu0 0.0
        %2138 = vmatpush1.msra.mxu0 0.0
        %2139 = vmatprep.subr.mxu0 0.0
        %2140 = vmatpush1.msra.mxu0 0.0
        %2141 = vmatprep.subr.mxu0 0.0
        %2142 = vmatpush1.msra.mxu0 0.0
        %2143 = vmatprep.subr.mxu0 0.0
        %2144 = vmatpush1.msra.mxu0 0.0
        %2145 = vmatprep.subr.mxu0 0.0
        %2146 = vmatpush1.msra.mxu0 0.0
        %2147 = vmatprep.subr.mxu0 0.0
        %2148 = vmatpush1.msra.mxu0 0.0
        %2149 = vmatprep.subr.mxu0 0.0
        %2150 = vmatpush1.msra.mxu0 0.0
        %2151 = vmatprep.subr.mxu0 0.0
        %2152 = vmatpush1.msra.mxu0 0.0
        %2153 = vmatprep.subr.mxu0 0.0
        %2154 = vmatpush1.msra.mxu0 0.0
        %2155 = vmatprep.subr.mxu0 0.0
        %2156 = vmatpush1.msra.mxu0 0.0
        %2157 = vmatprep.subr.mxu0 0.0
        %2158 = vmatpush1.msra.mxu0 0.0
        %2159 = vmatprep.subr.mxu0 0.0
        %2160 = vmatpush1.msra.mxu0 %v2125
        %2161 = vmatprep.subr.mxu0 0.0
        %2162 = vmatpush2.msra.mxu0 0.0
        %2163 = vmatprep.subr.mxu0 0.0
        %2164 = vmatpush2.msra.mxu0 0.0
        %2165 = vmatprep.subr.mxu0 0.0
        %2166 = vmatpush2.msra.mxu0 0.0
        %2167 = vmatprep.subr.mxu0 0.0
        %2168 = vmatpush2.msra.mxu0 0.0
        %2169 = vmatprep.subr.mxu0 0.0
        %2170 = vmatpush2.msra.mxu0 0.0
        %2171 = vmatprep.subr.mxu0 0.0
        %2172 = vmatpush2.msra.mxu0 0.0
        %2173 = vmatprep.subr.mxu0 0.0
        %2174 = vmatpush2.msra.mxu0 0.0
        %2175 = vmatprep.subr.mxu0 0.0
        %2176 = vmatpush2.msra.mxu0 0.0
        %2177 = vmatprep.subr.mxu0 0.0
        %2178 = vmatpush2.msra.mxu0 0.0
        %2179 = vmatprep.subr.mxu0 0.0
        %2180 = vmatpush2.msra.mxu0 0.0
        %2181 = vmatprep.subr.mxu0 0.0
        %2182 = vmatpush2.msra.mxu0 0.0
        %2183 = vmatprep.subr.mxu0 0.0
        %2184 = vmatpush2.msra.mxu0 0.0
        %2185 = vmatprep.subr.mxu0 0.0
        %2186 = vmatpush2.msra.mxu0 0.0
        %2187 = vmatprep.subr.mxu0 0.0
        %2188 = vmatpush2.msra.mxu0 0.0
        %2189 = vmatprep.subr.mxu0 0.0
        %2190 = vmatpush2.msra.mxu0 0.0
        %2191 = vmatprep.subr.mxu0 0.0
        %2192 = vmatpush2.msra.mxu0 0.0
        %2193 = vmatprep.mubr.f32.mxu0 0.0
        %2194 = vmatmul.mubr.f32.gmra.mxu0 %v2127
        %v2195 = vpop.f32.mrf.mxu0
        %v2196 = vadd.f32 0.0, %v2195
        %v2197 = vpop.f32.mrf.mxu0
        %2198 = vdwg.mxu0
        %v2199 = vadd.f32 %v1710, %v2196
        %s2200 = scalar_lea.vmem %s5, 96
        %v2201 = vld [vmem:[%s2200] sm:$0xff]
        %v2202 = vld [vmem:[%s2200 + $0x8] sm:$0xff]
        %v2203 = vld [vmem:[%s2200 + $0x10] sm:$0xff]
        %v2204 = vld [vmem:[%s2200 + $0x18] sm:$0xff]
        %s2205 = scalar_lea.vmem %s6, 3
        %v2206 = vld [vmem:[%s2205] sm:$0x1]
        %v2208 = vlaneseq
        %v2209 = vshrl.u32 %v2208, 7
        %v2210 = vsub.s32 0, %v2209
        %v2211 = vrot.slane %v2206, %v2210
        %2213 = vmatprep.subr.mxu0 0.0
        %2214 = vmatpush1.msra.mxu0 0.0
        %2215 = vmatprep.subr.mxu0 0.0
        %2216 = vmatpush1.msra.mxu0 0.0
        %2217 = vmatprep.subr.mxu0 0.0
        %2218 = vmatpush1.msra.mxu0 0.0
        %2219 = vmatprep.subr.mxu0 0.0
        %2220 = vmatpush1.msra.mxu0 0.0
        %2221 = vmatprep.subr.mxu0 0.0
        %2222 = vmatpush1.msra.mxu0 0.0
        %2223 = vmatprep.subr.mxu0 0.0
        %2224 = vmatpush1.msra.mxu0 0.0
        %2225 = vmatprep.subr.mxu0 0.0
        %2226 = vmatpush1.msra.mxu0 0.0
        %2227 = vmatprep.subr.mxu0 0.0
        %2228 = vmatpush1.msra.mxu0 0.0
        %2229 = vmatprep.subr.mxu0 0.0
        %2230 = vmatpush1.msra.mxu0 0.0
        %2231 = vmatprep.subr.mxu0 0.0
        %2232 = vmatpush1.msra.mxu0 0.0
        %2233 = vmatprep.subr.mxu0 0.0
        %2234 = vmatpush1.msra.mxu0 0.0
        %2235 = vmatprep.subr.mxu0 0.0
        %2236 = vmatpush1.msra.mxu0 0.0
        %2237 = vmatprep.subr.mxu0 0.0
        %2238 = vmatpush1.msra.mxu0 %v2204
        %2239 = vmatprep.subr.mxu0 0.0
        %2240 = vmatpush1.msra.mxu0 %v2203
        %2241 = vmatprep.subr.mxu0 0.0
        %2242 = vmatpush1.msra.mxu0 %v2202
        %2243 = vmatprep.subr.mxu0 0.0
        %2244 = vmatpush1.msra.mxu0 %v2201
        %2245 = vmatprep.subr.mxu0 0.0
        %2246 = vmatpush2.msra.mxu0 0.0
        %2247 = vmatprep.subr.mxu0 0.0
        %2248 = vmatpush2.msra.mxu0 0.0
        %2249 = vmatprep.subr.mxu0 0.0
        %2250 = vmatpush2.msra.mxu0 0.0
        %2251 = vmatprep.subr.mxu0 0.0
        %2252 = vmatpush2.msra.mxu0 0.0
        %2253 = vmatprep.subr.mxu0 0.0
        %2254 = vmatpush2.msra.mxu0 0.0
        %2255 = vmatprep.subr.mxu0 0.0
        %2256 = vmatpush2.msra.mxu0 0.0
        %2257 = vmatprep.subr.mxu0 0.0
        %2258 = vmatpush2.msra.mxu0 0.0
        %2259 = vmatprep.subr.mxu0 0.0
        %2260 = vmatpush2.msra.mxu0 0.0
        %2261 = vmatprep.subr.mxu0 0.0
        %2262 = vmatpush2.msra.mxu0 0.0
        %2263 = vmatprep.subr.mxu0 0.0
        %2264 = vmatpush2.msra.mxu0 0.0
        %2265 = vmatprep.subr.mxu0 0.0
        %2266 = vmatpush2.msra.mxu0 0.0
        %2267 = vmatprep.subr.mxu0 0.0
        %2268 = vmatpush2.msra.mxu0 0.0
        %2269 = vmatprep.subr.mxu0 0.0
        %2270 = vmatpush2.msra.mxu0 0.0
        %2271 = vmatprep.subr.mxu0 0.0
        %2272 = vmatpush2.msra.mxu0 0.0
        %2273 = vmatprep.subr.mxu0 0.0
        %2274 = vmatpush2.msra.mxu0 0.0
        %2275 = vmatprep.subr.mxu0 0.0
        %2276 = vmatpush2.msra.mxu0 0.0
        %2277 = vmatprep.mubr.f32.mxu0 0.0
        %2278 = vmatmul.mubr.f32.gmra.mxu0 %v750
        %v2279 = vpop.f32.mrf.mxu0
        %v2280 = vadd.f32 %v2211, %v2279
        %v2281 = vpop.f32.mrf.mxu0
        %2282 = vdwg.mxu0
        %s2283 = scalar_lea.vmem %s7, 96
        %v2284 = vld [vmem:[%s2283] sm:$0xff]
        %v2285 = vld [vmem:[%s2283 + $0x8] sm:$0xff]
        %v2286 = vld [vmem:[%s2283 + $0x10] sm:$0xff]
        %v2287 = vld [vmem:[%s2283 + $0x18] sm:$0xff]
        %s2288 = scalar_lea.vmem %s8, 3
        %v2289 = vld [vmem:[%s2288] sm:$0x1]
        %v2291 = vlaneseq
        %v2292 = vshrl.u32 %v2291, 7
        %v2293 = vsub.s32 0, %v2292
        %v2294 = vrot.slane %v2289, %v2293
        %2296 = vmatprep.subr.mxu0 0.0
        %2297 = vmatpush1.msra.mxu0 0.0
        %2298 = vmatprep.subr.mxu0 0.0
        %2299 = vmatpush1.msra.mxu0 0.0
        %2300 = vmatprep.subr.mxu0 0.0
        %2301 = vmatpush1.msra.mxu0 0.0
        %2302 = vmatprep.subr.mxu0 0.0
        %2303 = vmatpush1.msra.mxu0 0.0
        %2304 = vmatprep.subr.mxu0 0.0
        %2305 = vmatpush1.msra.mxu0 0.0
        %2306 = vmatprep.subr.mxu0 0.0
        %2307 = vmatpush1.msra.mxu0 0.0
        %2308 = vmatprep.subr.mxu0 0.0
        %2309 = vmatpush1.msra.mxu0 0.0
        %2310 = vmatprep.subr.mxu0 0.0
        %2311 = vmatpush1.msra.mxu0 0.0
        %2312 = vmatprep.subr.mxu0 0.0
        %2313 = vmatpush1.msra.mxu0 0.0
        %2314 = vmatprep.subr.mxu0 0.0
        %2315 = vmatpush1.msra.mxu0 0.0
        %2316 = vmatprep.subr.mxu0 0.0
        %2317 = vmatpush1.msra.mxu0 0.0
        %2318 = vmatprep.subr.mxu0 0.0
        %2319 = vmatpush1.msra.mxu0 0.0
        %2320 = vmatprep.subr.mxu0 0.0
        %2321 = vmatpush1.msra.mxu0 %v2287
        %2322 = vmatprep.subr.mxu0 0.0
        %2323 = vmatpush1.msra.mxu0 %v2286
        %2324 = vmatprep.subr.mxu0 0.0
        %2325 = vmatpush1.msra.mxu0 %v2285
        %2326 = vmatprep.subr.mxu0 0.0
        %2327 = vmatpush1.msra.mxu0 %v2284
        %2328 = vmatprep.subr.mxu0 0.0
        %2329 = vmatpush2.msra.mxu0 0.0
        %2330 = vmatprep.subr.mxu0 0.0
        %2331 = vmatpush2.msra.mxu0 0.0
        %2332 = vmatprep.subr.mxu0 0.0
        %2333 = vmatpush2.msra.mxu0 0.0
        %2334 = vmatprep.subr.mxu0 0.0
        %2335 = vmatpush2.msra.mxu0 0.0
        %2336 = vmatprep.subr.mxu0 0.0
        %2337 = vmatpush2.msra.mxu0 0.0
        %2338 = vmatprep.subr.mxu0 0.0
        %2339 = vmatpush2.msra.mxu0 0.0
        %2340 = vmatprep.subr.mxu0 0.0
        %2341 = vmatpush2.msra.mxu0 0.0
        %2342 = vmatprep.subr.mxu0 0.0
        %2343 = vmatpush2.msra.mxu0 0.0
        %2344 = vmatprep.subr.mxu0 0.0
        %2345 = vmatpush2.msra.mxu0 0.0
        %2346 = vmatprep.subr.mxu0 0.0
        %2347 = vmatpush2.msra.mxu0 0.0
        %2348 = vmatprep.subr.mxu0 0.0
        %2349 = vmatpush2.msra.mxu0 0.0
        %2350 = vmatprep.subr.mxu0 0.0
        %2351 = vmatpush2.msra.mxu0 0.0
        %2352 = vmatprep.subr.mxu0 0.0
        %2353 = vmatpush2.msra.mxu0 0.0
        %2354 = vmatprep.subr.mxu0 0.0
        %2355 = vmatpush2.msra.mxu0 0.0
        %2356 = vmatprep.subr.mxu0 0.0
        %2357 = vmatpush2.msra.mxu0 0.0
        %2358 = vmatprep.subr.mxu0 0.0
        %2359 = vmatpush2.msra.mxu0 0.0
        %2360 = vmatprep.mubr.f32.mxu0 0.0
        %2361 = vmatmul.mubr.f32.gmra.mxu0 %v750
        %v2362 = vpop.f32.mrf.mxu0
        %v2363 = vadd.f32 %v2294, %v2362
        %v2364 = vpop.f32.mrf.mxu0
        %2365 = vdwg.mxu0
        %s2366 = scalar_lea.vmem %s9, 96
        %v2367 = vld [vmem:[%s2366] sm:$0xff]
        %v2368 = vld [vmem:[%s2366 + $0x8] sm:$0xff]
        %v2369 = vld [vmem:[%s2366 + $0x10] sm:$0xff]
        %v2370 = vld [vmem:[%s2366 + $0x18] sm:$0xff]
        %s2371 = scalar_lea.vmem %s10, 3
        %v2372 = vld [vmem:[%s2371] sm:$0x1]
        %v2374 = vlaneseq
        %v2375 = vshrl.u32 %v2374, 7
        %v2376 = vsub.s32 0, %v2375
        %v2377 = vrot.slane %v2372, %v2376
        %2379 = vmatprep.subr.mxu0 0.0
        %2380 = vmatpush1.msra.mxu0 0.0
        %2381 = vmatprep.subr.mxu0 0.0
        %2382 = vmatpush1.msra.mxu0 0.0
        %2383 = vmatprep.subr.mxu0 0.0
        %2384 = vmatpush1.msra.mxu0 0.0
        %2385 = vmatprep.subr.mxu0 0.0
        %2386 = vmatpush1.msra.mxu0 0.0
        %2387 = vmatprep.subr.mxu0 0.0
        %2388 = vmatpush1.msra.mxu0 0.0
        %2389 = vmatprep.subr.mxu0 0.0
        %2390 = vmatpush1.msra.mxu0 0.0
        %2391 = vmatprep.subr.mxu0 0.0
        %2392 = vmatpush1.msra.mxu0 0.0
        %2393 = vmatprep.subr.mxu0 0.0
        %2394 = vmatpush1.msra.mxu0 0.0
        %2395 = vmatprep.subr.mxu0 0.0
        %2396 = vmatpush1.msra.mxu0 0.0
        %2397 = vmatprep.subr.mxu0 0.0
        %2398 = vmatpush1.msra.mxu0 0.0
        %2399 = vmatprep.subr.mxu0 0.0
        %2400 = vmatpush1.msra.mxu0 0.0
        %2401 = vmatprep.subr.mxu0 0.0
        %2402 = vmatpush1.msra.mxu0 0.0
        %2403 = vmatprep.subr.mxu0 0.0
        %2404 = vmatpush1.msra.mxu0 %v2370
        %2405 = vmatprep.subr.mxu0 0.0
        %2406 = vmatpush1.msra.mxu0 %v2369
        %2407 = vmatprep.subr.mxu0 0.0
        %2408 = vmatpush1.msra.mxu0 %v2368
        %2409 = vmatprep.subr.mxu0 0.0
        %2410 = vmatpush1.msra.mxu0 %v2367
        %2411 = vmatprep.subr.mxu0 0.0
        %2412 = vmatpush2.msra.mxu0 0.0
        %2413 = vmatprep.subr.mxu0 0.0
        %2414 = vmatpush2.msra.mxu0 0.0
        %2415 = vmatprep.subr.mxu0 0.0
        %2416 = vmatpush2.msra.mxu0 0.0
        %2417 = vmatprep.subr.mxu0 0.0
        %2418 = vmatpush2.msra.mxu0 0.0
        %2419 = vmatprep.subr.mxu0 0.0
        %2420 = vmatpush2.msra.mxu0 0.0
        %2421 = vmatprep.subr.mxu0 0.0
        %2422 = vmatpush2.msra.mxu0 0.0
        %2423 = vmatprep.subr.mxu0 0.0
        %2424 = vmatpush2.msra.mxu0 0.0
        %2425 = vmatprep.subr.mxu0 0.0
        %2426 = vmatpush2.msra.mxu0 0.0
        %2427 = vmatprep.subr.mxu0 0.0
        %2428 = vmatpush2.msra.mxu0 0.0
        %2429 = vmatprep.subr.mxu0 0.0
        %2430 = vmatpush2.msra.mxu0 0.0
        %2431 = vmatprep.subr.mxu0 0.0
        %2432 = vmatpush2.msra.mxu0 0.0
        %2433 = vmatprep.subr.mxu0 0.0
        %2434 = vmatpush2.msra.mxu0 0.0
        %2435 = vmatprep.subr.mxu0 0.0
        %2436 = vmatpush2.msra.mxu0 0.0
        %2437 = vmatprep.subr.mxu0 0.0
        %2438 = vmatpush2.msra.mxu0 0.0
        %2439 = vmatprep.subr.mxu0 0.0
        %2440 = vmatpush2.msra.mxu0 0.0
        %2441 = vmatprep.subr.mxu0 0.0
        %2442 = vmatpush2.msra.mxu0 0.0
        %2443 = vmatprep.mubr.f32.mxu0 0.0
        %2444 = vmatmul.mubr.f32.gmra.mxu0 %v750
        %v2445 = vpop.f32.mrf.mxu0
        %v2446 = vadd.f32 %v2377, %v2445
        %v2447 = vpop.f32.mrf.mxu0
        %2448 = vdwg.mxu0
        %v2450 = vsel %vm984, %v2280, 0
        %v2453 = vsel %vm984, %v2363, 0
        %2455 = vmatprep.subr.mxu0 0.0
        %2456 = vmatpush1.xpose.msra.mxu0 0.0
        %2457 = vmatprep.subr.mxu0 0.0
        %2458 = vmatpush1.xpose.msra.mxu0 0.0
        %2459 = vmatprep.subr.mxu0 0.0
        %2460 = vmatpush1.xpose.msra.mxu0 0.0
        %2461 = vmatprep.subr.mxu0 0.0
        %2462 = vmatpush1.xpose.msra.mxu0 0.0
        %2463 = vmatprep.subr.mxu0 0.0
        %2464 = vmatpush1.xpose.msra.mxu0 0.0
        %2465 = vmatprep.subr.mxu0 0.0
        %2466 = vmatpush1.xpose.msra.mxu0 0.0
        %2467 = vmatprep.subr.mxu0 0.0
        %2468 = vmatpush1.xpose.msra.mxu0 0.0
        %2469 = vmatprep.subr.mxu0 0.0
        %2470 = vmatpush1.xpose.msra.mxu0 0.0
        %2471 = vmatprep.subr.mxu0 0.0
        %2472 = vmatpush1.xpose.msra.mxu0 0.0
        %2473 = vmatprep.subr.mxu0 0.0
        %2474 = vmatpush1.xpose.msra.mxu0 0.0
        %2475 = vmatprep.subr.mxu0 0.0
        %2476 = vmatpush1.xpose.msra.mxu0 0.0
        %2477 = vmatprep.subr.mxu0 0.0
        %2478 = vmatpush1.xpose.msra.mxu0 0.0
        %2479 = vmatprep.subr.mxu0 0.0
        %2480 = vmatpush1.xpose.msra.mxu0 0.0
        %2481 = vmatprep.subr.mxu0 0.0
        %2482 = vmatpush1.xpose.msra.mxu0 0.0
        %2483 = vmatprep.subr.mxu0 0.0
        %2484 = vmatpush1.xpose.msra.mxu0 0.0
        %2485 = vmatprep.subr.mxu0 0.0
        %2486 = vmatpush1.xpose.msra.mxu0 %v2453
        %2487 = vmatprep.subr.mxu0 0.0
        %2488 = vmatpush2.xpose.msra.mxu0 0.0
        %2489 = vmatprep.subr.mxu0 0.0
        %2490 = vmatpush2.xpose.msra.mxu0 0.0
        %2491 = vmatprep.subr.mxu0 0.0
        %2492 = vmatpush2.xpose.msra.mxu0 0.0
        %2493 = vmatprep.subr.mxu0 0.0
        %2494 = vmatpush2.xpose.msra.mxu0 0.0
        %2495 = vmatprep.subr.mxu0 0.0
        %2496 = vmatpush2.xpose.msra.mxu0 0.0
        %2497 = vmatprep.subr.mxu0 0.0
        %2498 = vmatpush2.xpose.msra.mxu0 0.0
        %2499 = vmatprep.subr.mxu0 0.0
        %2500 = vmatpush2.xpose.msra.mxu0 0.0
        %2501 = vmatprep.subr.mxu0 0.0
        %2502 = vmatpush2.xpose.msra.mxu0 0.0
        %2503 = vmatprep.subr.mxu0 0.0
        %2504 = vmatpush2.xpose.msra.mxu0 0.0
        %2505 = vmatprep.subr.mxu0 0.0
        %2506 = vmatpush2.xpose.msra.mxu0 0.0
        %2507 = vmatprep.subr.mxu0 0.0
        %2508 = vmatpush2.xpose.msra.mxu0 0.0
        %2509 = vmatprep.subr.mxu0 0.0
        %2510 = vmatpush2.xpose.msra.mxu0 0.0
        %2511 = vmatprep.subr.mxu0 0.0
        %2512 = vmatpush2.xpose.msra.mxu0 0.0
        %2513 = vmatprep.subr.mxu0 0.0
        %2514 = vmatpush2.xpose.msra.mxu0 0.0
        %2515 = vmatprep.subr.mxu0 0.0
        %2516 = vmatpush2.xpose.msra.mxu0 0.0
        %2517 = vmatprep.subr.mxu0 0.0
        %2518 = vmatpush2.xpose.msra.mxu0 0.0
        %2519 = vmatprep.mubr.f32.mxu0 0.0
        %2520 = vmatmul.mubr.f32.gmra.mxu0 %v2450
        %v2521 = vpop.f32.mrf.mxu0
        %v2522 = vadd.f32 0.0, %v2521
        %v2523 = vpop.f32.mrf.mxu0
        %2524 = vdwg.mxu0
        %v2525 = vmul.f32 %v2522, 0.35355338
        %v2526 = vadd.f32 %v2525, %v1066
        %v2527 = vsel %vm984, %v2526, -inf
        %2528 = vmax.xlane.f32.xlu0 %v2527
        %v2529 = vpop.xlane.xlu0 %2528
        %v2530 = vsub.f32 %v2526, %v2529
        %v2531 = vmul.f32 %v2530, 1.442695
        %v2532 = vpow.pop %v2531
        %v2533 = vsel %vm984, %v2532, 0.0
        %2534 = vadd.xlane.f32.xlu0 %v2533
        %v2535 = vpop.xlane.xlu0 %2534
        %v2536 = vrcp.pop %v2535
        %v2537 = vmul.f32 %v2532, %v2536
        %v2539 = vsel %vm984, %v2537, 0
        %2541 = vmatprep.subr.mxu0 0.0
        %2542 = vmatpush1.msra.mxu0 0.0
        %2543 = vmatprep.subr.mxu0 0.0
        %2544 = vmatpush1.msra.mxu0 0.0
        %2545 = vmatprep.subr.mxu0 0.0
        %2546 = vmatpush1.msra.mxu0 0.0
        %2547 = vmatprep.subr.mxu0 0.0
        %2548 = vmatpush1.msra.mxu0 0.0
        %2549 = vmatprep.subr.mxu0 0.0
        %2550 = vmatpush1.msra.mxu0 0.0
        %2551 = vmatprep.subr.mxu0 0.0
        %2552 = vmatpush1.msra.mxu0 0.0
        %2553 = vmatprep.subr.mxu0 0.0
        %2554 = vmatpush1.msra.mxu0 0.0
        %2555 = vmatprep.subr.mxu0 0.0
        %2556 = vmatpush1.msra.mxu0 0.0
        %2557 = vmatprep.subr.mxu0 0.0
        %2558 = vmatpush1.msra.mxu0 0.0
        %2559 = vmatprep.subr.mxu0 0.0
        %2560 = vmatpush1.msra.mxu0 0.0
        %2561 = vmatprep.subr.mxu0 0.0
        %2562 = vmatpush1.msra.mxu0 0.0
        %2563 = vmatprep.subr.mxu0 0.0
        %2564 = vmatpush1.msra.mxu0 0.0
        %2565 = vmatprep.subr.mxu0 0.0
        %2566 = vmatpush1.msra.mxu0 0.0
        %2567 = vmatprep.subr.mxu0 0.0
        %2568 = vmatpush1.msra.mxu0 0.0
        %2569 = vmatprep.subr.mxu0 0.0
        %2570 = vmatpush1.msra.mxu0 0.0
        %2571 = vmatprep.subr.mxu0 0.0
        %2572 = vmatpush1.msra.mxu0 %v2446
        %2573 = vmatprep.subr.mxu0 0.0
        %2574 = vmatpush2.msra.mxu0 0.0
        %2575 = vmatprep.subr.mxu0 0.0
        %2576 = vmatpush2.msra.mxu0 0.0
        %2577 = vmatprep.subr.mxu0 0.0
        %2578 = vmatpush2.msra.mxu0 0.0
        %2579 = vmatprep.subr.mxu0 0.0
        %2580 = vmatpush2.msra.mxu0 0.0
        %2581 = vmatprep.subr.mxu0 0.0
        %2582 = vmatpush2.msra.mxu0 0.0
        %2583 = vmatprep.subr.mxu0 0.0
        %2584 = vmatpush2.msra.mxu0 0.0
        %2585 = vmatprep.subr.mxu0 0.0
        %2586 = vmatpush2.msra.mxu0 0.0
        %2587 = vmatprep.subr.mxu0 0.0
        %2588 = vmatpush2.msra.mxu0 0.0
        %2589 = vmatprep.subr.mxu0 0.0
        %2590 = vmatpush2.msra.mxu0 0.0
        %2591 = vmatprep.subr.mxu0 0.0
        %2592 = vmatpush2.msra.mxu0 0.0
        %2593 = vmatprep.subr.mxu0 0.0
        %2594 = vmatpush2.msra.mxu0 0.0
        %2595 = vmatprep.subr.mxu0 0.0
        %2596 = vmatpush2.msra.mxu0 0.0
        %2597 = vmatprep.subr.mxu0 0.0
        %2598 = vmatpush2.msra.mxu0 0.0
        %2599 = vmatprep.subr.mxu0 0.0
        %2600 = vmatpush2.msra.mxu0 0.0
        %2601 = vmatprep.subr.mxu0 0.0
        %2602 = vmatpush2.msra.mxu0 0.0
        %2603 = vmatprep.subr.mxu0 0.0
        %2604 = vmatpush2.msra.mxu0 0.0
        %2605 = vmatprep.mubr.f32.mxu0 0.0
        %2606 = vmatmul.mubr.f32.gmra.mxu0 %v2539
        %v2607 = vpop.f32.mrf.mxu0
        %v2608 = vadd.f32 0.0, %v2607
        %v2609 = vpop.f32.mrf.mxu0
        %2610 = vdwg.mxu0
        %s2611 = scalar_lea.vmem %s11, 24
        %v2612 = vld [vmem:[%s2611] sm:$0xff]
        %v2614 = vsel %vm984, %v2608, 0
        %2616 = vmatprep.subr.mxu0 0.0
        %2617 = vmatpush1.msra.mxu0 0.0
        %2618 = vmatprep.subr.mxu0 0.0
        %2619 = vmatpush1.msra.mxu0 0.0
        %2620 = vmatprep.subr.mxu0 0.0
        %2621 = vmatpush1.msra.mxu0 0.0
        %2622 = vmatprep.subr.mxu0 0.0
        %2623 = vmatpush1.msra.mxu0 0.0
        %2624 = vmatprep.subr.mxu0 0.0
        %2625 = vmatpush1.msra.mxu0 0.0
        %2626 = vmatprep.subr.mxu0 0.0
        %2627 = vmatpush1.msra.mxu0 0.0
        %2628 = vmatprep.subr.mxu0 0.0
        %2629 = vmatpush1.msra.mxu0 0.0
        %2630 = vmatprep.subr.mxu0 0.0
        %2631 = vmatpush1.msra.mxu0 0.0
        %2632 = vmatprep.subr.mxu0 0.0
        %2633 = vmatpush1.msra.mxu0 0.0
        %2634 = vmatprep.subr.mxu0 0.0
        %2635 = vmatpush1.msra.mxu0 0.0
        %2636 = vmatprep.subr.mxu0 0.0
        %2637 = vmatpush1.msra.mxu0 0.0
        %2638 = vmatprep.subr.mxu0 0.0
        %2639 = vmatpush1.msra.mxu0 0.0
        %2640 = vmatprep.subr.mxu0 0.0
        %2641 = vmatpush1.msra.mxu0 0.0
        %2642 = vmatprep.subr.mxu0 0.0
        %2643 = vmatpush1.msra.mxu0 0.0
        %2644 = vmatprep.subr.mxu0 0.0
        %2645 = vmatpush1.msra.mxu0 0.0
        %2646 = vmatprep.subr.mxu0 0.0
        %2647 = vmatpush1.msra.mxu0 %v2612
        %2648 = vmatprep.subr.mxu0 0.0
        %2649 = vmatpush2.msra.mxu0 0.0
        %2650 = vmatprep.subr.mxu0 0.0
        %2651 = vmatpush2.msra.mxu0 0.0
        %2652 = vmatprep.subr.mxu0 0.0
        %2653 = vmatpush2.msra.mxu0 0.0
        %2654 = vmatprep.subr.mxu0 0.0
        %2655 = vmatpush2.msra.mxu0 0.0
        %2656 = vmatprep.subr.mxu0 0.0
        %2657 = vmatpush2.msra.mxu0 0.0
        %2658 = vmatprep.subr.mxu0 0.0
        %2659 = vmatpush2.msra.mxu0 0.0
        %2660 = vmatprep.subr.mxu0 0.0
        %2661 = vmatpush2.msra.mxu0 0.0
        %2662 = vmatprep.subr.mxu0 0.0
        %2663 = vmatpush2.msra.mxu0 0.0
        %2664 = vmatprep.subr.mxu0 0.0
        %2665 = vmatpush2.msra.mxu0 0.0
        %2666 = vmatprep.subr.mxu0 0.0
        %2667 = vmatpush2.msra.mxu0 0.0
        %2668 = vmatprep.subr.mxu0 0.0
        %2669 = vmatpush2.msra.mxu0 0.0
        %2670 = vmatprep.subr.mxu0 0.0
        %2671 = vmatpush2.msra.mxu0 0.0
        %2672 = vmatprep.subr.mxu0 0.0
        %2673 = vmatpush2.msra.mxu0 0.0
        %2674 = vmatprep.subr.mxu0 0.0
        %2675 = vmatpush2.msra.mxu0 0.0
        %2676 = vmatprep.subr.mxu0 0.0
        %2677 = vmatpush2.msra.mxu0 0.0
        %2678 = vmatprep.subr.mxu0 0.0
        %2679 = vmatpush2.msra.mxu0 0.0
        %2680 = vmatprep.mubr.f32.mxu0 0.0
        %2681 = vmatmul.mubr.f32.gmra.mxu0 %v2614
        %v2682 = vpop.f32.mrf.mxu0
        %v2683 = vadd.f32 0.0, %v2682
        %v2684 = vpop.f32.mrf.mxu0
        %2685 = vdwg.mxu0
        %v2686 = vadd.f32 %v2199, %v2683
        %v2687 = vld [vmem:[%s12] sm:$0x1]
        %v2689 = vlaneseq
        %v2690 = vshrl.u32 %v2689, 7
        %v2691 = vsub.s32 0, %v2690
        %v2692 = vrot.slane %v2687, %v2691
        %v2694 = vadd.f32 %v2686, %v2692
        %v2695 = vadd.f32 %v2694, %v735
        %v2696 = vld [vmem:[%s13] sm:$0x1]
        %v2697 = vld [vmem:[%s14] sm:$0x1]
        %v2698 = vsel %vm748, %v2695, 0.0
        %2699 = vadd.xlane.f32.xlu0 %v2698
        %v2700 = vpop.xlane.xlu0 %2699
        %v2701 = vrcp.pop 32.0
        %v2702 = vmul.f32 %v2700, %v2701
        %v2703 = vsub.f32 %v2695, %v2702
        %v2704 = vmul.f32 %v2703, %v2703
        %v2705 = vsel %vm748, %v2704, 0.0
        %2706 = vadd.xlane.f32.xlu0 %v2705
        %v2707 = vpop.xlane.xlu0 %2706
        %v2708 = vmul.f32 %v2707, %v2701
        %v2709 = vadd.f32 %v2708, 1e-06
        %v2710 = vrsqrt.pop %v2709
        %v2711 = vmul.f32 %v2703, %v2710
        %v2713 = vlaneseq
        %v2714 = vshrl.u32 %v2713, 7
        %v2715 = vsub.s32 0, %v2714
        %v2716 = vrot.slane %v2696, %v2715
        %v2718 = vmul.f32 %v2711, %v2716
        %v2720 = vlaneseq
        %v2721 = vshrl.u32 %v2720, 7
        %v2722 = vsub.s32 0, %v2721
        %v2723 = vrot.slane %v2697, %v2722
        %v2725 = vadd.f32 %v2718, %v2723
        %v2726 = vld [vmem:[%s15] sm:$0xff]
        %v2727 = vld [vmem:[%s15 + $0x8] sm:$0xff]
        %v2728 = vld [vmem:[%s15 + $0x10] sm:$0xff]
        %v2729 = vld [vmem:[%s15 + $0x18] sm:$0xff]
        %v2730 = vld [vmem:[%s16] sm:$0x1]
        %v2732 = vlaneseq
        %v2733 = vshrl.u32 %v2732, 7
        %v2734 = vsub.s32 0, %v2733
        %v2735 = vrot.slane %v2730, %v2734
        %v2738 = vsel %vm748, %v2725, 0
        %2740 = vmatprep.subr.mxu0 0.0
        %2741 = vmatpush1.msra.mxu0 0.0
        %2742 = vmatprep.subr.mxu0 0.0
        %2743 = vmatpush1.msra.mxu0 0.0
        %2744 = vmatprep.subr.mxu0 0.0
        %2745 = vmatpush1.msra.mxu0 0.0
        %2746 = vmatprep.subr.mxu0 0.0
        %2747 = vmatpush1.msra.mxu0 0.0
        %2748 = vmatprep.subr.mxu0 0.0
        %2749 = vmatpush1.msra.mxu0 0.0
        %2750 = vmatprep.subr.mxu0 0.0
        %2751 = vmatpush1.msra.mxu0 0.0
        %2752 = vmatprep.subr.mxu0 0.0
        %2753 = vmatpush1.msra.mxu0 0.0
        %2754 = vmatprep.subr.mxu0 0.0
        %2755 = vmatpush1.msra.mxu0 0.0
        %2756 = vmatprep.subr.mxu0 0.0
        %2757 = vmatpush1.msra.mxu0 0.0
        %2758 = vmatprep.subr.mxu0 0.0
        %2759 = vmatpush1.msra.mxu0 0.0
        %2760 = vmatprep.subr.mxu0 0.0
        %2761 = vmatpush1.msra.mxu0 0.0
        %2762 = vmatprep.subr.mxu0 0.0
        %2763 = vmatpush1.msra.mxu0 0.0
        %2764 = vmatprep.subr.mxu0 0.0
        %2765 = vmatpush1.msra.mxu0 %v2729
        %2766 = vmatprep.subr.mxu0 0.0
        %2767 = vmatpush1.msra.mxu0 %v2728
        %2768 = vmatprep.subr.mxu0 0.0
        %2769 = vmatpush1.msra.mxu0 %v2727
        %2770 = vmatprep.subr.mxu0 0.0
        %2771 = vmatpush1.msra.mxu0 %v2726
        %2772 = vmatprep.subr.mxu0 0.0
        %2773 = vmatpush2.msra.mxu0 0.0
        %2774 = vmatprep.subr.mxu0 0.0
        %2775 = vmatpush2.msra.mxu0 0.0
        %2776 = vmatprep.subr.mxu0 0.0
        %2777 = vmatpush2.msra.mxu0 0.0
        %2778 = vmatprep.subr.mxu0 0.0
        %2779 = vmatpush2.msra.mxu0 0.0
        %2780 = vmatprep.subr.mxu0 0.0
        %2781 = vmatpush2.msra.mxu0 0.0
        %2782 = vmatprep.subr.mxu0 0.0
        %2783 = vmatpush2.msra.mxu0 0.0
        %2784 = vmatprep.subr.mxu0 0.0
        %2785 = vmatpush2.msra.mxu0 0.0
        %2786 = vmatprep.subr.mxu0 0.0
        %2787 = vmatpush2.msra.mxu0 0.0
        %2788 = vmatprep.subr.mxu0 0.0
        %2789 = vmatpush2.msra.mxu0 0.0
        %2790 = vmatprep.subr.mxu0 0.0
        %2791 = vmatpush2.msra.mxu0 0.0
        %2792 = vmatprep.subr.mxu0 0.0
        %2793 = vmatpush2.msra.mxu0 0.0
        %2794 = vmatprep.subr.mxu0 0.0
        %2795 = vmatpush2.msra.mxu0 0.0
        %2796 = vmatprep.subr.mxu0 0.0
        %2797 = vmatpush2.msra.mxu0 0.0
        %2798 = vmatprep.subr.mxu0 0.0
        %2799 = vmatpush2.msra.mxu0 0.0
        %2800 = vmatprep.subr.mxu0 0.0
        %2801 = vmatpush2.msra.mxu0 0.0
        %2802 = vmatprep.subr.mxu0 0.0
        %2803 = vmatpush2.msra.mxu0 0.0
        %2804 = vmatprep.mubr.f32.mxu0 0.0
        %2805 = vmatmul.mubr.f32.gmra.mxu0 %v2738
        %v2806 = vpop.f32.mrf.mxu0
        %v2807 = vadd.f32 %v2735, %v2806
        %v2808 = vpop.f32.mrf.mxu0
        %2809 = vdwg.mxu0
        %v2810 = vmul.f32 %v2807, 0.5
        %v2811 = vmul.f32 %v2807, 0.044715
        %v2812 = vmul.f32 %v2811, %v2807
        %v2813 = vmul.f32 %v2812, %v2807
        %v2814 = vadd.f32 %v2807, %v2813
        %v2815 = vmul.f32 %v2814, 0.7978846
        %v2816 = vtanh.pop %v2815
        %v2817 = vadd.f32 %v2816, 1.0
        %v2818 = vmul.f32 %v2810, %v2817
        %v2819 = vld [vmem:[%s17] sm:$0xff]
        %v2820 = vld [vmem:[%s17 + $0x8] sm:$0xff]
        %v2821 = vld [vmem:[%s17 + $0x10] sm:$0xff]
        %v2822 = vld [vmem:[%s17 + $0x18] sm:$0xff]
        %v2823 = vld [vmem:[%s17 + $0x20] sm:$0xff]
        %v2824 = vld [vmem:[%s17 + $0x28] sm:$0xff]
        %v2825 = vld [vmem:[%s17 + $0x30] sm:$0xff]
        %v2826 = vld [vmem:[%s17 + $0x38] sm:$0xff]
        %v2827 = vld [vmem:[%s18] sm:$0x1]
        %v2829 = vlaneseq
        %v2830 = vshrl.u32 %v2829, 7
        %v2831 = vsub.s32 0, %v2830
        %v2832 = vrot.slane %v2827, %v2831
        %vm2834 = vcmask 523264
        %v2836 = vsel %vm2834, %v2818, 0
        %2838 = vmatprep.subr.mxu0 0.0
        %2839 = vmatpush1.msra.mxu0 0.0
        %2840 = vmatprep.subr.mxu0 0.0
        %2841 = vmatpush1.msra.mxu0 0.0
        %2842 = vmatprep.subr.mxu0 0.0
        %2843 = vmatpush1.msra.mxu0 0.0
        %2844 = vmatprep.subr.mxu0 0.0
        %2845 = vmatpush1.msra.mxu0 0.0
        %2846 = vmatprep.subr.mxu0 0.0
        %2847 = vmatpush1.msra.mxu0 0.0
        %2848 = vmatprep.subr.mxu0 0.0
        %2849 = vmatpush1.msra.mxu0 0.0
        %2850 = vmatprep.subr.mxu0 0.0
        %2851 = vmatpush1.msra.mxu0 0.0
        %2852 = vmatprep.subr.mxu0 0.0
        %2853 = vmatpush1.msra.mxu0 0.0
        %2854 = vmatprep.subr.mxu0 0.0
        %2855 = vmatpush1.msra.mxu0 %v2826
        %2856 = vmatprep.subr.mxu0 0.0
        %2857 = vmatpush1.msra.mxu0 %v2825
        %2858 = vmatprep.subr.mxu0 0.0
        %2859 = vmatpush1.msra.mxu0 %v2824
        %2860 = vmatprep.subr.mxu0 0.0
        %2861 = vmatpush1.msra.mxu0 %v2823
        %2862 = vmatprep.subr.mxu0 0.0
        %2863 = vmatpush1.msra.mxu0 %v2822
        %2864 = vmatprep.subr.mxu0 0.0
        %2865 = vmatpush1.msra.mxu0 %v2821
        %2866 = vmatprep.subr.mxu0 0.0
        %2867 = vmatpush1.msra.mxu0 %v2820
        %2868 = vmatprep.subr.mxu0 0.0
        %2869 = vmatpush1.msra.mxu0 %v2819
        %2870 = vmatprep.subr.mxu0 0.0
        %2871 = vmatpush2.msra.mxu0 0.0
        %2872 = vmatprep.subr.mxu0 0.0
        %2873 = vmatpush2.msra.mxu0 0.0
        %2874 = vmatprep.subr.mxu0 0.0
        %2875 = vmatpush2.msra.mxu0 0.0
        %2876 = vmatprep.subr.mxu0 0.0
        %2877 = vmatpush2.msra.mxu0 0.0
        %2878 = vmatprep.subr.mxu0 0.0
        %2879 = vmatpush2.msra.mxu0 0.0
        %2880 = vmatprep.subr.mxu0 0.0
        %2881 = vmatpush2.msra.mxu0 0.0
        %2882 = vmatprep.subr.mxu0 0.0
        %2883 = vmatpush2.msra.mxu0 0.0
        %2884 = vmatprep.subr.mxu0 0.0
        %2885 = vmatpush2.msra.mxu0 0.0
        %2886 = vmatprep.subr.mxu0 0.0
        %2887 = vmatpush2.msra.mxu0 0.0
        %2888 = vmatprep.subr.mxu0 0.0
        %2889 = vmatpush2.msra.mxu0 0.0
        %2890 = vmatprep.subr.mxu0 0.0
        %2891 = vmatpush2.msra.mxu0 0.0
        %2892 = vmatprep.subr.mxu0 0.0
        %2893 = vmatpush2.msra.mxu0 0.0
        %2894 = vmatprep.subr.mxu0 0.0
        %2895 = vmatpush2.msra.mxu0 0.0
        %2896 = vmatprep.subr.mxu0 0.0
        %2897 = vmatpush2.msra.mxu0 0.0
        %2898 = vmatprep.subr.mxu0 0.0
        %2899 = vmatpush2.msra.mxu0 0.0
        %2900 = vmatprep.subr.mxu0 0.0
        %2901 = vmatpush2.msra.mxu0 0.0
        %2902 = vmatprep.mubr.f32.mxu0 0.0
        %2903 = vmatmul.mubr.f32.gmra.mxu0 %v2836
        %v2904 = vpop.f32.mrf.mxu0
        %v2905 = vadd.f32 %v2832, %v2904
        %v2906 = vpop.f32.mrf.mxu0
        %2907 = vdwg.mxu0
        %v2908 = vadd.f32 %v2905, %v2695
        %s2909 = scalar_lea.vmem %s3, 1
        %v2910 = vld [vmem:[%s2909] sm:$0x1]
        %s2911 = scalar_lea.vmem %s4, 1
        %v2912 = vld [vmem:[%s2911] sm:$0x1]
        %v2913 = vsel %vm748, %v2908, 0.0
        %2914 = vadd.xlane.f32.xlu0 %v2913
        %v2915 = vpop.xlane.xlu0 %2914
        %v2916 = vmul.f32 %v2915, %v2701
        %v2917 = vsub.f32 %v2908, %v2916
        %v2918 = vmul.f32 %v2917, %v2917
        %v2919 = vsel %vm748, %v2918, 0.0
        %2920 = vadd.xlane.f32.xlu0 %v2919
        %v2921 = vpop.xlane.xlu0 %2920
        %v2922 = vmul.f32 %v2921, %v2701
        %v2923 = vadd.f32 %v2922, 1e-06
        %v2924 = vrsqrt.pop %v2923
        %v2925 = vmul.f32 %v2917, %v2924
        %v2927 = vlaneseq
        %v2928 = vshrl.u32 %v2927, 7
        %v2929 = vsub.s32 0, %v2928
        %v2930 = vrot.slane %v2910, %v2929
        %v2932 = vmul.f32 %v2925, %v2930
        %v2934 = vlaneseq
        %v2935 = vshrl.u32 %v2934, 7
        %v2936 = vsub.s32 0, %v2935
        %v2937 = vrot.slane %v2912, %v2936
        %v2939 = vadd.f32 %v2932, %v2937
        %s2940 = scalar_lea.vmem %s5, 128
        %v2941 = vld [vmem:[%s2940] sm:$0xff]
        %v2942 = vld [vmem:[%s2940 + $0x8] sm:$0xff]
        %v2943 = vld [vmem:[%s2940 + $0x10] sm:$0xff]
        %v2944 = vld [vmem:[%s2940 + $0x18] sm:$0xff]
        %s2945 = scalar_lea.vmem %s6, 4
        %v2946 = vld [vmem:[%s2945] sm:$0x1]
        %v2948 = vlaneseq
        %v2949 = vshrl.u32 %v2948, 7
        %v2950 = vsub.s32 0, %v2949
        %v2951 = vrot.slane %v2946, %v2950
        %v2954 = vsel %vm748, %v2939, 0
        %2956 = vmatprep.subr.mxu0 0.0
        %2957 = vmatpush1.msra.mxu0 0.0
        %2958 = vmatprep.subr.mxu0 0.0
        %2959 = vmatpush1.msra.mxu0 0.0
        %2960 = vmatprep.subr.mxu0 0.0
        %2961 = vmatpush1.msra.mxu0 0.0
        %2962 = vmatprep.subr.mxu0 0.0
        %2963 = vmatpush1.msra.mxu0 0.0
        %2964 = vmatprep.subr.mxu0 0.0
        %2965 = vmatpush1.msra.mxu0 0.0
        %2966 = vmatprep.subr.mxu0 0.0
        %2967 = vmatpush1.msra.mxu0 0.0
        %2968 = vmatprep.subr.mxu0 0.0
        %2969 = vmatpush1.msra.mxu0 0.0
        %2970 = vmatprep.subr.mxu0 0.0
        %2971 = vmatpush1.msra.mxu0 0.0
        %2972 = vmatprep.subr.mxu0 0.0
        %2973 = vmatpush1.msra.mxu0 0.0
        %2974 = vmatprep.subr.mxu0 0.0
        %2975 = vmatpush1.msra.mxu0 0.0
        %2976 = vmatprep.subr.mxu0 0.0
        %2977 = vmatpush1.msra.mxu0 0.0
        %2978 = vmatprep.subr.mxu0 0.0
        %2979 = vmatpush1.msra.mxu0 0.0
        %2980 = vmatprep.subr.mxu0 0.0
        %2981 = vmatpush1.msra.mxu0 %v2944
        %2982 = vmatprep.subr.mxu0 0.0
        %2983 = vmatpush1.msra.mxu0 %v2943
        %2984 = vmatprep.subr.mxu0 0.0
        %2985 = vmatpush1.msra.mxu0 %v2942
        %2986 = vmatprep.subr.mxu0 0.0
        %2987 = vmatpush1.msra.mxu0 %v2941
        %2988 = vmatprep.subr.mxu0 0.0
        %2989 = vmatpush2.msra.mxu0 0.0
        %2990 = vmatprep.subr.mxu0 0.0
        %2991 = vmatpush2.msra.mxu0 0.0
        %2992 = vmatprep.subr.mxu0 0.0
        %2993 = vmatpush2.msra.mxu0 0.0
        %2994 = vmatprep.subr.mxu0 0.0
        %2995 = vmatpush2.msra.mxu0 0.0
        %2996 = vmatprep.subr.mxu0 0.0
        %2997 = vmatpush2.msra.mxu0 0.0
        %2998 = vmatprep.subr.mxu0 0.0
        %2999 = vmatpush2.msra.mxu0 0.0
        %3000 = vmatprep.subr.mxu0 0.0
        %3001 = vmatpush2.msra.mxu0 0.0
        %3002 = vmatprep.subr.mxu0 0.0
        %3003 = vmatpush2.msra.mxu0 0.0
        %3004 = vmatprep.subr.mxu0 0.0
        %3005 = vmatpush2.msra.mxu0 0.0
        %3006 = vmatprep.subr.mxu0 0.0
        %3007 = vmatpush2.msra.mxu0 0.0
        %3008 = vmatprep.subr.mxu0 0.0
        %3009 = vmatpush2.msra.mxu0 0.0
        %3010 = vmatprep.subr.mxu0 0.0
        %3011 = vmatpush2.msra.mxu0 0.0
        %3012 = vmatprep.subr.mxu0 0.0
        %3013 = vmatpush2.msra.mxu0 0.0
        %3014 = vmatprep.subr.mxu0 0.0
        %3015 = vmatpush2.msra.mxu0 0.0
        %3016 = vmatprep.subr.mxu0 0.0
        %3017 = vmatpush2.msra.mxu0 0.0
        %3018 = vmatprep.subr.mxu0 0.0
        %3019 = vmatpush2.msra.mxu0 0.0
        %3020 = vmatprep.mubr.f32.mxu0 0.0
        %3021 = vmatmul.mubr.f32.gmra.mxu0 %v2954
        %v3022 = vpop.f32.mrf.mxu0
        %v3023 = vadd.f32 %v2951, %v3022
        %v3024 = vpop.f32.mrf.mxu0
        %3025 = vdwg.mxu0
        %s3026 = scalar_lea.vmem %s7, 128
        %v3027 = vld [vmem:[%s3026] sm:$0xff]
        %v3028 = vld [vmem:[%s3026 + $0x8] sm:$0xff]
        %v3029 = vld [vmem:[%s3026 + $0x10] sm:$0xff]
        %v3030 = vld [vmem:[%s3026 + $0x18] sm:$0xff]
        %s3031 = scalar_lea.vmem %s8, 4
        %v3032 = vld [vmem:[%s3031] sm:$0x1]
        %v3034 = vlaneseq
        %v3035 = vshrl.u32 %v3034, 7
        %v3036 = vsub.s32 0, %v3035
        %v3037 = vrot.slane %v3032, %v3036
        %3039 = vmatprep.subr.mxu0 0.0
        %3040 = vmatpush1.msra.mxu0 0.0
        %3041 = vmatprep.subr.mxu0 0.0
        %3042 = vmatpush1.msra.mxu0 0.0
        %3043 = vmatprep.subr.mxu0 0.0
        %3044 = vmatpush1.msra.mxu0 0.0
        %3045 = vmatprep.subr.mxu0 0.0
        %3046 = vmatpush1.msra.mxu0 0.0
        %3047 = vmatprep.subr.mxu0 0.0
        %3048 = vmatpush1.msra.mxu0 0.0
        %3049 = vmatprep.subr.mxu0 0.0
        %3050 = vmatpush1.msra.mxu0 0.0
        %3051 = vmatprep.subr.mxu0 0.0
        %3052 = vmatpush1.msra.mxu0 0.0
        %3053 = vmatprep.subr.mxu0 0.0
        %3054 = vmatpush1.msra.mxu0 0.0
        %3055 = vmatprep.subr.mxu0 0.0
        %3056 = vmatpush1.msra.mxu0 0.0
        %3057 = vmatprep.subr.mxu0 0.0
        %3058 = vmatpush1.msra.mxu0 0.0
        %3059 = vmatprep.subr.mxu0 0.0
        %3060 = vmatpush1.msra.mxu0 0.0
        %3061 = vmatprep.subr.mxu0 0.0
        %3062 = vmatpush1.msra.mxu0 0.0
        %3063 = vmatprep.subr.mxu0 0.0
        %3064 = vmatpush1.msra.mxu0 %v3030
        %3065 = vmatprep.subr.mxu0 0.0
        %3066 = vmatpush1.msra.mxu0 %v3029
        %3067 = vmatprep.subr.mxu0 0.0
        %3068 = vmatpush1.msra.mxu0 %v3028
        %3069 = vmatprep.subr.mxu0 0.0
        %3070 = vmatpush1.msra.mxu0 %v3027
        %3071 = vmatprep.subr.mxu0 0.0
        %3072 = vmatpush2.msra.mxu0 0.0
        %3073 = vmatprep.subr.mxu0 0.0
        %3074 = vmatpush2.msra.mxu0 0.0
        %3075 = vmatprep.subr.mxu0 0.0
        %3076 = vmatpush2.msra.mxu0 0.0
        %3077 = vmatprep.subr.mxu0 0.0
        %3078 = vmatpush2.msra.mxu0 0.0
        %3079 = vmatprep.subr.mxu0 0.0
        %3080 = vmatpush2.msra.mxu0 0.0
        %3081 = vmatprep.subr.mxu0 0.0
        %3082 = vmatpush2.msra.mxu0 0.0
        %3083 = vmatprep.subr.mxu0 0.0
        %3084 = vmatpush2.msra.mxu0 0.0
        %3085 = vmatprep.subr.mxu0 0.0
        %3086 = vmatpush2.msra.mxu0 0.0
        %3087 = vmatprep.subr.mxu0 0.0
        %3088 = vmatpush2.msra.mxu0 0.0
        %3089 = vmatprep.subr.mxu0 0.0
        %3090 = vmatpush2.msra.mxu0 0.0
        %3091 = vmatprep.subr.mxu0 0.0
        %3092 = vmatpush2.msra.mxu0 0.0
        %3093 = vmatprep.subr.mxu0 0.0
        %3094 = vmatpush2.msra.mxu0 0.0
        %3095 = vmatprep.subr.mxu0 0.0
        %3096 = vmatpush2.msra.mxu0 0.0
        %3097 = vmatprep.subr.mxu0 0.0
        %3098 = vmatpush2.msra.mxu0 0.0
        %3099 = vmatprep.subr.mxu0 0.0
        %3100 = vmatpush2.msra.mxu0 0.0
        %3101 = vmatprep.subr.mxu0 0.0
        %3102 = vmatpush2.msra.mxu0 0.0
        %3103 = vmatprep.mubr.f32.mxu0 0.0
        %3104 = vmatmul.mubr.f32.gmra.mxu0 %v2954
        %v3105 = vpop.f32.mrf.mxu0
        %v3106 = vadd.f32 %v3037, %v3105
        %v3107 = vpop.f32.mrf.mxu0
        %3108 = vdwg.mxu0
        %s3109 = scalar_lea.vmem %s9, 128
        %v3110 = vld [vmem:[%s3109] sm:$0xff]
        %v3111 = vld [vmem:[%s3109 + $0x8] sm:$0xff]
        %v3112 = vld [vmem:[%s3109 + $0x10] sm:$0xff]
        %v3113 = vld [vmem:[%s3109 + $0x18] sm:$0xff]
        %s3114 = scalar_lea.vmem %s10, 4
        %v3115 = vld [vmem:[%s3114] sm:$0x1]
        %v3117 = vlaneseq
        %v3118 = vshrl.u32 %v3117, 7
        %v3119 = vsub.s32 0, %v3118
        %v3120 = vrot.slane %v3115, %v3119
        %3122 = vmatprep.subr.mxu0 0.0
        %3123 = vmatpush1.msra.mxu0 0.0
        %3124 = vmatprep.subr.mxu0 0.0
        %3125 = vmatpush1.msra.mxu0 0.0
        %3126 = vmatprep.subr.mxu0 0.0
        %3127 = vmatpush1.msra.mxu0 0.0
        %3128 = vmatprep.subr.mxu0 0.0
        %3129 = vmatpush1.msra.mxu0 0.0
        %3130 = vmatprep.subr.mxu0 0.0
        %3131 = vmatpush1.msra.mxu0 0.0
        %3132 = vmatprep.subr.mxu0 0.0
        %3133 = vmatpush1.msra.mxu0 0.0
        %3134 = vmatprep.subr.mxu0 0.0
        %3135 = vmatpush1.msra.mxu0 0.0
        %3136 = vmatprep.subr.mxu0 0.0
        %3137 = vmatpush1.msra.mxu0 0.0
        %3138 = vmatprep.subr.mxu0 0.0
        %3139 = vmatpush1.msra.mxu0 0.0
        %3140 = vmatprep.subr.mxu0 0.0
        %3141 = vmatpush1.msra.mxu0 0.0
        %3142 = vmatprep.subr.mxu0 0.0
        %3143 = vmatpush1.msra.mxu0 0.0
        %3144 = vmatprep.subr.mxu0 0.0
        %3145 = vmatpush1.msra.mxu0 0.0
        %3146 = vmatprep.subr.mxu0 0.0
        %3147 = vmatpush1.msra.mxu0 %v3113
        %3148 = vmatprep.subr.mxu0 0.0
        %3149 = vmatpush1.msra.mxu0 %v3112
        %3150 = vmatprep.subr.mxu0 0.0
        %3151 = vmatpush1.msra.mxu0 %v3111
        %3152 = vmatprep.subr.mxu0 0.0
        %3153 = vmatpush1.msra.mxu0 %v3110
        %3154 = vmatprep.subr.mxu0 0.0
        %3155 = vmatpush2.msra.mxu0 0.0
        %3156 = vmatprep.subr.mxu0 0.0
        %3157 = vmatpush2.msra.mxu0 0.0
        %3158 = vmatprep.subr.mxu0 0.0
        %3159 = vmatpush2.msra.mxu0 0.0
        %3160 = vmatprep.subr.mxu0 0.0
        %3161 = vmatpush2.msra.mxu0 0.0
        %3162 = vmatprep.subr.mxu0 0.0
        %3163 = vmatpush2.msra.mxu0 0.0
        %3164 = vmatprep.subr.mxu0 0.0
        %3165 = vmatpush2.msra.mxu0 0.0
        %3166 = vmatprep.subr.mxu0 0.0
        %3167 = vmatpush2.msra.mxu0 0.0
        %3168 = vmatprep.subr.mxu0 0.0
        %3169 = vmatpush2.msra.mxu0 0.0
        %3170 = vmatprep.subr.mxu0 0.0
        %3171 = vmatpush2.msra.mxu0 0.0
        %3172 = vmatprep.subr.mxu0 0.0
        %3173 = vmatpush2.msra.mxu0 0.0
        %3174 = vmatprep.subr.mxu0 0.0
        %3175 = vmatpush2.msra.mxu0 0.0
        %3176 = vmatprep.subr.mxu0 0.0
        %3177 = vmatpush2.msra.mxu0 0.0
        %3178 = vmatprep.subr.mxu0 0.0
        %3179 = vmatpush2.msra.mxu0 0.0
        %3180 = vmatprep.subr.mxu0 0.0
        %3181 = vmatpush2.msra.mxu0 0.0
        %3182 = vmatprep.subr.mxu0 0.0
        %3183 = vmatpush2.msra.mxu0 0.0
        %3184 = vmatprep.subr.mxu0 0.0
        %3185 = vmatpush2.msra.mxu0 0.0
        %3186 = vmatprep.mubr.f32.mxu0 0.0
        %3187 = vmatmul.mubr.f32.gmra.mxu0 %v2954
        %v3188 = vpop.f32.mrf.mxu0
        %v3189 = vadd.f32 %v3120, %v3188
        %v3190 = vpop.f32.mrf.mxu0
        %3191 = vdwg.mxu0
        %v3193 = vsel %vm984, %v3023, 0
        %v3196 = vsel %vm984, %v3106, 0
        %3198 = vmatprep.subr.mxu0 0.0
        %3199 = vmatpush1.xpose.msra.mxu0 0.0
        %3200 = vmatprep.subr.mxu0 0.0
        %3201 = vmatpush1.xpose.msra.mxu0 0.0
        %3202 = vmatprep.subr.mxu0 0.0
        %3203 = vmatpush1.xpose.msra.mxu0 0.0
        %3204 = vmatprep.subr.mxu0 0.0
        %3205 = vmatpush1.xpose.msra.mxu0 0.0
        %3206 = vmatprep.subr.mxu0 0.0
        %3207 = vmatpush1.xpose.msra.mxu0 0.0
        %3208 = vmatprep.subr.mxu0 0.0
        %3209 = vmatpush1.xpose.msra.mxu0 0.0
        %3210 = vmatprep.subr.mxu0 0.0
        %3211 = vmatpush1.xpose.msra.mxu0 0.0
        %3212 = vmatprep.subr.mxu0 0.0
        %3213 = vmatpush1.xpose.msra.mxu0 0.0
        %3214 = vmatprep.subr.mxu0 0.0
        %3215 = vmatpush1.xpose.msra.mxu0 0.0
        %3216 = vmatprep.subr.mxu0 0.0
        %3217 = vmatpush1.xpose.msra.mxu0 0.0
        %3218 = vmatprep.subr.mxu0 0.0
        %3219 = vmatpush1.xpose.msra.mxu0 0.0
        %3220 = vmatprep.subr.mxu0 0.0
        %3221 = vmatpush1.xpose.msra.mxu0 0.0
        %3222 = vmatprep.subr.mxu0 0.0
        %3223 = vmatpush1.xpose.msra.mxu0 0.0
        %3224 = vmatprep.subr.mxu0 0.0
        %3225 = vmatpush1.xpose.msra.mxu0 0.0
        %3226 = vmatprep.subr.mxu0 0.0
        %3227 = vmatpush1.xpose.msra.mxu0 0.0
        %3228 = vmatprep.subr.mxu0 0.0
        %3229 = vmatpush1.xpose.msra.mxu0 %v3196
        %3230 = vmatprep.subr.mxu0 0.0
        %3231 = vmatpush2.xpose.msra.mxu0 0.0
        %3232 = vmatprep.subr.mxu0 0.0
        %3233 = vmatpush2.xpose.msra.mxu0 0.0
        %3234 = vmatprep.subr.mxu0 0.0
        %3235 = vmatpush2.xpose.msra.mxu0 0.0
        %3236 = vmatprep.subr.mxu0 0.0
        %3237 = vmatpush2.xpose.msra.mxu0 0.0
        %3238 = vmatprep.subr.mxu0 0.0
        %3239 = vmatpush2.xpose.msra.mxu0 0.0
        %3240 = vmatprep.subr.mxu0 0.0
        %3241 = vmatpush2.xpose.msra.mxu0 0.0
        %3242 = vmatprep.subr.mxu0 0.0
        %3243 = vmatpush2.xpose.msra.mxu0 0.0
        %3244 = vmatprep.subr.mxu0 0.0
        %3245 = vmatpush2.xpose.msra.mxu0 0.0
        %3246 = vmatprep.subr.mxu0 0.0
        %3247 = vmatpush2.xpose.msra.mxu0 0.0
        %3248 = vmatprep.subr.mxu0 0.0
        %3249 = vmatpush2.xpose.msra.mxu0 0.0
        %3250 = vmatprep.subr.mxu0 0.0
        %3251 = vmatpush2.xpose.msra.mxu0 0.0
        %3252 = vmatprep.subr.mxu0 0.0
        %3253 = vmatpush2.xpose.msra.mxu0 0.0
        %3254 = vmatprep.subr.mxu0 0.0
        %3255 = vmatpush2.xpose.msra.mxu0 0.0
        %3256 = vmatprep.subr.mxu0 0.0
        %3257 = vmatpush2.xpose.msra.mxu0 0.0
        %3258 = vmatprep.subr.mxu0 0.0
        %3259 = vmatpush2.xpose.msra.mxu0 0.0
        %3260 = vmatprep.subr.mxu0 0.0
        %3261 = vmatpush2.xpose.msra.mxu0 0.0
        %3262 = vmatprep.mubr.f32.mxu0 0.0
        %3263 = vmatmul.mubr.f32.gmra.mxu0 %v3193
        %v3264 = vpop.f32.mrf.mxu0
        %v3265 = vadd.f32 0.0, %v3264
        %v3266 = vpop.f32.mrf.mxu0
        %3267 = vdwg.mxu0
        %v3268 = vmul.f32 %v3265, 0.35355338
        %v3269 = vadd.f32 %v3268, %v1066
        %v3270 = vsel %vm984, %v3269, -inf
        %3271 = vmax.xlane.f32.xlu0 %v3270
        %v3272 = vpop.xlane.xlu0 %3271
        %v3273 = vsub.f32 %v3269, %v3272
        %v3274 = vmul.f32 %v3273, 1.442695
        %v3275 = vpow.pop %v3274
        %v3276 = vsel %vm984, %v3275, 0.0
        %3277 = vadd.xlane.f32.xlu0 %v3276
        %v3278 = vpop.xlane.xlu0 %3277
        %v3279 = vrcp.pop %v3278
        %v3280 = vmul.f32 %v3275, %v3279
        %v3282 = vsel %vm984, %v3280, 0
        %3284 = vmatprep.subr.mxu0 0.0
        %3285 = vmatpush1.msra.mxu0 0.0
        %3286 = vmatprep.subr.mxu0 0.0
        %3287 = vmatpush1.msra.mxu0 0.0
        %3288 = vmatprep.subr.mxu0 0.0
        %3289 = vmatpush1.msra.mxu0 0.0
        %3290 = vmatprep.subr.mxu0 0.0
        %3291 = vmatpush1.msra.mxu0 0.0
        %3292 = vmatprep.subr.mxu0 0.0
        %3293 = vmatpush1.msra.mxu0 0.0
        %3294 = vmatprep.subr.mxu0 0.0
        %3295 = vmatpush1.msra.mxu0 0.0
        %3296 = vmatprep.subr.mxu0 0.0
        %3297 = vmatpush1.msra.mxu0 0.0
        %3298 = vmatprep.subr.mxu0 0.0
        %3299 = vmatpush1.msra.mxu0 0.0
        %3300 = vmatprep.subr.mxu0 0.0
        %3301 = vmatpush1.msra.mxu0 0.0
        %3302 = vmatprep.subr.mxu0 0.0
        %3303 = vmatpush1.msra.mxu0 0.0
        %3304 = vmatprep.subr.mxu0 0.0
        %3305 = vmatpush1.msra.mxu0 0.0
        %3306 = vmatprep.subr.mxu0 0.0
        %3307 = vmatpush1.msra.mxu0 0.0
        %3308 = vmatprep.subr.mxu0 0.0
        %3309 = vmatpush1.msra.mxu0 0.0
        %3310 = vmatprep.subr.mxu0 0.0
        %3311 = vmatpush1.msra.mxu0 0.0
        %3312 = vmatprep.subr.mxu0 0.0
        %3313 = vmatpush1.msra.mxu0 0.0
        %3314 = vmatprep.subr.mxu0 0.0
        %3315 = vmatpush1.msra.mxu0 %v3189
        %3316 = vmatprep.subr.mxu0 0.0
        %3317 = vmatpush2.msra.mxu0 0.0
        %3318 = vmatprep.subr.mxu0 0.0
        %3319 = vmatpush2.msra.mxu0 0.0
        %3320 = vmatprep.subr.mxu0 0.0
        %3321 = vmatpush2.msra.mxu0 0.0
        %3322 = vmatprep.subr.mxu0 0.0
        %3323 = vmatpush2.msra.mxu0 0.0
        %3324 = vmatprep.subr.mxu0 0.0
        %3325 = vmatpush2.msra.mxu0 0.0
        %3326 = vmatprep.subr.mxu0 0.0
        %3327 = vmatpush2.msra.mxu0 0.0
        %3328 = vmatprep.subr.mxu0 0.0
        %3329 = vmatpush2.msra.mxu0 0.0
        %3330 = vmatprep.subr.mxu0 0.0
        %3331 = vmatpush2.msra.mxu0 0.0
        %3332 = vmatprep.subr.mxu0 0.0
        %3333 = vmatpush2.msra.mxu0 0.0
        %3334 = vmatprep.subr.mxu0 0.0
        %3335 = vmatpush2.msra.mxu0 0.0
        %3336 = vmatprep.subr.mxu0 0.0
        %3337 = vmatpush2.msra.mxu0 0.0
        %3338 = vmatprep.subr.mxu0 0.0
        %3339 = vmatpush2.msra.mxu0 0.0
        %3340 = vmatprep.subr.mxu0 0.0
        %3341 = vmatpush2.msra.mxu0 0.0
        %3342 = vmatprep.subr.mxu0 0.0
        %3343 = vmatpush2.msra.mxu0 0.0
        %3344 = vmatprep.subr.mxu0 0.0
        %3345 = vmatpush2.msra.mxu0 0.0
        %3346 = vmatprep.subr.mxu0 0.0
        %3347 = vmatpush2.msra.mxu0 0.0
        %3348 = vmatprep.mubr.f32.mxu0 0.0
        %3349 = vmatmul.mubr.f32.gmra.mxu0 %v3282
        %v3350 = vpop.f32.mrf.mxu0
        %v3351 = vadd.f32 0.0, %v3350
        %v3352 = vpop.f32.mrf.mxu0
        %3353 = vdwg.mxu0
        %s3354 = scalar_lea.vmem %s11, 32
        %v3355 = vld [vmem:[%s3354] sm:$0xff]
        %s3356 = scalar_lea.vmem %s5, 160
        %v3357 = vld [vmem:[%s3356] sm:$0xff]
        %v3358 = vld [vmem:[%s3356 + $0x8] sm:$0xff]
        %v3359 = vld [vmem:[%s3356 + $0x10] sm:$0xff]
        %v3360 = vld [vmem:[%s3356 + $0x18] sm:$0xff]
        %s3361 = scalar_lea.vmem %s6, 5
        %v3362 = vld [vmem:[%s3361] sm:$0x1]
        %v3364 = vlaneseq
        %v3365 = vshrl.u32 %v3364, 7
        %v3366 = vsub.s32 0, %v3365
        %v3367 = vrot.slane %v3362, %v3366
        %3369 = vmatprep.subr.mxu0 0.0
        %3370 = vmatpush1.msra.mxu0 0.0
        %3371 = vmatprep.subr.mxu0 0.0
        %3372 = vmatpush1.msra.mxu0 0.0
        %3373 = vmatprep.subr.mxu0 0.0
        %3374 = vmatpush1.msra.mxu0 0.0
        %3375 = vmatprep.subr.mxu0 0.0
        %3376 = vmatpush1.msra.mxu0 0.0
        %3377 = vmatprep.subr.mxu0 0.0
        %3378 = vmatpush1.msra.mxu0 0.0
        %3379 = vmatprep.subr.mxu0 0.0
        %3380 = vmatpush1.msra.mxu0 0.0
        %3381 = vmatprep.subr.mxu0 0.0
        %3382 = vmatpush1.msra.mxu0 0.0
        %3383 = vmatprep.subr.mxu0 0.0
        %3384 = vmatpush1.msra.mxu0 0.0
        %3385 = vmatprep.subr.mxu0 0.0
        %3386 = vmatpush1.msra.mxu0 0.0
        %3387 = vmatprep.subr.mxu0 0.0
        %3388 = vmatpush1.msra.mxu0 0.0
        %3389 = vmatprep.subr.mxu0 0.0
        %3390 = vmatpush1.msra.mxu0 0.0
        %3391 = vmatprep.subr.mxu0 0.0
        %3392 = vmatpush1.msra.mxu0 0.0
        %3393 = vmatprep.subr.mxu0 0.0
        %3394 = vmatpush1.msra.mxu0 %v3360
        %3395 = vmatprep.subr.mxu0 0.0
        %3396 = vmatpush1.msra.mxu0 %v3359
        %3397 = vmatprep.subr.mxu0 0.0
        %3398 = vmatpush1.msra.mxu0 %v3358
        %3399 = vmatprep.subr.mxu0 0.0
        %3400 = vmatpush1.msra.mxu0 %v3357
        %3401 = vmatprep.subr.mxu0 0.0
        %3402 = vmatpush2.msra.mxu0 0.0
        %3403 = vmatprep.subr.mxu0 0.0
        %3404 = vmatpush2.msra.mxu0 0.0
        %3405 = vmatprep.subr.mxu0 0.0
        %3406 = vmatpush2.msra.mxu0 0.0
        %3407 = vmatprep.subr.mxu0 0.0
        %3408 = vmatpush2.msra.mxu0 0.0
        %3409 = vmatprep.subr.mxu0 0.0
        %3410 = vmatpush2.msra.mxu0 0.0
        %3411 = vmatprep.subr.mxu0 0.0
        %3412 = vmatpush2.msra.mxu0 0.0
        %3413 = vmatprep.subr.mxu0 0.0
        %3414 = vmatpush2.msra.mxu0 0.0
        %3415 = vmatprep.subr.mxu0 0.0
        %3416 = vmatpush2.msra.mxu0 0.0
        %3417 = vmatprep.subr.mxu0 0.0
        %3418 = vmatpush2.msra.mxu0 0.0
        %3419 = vmatprep.subr.mxu0 0.0
        %3420 = vmatpush2.msra.mxu0 0.0
        %3421 = vmatprep.subr.mxu0 0.0
        %3422 = vmatpush2.msra.mxu0 0.0
        %3423 = vmatprep.subr.mxu0 0.0
        %3424 = vmatpush2.msra.mxu0 0.0
        %3425 = vmatprep.subr.mxu0 0.0
        %3426 = vmatpush2.msra.mxu0 0.0
        %3427 = vmatprep.subr.mxu0 0.0
        %3428 = vmatpush2.msra.mxu0 0.0
        %3429 = vmatprep.subr.mxu0 0.0
        %3430 = vmatpush2.msra.mxu0 0.0
        %3431 = vmatprep.subr.mxu0 0.0
        %3432 = vmatpush2.msra.mxu0 0.0
        %3433 = vmatprep.mubr.f32.mxu0 0.0
        %3434 = vmatmul.mubr.f32.gmra.mxu0 %v2954
        %v3435 = vpop.f32.mrf.mxu0
        %v3436 = vadd.f32 %v3367, %v3435
        %v3437 = vpop.f32.mrf.mxu0
        %3438 = vdwg.mxu0
        %s3439 = scalar_lea.vmem %s7, 160
        %v3440 = vld [vmem:[%s3439] sm:$0xff]
        %v3441 = vld [vmem:[%s3439 + $0x8] sm:$0xff]
        %v3442 = vld [vmem:[%s3439 + $0x10] sm:$0xff]
        %v3443 = vld [vmem:[%s3439 + $0x18] sm:$0xff]
        %s3444 = scalar_lea.vmem %s8, 5
        %v3445 = vld [vmem:[%s3444] sm:$0x1]
        %v3447 = vlaneseq
        %v3448 = vshrl.u32 %v3447, 7
        %v3449 = vsub.s32 0, %v3448
        %v3450 = vrot.slane %v3445, %v3449
        %3452 = vmatprep.subr.mxu0 0.0
        %3453 = vmatpush1.msra.mxu0 0.0
        %3454 = vmatprep.subr.mxu0 0.0
        %3455 = vmatpush1.msra.mxu0 0.0
        %3456 = vmatprep.subr.mxu0 0.0
        %3457 = vmatpush1.msra.mxu0 0.0
        %3458 = vmatprep.subr.mxu0 0.0
        %3459 = vmatpush1.msra.mxu0 0.0
        %3460 = vmatprep.subr.mxu0 0.0
        %3461 = vmatpush1.msra.mxu0 0.0
        %3462 = vmatprep.subr.mxu0 0.0
        %3463 = vmatpush1.msra.mxu0 0.0
        %3464 = vmatprep.subr.mxu0 0.0
        %3465 = vmatpush1.msra.mxu0 0.0
        %3466 = vmatprep.subr.mxu0 0.0
        %3467 = vmatpush1.msra.mxu0 0.0
        %3468 = vmatprep.subr.mxu0 0.0
        %3469 = vmatpush1.msra.mxu0 0.0
        %3470 = vmatprep.subr.mxu0 0.0
        %3471 = vmatpush1.msra.mxu0 0.0
        %3472 = vmatprep.subr.mxu0 0.0
        %3473 = vmatpush1.msra.mxu0 0.0
        %3474 = vmatprep.subr.mxu0 0.0
        %3475 = vmatpush1.msra.mxu0 0.0
        %3476 = vmatprep.subr.mxu0 0.0
        %3477 = vmatpush1.msra.mxu0 %v3443
        %3478 = vmatprep.subr.mxu0 0.0
        %3479 = vmatpush1.msra.mxu0 %v3442
        %3480 = vmatprep.subr.mxu0 0.0
        %3481 = vmatpush1.msra.mxu0 %v3441
        %3482 = vmatprep.subr.mxu0 0.0
        %3483 = vmatpush1.msra.mxu0 %v3440
        %3484 = vmatprep.subr.mxu0 0.0
        %3485 = vmatpush2.msra.mxu0 0.0
        %3486 = vmatprep.subr.mxu0 0.0
        %3487 = vmatpush2.msra.mxu0 0.0
        %3488 = vmatprep.subr.mxu0 0.0
        %3489 = vmatpush2.msra.mxu0 0.0
        %3490 = vmatprep.subr.mxu0 0.0
        %3491 = vmatpush2.msra.mxu0 0.0
        %3492 = vmatprep.subr.mxu0 0.0
        %3493 = vmatpush2.msra.mxu0 0.0
        %3494 = vmatprep.subr.mxu0 0.0
        %3495 = vmatpush2.msra.mxu0 0.0
        %3496 = vmatprep.subr.mxu0 0.0
        %3497 = vmatpush2.msra.mxu0 0.0
        %3498 = vmatprep.subr.mxu0 0.0
        %3499 = vmatpush2.msra.mxu0 0.0
        %3500 = vmatprep.subr.mxu0 0.0
        %3501 = vmatpush2.msra.mxu0 0.0
        %3502 = vmatprep.subr.mxu0 0.0
        %3503 = vmatpush2.msra.mxu0 0.0
        %3504 = vmatprep.subr.mxu0 0.0
        %3505 = vmatpush2.msra.mxu0 0.0
        %3506 = vmatprep.subr.mxu0 0.0
        %3507 = vmatpush2.msra.mxu0 0.0
        %3508 = vmatprep.subr.mxu0 0.0
        %3509 = vmatpush2.msra.mxu0 0.0
        %3510 = vmatprep.subr.mxu0 0.0
        %3511 = vmatpush2.msra.mxu0 0.0
        %3512 = vmatprep.subr.mxu0 0.0
        %3513 = vmatpush2.msra.mxu0 0.0
        %3514 = vmatprep.subr.mxu0 0.0
        %3515 = vmatpush2.msra.mxu0 0.0
        %3516 = vmatprep.mubr.f32.mxu0 0.0
        %3517 = vmatmul.mubr.f32.gmra.mxu0 %v2954
        %v3518 = vpop.f32.mrf.mxu0
        %v3519 = vadd.f32 %v3450, %v3518
        %v3520 = vpop.f32.mrf.mxu0
        %3521 = vdwg.mxu0
        %s3522 = scalar_lea.vmem %s9, 160
        %v3523 = vld [vmem:[%s3522] sm:$0xff]
        %v3524 = vld [vmem:[%s3522 + $0x8] sm:$0xff]
        %v3525 = vld [vmem:[%s3522 + $0x10] sm:$0xff]
        %v3526 = vld [vmem:[%s3522 + $0x18] sm:$0xff]
        %s3527 = scalar_lea.vmem %s10, 5
        %v3528 = vld [vmem:[%s3527] sm:$0x1]
        %v3530 = vlaneseq
        %v3531 = vshrl.u32 %v3530, 7
        %v3532 = vsub.s32 0, %v3531
        %v3533 = vrot.slane %v3528, %v3532
        %3535 = vmatprep.subr.mxu0 0.0
        %3536 = vmatpush1.msra.mxu0 0.0
        %3537 = vmatprep.subr.mxu0 0.0
        %3538 = vmatpush1.msra.mxu0 0.0
        %3539 = vmatprep.subr.mxu0 0.0
        %3540 = vmatpush1.msra.mxu0 0.0
        %3541 = vmatprep.subr.mxu0 0.0
        %3542 = vmatpush1.msra.mxu0 0.0
        %3543 = vmatprep.subr.mxu0 0.0
        %3544 = vmatpush1.msra.mxu0 0.0
        %3545 = vmatprep.subr.mxu0 0.0
        %3546 = vmatpush1.msra.mxu0 0.0
        %3547 = vmatprep.subr.mxu0 0.0
        %3548 = vmatpush1.msra.mxu0 0.0
        %3549 = vmatprep.subr.mxu0 0.0
        %3550 = vmatpush1.msra.mxu0 0.0
        %3551 = vmatprep.subr.mxu0 0.0
        %3552 = vmatpush1.msra.mxu0 0.0
        %3553 = vmatprep.subr.mxu0 0.0
        %3554 = vmatpush1.msra.mxu0 0.0
        %3555 = vmatprep.subr.mxu0 0.0
        %3556 = vmatpush1.msra.mxu0 0.0
        %3557 = vmatprep.subr.mxu0 0.0
        %3558 = vmatpush1.msra.mxu0 0.0
        %3559 = vmatprep.subr.mxu0 0.0
        %3560 = vmatpush1.msra.mxu0 %v3526
        %3561 = vmatprep.subr.mxu0 0.0
        %3562 = vmatpush1.msra.mxu0 %v3525
        %3563 = vmatprep.subr.mxu0 0.0
        %3564 = vmatpush1.msra.mxu0 %v3524
        %3565 = vmatprep.subr.mxu0 0.0
        %3566 = vmatpush1.msra.mxu0 %v3523
        %3567 = vmatprep.subr.mxu0 0.0
        %3568 = vmatpush2.msra.mxu0 0.0
        %3569 = vmatprep.subr.mxu0 0.0
        %3570 = vmatpush2.msra.mxu0 0.0
        %3571 = vmatprep.subr.mxu0 0.0
        %3572 = vmatpush2.msra.mxu0 0.0
        %3573 = vmatprep.subr.mxu0 0.0
        %3574 = vmatpush2.msra.mxu0 0.0
        %3575 = vmatprep.subr.mxu0 0.0
        %3576 = vmatpush2.msra.mxu0 0.0
        %3577 = vmatprep.subr.mxu0 0.0
        %3578 = vmatpush2.msra.mxu0 0.0
        %3579 = vmatprep.subr.mxu0 0.0
        %3580 = vmatpush2.msra.mxu0 0.0
        %3581 = vmatprep.subr.mxu0 0.0
        %3582 = vmatpush2.msra.mxu0 0.0
        %3583 = vmatprep.subr.mxu0 0.0
        %3584 = vmatpush2.msra.mxu0 0.0
        %3585 = vmatprep.subr.mxu0 0.0
        %3586 = vmatpush2.msra.mxu0 0.0
        %3587 = vmatprep.subr.mxu0 0.0
        %3588 = vmatpush2.msra.mxu0 0.0
        %3589 = vmatprep.subr.mxu0 0.0
        %3590 = vmatpush2.msra.mxu0 0.0
        %3591 = vmatprep.subr.mxu0 0.0
        %3592 = vmatpush2.msra.mxu0 0.0
        %3593 = vmatprep.subr.mxu0 0.0
        %3594 = vmatpush2.msra.mxu0 0.0
        %3595 = vmatprep.subr.mxu0 0.0
        %3596 = vmatpush2.msra.mxu0 0.0
        %3597 = vmatprep.subr.mxu0 0.0
        %3598 = vmatpush2.msra.mxu0 0.0
        %3599 = vmatprep.mubr.f32.mxu0 0.0
        %3600 = vmatmul.mubr.f32.gmra.mxu0 %v2954
        %v3601 = vpop.f32.mrf.mxu0
        %v3602 = vadd.f32 %v3533, %v3601
        %v3603 = vpop.f32.mrf.mxu0
        %3604 = vdwg.mxu0
        %v3606 = vsel %vm984, %v3436, 0
        %v3609 = vsel %vm984, %v3519, 0
        %3611 = vmatprep.subr.mxu0 0.0
        %3612 = vmatpush1.xpose.msra.mxu0 0.0
        %3613 = vmatprep.subr.mxu0 0.0
        %3614 = vmatpush1.xpose.msra.mxu0 0.0
        %3615 = vmatprep.subr.mxu0 0.0
        %3616 = vmatpush1.xpose.msra.mxu0 0.0
        %3617 = vmatprep.subr.mxu0 0.0
        %3618 = vmatpush1.xpose.msra.mxu0 0.0
        %3619 = vmatprep.subr.mxu0 0.0
        %3620 = vmatpush1.xpose.msra.mxu0 0.0
        %3621 = vmatprep.subr.mxu0 0.0
        %3622 = vmatpush1.xpose.msra.mxu0 0.0
        %3623 = vmatprep.subr.mxu0 0.0
        %3624 = vmatpush1.xpose.msra.mxu0 0.0
        %3625 = vmatprep.subr.mxu0 0.0
        %3626 = vmatpush1.xpose.msra.mxu0 0.0
        %3627 = vmatprep.subr.mxu0 0.0
        %3628 = vmatpush1.xpose.msra.mxu0 0.0
        %3629 = vmatprep.subr.mxu0 0.0
        %3630 = vmatpush1.xpose.msra.mxu0 0.0
        %3631 = vmatprep.subr.mxu0 0.0
        %3632 = vmatpush1.xpose.msra.mxu0 0.0
        %3633 = vmatprep.subr.mxu0 0.0
        %3634 = vmatpush1.xpose.msra.mxu0 0.0
        %3635 = vmatprep.subr.mxu0 0.0
        %3636 = vmatpush1.xpose.msra.mxu0 0.0
        %3637 = vmatprep.subr.mxu0 0.0
        %3638 = vmatpush1.xpose.msra.mxu0 0.0
        %3639 = vmatprep.subr.mxu0 0.0
        %3640 = vmatpush1.xpose.msra.mxu0 0.0
        %3641 = vmatprep.subr.mxu0 0.0
        %3642 = vmatpush1.xpose.msra.mxu0 %v3609
        %3643 = vmatprep.subr.mxu0 0.0
        %3644 = vmatpush2.xpose.msra.mxu0 0.0
        %3645 = vmatprep.subr.mxu0 0.0
        %3646 = vmatpush2.xpose.msra.mxu0 0.0
        %3647 = vmatprep.subr.mxu0 0.0
        %3648 = vmatpush2.xpose.msra.mxu0 0.0
        %3649 = vmatprep.subr.mxu0 0.0
        %3650 = vmatpush2.xpose.msra.mxu0 0.0
        %3651 = vmatprep.subr.mxu0 0.0
        %3652 = vmatpush2.xpose.msra.mxu0 0.0
        %3653 = vmatprep.subr.mxu0 0.0
        %3654 = vmatpush2.xpose.msra.mxu0 0.0
        %3655 = vmatprep.subr.mxu0 0.0
        %3656 = vmatpush2.xpose.msra.mxu0 0.0
        %3657 = vmatprep.subr.mxu0 0.0
        %3658 = vmatpush2.xpose.msra.mxu0 0.0
        %3659 = vmatprep.subr.mxu0 0.0
        %3660 = vmatpush2.xpose.msra.mxu0 0.0
        %3661 = vmatprep.subr.mxu0 0.0
        %3662 = vmatpush2.xpose.msra.mxu0 0.0
        %3663 = vmatprep.subr.mxu0 0.0
        %3664 = vmatpush2.xpose.msra.mxu0 0.0
        %3665 = vmatprep.subr.mxu0 0.0
        %3666 = vmatpush2.xpose.msra.mxu0 0.0
        %3667 = vmatprep.subr.mxu0 0.0
        %3668 = vmatpush2.xpose.msra.mxu0 0.0
        %3669 = vmatprep.subr.mxu0 0.0
        %3670 = vmatpush2.xpose.msra.mxu0 0.0
        %3671 = vmatprep.subr.mxu0 0.0
        %3672 = vmatpush2.xpose.msra.mxu0 0.0
        %3673 = vmatprep.subr.mxu0 0.0
        %3674 = vmatpush2.xpose.msra.mxu0 0.0
        %3675 = vmatprep.mubr.f32.mxu0 0.0
        %3676 = vmatmul.mubr.f32.gmra.mxu0 %v3606
        %v3677 = vpop.f32.mrf.mxu0
        %v3678 = vadd.f32 0.0, %v3677
        %v3679 = vpop.f32.mrf.mxu0
        %3680 = vdwg.mxu0
        %v3681 = vmul.f32 %v3678, 0.35355338
        %v3682 = vadd.f32 %v3681, %v1066
        %v3683 = vsel %vm984, %v3682, -inf
        %3684 = vmax.xlane.f32.xlu0 %v3683
        %v3685 = vpop.xlane.xlu0 %3684
        %v3686 = vsub.f32 %v3682, %v3685
        %v3687 = vmul.f32 %v3686, 1.442695
        %v3688 = vpow.pop %v3687
        %v3689 = vsel %vm984, %v3688, 0.0
        %3690 = vadd.xlane.f32.xlu0 %v3689
        %v3691 = vpop.xlane.xlu0 %3690
        %v3692 = vrcp.pop %v3691
        %v3693 = vmul.f32 %v3688, %v3692
        %v3695 = vsel %vm984, %v3693, 0
        %3697 = vmatprep.subr.mxu0 0.0
        %3698 = vmatpush1.msra.mxu0 0.0
        %3699 = vmatprep.subr.mxu0 0.0
        %3700 = vmatpush1.msra.mxu0 0.0
        %3701 = vmatprep.subr.mxu0 0.0
        %3702 = vmatpush1.msra.mxu0 0.0
        %3703 = vmatprep.subr.mxu0 0.0
        %3704 = vmatpush1.msra.mxu0 0.0
        %3705 = vmatprep.subr.mxu0 0.0
        %3706 = vmatpush1.msra.mxu0 0.0
        %3707 = vmatprep.subr.mxu0 0.0
        %3708 = vmatpush1.msra.mxu0 0.0
        %3709 = vmatprep.subr.mxu0 0.0
        %3710 = vmatpush1.msra.mxu0 0.0
        %3711 = vmatprep.subr.mxu0 0.0
        %3712 = vmatpush1.msra.mxu0 0.0
        %3713 = vmatprep.subr.mxu0 0.0
        %3714 = vmatpush1.msra.mxu0 0.0
        %3715 = vmatprep.subr.mxu0 0.0
        %3716 = vmatpush1.msra.mxu0 0.0
        %3717 = vmatprep.subr.mxu0 0.0
        %3718 = vmatpush1.msra.mxu0 0.0
        %3719 = vmatprep.subr.mxu0 0.0
        %3720 = vmatpush1.msra.mxu0 0.0
        %3721 = vmatprep.subr.mxu0 0.0
        %3722 = vmatpush1.msra.mxu0 0.0
        %3723 = vmatprep.subr.mxu0 0.0
        %3724 = vmatpush1.msra.mxu0 0.0
        %3725 = vmatprep.subr.mxu0 0.0
        %3726 = vmatpush1.msra.mxu0 0.0
        %3727 = vmatprep.subr.mxu0 0.0
        %3728 = vmatpush1.msra.mxu0 %v3602
        %3729 = vmatprep.subr.mxu0 0.0
        %3730 = vmatpush2.msra.mxu0 0.0
        %3731 = vmatprep.subr.mxu0 0.0
        %3732 = vmatpush2.msra.mxu0 0.0
        %3733 = vmatprep.subr.mxu0 0.0
        %3734 = vmatpush2.msra.mxu0 0.0
        %3735 = vmatprep.subr.mxu0 0.0
        %3736 = vmatpush2.msra.mxu0 0.0
        %3737 = vmatprep.subr.mxu0 0.0
        %3738 = vmatpush2.msra.mxu0 0.0
        %3739 = vmatprep.subr.mxu0 0.0
        %3740 = vmatpush2.msra.mxu0 0.0
        %3741 = vmatprep.subr.mxu0 0.0
        %3742 = vmatpush2.msra.mxu0 0.0
        %3743 = vmatprep.subr.mxu0 0.0
        %3744 = vmatpush2.msra.mxu0 0.0
        %3745 = vmatprep.subr.mxu0 0.0
        %3746 = vmatpush2.msra.mxu0 0.0
        %3747 = vmatprep.subr.mxu0 0.0
        %3748 = vmatpush2.msra.mxu0 0.0
        %3749 = vmatprep.subr.mxu0 0.0
        %3750 = vmatpush2.msra.mxu0 0.0
        %3751 = vmatprep.subr.mxu0 0.0
        %3752 = vmatpush2.msra.mxu0 0.0
        %3753 = vmatprep.subr.mxu0 0.0
        %3754 = vmatpush2.msra.mxu0 0.0
        %3755 = vmatprep.subr.mxu0 0.0
        %3756 = vmatpush2.msra.mxu0 0.0
        %3757 = vmatprep.subr.mxu0 0.0
        %3758 = vmatpush2.msra.mxu0 0.0
        %3759 = vmatprep.subr.mxu0 0.0
        %3760 = vmatpush2.msra.mxu0 0.0
        %3761 = vmatprep.mubr.f32.mxu0 0.0
        %3762 = vmatmul.mubr.f32.gmra.mxu0 %v3695
        %v3763 = vpop.f32.mrf.mxu0
        %v3764 = vadd.f32 0.0, %v3763
        %v3765 = vpop.f32.mrf.mxu0
        %3766 = vdwg.mxu0
        %s3767 = scalar_lea.vmem %s11, 40
        %v3768 = vld [vmem:[%s3767] sm:$0xff]
        %v3770 = vsel %vm984, %v3764, 0
        %3772 = vmatprep.subr.mxu0 0.0
        %3773 = vmatpush1.msra.mxu0 0.0
        %3774 = vmatprep.subr.mxu0 0.0
        %3775 = vmatpush1.msra.mxu0 0.0
        %3776 = vmatprep.subr.mxu0 0.0
        %3777 = vmatpush1.msra.mxu0 0.0
        %3778 = vmatprep.subr.mxu0 0.0
        %3779 = vmatpush1.msra.mxu0 0.0
        %3780 = vmatprep.subr.mxu0 0.0
        %3781 = vmatpush1.msra.mxu0 0.0
        %3782 = vmatprep.subr.mxu0 0.0
        %3783 = vmatpush1.msra.mxu0 0.0
        %3784 = vmatprep.subr.mxu0 0.0
        %3785 = vmatpush1.msra.mxu0 0.0
        %3786 = vmatprep.subr.mxu0 0.0
        %3787 = vmatpush1.msra.mxu0 0.0
        %3788 = vmatprep.subr.mxu0 0.0
        %3789 = vmatpush1.msra.mxu0 0.0
        %3790 = vmatprep.subr.mxu0 0.0
        %3791 = vmatpush1.msra.mxu0 0.0
        %3792 = vmatprep.subr.mxu0 0.0
        %3793 = vmatpush1.msra.mxu0 0.0
        %3794 = vmatprep.subr.mxu0 0.0
        %3795 = vmatpush1.msra.mxu0 0.0
        %3796 = vmatprep.subr.mxu0 0.0
        %3797 = vmatpush1.msra.mxu0 0.0
        %3798 = vmatprep.subr.mxu0 0.0
        %3799 = vmatpush1.msra.mxu0 0.0
        %3800 = vmatprep.subr.mxu0 0.0
        %3801 = vmatpush1.msra.mxu0 0.0
        %3802 = vmatprep.subr.mxu0 0.0
        %3803 = vmatpush1.msra.mxu0 %v3768
        %3804 = vmatprep.subr.mxu0 0.0
        %3805 = vmatpush2.msra.mxu0 0.0
        %3806 = vmatprep.subr.mxu0 0.0
        %3807 = vmatpush2.msra.mxu0 0.0
        %3808 = vmatprep.subr.mxu0 0.0
        %3809 = vmatpush2.msra.mxu0 0.0
        %3810 = vmatprep.subr.mxu0 0.0
        %3811 = vmatpush2.msra.mxu0 0.0
        %3812 = vmatprep.subr.mxu0 0.0
        %3813 = vmatpush2.msra.mxu0 0.0
        %3814 = vmatprep.subr.mxu0 0.0
        %3815 = vmatpush2.msra.mxu0 0.0
        %3816 = vmatprep.subr.mxu0 0.0
        %3817 = vmatpush2.msra.mxu0 0.0
        %3818 = vmatprep.subr.mxu0 0.0
        %3819 = vmatpush2.msra.mxu0 0.0
        %3820 = vmatprep.subr.mxu0 0.0
        %3821 = vmatpush2.msra.mxu0 0.0
        %3822 = vmatprep.subr.mxu0 0.0
        %3823 = vmatpush2.msra.mxu0 0.0
        %3824 = vmatprep.subr.mxu0 0.0
        %3825 = vmatpush2.msra.mxu0 0.0
        %3826 = vmatprep.subr.mxu0 0.0
        %3827 = vmatpush2.msra.mxu0 0.0
        %3828 = vmatprep.subr.mxu0 0.0
        %3829 = vmatpush2.msra.mxu0 0.0
        %3830 = vmatprep.subr.mxu0 0.0
        %3831 = vmatpush2.msra.mxu0 0.0
        %3832 = vmatprep.subr.mxu0 0.0
        %3833 = vmatpush2.msra.mxu0 0.0
        %3834 = vmatprep.subr.mxu0 0.0
        %3835 = vmatpush2.msra.mxu0 0.0
        %3836 = vmatprep.mubr.f32.mxu0 0.0
        %3837 = vmatmul.mubr.f32.gmra.mxu0 %v3770
        %v3838 = vpop.f32.mrf.mxu0
        %v3839 = vadd.f32 0.0, %v3838
        %v3840 = vpop.f32.mrf.mxu0
        %3841 = vdwg.mxu0
        %v3843 = vsel %vm984, %v3351, 0
        %3845 = vmatprep.subr.mxu0 0.0
        %3846 = vmatpush1.msra.mxu0 0.0
        %3847 = vmatprep.subr.mxu0 0.0
        %3848 = vmatpush1.msra.mxu0 0.0
        %3849 = vmatprep.subr.mxu0 0.0
        %3850 = vmatpush1.msra.mxu0 0.0
        %3851 = vmatprep.subr.mxu0 0.0
        %3852 = vmatpush1.msra.mxu0 0.0
        %3853 = vmatprep.subr.mxu0 0.0
        %3854 = vmatpush1.msra.mxu0 0.0
        %3855 = vmatprep.subr.mxu0 0.0
        %3856 = vmatpush1.msra.mxu0 0.0
        %3857 = vmatprep.subr.mxu0 0.0
        %3858 = vmatpush1.msra.mxu0 0.0
        %3859 = vmatprep.subr.mxu0 0.0
        %3860 = vmatpush1.msra.mxu0 0.0
        %3861 = vmatprep.subr.mxu0 0.0
        %3862 = vmatpush1.msra.mxu0 0.0
        %3863 = vmatprep.subr.mxu0 0.0
        %3864 = vmatpush1.msra.mxu0 0.0
        %3865 = vmatprep.subr.mxu0 0.0
        %3866 = vmatpush1.msra.mxu0 0.0
        %3867 = vmatprep.subr.mxu0 0.0
        %3868 = vmatpush1.msra.mxu0 0.0
        %3869 = vmatprep.subr.mxu0 0.0
        %3870 = vmatpush1.msra.mxu0 0.0
        %3871 = vmatprep.subr.mxu0 0.0
        %3872 = vmatpush1.msra.mxu0 0.0
        %3873 = vmatprep.subr.mxu0 0.0
        %3874 = vmatpush1.msra.mxu0 0.0
        %3875 = vmatprep.subr.mxu0 0.0
        %3876 = vmatpush1.msra.mxu0 %v3355
        %3877 = vmatprep.subr.mxu0 0.0
        %3878 = vmatpush2.msra.mxu0 0.0
        %3879 = vmatprep.subr.mxu0 0.0
        %3880 = vmatpush2.msra.mxu0 0.0
        %3881 = vmatprep.subr.mxu0 0.0
        %3882 = vmatpush2.msra.mxu0 0.0
        %3883 = vmatprep.subr.mxu0 0.0
        %3884 = vmatpush2.msra.mxu0 0.0
        %3885 = vmatprep.subr.mxu0 0.0
        %3886 = vmatpush2.msra.mxu0 0.0
        %3887 = vmatprep.subr.mxu0 0.0
        %3888 = vmatpush2.msra.mxu0 0.0
        %3889 = vmatprep.subr.mxu0 0.0
        %3890 = vmatpush2.msra.mxu0 0.0
        %3891 = vmatprep.subr.mxu0 0.0
        %3892 = vmatpush2.msra.mxu0 0.0
        %3893 = vmatprep.subr.mxu0 0.0
        %3894 = vmatpush2.msra.mxu0 0.0
        %3895 = vmatprep.subr.mxu0 0.0
        %3896 = vmatpush2.msra.mxu0 0.0
        %3897 = vmatprep.subr.mxu0 0.0
        %3898 = vmatpush2.msra.mxu0 0.0
        %3899 = vmatprep.subr.mxu0 0.0
        %3900 = vmatpush2.msra.mxu0 0.0
        %3901 = vmatprep.subr.mxu0 0.0
        %3902 = vmatpush2.msra.mxu0 0.0
        %3903 = vmatprep.subr.mxu0 0.0
        %3904 = vmatpush2.msra.mxu0 0.0
        %3905 = vmatprep.subr.mxu0 0.0
        %3906 = vmatpush2.msra.mxu0 0.0
        %3907 = vmatprep.subr.mxu0 0.0
        %3908 = vmatpush2.msra.mxu0 0.0
        %3909 = vmatprep.mubr.f32.mxu0 0.0
        %3910 = vmatmul.mubr.f32.gmra.mxu0 %v3843
        %v3911 = vpop.f32.mrf.mxu0
        %v3912 = vadd.f32 %v3839, %v3911
        %v3913 = vpop.f32.mrf.mxu0
        %3914 = vdwg.mxu0
        %s3915 = scalar_lea.vmem %s5, 192
        %v3916 = vld [vmem:[%s3915] sm:$0xff]
        %v3917 = vld [vmem:[%s3915 + $0x8] sm:$0xff]
        %v3918 = vld [vmem:[%s3915 + $0x10] sm:$0xff]
        %v3919 = vld [vmem:[%s3915 + $0x18] sm:$0xff]
        %s3920 = scalar_lea.vmem %s6, 6
        %v3921 = vld [vmem:[%s3920] sm:$0x1]
        %v3923 = vlaneseq
        %v3924 = vshrl.u32 %v3923, 7
        %v3925 = vsub.s32 0, %v3924
        %v3926 = vrot.slane %v3921, %v3925
        %3928 = vmatprep.subr.mxu0 0.0
        %3929 = vmatpush1.msra.mxu0 0.0
        %3930 = vmatprep.subr.mxu0 0.0
        %3931 = vmatpush1.msra.mxu0 0.0
        %3932 = vmatprep.subr.mxu0 0.0
        %3933 = vmatpush1.msra.mxu0 0.0
        %3934 = vmatprep.subr.mxu0 0.0
        %3935 = vmatpush1.msra.mxu0 0.0
        %3936 = vmatprep.subr.mxu0 0.0
        %3937 = vmatpush1.msra.mxu0 0.0
        %3938 = vmatprep.subr.mxu0 0.0
        %3939 = vmatpush1.msra.mxu0 0.0
        %3940 = vmatprep.subr.mxu0 0.0
        %3941 = vmatpush1.msra.mxu0 0.0
        %3942 = vmatprep.subr.mxu0 0.0
        %3943 = vmatpush1.msra.mxu0 0.0
        %3944 = vmatprep.subr.mxu0 0.0
        %3945 = vmatpush1.msra.mxu0 0.0
        %3946 = vmatprep.subr.mxu0 0.0
        %3947 = vmatpush1.msra.mxu0 0.0
        %3948 = vmatprep.subr.mxu0 0.0
        %3949 = vmatpush1.msra.mxu0 0.0
        %3950 = vmatprep.subr.mxu0 0.0
        %3951 = vmatpush1.msra.mxu0 0.0
        %3952 = vmatprep.subr.mxu0 0.0
        %3953 = vmatpush1.msra.mxu0 %v3919
        %3954 = vmatprep.subr.mxu0 0.0
        %3955 = vmatpush1.msra.mxu0 %v3918
        %3956 = vmatprep.subr.mxu0 0.0
        %3957 = vmatpush1.msra.mxu0 %v3917
        %3958 = vmatprep.subr.mxu0 0.0
        %3959 = vmatpush1.msra.mxu0 %v3916
        %3960 = vmatprep.subr.mxu0 0.0
        %3961 = vmatpush2.msra.mxu0 0.0
        %3962 = vmatprep.subr.mxu0 0.0
        %3963 = vmatpush2.msra.mxu0 0.0
        %3964 = vmatprep.subr.mxu0 0.0
        %3965 = vmatpush2.msra.mxu0 0.0
        %3966 = vmatprep.subr.mxu0 0.0
        %3967 = vmatpush2.msra.mxu0 0.0
        %3968 = vmatprep.subr.mxu0 0.0
        %3969 = vmatpush2.msra.mxu0 0.0
        %3970 = vmatprep.subr.mxu0 0.0
        %3971 = vmatpush2.msra.mxu0 0.0
        %3972 = vmatprep.subr.mxu0 0.0
        %3973 = vmatpush2.msra.mxu0 0.0
        %3974 = vmatprep.subr.mxu0 0.0
        %3975 = vmatpush2.msra.mxu0 0.0
        %3976 = vmatprep.subr.mxu0 0.0
        %3977 = vmatpush2.msra.mxu0 0.0
        %3978 = vmatprep.subr.mxu0 0.0
        %3979 = vmatpush2.msra.mxu0 0.0
        %3980 = vmatprep.subr.mxu0 0.0
        %3981 = vmatpush2.msra.mxu0 0.0
        %3982 = vmatprep.subr.mxu0 0.0
        %3983 = vmatpush2.msra.mxu0 0.0
        %3984 = vmatprep.subr.mxu0 0.0
        %3985 = vmatpush2.msra.mxu0 0.0
        %3986 = vmatprep.subr.mxu0 0.0
        %3987 = vmatpush2.msra.mxu0 0.0
        %3988 = vmatprep.subr.mxu0 0.0
        %3989 = vmatpush2.msra.mxu0 0.0
        %3990 = vmatprep.subr.mxu0 0.0
        %3991 = vmatpush2.msra.mxu0 0.0
        %3992 = vmatprep.mubr.f32.mxu0 0.0
        %3993 = vmatmul.mubr.f32.gmra.mxu0 %v2954
        %v3994 = vpop.f32.mrf.mxu0
        %v3995 = vadd.f32 %v3926, %v3994
        %v3996 = vpop.f32.mrf.mxu0
        %3997 = vdwg.mxu0
        %s3998 = scalar_lea.vmem %s7, 192
        %v3999 = vld [vmem:[%s3998] sm:$0xff]
        %v4000 = vld [vmem:[%s3998 + $0x8] sm:$0xff]
        %v4001 = vld [vmem:[%s3998 + $0x10] sm:$0xff]
        %v4002 = vld [vmem:[%s3998 + $0x18] sm:$0xff]
        %s4003 = scalar_lea.vmem %s8, 6
        %v4004 = vld [vmem:[%s4003] sm:$0x1]
        %v4006 = vlaneseq
        %v4007 = vshrl.u32 %v4006, 7
        %v4008 = vsub.s32 0, %v4007
        %v4009 = vrot.slane %v4004, %v4008
        %4011 = vmatprep.subr.mxu0 0.0
        %4012 = vmatpush1.msra.mxu0 0.0
        %4013 = vmatprep.subr.mxu0 0.0
        %4014 = vmatpush1.msra.mxu0 0.0
        %4015 = vmatprep.subr.mxu0 0.0
        %4016 = vmatpush1.msra.mxu0 0.0
        %4017 = vmatprep.subr.mxu0 0.0
        %4018 = vmatpush1.msra.mxu0 0.0
        %4019 = vmatprep.subr.mxu0 0.0
        %4020 = vmatpush1.msra.mxu0 0.0
        %4021 = vmatprep.subr.mxu0 0.0
        %4022 = vmatpush1.msra.mxu0 0.0
        %4023 = vmatprep.subr.mxu0 0.0
        %4024 = vmatpush1.msra.mxu0 0.0
        %4025 = vmatprep.subr.mxu0 0.0
        %4026 = vmatpush1.msra.mxu0 0.0
        %4027 = vmatprep.subr.mxu0 0.0
        %4028 = vmatpush1.msra.mxu0 0.0
        %4029 = vmatprep.subr.mxu0 0.0
        %4030 = vmatpush1.msra.mxu0 0.0
        %4031 = vmatprep.subr.mxu0 0.0
        %4032 = vmatpush1.msra.mxu0 0.0
        %4033 = vmatprep.subr.mxu0 0.0
        %4034 = vmatpush1.msra.mxu0 0.0
        %4035 = vmatprep.subr.mxu0 0.0
        %4036 = vmatpush1.msra.mxu0 %v4002
        %4037 = vmatprep.subr.mxu0 0.0
        %4038 = vmatpush1.msra.mxu0 %v4001
        %4039 = vmatprep.subr.mxu0 0.0
        %4040 = vmatpush1.msra.mxu0 %v4000
        %4041 = vmatprep.subr.mxu0 0.0
        %4042 = vmatpush1.msra.mxu0 %v3999
        %4043 = vmatprep.subr.mxu0 0.0
        %4044 = vmatpush2.msra.mxu0 0.0
        %4045 = vmatprep.subr.mxu0 0.0
        %4046 = vmatpush2.msra.mxu0 0.0
        %4047 = vmatprep.subr.mxu0 0.0
        %4048 = vmatpush2.msra.mxu0 0.0
        %4049 = vmatprep.subr.mxu0 0.0
        %4050 = vmatpush2.msra.mxu0 0.0
        %4051 = vmatprep.subr.mxu0 0.0
        %4052 = vmatpush2.msra.mxu0 0.0
        %4053 = vmatprep.subr.mxu0 0.0
        %4054 = vmatpush2.msra.mxu0 0.0
        %4055 = vmatprep.subr.mxu0 0.0
        %4056 = vmatpush2.msra.mxu0 0.0
        %4057 = vmatprep.subr.mxu0 0.0
        %4058 = vmatpush2.msra.mxu0 0.0
        %4059 = vmatprep.subr.mxu0 0.0
        %4060 = vmatpush2.msra.mxu0 0.0
        %4061 = vmatprep.subr.mxu0 0.0
        %4062 = vmatpush2.msra.mxu0 0.0
        %4063 = vmatprep.subr.mxu0 0.0
        %4064 = vmatpush2.msra.mxu0 0.0
        %4065 = vmatprep.subr.mxu0 0.0
        %4066 = vmatpush2.msra.mxu0 0.0
        %4067 = vmatprep.subr.mxu0 0.0
        %4068 = vmatpush2.msra.mxu0 0.0
        %4069 = vmatprep.subr.mxu0 0.0
        %4070 = vmatpush2.msra.mxu0 0.0
        %4071 = vmatprep.subr.mxu0 0.0
        %4072 = vmatpush2.msra.mxu0 0.0
        %4073 = vmatprep.subr.mxu0 0.0
        %4074 = vmatpush2.msra.mxu0 0.0
        %4075 = vmatprep.mubr.f32.mxu0 0.0
        %4076 = vmatmul.mubr.f32.gmra.mxu0 %v2954
        %v4077 = vpop.f32.mrf.mxu0
        %v4078 = vadd.f32 %v4009, %v4077
        %v4079 = vpop.f32.mrf.mxu0
        %4080 = vdwg.mxu0
        %s4081 = scalar_lea.vmem %s9, 192
        %v4082 = vld [vmem:[%s4081] sm:$0xff]
        %v4083 = vld [vmem:[%s4081 + $0x8] sm:$0xff]
        %v4084 = vld [vmem:[%s4081 + $0x10] sm:$0xff]
        %v4085 = vld [vmem:[%s4081 + $0x18] sm:$0xff]
        %s4086 = scalar_lea.vmem %s10, 6
        %v4087 = vld [vmem:[%s4086] sm:$0x1]
        %v4089 = vlaneseq
        %v4090 = vshrl.u32 %v4089, 7
        %v4091 = vsub.s32 0, %v4090
        %v4092 = vrot.slane %v4087, %v4091
        %4094 = vmatprep.subr.mxu0 0.0
        %4095 = vmatpush1.msra.mxu0 0.0
        %4096 = vmatprep.subr.mxu0 0.0
        %4097 = vmatpush1.msra.mxu0 0.0
        %4098 = vmatprep.subr.mxu0 0.0
        %4099 = vmatpush1.msra.mxu0 0.0
        %4100 = vmatprep.subr.mxu0 0.0
        %4101 = vmatpush1.msra.mxu0 0.0
        %4102 = vmatprep.subr.mxu0 0.0
        %4103 = vmatpush1.msra.mxu0 0.0
        %4104 = vmatprep.subr.mxu0 0.0
        %4105 = vmatpush1.msra.mxu0 0.0
        %4106 = vmatprep.subr.mxu0 0.0
        %4107 = vmatpush1.msra.mxu0 0.0
        %4108 = vmatprep.subr.mxu0 0.0
        %4109 = vmatpush1.msra.mxu0 0.0
        %4110 = vmatprep.subr.mxu0 0.0
        %4111 = vmatpush1.msra.mxu0 0.0
        %4112 = vmatprep.subr.mxu0 0.0
        %4113 = vmatpush1.msra.mxu0 0.0
        %4114 = vmatprep.subr.mxu0 0.0
        %4115 = vmatpush1.msra.mxu0 0.0
        %4116 = vmatprep.subr.mxu0 0.0
        %4117 = vmatpush1.msra.mxu0 0.0
        %4118 = vmatprep.subr.mxu0 0.0
        %4119 = vmatpush1.msra.mxu0 %v4085
        %4120 = vmatprep.subr.mxu0 0.0
        %4121 = vmatpush1.msra.mxu0 %v4084
        %4122 = vmatprep.subr.mxu0 0.0
        %4123 = vmatpush1.msra.mxu0 %v4083
        %4124 = vmatprep.subr.mxu0 0.0
        %4125 = vmatpush1.msra.mxu0 %v4082
        %4126 = vmatprep.subr.mxu0 0.0
        %4127 = vmatpush2.msra.mxu0 0.0
        %4128 = vmatprep.subr.mxu0 0.0
        %4129 = vmatpush2.msra.mxu0 0.0
        %4130 = vmatprep.subr.mxu0 0.0
        %4131 = vmatpush2.msra.mxu0 0.0
        %4132 = vmatprep.subr.mxu0 0.0
        %4133 = vmatpush2.msra.mxu0 0.0
        %4134 = vmatprep.subr.mxu0 0.0
        %4135 = vmatpush2.msra.mxu0 0.0
        %4136 = vmatprep.subr.mxu0 0.0
        %4137 = vmatpush2.msra.mxu0 0.0
        %4138 = vmatprep.subr.mxu0 0.0
        %4139 = vmatpush2.msra.mxu0 0.0
        %4140 = vmatprep.subr.mxu0 0.0
        %4141 = vmatpush2.msra.mxu0 0.0
        %4142 = vmatprep.subr.mxu0 0.0
        %4143 = vmatpush2.msra.mxu0 0.0
        %4144 = vmatprep.subr.mxu0 0.0
        %4145 = vmatpush2.msra.mxu0 0.0
        %4146 = vmatprep.subr.mxu0 0.0
        %4147 = vmatpush2.msra.mxu0 0.0
        %4148 = vmatprep.subr.mxu0 0.0
        %4149 = vmatpush2.msra.mxu0 0.0
        %4150 = vmatprep.subr.mxu0 0.0
        %4151 = vmatpush2.msra.mxu0 0.0
        %4152 = vmatprep.subr.mxu0 0.0
        %4153 = vmatpush2.msra.mxu0 0.0
        %4154 = vmatprep.subr.mxu0 0.0
        %4155 = vmatpush2.msra.mxu0 0.0
        %4156 = vmatprep.subr.mxu0 0.0
        %4157 = vmatpush2.msra.mxu0 0.0
        %4158 = vmatprep.mubr.f32.mxu0 0.0
        %4159 = vmatmul.mubr.f32.gmra.mxu0 %v2954
        %v4160 = vpop.f32.mrf.mxu0
        %v4161 = vadd.f32 %v4092, %v4160
        %v4162 = vpop.f32.mrf.mxu0
        %4163 = vdwg.mxu0
        %v4165 = vsel %vm984, %v3995, 0
        %v4168 = vsel %vm984, %v4078, 0
        %4170 = vmatprep.subr.mxu0 0.0
        %4171 = vmatpush1.xpose.msra.mxu0 0.0
        %4172 = vmatprep.subr.mxu0 0.0
        %4173 = vmatpush1.xpose.msra.mxu0 0.0
        %4174 = vmatprep.subr.mxu0 0.0
        %4175 = vmatpush1.xpose.msra.mxu0 0.0
        %4176 = vmatprep.subr.mxu0 0.0
        %4177 = vmatpush1.xpose.msra.mxu0 0.0
        %4178 = vmatprep.subr.mxu0 0.0
        %4179 = vmatpush1.xpose.msra.mxu0 0.0
        %4180 = vmatprep.subr.mxu0 0.0
        %4181 = vmatpush1.xpose.msra.mxu0 0.0
        %4182 = vmatprep.subr.mxu0 0.0
        %4183 = vmatpush1.xpose.msra.mxu0 0.0
        %4184 = vmatprep.subr.mxu0 0.0
        %4185 = vmatpush1.xpose.msra.mxu0 0.0
        %4186 = vmatprep.subr.mxu0 0.0
        %4187 = vmatpush1.xpose.msra.mxu0 0.0
        %4188 = vmatprep.subr.mxu0 0.0
        %4189 = vmatpush1.xpose.msra.mxu0 0.0
        %4190 = vmatprep.subr.mxu0 0.0
        %4191 = vmatpush1.xpose.msra.mxu0 0.0
        %4192 = vmatprep.subr.mxu0 0.0
        %4193 = vmatpush1.xpose.msra.mxu0 0.0
        %4194 = vmatprep.subr.mxu0 0.0
        %4195 = vmatpush1.xpose.msra.mxu0 0.0
        %4196 = vmatprep.subr.mxu0 0.0
        %4197 = vmatpush1.xpose.msra.mxu0 0.0
        %4198 = vmatprep.subr.mxu0 0.0
        %4199 = vmatpush1.xpose.msra.mxu0 0.0
        %4200 = vmatprep.subr.mxu0 0.0
        %4201 = vmatpush1.xpose.msra.mxu0 %v4168
        %4202 = vmatprep.subr.mxu0 0.0
        %4203 = vmatpush2.xpose.msra.mxu0 0.0
        %4204 = vmatprep.subr.mxu0 0.0
        %4205 = vmatpush2.xpose.msra.mxu0 0.0
        %4206 = vmatprep.subr.mxu0 0.0
        %4207 = vmatpush2.xpose.msra.mxu0 0.0
        %4208 = vmatprep.subr.mxu0 0.0
        %4209 = vmatpush2.xpose.msra.mxu0 0.0
        %4210 = vmatprep.subr.mxu0 0.0
        %4211 = vmatpush2.xpose.msra.mxu0 0.0
        %4212 = vmatprep.subr.mxu0 0.0
        %4213 = vmatpush2.xpose.msra.mxu0 0.0
        %4214 = vmatprep.subr.mxu0 0.0
        %4215 = vmatpush2.xpose.msra.mxu0 0.0
        %4216 = vmatprep.subr.mxu0 0.0
        %4217 = vmatpush2.xpose.msra.mxu0 0.0
        %4218 = vmatprep.subr.mxu0 0.0
        %4219 = vmatpush2.xpose.msra.mxu0 0.0
        %4220 = vmatprep.subr.mxu0 0.0
        %4221 = vmatpush2.xpose.msra.mxu0 0.0
        %4222 = vmatprep.subr.mxu0 0.0
        %4223 = vmatpush2.xpose.msra.mxu0 0.0
        %4224 = vmatprep.subr.mxu0 0.0
        %4225 = vmatpush2.xpose.msra.mxu0 0.0
        %4226 = vmatprep.subr.mxu0 0.0
        %4227 = vmatpush2.xpose.msra.mxu0 0.0
        %4228 = vmatprep.subr.mxu0 0.0
        %4229 = vmatpush2.xpose.msra.mxu0 0.0
        %4230 = vmatprep.subr.mxu0 0.0
        %4231 = vmatpush2.xpose.msra.mxu0 0.0
        %4232 = vmatprep.subr.mxu0 0.0
        %4233 = vmatpush2.xpose.msra.mxu0 0.0
        %4234 = vmatprep.mubr.f32.mxu0 0.0
        %4235 = vmatmul.mubr.f32.gmra.mxu0 %v4165
        %v4236 = vpop.f32.mrf.mxu0
        %v4237 = vadd.f32 0.0, %v4236
        %v4238 = vpop.f32.mrf.mxu0
        %4239 = vdwg.mxu0
        %v4240 = vmul.f32 %v4237, 0.35355338
        %v4241 = vadd.f32 %v4240, %v1066
        %v4242 = vsel %vm984, %v4241, -inf
        %4243 = vmax.xlane.f32.xlu0 %v4242
        %v4244 = vpop.xlane.xlu0 %4243
        %v4245 = vsub.f32 %v4241, %v4244
        %v4246 = vmul.f32 %v4245, 1.442695
        %v4247 = vpow.pop %v4246
        %v4248 = vsel %vm984, %v4247, 0.0
        %4249 = vadd.xlane.f32.xlu0 %v4248
        %v4250 = vpop.xlane.xlu0 %4249
        %v4251 = vrcp.pop %v4250
        %v4252 = vmul.f32 %v4247, %v4251
        %v4254 = vsel %vm984, %v4252, 0
        %4256 = vmatprep.subr.mxu0 0.0
        %4257 = vmatpush1.msra.mxu0 0.0
        %4258 = vmatprep.subr.mxu0 0.0
        %4259 = vmatpush1.msra.mxu0 0.0
        %4260 = vmatprep.subr.mxu0 0.0
        %4261 = vmatpush1.msra.mxu0 0.0
        %4262 = vmatprep.subr.mxu0 0.0
        %4263 = vmatpush1.msra.mxu0 0.0
        %4264 = vmatprep.subr.mxu0 0.0
        %4265 = vmatpush1.msra.mxu0 0.0
        %4266 = vmatprep.subr.mxu0 0.0
        %4267 = vmatpush1.msra.mxu0 0.0
        %4268 = vmatprep.subr.mxu0 0.0
        %4269 = vmatpush1.msra.mxu0 0.0
        %4270 = vmatprep.subr.mxu0 0.0
        %4271 = vmatpush1.msra.mxu0 0.0
        %4272 = vmatprep.subr.mxu0 0.0
        %4273 = vmatpush1.msra.mxu0 0.0
        %4274 = vmatprep.subr.mxu0 0.0
        %4275 = vmatpush1.msra.mxu0 0.0
        %4276 = vmatprep.subr.mxu0 0.0
        %4277 = vmatpush1.msra.mxu0 0.0
        %4278 = vmatprep.subr.mxu0 0.0
        %4279 = vmatpush1.msra.mxu0 0.0
        %4280 = vmatprep.subr.mxu0 0.0
        %4281 = vmatpush1.msra.mxu0 0.0
        %4282 = vmatprep.subr.mxu0 0.0
        %4283 = vmatpush1.msra.mxu0 0.0
        %4284 = vmatprep.subr.mxu0 0.0
        %4285 = vmatpush1.msra.mxu0 0.0
        %4286 = vmatprep.subr.mxu0 0.0
        %4287 = vmatpush1.msra.mxu0 %v4161
        %4288 = vmatprep.subr.mxu0 0.0
        %4289 = vmatpush2.msra.mxu0 0.0
        %4290 = vmatprep.subr.mxu0 0.0
        %4291 = vmatpush2.msra.mxu0 0.0
        %4292 = vmatprep.subr.mxu0 0.0
        %4293 = vmatpush2.msra.mxu0 0.0
        %4294 = vmatprep.subr.mxu0 0.0
        %4295 = vmatpush2.msra.mxu0 0.0
        %4296 = vmatprep.subr.mxu0 0.0
        %4297 = vmatpush2.msra.mxu0 0.0
        %4298 = vmatprep.subr.mxu0 0.0
        %4299 = vmatpush2.msra.mxu0 0.0
        %4300 = vmatprep.subr.mxu0 0.0
        %4301 = vmatpush2.msra.mxu0 0.0
        %4302 = vmatprep.subr.mxu0 0.0
        %4303 = vmatpush2.msra.mxu0 0.0
        %4304 = vmatprep.subr.mxu0 0.0
        %4305 = vmatpush2.msra.mxu0 0.0
        %4306 = vmatprep.subr.mxu0 0.0
        %4307 = vmatpush2.msra.mxu0 0.0
        %4308 = vmatprep.subr.mxu0 0.0
        %4309 = vmatpush2.msra.mxu0 0.0
        %4310 = vmatprep.subr.mxu0 0.0
        %4311 = vmatpush2.msra.mxu0 0.0
        %4312 = vmatprep.subr.mxu0 0.0
        %4313 = vmatpush2.msra.mxu0 0.0
        %4314 = vmatprep.subr.mxu0 0.0
        %4315 = vmatpush2.msra.mxu0 0.0
        %4316 = vmatprep.subr.mxu0 0.0
        %4317 = vmatpush2.msra.mxu0 0.0
        %4318 = vmatprep.subr.mxu0 0.0
        %4319 = vmatpush2.msra.mxu0 0.0
        %4320 = vmatprep.mubr.f32.mxu0 0.0
        %4321 = vmatmul.mubr.f32.gmra.mxu0 %v4254
        %v4322 = vpop.f32.mrf.mxu0
        %v4323 = vadd.f32 0.0, %v4322
        %v4324 = vpop.f32.mrf.mxu0
        %4325 = vdwg.mxu0
        %s4326 = scalar_lea.vmem %s11, 48
        %v4327 = vld [vmem:[%s4326] sm:$0xff]
        %v4329 = vsel %vm984, %v4323, 0
        %4331 = vmatprep.subr.mxu0 0.0
        %4332 = vmatpush1.msra.mxu0 0.0
        %4333 = vmatprep.subr.mxu0 0.0
        %4334 = vmatpush1.msra.mxu0 0.0
        %4335 = vmatprep.subr.mxu0 0.0
        %4336 = vmatpush1.msra.mxu0 0.0
        %4337 = vmatprep.subr.mxu0 0.0
        %4338 = vmatpush1.msra.mxu0 0.0
        %4339 = vmatprep.subr.mxu0 0.0
        %4340 = vmatpush1.msra.mxu0 0.0
        %4341 = vmatprep.subr.mxu0 0.0
        %4342 = vmatpush1.msra.mxu0 0.0
        %4343 = vmatprep.subr.mxu0 0.0
        %4344 = vmatpush1.msra.mxu0 0.0
        %4345 = vmatprep.subr.mxu0 0.0
        %4346 = vmatpush1.msra.mxu0 0.0
        %4347 = vmatprep.subr.mxu0 0.0
        %4348 = vmatpush1.msra.mxu0 0.0
        %4349 = vmatprep.subr.mxu0 0.0
        %4350 = vmatpush1.msra.mxu0 0.0
        %4351 = vmatprep.subr.mxu0 0.0
        %4352 = vmatpush1.msra.mxu0 0.0
        %4353 = vmatprep.subr.mxu0 0.0
        %4354 = vmatpush1.msra.mxu0 0.0
        %4355 = vmatprep.subr.mxu0 0.0
        %4356 = vmatpush1.msra.mxu0 0.0
        %4357 = vmatprep.subr.mxu0 0.0
        %4358 = vmatpush1.msra.mxu0 0.0
        %4359 = vmatprep.subr.mxu0 0.0
        %4360 = vmatpush1.msra.mxu0 0.0
        %4361 = vmatprep.subr.mxu0 0.0
        %4362 = vmatpush1.msra.mxu0 %v4327
        %4363 = vmatprep.subr.mxu0 0.0
        %4364 = vmatpush2.msra.mxu0 0.0
        %4365 = vmatprep.subr.mxu0 0.0
        %4366 = vmatpush2.msra.mxu0 0.0
        %4367 = vmatprep.subr.mxu0 0.0
        %4368 = vmatpush2.msra.mxu0 0.0
        %4369 = vmatprep.subr.mxu0 0.0
        %4370 = vmatpush2.msra.mxu0 0.0
        %4371 = vmatprep.subr.mxu0 0.0
        %4372 = vmatpush2.msra.mxu0 0.0
        %4373 = vmatprep.subr.mxu0 0.0
        %4374 = vmatpush2.msra.mxu0 0.0
        %4375 = vmatprep.subr.mxu0 0.0
        %4376 = vmatpush2.msra.mxu0 0.0
        %4377 = vmatprep.subr.mxu0 0.0
        %4378 = vmatpush2.msra.mxu0 0.0
        %4379 = vmatprep.subr.mxu0 0.0
        %4380 = vmatpush2.msra.mxu0 0.0
        %4381 = vmatprep.subr.mxu0 0.0
        %4382 = vmatpush2.msra.mxu0 0.0
        %4383 = vmatprep.subr.mxu0 0.0
        %4384 = vmatpush2.msra.mxu0 0.0
        %4385 = vmatprep.subr.mxu0 0.0
        %4386 = vmatpush2.msra.mxu0 0.0
        %4387 = vmatprep.subr.mxu0 0.0
        %4388 = vmatpush2.msra.mxu0 0.0
        %4389 = vmatprep.subr.mxu0 0.0
        %4390 = vmatpush2.msra.mxu0 0.0
        %4391 = vmatprep.subr.mxu0 0.0
        %4392 = vmatpush2.msra.mxu0 0.0
        %4393 = vmatprep.subr.mxu0 0.0
        %4394 = vmatpush2.msra.mxu0 0.0
        %4395 = vmatprep.mubr.f32.mxu0 0.0
        %4396 = vmatmul.mubr.f32.gmra.mxu0 %v4329
        %v4397 = vpop.f32.mrf.mxu0
        %v4398 = vadd.f32 0.0, %v4397
        %v4399 = vpop.f32.mrf.mxu0
        %4400 = vdwg.mxu0
        %v4401 = vadd.f32 %v3912, %v4398
        %s4402 = scalar_lea.vmem %s5, 224
        %v4403 = vld [vmem:[%s4402] sm:$0xff]
        %v4404 = vld [vmem:[%s4402 + $0x8] sm:$0xff]
        %v4405 = vld [vmem:[%s4402 + $0x10] sm:$0xff]
        %v4406 = vld [vmem:[%s4402 + $0x18] sm:$0xff]
        %s4407 = scalar_lea.vmem %s6, 7
        %v4408 = vld [vmem:[%s4407] sm:$0x1]
        %v4410 = vlaneseq
        %v4411 = vshrl.u32 %v4410, 7
        %v4412 = vsub.s32 0, %v4411
        %v4413 = vrot.slane %v4408, %v4412
        %4415 = vmatprep.subr.mxu0 0.0
        %4416 = vmatpush1.msra.mxu0 0.0
        %4417 = vmatprep.subr.mxu0 0.0
        %4418 = vmatpush1.msra.mxu0 0.0
        %4419 = vmatprep.subr.mxu0 0.0
        %4420 = vmatpush1.msra.mxu0 0.0
        %4421 = vmatprep.subr.mxu0 0.0
        %4422 = vmatpush1.msra.mxu0 0.0
        %4423 = vmatprep.subr.mxu0 0.0
        %4424 = vmatpush1.msra.mxu0 0.0
        %4425 = vmatprep.subr.mxu0 0.0
        %4426 = vmatpush1.msra.mxu0 0.0
        %4427 = vmatprep.subr.mxu0 0.0
        %4428 = vmatpush1.msra.mxu0 0.0
        %4429 = vmatprep.subr.mxu0 0.0
        %4430 = vmatpush1.msra.mxu0 0.0
        %4431 = vmatprep.subr.mxu0 0.0
        %4432 = vmatpush1.msra.mxu0 0.0
        %4433 = vmatprep.subr.mxu0 0.0
        %4434 = vmatpush1.msra.mxu0 0.0
        %4435 = vmatprep.subr.mxu0 0.0
        %4436 = vmatpush1.msra.mxu0 0.0
        %4437 = vmatprep.subr.mxu0 0.0
        %4438 = vmatpush1.msra.mxu0 0.0
        %4439 = vmatprep.subr.mxu0 0.0
        %4440 = vmatpush1.msra.mxu0 %v4406
        %4441 = vmatprep.subr.mxu0 0.0
        %4442 = vmatpush1.msra.mxu0 %v4405
        %4443 = vmatprep.subr.mxu0 0.0
        %4444 = vmatpush1.msra.mxu0 %v4404
        %4445 = vmatprep.subr.mxu0 0.0
        %4446 = vmatpush1.msra.mxu0 %v4403
        %4447 = vmatprep.subr.mxu0 0.0
        %4448 = vmatpush2.msra.mxu0 0.0
        %4449 = vmatprep.subr.mxu0 0.0
        %4450 = vmatpush2.msra.mxu0 0.0
        %4451 = vmatprep.subr.mxu0 0.0
        %4452 = vmatpush2.msra.mxu0 0.0
        %4453 = vmatprep.subr.mxu0 0.0
        %4454 = vmatpush2.msra.mxu0 0.0
        %4455 = vmatprep.subr.mxu0 0.0
        %4456 = vmatpush2.msra.mxu0 0.0
        %4457 = vmatprep.subr.mxu0 0.0
        %4458 = vmatpush2.msra.mxu0 0.0
        %4459 = vmatprep.subr.mxu0 0.0
        %4460 = vmatpush2.msra.mxu0 0.0
        %4461 = vmatprep.subr.mxu0 0.0
        %4462 = vmatpush2.msra.mxu0 0.0
        %4463 = vmatprep.subr.mxu0 0.0
        %4464 = vmatpush2.msra.mxu0 0.0
        %4465 = vmatprep.subr.mxu0 0.0
        %4466 = vmatpush2.msra.mxu0 0.0
        %4467 = vmatprep.subr.mxu0 0.0
        %4468 = vmatpush2.msra.mxu0 0.0
        %4469 = vmatprep.subr.mxu0 0.0
        %4470 = vmatpush2.msra.mxu0 0.0
        %4471 = vmatprep.subr.mxu0 0.0
        %4472 = vmatpush2.msra.mxu0 0.0
        %4473 = vmatprep.subr.mxu0 0.0
        %4474 = vmatpush2.msra.mxu0 0.0
        %4475 = vmatprep.subr.mxu0 0.0
        %4476 = vmatpush2.msra.mxu0 0.0
        %4477 = vmatprep.subr.mxu0 0.0
        %4478 = vmatpush2.msra.mxu0 0.0
        %4479 = vmatprep.mubr.f32.mxu0 0.0
        %4480 = vmatmul.mubr.f32.gmra.mxu0 %v2954
        %v4481 = vpop.f32.mrf.mxu0
        %v4482 = vadd.f32 %v4413, %v4481
        %v4483 = vpop.f32.mrf.mxu0
        %4484 = vdwg.mxu0
        %s4485 = scalar_lea.vmem %s7, 224
        %v4486 = vld [vmem:[%s4485] sm:$0xff]
        %v4487 = vld [vmem:[%s4485 + $0x8] sm:$0xff]
        %v4488 = vld [vmem:[%s4485 + $0x10] sm:$0xff]
        %v4489 = vld [vmem:[%s4485 + $0x18] sm:$0xff]
        %s4490 = scalar_lea.vmem %s8, 7
        %v4491 = vld [vmem:[%s4490] sm:$0x1]
        %v4493 = vlaneseq
        %v4494 = vshrl.u32 %v4493, 7
        %v4495 = vsub.s32 0, %v4494
        %v4496 = vrot.slane %v4491, %v4495
        %4498 = vmatprep.subr.mxu0 0.0
        %4499 = vmatpush1.msra.mxu0 0.0
        %4500 = vmatprep.subr.mxu0 0.0
        %4501 = vmatpush1.msra.mxu0 0.0
        %4502 = vmatprep.subr.mxu0 0.0
        %4503 = vmatpush1.msra.mxu0 0.0
        %4504 = vmatprep.subr.mxu0 0.0
        %4505 = vmatpush1.msra.mxu0 0.0
        %4506 = vmatprep.subr.mxu0 0.0
        %4507 = vmatpush1.msra.mxu0 0.0
        %4508 = vmatprep.subr.mxu0 0.0
        %4509 = vmatpush1.msra.mxu0 0.0
        %4510 = vmatprep.subr.mxu0 0.0
        %4511 = vmatpush1.msra.mxu0 0.0
        %4512 = vmatprep.subr.mxu0 0.0
        %4513 = vmatpush1.msra.mxu0 0.0
        %4514 = vmatprep.subr.mxu0 0.0
        %4515 = vmatpush1.msra.mxu0 0.0
        %4516 = vmatprep.subr.mxu0 0.0
        %4517 = vmatpush1.msra.mxu0 0.0
        %4518 = vmatprep.subr.mxu0 0.0
        %4519 = vmatpush1.msra.mxu0 0.0
        %4520 = vmatprep.subr.mxu0 0.0
        %4521 = vmatpush1.msra.mxu0 0.0
        %4522 = vmatprep.subr.mxu0 0.0
        %4523 = vmatpush1.msra.mxu0 %v4489
        %4524 = vmatprep.subr.mxu0 0.0
        %4525 = vmatpush1.msra.mxu0 %v4488
        %4526 = vmatprep.subr.mxu0 0.0
        %4527 = vmatpush1.msra.mxu0 %v4487
        %4528 = vmatprep.subr.mxu0 0.0
        %4529 = vmatpush1.msra.mxu0 %v4486
        %4530 = vmatprep.subr.mxu0 0.0
        %4531 = vmatpush2.msra.mxu0 0.0
        %4532 = vmatprep.subr.mxu0 0.0
        %4533 = vmatpush2.msra.mxu0 0.0
        %4534 = vmatprep.subr.mxu0 0.0
        %4535 = vmatpush2.msra.mxu0 0.0
        %4536 = vmatprep.subr.mxu0 0.0
        %4537 = vmatpush2.msra.mxu0 0.0
        %4538 = vmatprep.subr.mxu0 0.0
        %4539 = vmatpush2.msra.mxu0 0.0
        %4540 = vmatprep.subr.mxu0 0.0
        %4541 = vmatpush2.msra.mxu0 0.0
        %4542 = vmatprep.subr.mxu0 0.0
        %4543 = vmatpush2.msra.mxu0 0.0
        %4544 = vmatprep.subr.mxu0 0.0
        %4545 = vmatpush2.msra.mxu0 0.0
        %4546 = vmatprep.subr.mxu0 0.0
        %4547 = vmatpush2.msra.mxu0 0.0
        %4548 = vmatprep.subr.mxu0 0.0
        %4549 = vmatpush2.msra.mxu0 0.0
        %4550 = vmatprep.subr.mxu0 0.0
        %4551 = vmatpush2.msra.mxu0 0.0
        %4552 = vmatprep.subr.mxu0 0.0
        %4553 = vmatpush2.msra.mxu0 0.0
        %4554 = vmatprep.subr.mxu0 0.0
        %4555 = vmatpush2.msra.mxu0 0.0
        %4556 = vmatprep.subr.mxu0 0.0
        %4557 = vmatpush2.msra.mxu0 0.0
        %4558 = vmatprep.subr.mxu0 0.0
        %4559 = vmatpush2.msra.mxu0 0.0
        %4560 = vmatprep.subr.mxu0 0.0
        %4561 = vmatpush2.msra.mxu0 0.0
        %4562 = vmatprep.mubr.f32.mxu0 0.0
        %4563 = vmatmul.mubr.f32.gmra.mxu0 %v2954
        %v4564 = vpop.f32.mrf.mxu0
        %v4565 = vadd.f32 %v4496, %v4564
        %v4566 = vpop.f32.mrf.mxu0
        %4567 = vdwg.mxu0
        %s4568 = scalar_lea.vmem %s9, 224
        %v4569 = vld [vmem:[%s4568] sm:$0xff]
        %v4570 = vld [vmem:[%s4568 + $0x8] sm:$0xff]
        %v4571 = vld [vmem:[%s4568 + $0x10] sm:$0xff]
        %v4572 = vld [vmem:[%s4568 + $0x18] sm:$0xff]
        %s4573 = scalar_lea.vmem %s10, 7
        %v4574 = vld [vmem:[%s4573] sm:$0x1]
        %v4576 = vlaneseq
        %v4577 = vshrl.u32 %v4576, 7
        %v4578 = vsub.s32 0, %v4577
        %v4579 = vrot.slane %v4574, %v4578
        %4581 = vmatprep.subr.mxu0 0.0
        %4582 = vmatpush1.msra.mxu0 0.0
        %4583 = vmatprep.subr.mxu0 0.0
        %4584 = vmatpush1.msra.mxu0 0.0
        %4585 = vmatprep.subr.mxu0 0.0
        %4586 = vmatpush1.msra.mxu0 0.0
        %4587 = vmatprep.subr.mxu0 0.0
        %4588 = vmatpush1.msra.mxu0 0.0
        %4589 = vmatprep.subr.mxu0 0.0
        %4590 = vmatpush1.msra.mxu0 0.0
        %4591 = vmatprep.subr.mxu0 0.0
        %4592 = vmatpush1.msra.mxu0 0.0
        %4593 = vmatprep.subr.mxu0 0.0
        %4594 = vmatpush1.msra.mxu0 0.0
        %4595 = vmatprep.subr.mxu0 0.0
        %4596 = vmatpush1.msra.mxu0 0.0
        %4597 = vmatprep.subr.mxu0 0.0
        %4598 = vmatpush1.msra.mxu0 0.0
        %4599 = vmatprep.subr.mxu0 0.0
        %4600 = vmatpush1.msra.mxu0 0.0
        %4601 = vmatprep.subr.mxu0 0.0
        %4602 = vmatpush1.msra.mxu0 0.0
        %4603 = vmatprep.subr.mxu0 0.0
        %4604 = vmatpush1.msra.mxu0 0.0
        %4605 = vmatprep.subr.mxu0 0.0
        %4606 = vmatpush1.msra.mxu0 %v4572
        %4607 = vmatprep.subr.mxu0 0.0
        %4608 = vmatpush1.msra.mxu0 %v4571
        %4609 = vmatprep.subr.mxu0 0.0
        %4610 = vmatpush1.msra.mxu0 %v4570
        %4611 = vmatprep.subr.mxu0 0.0
        %4612 = vmatpush1.msra.mxu0 %v4569
        %4613 = vmatprep.subr.mxu0 0.0
        %4614 = vmatpush2.msra.mxu0 0.0
        %4615 = vmatprep.subr.mxu0 0.0
        %4616 = vmatpush2.msra.mxu0 0.0
        %4617 = vmatprep.subr.mxu0 0.0
        %4618 = vmatpush2.msra.mxu0 0.0
        %4619 = vmatprep.subr.mxu0 0.0
        %4620 = vmatpush2.msra.mxu0 0.0
        %4621 = vmatprep.subr.mxu0 0.0
        %4622 = vmatpush2.msra.mxu0 0.0
        %4623 = vmatprep.subr.mxu0 0.0
        %4624 = vmatpush2.msra.mxu0 0.0
        %4625 = vmatprep.subr.mxu0 0.0
        %4626 = vmatpush2.msra.mxu0 0.0
        %4627 = vmatprep.subr.mxu0 0.0
        %4628 = vmatpush2.msra.mxu0 0.0
        %4629 = vmatprep.subr.mxu0 0.0
        %4630 = vmatpush2.msra.mxu0 0.0
        %4631 = vmatprep.subr.mxu0 0.0
        %4632 = vmatpush2.msra.mxu0 0.0
        %4633 = vmatprep.subr.mxu0 0.0
        %4634 = vmatpush2.msra.mxu0 0.0
        %4635 = vmatprep.subr.mxu0 0.0
        %4636 = vmatpush2.msra.mxu0 0.0
        %4637 = vmatprep.subr.mxu0 0.0
        %4638 = vmatpush2.msra.mxu0 0.0
        %4639 = vmatprep.subr.mxu0 0.0
        %4640 = vmatpush2.msra.mxu0 0.0
        %4641 = vmatprep.subr.mxu0 0.0
        %4642 = vmatpush2.msra.mxu0 0.0
        %4643 = vmatprep.subr.mxu0 0.0
        %4644 = vmatpush2.msra.mxu0 0.0
        %4645 = vmatprep.mubr.f32.mxu0 0.0
        %4646 = vmatmul.mubr.f32.gmra.mxu0 %v2954
        %v4647 = vpop.f32.mrf.mxu0
        %v4648 = vadd.f32 %v4579, %v4647
        %v4649 = vpop.f32.mrf.mxu0
        %4650 = vdwg.mxu0
        %v4652 = vsel %vm984, %v4482, 0
        %v4655 = vsel %vm984, %v4565, 0
        %4657 = vmatprep.subr.mxu0 0.0
        %4658 = vmatpush1.xpose.msra.mxu0 0.0
        %4659 = vmatprep.subr.mxu0 0.0
        %4660 = vmatpush1.xpose.msra.mxu0 0.0
        %4661 = vmatprep.subr.mxu0 0.0
        %4662 = vmatpush1.xpose.msra.mxu0 0.0
        %4663 = vmatprep.subr.mxu0 0.0
        %4664 = vmatpush1.xpose.msra.mxu0 0.0
        %4665 = vmatprep.subr.mxu0 0.0
        %4666 = vmatpush1.xpose.msra.mxu0 0.0
        %4667 = vmatprep.subr.mxu0 0.0
        %4668 = vmatpush1.xpose.msra.mxu0 0.0
        %4669 = vmatprep.subr.mxu0 0.0
        %4670 = vmatpush1.xpose.msra.mxu0 0.0
        %4671 = vmatprep.subr.mxu0 0.0
        %4672 = vmatpush1.xpose.msra.mxu0 0.0
        %4673 = vmatprep.subr.mxu0 0.0
        %4674 = vmatpush1.xpose.msra.mxu0 0.0
        %4675 = vmatprep.subr.mxu0 0.0
        %4676 = vmatpush1.xpose.msra.mxu0 0.0
        %4677 = vmatprep.subr.mxu0 0.0
        %4678 = vmatpush1.xpose.msra.mxu0 0.0
        %4679 = vmatprep.subr.mxu0 0.0
        %4680 = vmatpush1.xpose.msra.mxu0 0.0
        %4681 = vmatprep.subr.mxu0 0.0
        %4682 = vmatpush1.xpose.msra.mxu0 0.0
        %4683 = vmatprep.subr.mxu0 0.0
        %4684 = vmatpush1.xpose.msra.mxu0 0.0
        %4685 = vmatprep.subr.mxu0 0.0
        %4686 = vmatpush1.xpose.msra.mxu0 0.0
        %4687 = vmatprep.subr.mxu0 0.0
        %4688 = vmatpush1.xpose.msra.mxu0 %v4655
        %4689 = vmatprep.subr.mxu0 0.0
        %4690 = vmatpush2.xpose.msra.mxu0 0.0
        %4691 = vmatprep.subr.mxu0 0.0
        %4692 = vmatpush2.xpose.msra.mxu0 0.0
        %4693 = vmatprep.subr.mxu0 0.0
        %4694 = vmatpush2.xpose.msra.mxu0 0.0
        %4695 = vmatprep.subr.mxu0 0.0
        %4696 = vmatpush2.xpose.msra.mxu0 0.0
        %4697 = vmatprep.subr.mxu0 0.0
        %4698 = vmatpush2.xpose.msra.mxu0 0.0
        %4699 = vmatprep.subr.mxu0 0.0
        %4700 = vmatpush2.xpose.msra.mxu0 0.0
        %4701 = vmatprep.subr.mxu0 0.0
        %4702 = vmatpush2.xpose.msra.mxu0 0.0
        %4703 = vmatprep.subr.mxu0 0.0
        %4704 = vmatpush2.xpose.msra.mxu0 0.0
        %4705 = vmatprep.subr.mxu0 0.0
        %4706 = vmatpush2.xpose.msra.mxu0 0.0
        %4707 = vmatprep.subr.mxu0 0.0
        %4708 = vmatpush2.xpose.msra.mxu0 0.0
        %4709 = vmatprep.subr.mxu0 0.0
        %4710 = vmatpush2.xpose.msra.mxu0 0.0
        %4711 = vmatprep.subr.mxu0 0.0
        %4712 = vmatpush2.xpose.msra.mxu0 0.0
        %4713 = vmatprep.subr.mxu0 0.0
        %4714 = vmatpush2.xpose.msra.mxu0 0.0
        %4715 = vmatprep.subr.mxu0 0.0
        %4716 = vmatpush2.xpose.msra.mxu0 0.0
        %4717 = vmatprep.subr.mxu0 0.0
        %4718 = vmatpush2.xpose.msra.mxu0 0.0
        %4719 = vmatprep.subr.mxu0 0.0
        %4720 = vmatpush2.xpose.msra.mxu0 0.0
        %4721 = vmatprep.mubr.f32.mxu0 0.0
        %4722 = vmatmul.mubr.f32.gmra.mxu0 %v4652
        %v4723 = vpop.f32.mrf.mxu0
        %v4724 = vadd.f32 0.0, %v4723
        %v4725 = vpop.f32.mrf.mxu0
        %4726 = vdwg.mxu0
        %v4727 = vmul.f32 %v4724, 0.35355338
        %v4728 = vadd.f32 %v4727, %v1066
        %v4729 = vsel %vm984, %v4728, -inf
        %4730 = vmax.xlane.f32.xlu0 %v4729
        %v4731 = vpop.xlane.xlu0 %4730
        %v4732 = vsub.f32 %v4728, %v4731
        %v4733 = vmul.f32 %v4732, 1.442695
        %v4734 = vpow.pop %v4733
        %v4735 = vsel %vm984, %v4734, 0.0
        %4736 = vadd.xlane.f32.xlu0 %v4735
        %v4737 = vpop.xlane.xlu0 %4736
        %v4738 = vrcp.pop %v4737
        %v4739 = vmul.f32 %v4734, %v4738
        %v4741 = vsel %vm984, %v4739, 0
        %4743 = vmatprep.subr.mxu0 0.0
        %4744 = vmatpush1.msra.mxu0 0.0
        %4745 = vmatprep.subr.mxu0 0.0
        %4746 = vmatpush1.msra.mxu0 0.0
        %4747 = vmatprep.subr.mxu0 0.0
        %4748 = vmatpush1.msra.mxu0 0.0
        %4749 = vmatprep.subr.mxu0 0.0
        %4750 = vmatpush1.msra.mxu0 0.0
        %4751 = vmatprep.subr.mxu0 0.0
        %4752 = vmatpush1.msra.mxu0 0.0
        %4753 = vmatprep.subr.mxu0 0.0
        %4754 = vmatpush1.msra.mxu0 0.0
        %4755 = vmatprep.subr.mxu0 0.0
        %4756 = vmatpush1.msra.mxu0 0.0
        %4757 = vmatprep.subr.mxu0 0.0
        %4758 = vmatpush1.msra.mxu0 0.0
        %4759 = vmatprep.subr.mxu0 0.0
        %4760 = vmatpush1.msra.mxu0 0.0
        %4761 = vmatprep.subr.mxu0 0.0
        %4762 = vmatpush1.msra.mxu0 0.0
        %4763 = vmatprep.subr.mxu0 0.0
        %4764 = vmatpush1.msra.mxu0 0.0
        %4765 = vmatprep.subr.mxu0 0.0
        %4766 = vmatpush1.msra.mxu0 0.0
        %4767 = vmatprep.subr.mxu0 0.0
        %4768 = vmatpush1.msra.mxu0 0.0
        %4769 = vmatprep.subr.mxu0 0.0
        %4770 = vmatpush1.msra.mxu0 0.0
        %4771 = vmatprep.subr.mxu0 0.0
        %4772 = vmatpush1.msra.mxu0 0.0
        %4773 = vmatprep.subr.mxu0 0.0
        %4774 = vmatpush1.msra.mxu0 %v4648
        %4775 = vmatprep.subr.mxu0 0.0
        %4776 = vmatpush2.msra.mxu0 0.0
        %4777 = vmatprep.subr.mxu0 0.0
        %4778 = vmatpush2.msra.mxu0 0.0
        %4779 = vmatprep.subr.mxu0 0.0
        %4780 = vmatpush2.msra.mxu0 0.0
        %4781 = vmatprep.subr.mxu0 0.0
        %4782 = vmatpush2.msra.mxu0 0.0
        %4783 = vmatprep.subr.mxu0 0.0
        %4784 = vmatpush2.msra.mxu0 0.0
        %4785 = vmatprep.subr.mxu0 0.0
        %4786 = vmatpush2.msra.mxu0 0.0
        %4787 = vmatprep.subr.mxu0 0.0
        %4788 = vmatpush2.msra.mxu0 0.0
        %4789 = vmatprep.subr.mxu0 0.0
        %4790 = vmatpush2.msra.mxu0 0.0
        %4791 = vmatprep.subr.mxu0 0.0
        %4792 = vmatpush2.msra.mxu0 0.0
        %4793 = vmatprep.subr.mxu0 0.0
        %4794 = vmatpush2.msra.mxu0 0.0
        %4795 = vmatprep.subr.mxu0 0.0
        %4796 = vmatpush2.msra.mxu0 0.0
        %4797 = vmatprep.subr.mxu0 0.0
        %4798 = vmatpush2.msra.mxu0 0.0
        %4799 = vmatprep.subr.mxu0 0.0
        %4800 = vmatpush2.msra.mxu0 0.0
        %4801 = vmatprep.subr.mxu0 0.0
        %4802 = vmatpush2.msra.mxu0 0.0
        %4803 = vmatprep.subr.mxu0 0.0
        %4804 = vmatpush2.msra.mxu0 0.0
        %4805 = vmatprep.subr.mxu0 0.0
        %4806 = vmatpush2.msra.mxu0 0.0
        %4807 = vmatprep.mubr.f32.mxu0 0.0
        %4808 = vmatmul.mubr.f32.gmra.mxu0 %v4741
        %v4809 = vpop.f32.mrf.mxu0
        %v4810 = vadd.f32 0.0, %v4809
        %v4811 = vpop.f32.mrf.mxu0
        %4812 = vdwg.mxu0
        %s4813 = scalar_lea.vmem %s11, 56
        %v4814 = vld [vmem:[%s4813] sm:$0xff]
        %v4816 = vsel %vm984, %v4810, 0
        %4818 = vmatprep.subr.mxu0 0.0
        %4819 = vmatpush1.msra.mxu0 0.0
        %4820 = vmatprep.subr.mxu0 0.0
        %4821 = vmatpush1.msra.mxu0 0.0
        %4822 = vmatprep.subr.mxu0 0.0
        %4823 = vmatpush1.msra.mxu0 0.0
        %4824 = vmatprep.subr.mxu0 0.0
        %4825 = vmatpush1.msra.mxu0 0.0
        %4826 = vmatprep.subr.mxu0 0.0
        %4827 = vmatpush1.msra.mxu0 0.0
        %4828 = vmatprep.subr.mxu0 0.0
        %4829 = vmatpush1.msra.mxu0 0.0
        %4830 = vmatprep.subr.mxu0 0.0
        %4831 = vmatpush1.msra.mxu0 0.0
        %4832 = vmatprep.subr.mxu0 0.0
        %4833 = vmatpush1.msra.mxu0 0.0
        %4834 = vmatprep.subr.mxu0 0.0
        %4835 = vmatpush1.msra.mxu0 0.0
        %4836 = vmatprep.subr.mxu0 0.0
        %4837 = vmatpush1.msra.mxu0 0.0
        %4838 = vmatprep.subr.mxu0 0.0
        %4839 = vmatpush1.msra.mxu0 0.0
        %4840 = vmatprep.subr.mxu0 0.0
        %4841 = vmatpush1.msra.mxu0 0.0
        %4842 = vmatprep.subr.mxu0 0.0
        %4843 = vmatpush1.msra.mxu0 0.0
        %4844 = vmatprep.subr.mxu0 0.0
        %4845 = vmatpush1.msra.mxu0 0.0
        %4846 = vmatprep.subr.mxu0 0.0
        %4847 = vmatpush1.msra.mxu0 0.0
        %4848 = vmatprep.subr.mxu0 0.0
        %4849 = vmatpush1.msra.mxu0 %v4814
        %4850 = vmatprep.subr.mxu0 0.0
        %4851 = vmatpush2.msra.mxu0 0.0
        %4852 = vmatprep.subr.mxu0 0.0
        %4853 = vmatpush2.msra.mxu0 0.0
        %4854 = vmatprep.subr.mxu0 0.0
        %4855 = vmatpush2.msra.mxu0 0.0
        %4856 = vmatprep.subr.mxu0 0.0
        %4857 = vmatpush2.msra.mxu0 0.0
        %4858 = vmatprep.subr.mxu0 0.0
        %4859 = vmatpush2.msra.mxu0 0.0
        %4860 = vmatprep.subr.mxu0 0.0
        %4861 = vmatpush2.msra.mxu0 0.0
        %4862 = vmatprep.subr.mxu0 0.0
        %4863 = vmatpush2.msra.mxu0 0.0
        %4864 = vmatprep.subr.mxu0 0.0
        %4865 = vmatpush2.msra.mxu0 0.0
        %4866 = vmatprep.subr.mxu0 0.0
        %4867 = vmatpush2.msra.mxu0 0.0
        %4868 = vmatprep.subr.mxu0 0.0
        %4869 = vmatpush2.msra.mxu0 0.0
        %4870 = vmatprep.subr.mxu0 0.0
        %4871 = vmatpush2.msra.mxu0 0.0
        %4872 = vmatprep.subr.mxu0 0.0
        %4873 = vmatpush2.msra.mxu0 0.0
        %4874 = vmatprep.subr.mxu0 0.0
        %4875 = vmatpush2.msra.mxu0 0.0
        %4876 = vmatprep.subr.mxu0 0.0
        %4877 = vmatpush2.msra.mxu0 0.0
        %4878 = vmatprep.subr.mxu0 0.0
        %4879 = vmatpush2.msra.mxu0 0.0
        %4880 = vmatprep.subr.mxu0 0.0
        %4881 = vmatpush2.msra.mxu0 0.0
        %4882 = vmatprep.mubr.f32.mxu0 0.0
        %4883 = vmatmul.mubr.f32.gmra.mxu0 %v4816
        %v4884 = vpop.f32.mrf.mxu0
        %v4885 = vadd.f32 0.0, %v4884
        %v4886 = vpop.f32.mrf.mxu0
        %4887 = vdwg.mxu0
        %v4888 = vadd.f32 %v4401, %v4885
        %s4889 = scalar_lea.vmem %s12, 1
        %v4890 = vld [vmem:[%s4889] sm:$0x1]
        %v4892 = vlaneseq
        %v4893 = vshrl.u32 %v4892, 7
        %v4894 = vsub.s32 0, %v4893
        %v4895 = vrot.slane %v4890, %v4894
        %v4897 = vadd.f32 %v4888, %v4895
        %v4898 = vadd.f32 %v4897, %v2908
        %s4899 = scalar_lea.vmem %s13, 1
        %v4900 = vld [vmem:[%s4899] sm:$0x1]
        %s4901 = scalar_lea.vmem %s14, 1
        %v4902 = vld [vmem:[%s4901] sm:$0x1]
        %v4903 = vsel %vm748, %v4898, 0.0
        %4904 = vadd.xlane.f32.xlu0 %v4903
        %v4905 = vpop.xlane.xlu0 %4904
        %v4906 = vmul.f32 %v4905, %v2701
        %v4907 = vsub.f32 %v4898, %v4906
        %v4908 = vmul.f32 %v4907, %v4907
        %v4909 = vsel %vm748, %v4908, 0.0
        %4910 = vadd.xlane.f32.xlu0 %v4909
        %v4911 = vpop.xlane.xlu0 %4910
        %v4912 = vmul.f32 %v4911, %v2701
        %v4913 = vadd.f32 %v4912, 1e-06
        %v4914 = vrsqrt.pop %v4913
        %v4915 = vmul.f32 %v4907, %v4914
        %v4917 = vlaneseq
        %v4918 = vshrl.u32 %v4917, 7
        %v4919 = vsub.s32 0, %v4918
        %v4920 = vrot.slane %v4900, %v4919
        %v4922 = vmul.f32 %v4915, %v4920
        %v4924 = vlaneseq
        %v4925 = vshrl.u32 %v4924, 7
        %v4926 = vsub.s32 0, %v4925
        %v4927 = vrot.slane %v4902, %v4926
        %v4929 = vadd.f32 %v4922, %v4927
        %s4930 = scalar_lea.vmem %s15, 32
        %v4931 = vld [vmem:[%s4930] sm:$0xff]
        %v4932 = vld [vmem:[%s4930 + $0x8] sm:$0xff]
        %v4933 = vld [vmem:[%s4930 + $0x10] sm:$0xff]
        %v4934 = vld [vmem:[%s4930 + $0x18] sm:$0xff]
        %s4935 = scalar_lea.vmem %s16, 1
        %v4936 = vld [vmem:[%s4935] sm:$0x1]
        %v4938 = vlaneseq
        %v4939 = vshrl.u32 %v4938, 7
        %v4940 = vsub.s32 0, %v4939
        %v4941 = vrot.slane %v4936, %v4940
        %v4944 = vsel %vm748, %v4929, 0
        %4946 = vmatprep.subr.mxu0 0.0
        %4947 = vmatpush1.msra.mxu0 0.0
        %4948 = vmatprep.subr.mxu0 0.0
        %4949 = vmatpush1.msra.mxu0 0.0
        %4950 = vmatprep.subr.mxu0 0.0
        %4951 = vmatpush1.msra.mxu0 0.0
        %4952 = vmatprep.subr.mxu0 0.0
        %4953 = vmatpush1.msra.mxu0 0.0
        %4954 = vmatprep.subr.mxu0 0.0
        %4955 = vmatpush1.msra.mxu0 0.0
        %4956 = vmatprep.subr.mxu0 0.0
        %4957 = vmatpush1.msra.mxu0 0.0
        %4958 = vmatprep.subr.mxu0 0.0
        %4959 = vmatpush1.msra.mxu0 0.0
        %4960 = vmatprep.subr.mxu0 0.0
        %4961 = vmatpush1.msra.mxu0 0.0
        %4962 = vmatprep.subr.mxu0 0.0
        %4963 = vmatpush1.msra.mxu0 0.0
        %4964 = vmatprep.subr.mxu0 0.0
        %4965 = vmatpush1.msra.mxu0 0.0
        %4966 = vmatprep.subr.mxu0 0.0
        %4967 = vmatpush1.msra.mxu0 0.0
        %4968 = vmatprep.subr.mxu0 0.0
        %4969 = vmatpush1.msra.mxu0 0.0
        %4970 = vmatprep.subr.mxu0 0.0
        %4971 = vmatpush1.msra.mxu0 %v4934
        %4972 = vmatprep.subr.mxu0 0.0
        %4973 = vmatpush1.msra.mxu0 %v4933
        %4974 = vmatprep.subr.mxu0 0.0
        %4975 = vmatpush1.msra.mxu0 %v4932
        %4976 = vmatprep.subr.mxu0 0.0
        %4977 = vmatpush1.msra.mxu0 %v4931
        %4978 = vmatprep.subr.mxu0 0.0
        %4979 = vmatpush2.msra.mxu0 0.0
        %4980 = vmatprep.subr.mxu0 0.0
        %4981 = vmatpush2.msra.mxu0 0.0
        %4982 = vmatprep.subr.mxu0 0.0
        %4983 = vmatpush2.msra.mxu0 0.0
        %4984 = vmatprep.subr.mxu0 0.0
        %4985 = vmatpush2.msra.mxu0 0.0
        %4986 = vmatprep.subr.mxu0 0.0
        %4987 = vmatpush2.msra.mxu0 0.0
        %4988 = vmatprep.subr.mxu0 0.0
        %4989 = vmatpush2.msra.mxu0 0.0
        %4990 = vmatprep.subr.mxu0 0.0
        %4991 = vmatpush2.msra.mxu0 0.0
        %4992 = vmatprep.subr.mxu0 0.0
        %4993 = vmatpush2.msra.mxu0 0.0
        %4994 = vmatprep.subr.mxu0 0.0
        %4995 = vmatpush2.msra.mxu0 0.0
        %4996 = vmatprep.subr.mxu0 0.0
        %4997 = vmatpush2.msra.mxu0 0.0
        %4998 = vmatprep.subr.mxu0 0.0
        %4999 = vmatpush2.msra.mxu0 0.0
        %5000 = vmatprep.subr.mxu0 0.0
        %5001 = vmatpush2.msra.mxu0 0.0
        %5002 = vmatprep.subr.mxu0 0.0
        %5003 = vmatpush2.msra.mxu0 0.0
        %5004 = vmatprep.subr.mxu0 0.0
        %5005 = vmatpush2.msra.mxu0 0.0
        %5006 = vmatprep.subr.mxu0 0.0
        %5007 = vmatpush2.msra.mxu0 0.0
        %5008 = vmatprep.subr.mxu0 0.0
        %5009 = vmatpush2.msra.mxu0 0.0
        %5010 = vmatprep.mubr.f32.mxu0 0.0
        %5011 = vmatmul.mubr.f32.gmra.mxu0 %v4944
        %v5012 = vpop.f32.mrf.mxu0
        %v5013 = vadd.f32 %v4941, %v5012
        %v5014 = vpop.f32.mrf.mxu0
        %5015 = vdwg.mxu0
        %v5016 = vmul.f32 %v5013, 0.5
        %v5017 = vmul.f32 %v5013, 0.044715
        %v5018 = vmul.f32 %v5017, %v5013
        %v5019 = vmul.f32 %v5018, %v5013
        %v5020 = vadd.f32 %v5013, %v5019
        %v5021 = vmul.f32 %v5020, 0.7978846
        %v5022 = vtanh.pop %v5021
        %v5023 = vadd.f32 %v5022, 1.0
        %v5024 = vmul.f32 %v5016, %v5023
        %s5025 = scalar_lea.vmem %s17, 64
        %v5026 = vld [vmem:[%s5025] sm:$0xff]
        %v5027 = vld [vmem:[%s5025 + $0x8] sm:$0xff]
        %v5028 = vld [vmem:[%s5025 + $0x10] sm:$0xff]
        %v5029 = vld [vmem:[%s5025 + $0x18] sm:$0xff]
        %v5030 = vld [vmem:[%s5025 + $0x20] sm:$0xff]
        %v5031 = vld [vmem:[%s5025 + $0x28] sm:$0xff]
        %v5032 = vld [vmem:[%s5025 + $0x30] sm:$0xff]
        %v5033 = vld [vmem:[%s5025 + $0x38] sm:$0xff]
        %s5034 = scalar_lea.vmem %s18, 1
        %v5035 = vld [vmem:[%s5034] sm:$0x1]
        %v5037 = vlaneseq
        %v5038 = vshrl.u32 %v5037, 7
        %v5039 = vsub.s32 0, %v5038
        %v5040 = vrot.slane %v5035, %v5039
        %v5043 = vsel %vm2834, %v5024, 0
        %5045 = vmatprep.subr.mxu0 0.0
        %5046 = vmatpush1.msra.mxu0 0.0
        %5047 = vmatprep.subr.mxu0 0.0
        %5048 = vmatpush1.msra.mxu0 0.0
        %5049 = vmatprep.subr.mxu0 0.0
        %5050 = vmatpush1.msra.mxu0 0.0
        %5051 = vmatprep.subr.mxu0 0.0
        %5052 = vmatpush1.msra.mxu0 0.0
        %5053 = vmatprep.subr.mxu0 0.0
        %5054 = vmatpush1.msra.mxu0 0.0
        %5055 = vmatprep.subr.mxu0 0.0
        %5056 = vmatpush1.msra.mxu0 0.0
        %5057 = vmatprep.subr.mxu0 0.0
        %5058 = vmatpush1.msra.mxu0 0.0
        %5059 = vmatprep.subr.mxu0 0.0
        %5060 = vmatpush1.msra.mxu0 0.0
        %5061 = vmatprep.subr.mxu0 0.0
        %5062 = vmatpush1.msra.mxu0 %v5033
        %5063 = vmatprep.subr.mxu0 0.0
        %5064 = vmatpush1.msra.mxu0 %v5032
        %5065 = vmatprep.subr.mxu0 0.0
        %5066 = vmatpush1.msra.mxu0 %v5031
        %5067 = vmatprep.subr.mxu0 0.0
        %5068 = vmatpush1.msra.mxu0 %v5030
        %5069 = vmatprep.subr.mxu0 0.0
        %5070 = vmatpush1.msra.mxu0 %v5029
        %5071 = vmatprep.subr.mxu0 0.0
        %5072 = vmatpush1.msra.mxu0 %v5028
        %5073 = vmatprep.subr.mxu0 0.0
        %5074 = vmatpush1.msra.mxu0 %v5027
        %5075 = vmatprep.subr.mxu0 0.0
        %5076 = vmatpush1.msra.mxu0 %v5026
        %5077 = vmatprep.subr.mxu0 0.0
        %5078 = vmatpush2.msra.mxu0 0.0
        %5079 = vmatprep.subr.mxu0 0.0
        %5080 = vmatpush2.msra.mxu0 0.0
        %5081 = vmatprep.subr.mxu0 0.0
        %5082 = vmatpush2.msra.mxu0 0.0
        %5083 = vmatprep.subr.mxu0 0.0
        %5084 = vmatpush2.msra.mxu0 0.0
        %5085 = vmatprep.subr.mxu0 0.0
        %5086 = vmatpush2.msra.mxu0 0.0
        %5087 = vmatprep.subr.mxu0 0.0
        %5088 = vmatpush2.msra.mxu0 0.0
        %5089 = vmatprep.subr.mxu0 0.0
        %5090 = vmatpush2.msra.mxu0 0.0
        %5091 = vmatprep.subr.mxu0 0.0
        %5092 = vmatpush2.msra.mxu0 0.0
        %5093 = vmatprep.subr.mxu0 0.0
        %5094 = vmatpush2.msra.mxu0 0.0
        %5095 = vmatprep.subr.mxu0 0.0
        %5096 = vmatpush2.msra.mxu0 0.0
        %5097 = vmatprep.subr.mxu0 0.0
        %5098 = vmatpush2.msra.mxu0 0.0
        %5099 = vmatprep.subr.mxu0 0.0
        %5100 = vmatpush2.msra.mxu0 0.0
        %5101 = vmatprep.subr.mxu0 0.0
        %5102 = vmatpush2.msra.mxu0 0.0
        %5103 = vmatprep.subr.mxu0 0.0
        %5104 = vmatpush2.msra.mxu0 0.0
        %5105 = vmatprep.subr.mxu0 0.0
        %5106 = vmatpush2.msra.mxu0 0.0
        %5107 = vmatprep.subr.mxu0 0.0
        %5108 = vmatpush2.msra.mxu0 0.0
        %5109 = vmatprep.mubr.f32.mxu0 0.0
        %5110 = vmatmul.mubr.f32.gmra.mxu0 %v5043
        %v5111 = vpop.f32.mrf.mxu0
        %v5112 = vadd.f32 %v5040, %v5111
        %v5113 = vpop.f32.mrf.mxu0
        %5114 = vdwg.mxu0
        %v5115 = vadd.f32 %v5112, %v4898
        %v5116 = vld [vmem:[%s19] sm:$0x1]
        %v5117 = vld [vmem:[%s20] sm:$0x1]
        %v5118 = vsel %vm748, %v5115, 0.0
        %5119 = vadd.xlane.f32.xlu0 %v5118
        %v5120 = vpop.xlane.xlu0 %5119
        %v5121 = vmul.f32 %v5120, %v2701
        %v5122 = vsub.f32 %v5115, %v5121
        %v5123 = vmul.f32 %v5122, %v5122
        %v5124 = vsel %vm748, %v5123, 0.0
        %5125 = vadd.xlane.f32.xlu0 %v5124
        %v5126 = vpop.xlane.xlu0 %5125
        %v5127 = vmul.f32 %v5126, %v2701
        %v5128 = vadd.f32 %v5127, 1e-06
        %v5129 = vrsqrt.pop %v5128
        %v5130 = vmul.f32 %v5122, %v5129
        %v5132 = vlaneseq
        %v5133 = vshrl.u32 %v5132, 7
        %v5134 = vsub.s32 0, %v5133
        %v5135 = vrot.slane %v5116, %v5134
        %v5137 = vmul.f32 %v5130, %v5135
        %v5139 = vlaneseq
        %v5140 = vshrl.u32 %v5139, 7
        %v5141 = vsub.s32 0, %v5140
        %v5142 = vrot.slane %v5117, %v5141
        %v5144 = vadd.f32 %v5137, %v5142
        %v5145 = vld [vmem:[%s21] sm:$0x1]
        %v5146 = vld [vmem:[#allocation2] sm:$0x1]
        %5148 = vset.pattern.permute.xlu0 0
        %5149 = vperm.xlu0 %5148, %v5146
        %v5150 = vpop.permute.xlu0 %5149
        %v5152 = vlaneseq
        %v5153 = vshrl.u32 %v5152, 7
        %v5154 = vsub.s32 0, %v5153
        %v5155 = vrot.slane %v5150, %v5154
        %v5157 = vsel %vm748, %v5145, 0
        %v5160 = vsel %vm748, %v5144, 0
        %5162 = vmatprep.subr.mxu0 0.0
        %5163 = vmatpush1.xpose.msra.mxu0 0.0
        %5164 = vmatprep.subr.mxu0 0.0
        %5165 = vmatpush1.xpose.msra.mxu0 0.0
        %5166 = vmatprep.subr.mxu0 0.0
        %5167 = vmatpush1.xpose.msra.mxu0 0.0
        %5168 = vmatprep.subr.mxu0 0.0
        %5169 = vmatpush1.xpose.msra.mxu0 0.0
        %5170 = vmatprep.subr.mxu0 0.0
        %5171 = vmatpush1.xpose.msra.mxu0 0.0
        %5172 = vmatprep.subr.mxu0 0.0
        %5173 = vmatpush1.xpose.msra.mxu0 0.0
        %5174 = vmatprep.subr.mxu0 0.0
        %5175 = vmatpush1.xpose.msra.mxu0 0.0
        %5176 = vmatprep.subr.mxu0 0.0
        %5177 = vmatpush1.xpose.msra.mxu0 0.0
        %5178 = vmatprep.subr.mxu0 0.0
        %5179 = vmatpush1.xpose.msra.mxu0 0.0
        %5180 = vmatprep.subr.mxu0 0.0
        %5181 = vmatpush1.xpose.msra.mxu0 0.0
        %5182 = vmatprep.subr.mxu0 0.0
        %5183 = vmatpush1.xpose.msra.mxu0 0.0
        %5184 = vmatprep.subr.mxu0 0.0
        %5185 = vmatpush1.xpose.msra.mxu0 0.0
        %5186 = vmatprep.subr.mxu0 0.0
        %5187 = vmatpush1.xpose.msra.mxu0 0.0
        %5188 = vmatprep.subr.mxu0 0.0
        %5189 = vmatpush1.xpose.msra.mxu0 0.0
        %5190 = vmatprep.subr.mxu0 0.0
        %5191 = vmatpush1.xpose.msra.mxu0 0.0
        %5192 = vmatprep.subr.mxu0 0.0
        %5193 = vmatpush1.xpose.msra.mxu0 %v5160
        %5194 = vmatprep.subr.mxu0 0.0
        %5195 = vmatpush2.xpose.msra.mxu0 0.0
        %5196 = vmatprep.subr.mxu0 0.0
        %5197 = vmatpush2.xpose.msra.mxu0 0.0
        %5198 = vmatprep.subr.mxu0 0.0
        %5199 = vmatpush2.xpose.msra.mxu0 0.0
        %5200 = vmatprep.subr.mxu0 0.0
        %5201 = vmatpush2.xpose.msra.mxu0 0.0
        %5202 = vmatprep.subr.mxu0 0.0
        %5203 = vmatpush2.xpose.msra.mxu0 0.0
        %5204 = vmatprep.subr.mxu0 0.0
        %5205 = vmatpush2.xpose.msra.mxu0 0.0
        %5206 = vmatprep.subr.mxu0 0.0
        %5207 = vmatpush2.xpose.msra.mxu0 0.0
        %5208 = vmatprep.subr.mxu0 0.0
        %5209 = vmatpush2.xpose.msra.mxu0 0.0
        %5210 = vmatprep.subr.mxu0 0.0
        %5211 = vmatpush2.xpose.msra.mxu0 0.0
        %5212 = vmatprep.subr.mxu0 0.0
        %5213 = vmatpush2.xpose.msra.mxu0 0.0
        %5214 = vmatprep.subr.mxu0 0.0
        %5215 = vmatpush2.xpose.msra.mxu0 0.0
        %5216 = vmatprep.subr.mxu0 0.0
        %5217 = vmatpush2.xpose.msra.mxu0 0.0
        %5218 = vmatprep.subr.mxu0 0.0
        %5219 = vmatpush2.xpose.msra.mxu0 0.0
        %5220 = vmatprep.subr.mxu0 0.0
        %5221 = vmatpush2.xpose.msra.mxu0 0.0
        %5222 = vmatprep.subr.mxu0 0.0
        %5223 = vmatpush2.xpose.msra.mxu0 0.0
        %5224 = vmatprep.subr.mxu0 0.0
        %5225 = vmatpush2.xpose.msra.mxu0 0.0
        %5226 = vmatprep.mubr.f32.mxu0 0.0
        %5227 = vmatmul.mubr.f32.gmra.mxu0 %v5157
        %v5228 = vpop.f32.mrf.mxu0
        %v5229 = vadd.f32 %v5155, %v5228
        %v5230 = vpop.f32.mrf.mxu0
        %5231 = vdwg.mxu0
        %v5232 = vxor.u32 %v5229, 2147483648
        %v5233 = vmul.f32 %v5232, 1.442695
        %v5234 = vpow.pop %v5233
        %v5235 = vadd.f32 %v5234, 1.0
        %v5236 = vrcp.pop %v5235
        %v5237 = vmul.f32 1.0, %v5236
        %v5238 = vld [vmem:[%s734] sm:$0x1]
        %v5239 = vmul.f32 %v5237, %v5238
        %vm5240 = vcmask 57344
        %5241 = vst.msk [vmem:[%s724] sm:$0x1] %vm5240, %v5239
        %s5242 = sand.u32 %s545, 1
        %s5243 = scalar_lea.sflag [#allocation4], %s5242
        %s5244 = sand.u32 %s545, 1
        %s5245 = scalar_lea.vmem [#allocation3], %s5244
        // Predicated region
        $region113: #{long_ext_transformer_encoder.1} parent=111 // pred_check
          %p5246 = pneg %p555
        $region114: #{long_ext_transformer_encoder.1} parent=111 // pred_check_branch
          %5248 = sbr.rel (%p5246) target = $region116
        $region115: #{long_ext_transformer_encoder.1} parent=111 // pred_region
          %s5250 = ssub.s32 16, 16
          %5251 = vsyncadd %s5243, %s5250
          %s5252 = smul.addr %s39, 16
          %s5253 = scalar_lea.hbm %s23, %s5252
          %s5255 = sshll.u32 %s5245, 4
          %s5256 = int_to_ptr.vmem [resolvable:$true] %s5255
          %5258 = dma.vmem_to_hbm [thread:$0]  %s5256, 16, %s5253, %s5243
        $region116: #{long_ext_transformer_encoder.1} parent=111 // pred_fallthru
          _
      $region112: #{long_ext_transformer_encoder.1} parent=5 // pred_fallthru
        _
      %p5259 = scmp.le.s32.totalorder 2, %s34
      // Predicated region
      $region117: #{long_ext_transformer_encoder.1} parent=5 // pred_check
        %p5260 = pneg %p5259
      $region118: #{long_ext_transformer_encoder.1} parent=5 // pred_check_branch
        %5262 = sbr.rel (%p5260) target = $region120
      $region119: #{long_ext_transformer_encoder.1} parent=5 // pred_region
        %s5263 = ssub.s32 %s34, 2
        // Predicated region
        $region121: #{long_ext_transformer_encoder.1} parent=119 // pred_check
          %p5264 = pneg %p561
        $region122: #{long_ext_transformer_encoder.1} parent=119 // pred_check_branch
          %5266 = sbr.rel (%p5264) target = $region124
        $region123: #{long_ext_transformer_encoder.1} parent=119 // pred_region
          %s5267 = sand.u32 %s546, 1
          %s5268 = scalar_lea.sflag [#allocation4], %s5267
          %s5269 = sand.u32 %s546, 1
          %s5270 = scalar_lea.vmem [#allocation3], %s5269
          %5271 = dma.done %s5268, 16
        $region124: #{long_ext_transformer_encoder.1} parent=119 // pred_fallthru
          _
      $region120: #{long_ext_transformer_encoder.1} parent=5 // pred_fallthru
        _
    $region6: #{long_ext_transformer_encoder.1} parent=1 // loop_footer
      %s38 = sadd.s32 1, %s34
    $region7: #{long_ext_transformer_encoder.1} parent=1 // loop_footer_branch
      %33 = sbr.rel target = $region3
    $region8: #{long_ext_transformer_encoder.1} parent=1 // loop_exit
      _
    %5272 = vsyncpa [#allocation4], 1
    %s5273 = scalar_lea.sflag [#allocation4], 1
    %5274 = vsyncpa %s5273, 1

</llo_original>
